<compile_context>
chip_gen: v5e
topology: v5e:2x2
jax: 0.10.0
libtpu: 0.0.40
codegen_flags: <defaults>
</compile_context>

<pallas_src>
import functools

import numpy as np
import jax
import jax.numpy as jnp
from jax.experimental import pallas as pl
from jax.experimental.pallas import tpu as pltpu


def _round_up(x, m):
    return ((x + m - 1) // m) * m


# --------------------------------- kernel ----------------------------------------------
def tensorf_kernel(ind_ref, big_ref, fvt_ref, out_ref, *,
                   X, Y, Z, Rxy, R, nxy, nxy_p, nz, nz_p, VR, single_channel):
    tn = ind_ref.shape[1]
    ind = ind_ref[...]                                  # (3, tn) f32, coords in [-1, 1]

    def weights_1d(c, size):
        # torch.grid_sample (bilinear, border, align_corners=True) weights along one axis.
        # c: (1, tn).  Returns (size, tn) f32 with <= 2 nonzeros per column.
        p = jnp.clip((c + 1.0) * 0.5 * float(size - 1), 0.0, float(size - 1))
        i0 = jnp.floor(p)
        frac = p - i0
        i0i = i0.astype(jnp.int32)
        i1i = jnp.minimum(i0i + 1, size - 1)
        row = jax.lax.broadcasted_iota(jnp.int32, (size, tn), 0)
        return (jnp.where(row == i0i, 1.0 - frac, 0.0)
                + jnp.where(row == i1i, frac, 0.0))

    # f32 elementwise (v5e-safe); bf16 only as MXU operand.
    wx = weights_1d(ind[0:1, :], X)                     # (X, tn)
    wy = weights_1d(ind[1:2, :], Y)                     # (Y, tn)
    wz = weights_1d(ind[2:3, :], Z)                     # (Z, tn)
    w_all = jnp.concatenate([wx, wy, wz], axis=0).astype(jnp.bfloat16)   # (X+Y+Z, tn)

    # One fused MXU push: plane partial-interps (first spatial axis) + vector features.
    big = jnp.dot(big_ref[...], w_all,
                  preferred_element_type=jnp.float32)   # (Mrows, tn) f32

    # Group views of the plane partial-interps:
    #   xy rows: (Rxy, Y, tn) -> weight with wy, sum over Y
    #   xz|yz rows: (2R, Z, tn) -> weight with wz, sum over Z
    plane_xy = big[0:nxy, :].reshape(Rxy, Y, tn)
    plane_z = big[nxy_p:nxy_p + nz, :].reshape(2 * R, Z, tn)
    vfeat = big[nxy_p + nz_p:nxy_p + nz_p + VR, :]      # [z_feat | y_feat | x_feat]

    feat_xy = jnp.sum(plane_xy * wy[None, :, :], axis=1)        # (Rxy, tn)
    feat_z = jnp.sum(plane_z * wz[None, :, :], axis=1)          # (2R, tn)
    featparts = jnp.concatenate([feat_xy, feat_z], axis=0)      # (VR, tn) [xy|xz|yz]
    feat = featparts * vfeat                                    # (VR, tn) f32

    if single_channel:
        # compute_tensorf_val: plain sum over all components.
        out = jnp.sum(feat, axis=0, keepdims=True)              # (1, tn)
    else:
        # compute_tensorf_feat: f_vec projection.  Tiny K -> keep f32 for precision.
        out = jnp.dot(fvt_ref[...], feat,
                      preferred_element_type=jnp.float32)       # (C, tn)
    out_ref[...] = out.astype(out_ref.dtype)


# --------------------------- host-side constant assembly -------------------------------
def prepare_tensorf_constants(params, channels):
    """Build the fused parameter matrix once per parameter update (hoisted out of forward)."""
    xy_plane = params["xy_plane"]  # (1, Rxy, X, Y)
    xz_plane = params["xz_plane"]  # (1, R,   X, Z)
    yz_plane = params["yz_plane"]  # (1, R,   Y, Z)
    x_vec = params["x_vec"]        # (1, R,   X, 1)
    y_vec = params["y_vec"]        # (1, R,   Y, 1)
    z_vec = params["z_vec"]        # (1, Rxy, Z, 1)

    Rxy, X, Y = xy_plane.shape[1:]
    R = xz_plane.shape[1]
    Z = xz_plane.shape[3]
    Kw = X + Y + Z

    nxy = Rxy * Y                      # xy plane rows
    nz = 2 * R * Z                     # xz|yz plane rows
    nxy_p = _round_up(nxy, 8)          # pad so each block starts sublane-aligned
    nz_p = _round_up(nz, 8)
    VR = Rxy + 2 * R                   # feature components [xy | xz | yz]

    f32 = jnp.float32
    zeros = lambda r, c: jnp.zeros((r, c), f32)

    # Plane rows: row r*Y+j (xy) / r*Z+k (xz, yz) holds the 1D slice that gets interpolated
    # by the FIRST coordinate's weights (x for xy/xz, y for yz).
    xyB = xy_plane[0].transpose(0, 2, 1).reshape(nxy, X)
    xzB = xz_plane[0].transpose(0, 2, 1).reshape(R * Z, X)
    yzB = yz_plane[0].transpose(0, 2, 1).reshape(R * Z, Y)
    xy_rows = jnp.concatenate([xyB, zeros(nxy, Y + Z)], axis=1)               # (nxy, Kw)
    z_rows = jnp.concatenate([
        jnp.concatenate([xzB, zeros(R * Z, Y + Z)], axis=1),
        jnp.concatenate([zeros(R * Z, X), yzB, zeros(R * Z, Z)], axis=1),
    ], axis=0)                                                                # (nz, Kw)

    # Vector rows in z|y|x order so they multiply [xy|xz|yz] features directly.
    zvB = z_vec[0, :, :, 0]    # (Rxy, Z)
    yvB = y_vec[0, :, :, 0]    # (R, Y)
    xvB = x_vec[0, :, :, 0]    # (R, X)
    vec_rows = jnp.concatenate([
        jnp.concatenate([zeros(Rxy, X + Y), zvB], axis=1),
        jnp.concatenate([zeros(R, X), yvB, zeros(R, Z)], axis=1),
        jnp.concatenate([xvB, zeros(R, Y + Z)], axis=1),
    ], axis=0)                                                                # (VR, Kw)

    pad_rows = lambda a, r: jnp.pad(a, ((0, r - a.shape[0]), (0, 0)))
    big = jnp.concatenate([
        pad_rows(xy_rows, nxy_p),
        pad_rows(z_rows, nz_p),
        vec_rows,
    ], axis=0).astype(jnp.bfloat16)                                           # (Mrows, Kw)
    Mrows = nxy_p + nz_p + VR

    if channels > 1:
        fvt = params["f_vec"].T.astype(f32)                                   # (C, VR)
        c_out = channels
    else:
        fvt = jnp.ones((1, VR), f32)                                          # unused
        c_out = 1

    dims = dict(X=X, Y=Y, Z=Z, Rxy=Rxy, R=R, nxy=nxy, nxy_p=nxy_p, nz=nz, nz_p=nz_p,
                VR=VR, Kw=Kw, Mrows=Mrows, c_out=c_out)
    return big, fvt, dims


# ------------------------------------- forward -----------------------------------------
def tensorf_grid_forward(xyz, big, fvt, dims, xyz_min, xyz_max, *, channels, tn=2048):
    shape = xyz.shape[:-1]
    pts = xyz.reshape(-1, 3).astype(jnp.float32)
    n = pts.shape[0]
    ind = (pts - xyz_min) / (xyz_max - xyz_min) * 2.0 - 1.0
    n_pad = _round_up(max(n, 1), tn)
    ind_t = jnp.pad(ind, ((0, n_pad - n), (0, 0))).T            # (3, n_pad), lane-dense

    c_out = dims["c_out"]
    kernel = functools.partial(
        tensorf_kernel,
        X=dims["X"], Y=dims["Y"], Z=dims["Z"], Rxy=dims["Rxy"], R=dims["R"],
        nxy=dims["nxy"], nxy_p=dims["nxy_p"], nz=dims["nz"], nz_p=dims["nz_p"],
        VR=dims["VR"], single_channel=(channels <= 1))

    full = lambda i: (0, 0)
    out_t = pl.pallas_call(
        kernel,
        out_shape=jax.ShapeDtypeStruct((c_out, n_pad), jnp.float32),
        grid_spec=pltpu.PrefetchScalarGridSpec(
            num_scalar_prefetch=0,
            grid=(n_pad // tn,),
            in_specs=[
                pl.BlockSpec((3, tn), lambda i: (0, i)),            # coords (lane-dense)
                pl.BlockSpec((dims["Mrows"], dims["Kw"]), full),    # fused param matrix
                pl.BlockSpec((c_out, dims["VR"]), full),            # f_vec.T
            ],
            out_specs=pl.BlockSpec((c_out, tn), lambda i: (0, i)),
        ),
        compiler_params=pltpu.CompilerParams(
            dimension_semantics=("parallel",),
            vmem_limit_bytes=32 * 1024 * 1024),   # ~10 MiB live per tile; safe on v7x 64 MiB
    )(ind_t, big, fvt)

    out = out_t[:, :n].T                                        # (n, C)
    if channels > 1:
        return out.reshape(*shape, channels)
    return out[:, 0].reshape(*shape)


# ------------------------------- pure-JAX reference ------------------------------------
def _ref_sample(plane, ch, cw):
    """plane: (R, H, W); ch/cw: (N,) coords in [-1,1] (torch grid_sample semantics)."""
    _, H, W = plane.shape
    ph = jnp.clip((ch + 1.0) * 0.5 * (H - 1), 0.0, H - 1)
    pw = jnp.clip((cw + 1.0) * 0.5 * (W - 1), 0.0, W - 1)
    h0 = jnp.floor(ph).astype(jnp.int32); h1 = jnp.minimum(h0 + 1, H - 1)
    w0 = jnp.floor(pw).astype(jnp.int32); w1 = jnp.minimum(w0 + 1, W - 1)
    ah = ph - h0
    aw = pw - w0
    v00 = plane[:, h0, w0]; v01 = plane[:, h0, w1]
    v10 = plane[:, h1, w0]; v11 = plane[:, h1, w1]
    val = (v00 * (1 - ah) * (1 - aw) + v01 * (1 - ah) * aw +
           v10 * ah * (1 - aw) + v11 * ah * aw)
    return val.T  # (N, R)


def ref_forward(xyz, params, xyz_min, xyz_max, channels):
    shape = xyz.shape[:-1]
    pts = xyz.reshape(-1, 3).astype(jnp.float32)
    ind = (pts - xyz_min) / (xyz_max - xyz_min) * 2.0 - 1.0
    cx, cy, cz = ind[:, 0], ind[:, 1], ind[:, 2]
    zero = jnp.zeros_like(cx)
    xy = _ref_sample(params["xy_plane"][0], cx, cy)
    xz = _ref_sample(params["xz_plane"][0], cx, cz)
    yz = _ref_sample(params["yz_plane"][0], cy, cz)
    xf = _ref_sample(params["x_vec"][0], cx, zero)
    yf = _ref_sample(params["y_vec"][0], cy, zero)
    zf = _ref_sample(params["z_vec"][0], cz, zero)
    feat = jnp.concatenate([xy * zf, xz * yf, yz * xf], axis=-1)
    if channels > 1:
        return (feat @ params["f_vec"]).reshape(*shape, channels)
    return feat.sum(-1).reshape(*shape)


if __name__ == "__main__":
    key = jax.random.PRNGKey(0)
    ks = jax.random.split(key, 8)

    # Small TensoRF config: world_size=(16,16,16), n_comp=8, channels=4.
    X, Y, Z = 16, 16, 16
    R, Rxy = 8, 8
    channels = 4

    params = {
        "xy_plane": 0.01 * jax.random.normal(ks[0], (1, Rxy, X, Y), jnp.float32),
        "xz_plane": 0.01 * jax.random.normal(ks[1], (1, R, X, Z), jnp.float32),
        "yz_plane": 0.01 * jax.random.normal(ks[2], (1, R, Y, Z), jnp.float32),
        "x_vec":    0.01 * jax.random.normal(ks[3], (1, R, X, 1), jnp.float32),
        "y_vec":    0.01 * jax.random.normal(ks[4], (1, R, Y, 1), jnp.float32),
        "z_vec":    0.01 * jax.random.normal(ks[5], (1, Rxy, Z, 1), jnp.float32),
    }
    # f_vec: kaiming_uniform_(a=sqrt(5)) on (Rxy+2R, channels) -> U(-b, b), b=1/sqrt(channels)
    bound = 1.0 / np.sqrt(channels)
    params["f_vec"] = jax.random.uniform(
        ks[6], (Rxy + 2 * R, channels), jnp.float32, minval=-bound, maxval=bound)

    xyz_min = jnp.array([-1.0, -1.0, -1.0], jnp.float32)
    xyz_max = jnp.array([1.0, 1.0, 1.0], jnp.float32)
    # query points (includes out-of-bounds coords to exercise border clamping);
    # 4800 points -> 3 grid steps at tn=2048, exercising multi-step + tail padding.
    xyz = jax.random.uniform(ks[7], (4, 1200, 3), jnp.float32, minval=-1.2, maxval=1.2)

    # channels > 1 path (compute_tensorf_feat)
    big, fvt, dims = prepare_tensorf_constants(params, channels)   # hoisted, once per params
    out = tensorf_grid_forward(xyz, big, fvt, dims, xyz_min, xyz_max,
                               channels=channels, tn=2048)
    out = jax.block_until_ready(out)
    ref = ref_forward(xyz, params, xyz_min, xyz_max, channels)
    np.testing.assert_allclose(np.asarray(out), np.asarray(ref), rtol=2e-2, atol=1e-4)

    # channels == 1 path (compute_tensorf_val)
    big1, fvt1, dims1 = prepare_tensorf_constants(params, 1)
    out1 = tensorf_grid_forward(xyz, big1, fvt1, dims1, xyz_min, xyz_max,
                                channels=1, tn=2048)
    out1 = jax.block_until_ready(out1)
    ref1 = ref_forward(xyz, params, xyz_min, xyz_max, 1)
    np.testing.assert_allclose(np.asarray(out1), np.asarray(ref1), rtol=2e-2, atol=1e-4)

    print("KERNEL_OK")
</pallas_src>

<mosaic_0001>
module attributes {stable_mosaic.version = 11 : i64} {
  func.func @tensorf_kernel(%arg0: i32, %arg1: memref<3x2048xf32, #tpu.memory_space<vmem>>, %arg2: memref<408x48xbf16, #tpu.memory_space<vmem>>, %arg3: memref<4x24xf32, #tpu.memory_space<vmem>>, %arg4: memref<4x2048xf32, #tpu.memory_space<vmem>>) attributes {dimension_semantics = [#tpu.dimension_semantics<parallel>], iteration_bounds = array<i64: 3>, scalar_prefetch = 0 : i64, scratch_operands = 0 : i64, tpu.core_type = #tpu.core_type<tc>, window_params = [{transform_indices = @transform_0, window_bounds = array<i64: 3, 2048>}, {pipeline_mode = #tpu.pipeline_mode<synchronous>, transform_indices = @transform_1, window_bounds = array<i64: 408, 48>}, {pipeline_mode = #tpu.pipeline_mode<synchronous>, transform_indices = @transform_2, window_bounds = array<i64: 4, 24>}, {transform_indices = @transform_3, window_bounds = array<i64: 4, 2048>}]} {
    %c0 = arith.constant 0 : index
    %c0_0 = arith.constant 0 : index
    %0 = vector.load %arg1[%c0, %c0_0] : memref<3x2048xf32, #tpu.memory_space<vmem>>, vector<3x2048xf32>
    %1 = vector.extract_strided_slice %0 {offsets = [0, 0], sizes = [1, 2048], strides = [1, 1]} : vector<3x2048xf32> to vector<1x2048xf32>
    %cst = arith.constant 1.000000e+00 : f32
    %2 = vector.broadcast %cst : f32 to vector<1x2048xf32>
    %3 = arith.addf %1, %2 : vector<1x2048xf32>
    %cst_1 = arith.constant 5.000000e-01 : f32
    %4 = vector.broadcast %cst_1 : f32 to vector<1x2048xf32>
    %5 = arith.mulf %3, %4 : vector<1x2048xf32>
    %cst_2 = arith.constant 1.500000e+01 : f32
    %6 = vector.broadcast %cst_2 : f32 to vector<1x2048xf32>
    %7 = arith.mulf %5, %6 : vector<1x2048xf32>
    %cst_3 = arith.constant 0.000000e+00 : f32
    %cst_4 = arith.constant 1.500000e+01 : f32
    %8 = vector.broadcast %cst_3 : f32 to vector<1x2048xf32>
    %9 = arith.maximumf %8, %7 : vector<1x2048xf32>
    %10 = vector.broadcast %cst_4 : f32 to vector<1x2048xf32>
    %11 = arith.minimumf %10, %9 : vector<1x2048xf32>
    %12 = math.floor %11 : vector<1x2048xf32>
    %13 = arith.subf %11, %12 : vector<1x2048xf32>
    %14 = arith.fptosi %12 : vector<1x2048xf32> to vector<1x2048xi32>
    %c1_i32 = arith.constant 1 : i32
    %15 = vector.broadcast %c1_i32 : i32 to vector<1x2048xi32>
    %16 = arith.addi %14, %15 : vector<1x2048xi32>
    %c15_i32 = arith.constant 15 : i32
    %17 = vector.broadcast %c15_i32 : i32 to vector<1x2048xi32>
    %18 = arith.minsi %16, %17 : vector<1x2048xi32>
    %19 = tpu.iota {dimensions = array<i32: 0>} : vector<16x2048xi32>
    %20 = vector.broadcast %14 : vector<1x2048xi32> to vector<16x2048xi32>
    %21 = arith.cmpi eq, %19, %20 : vector<16x2048xi32>
    %cst_5 = arith.constant 1.000000e+00 : f32
    %22 = vector.broadcast %cst_5 : f32 to vector<1x2048xf32>
    %23 = arith.subf %22, %13 : vector<1x2048xf32>
    %cst_6 = arith.constant 0.000000e+00 : f32
    %24 = vector.shape_cast %23 : vector<1x2048xf32> to vector<1x2048xf32>
    %25 = vector.broadcast %24 : vector<1x2048xf32> to vector<16x2048xf32>
    %26 = vector.broadcast %cst_6 : f32 to vector<16x2048xf32>
    %27 = arith.select %21, %25, %26 : vector<16x2048xi1>, vector<16x2048xf32>
    %28 = vector.broadcast %18 : vector<1x2048xi32> to vector<16x2048xi32>
    %29 = arith.cmpi eq, %19, %28 : vector<16x2048xi32>
    %cst_7 = arith.constant 0.000000e+00 : f32
    %30 = vector.shape_cast %13 : vector<1x2048xf32> to vector<1x2048xf32>
    %31 = vector.broadcast %30 : vector<1x2048xf32> to vector<16x2048xf32>
    %32 = vector.broadcast %cst_7 : f32 to vector<16x2048xf32>
    %33 = arith.select %29, %31, %32 : vector<16x2048xi1>, vector<16x2048xf32>
    %34 = arith.addf %27, %33 : vector<16x2048xf32>
    %35 = vector.extract_strided_slice %0 {offsets = [1, 0], sizes = [1, 2048], strides = [1, 1]} : vector<3x2048xf32> to vector<1x2048xf32>
    %cst_8 = arith.constant 1.000000e+00 : f32
    %36 = vector.broadcast %cst_8 : f32 to vector<1x2048xf32>
    %37 = arith.addf %35, %36 : vector<1x2048xf32>
    %cst_9 = arith.constant 5.000000e-01 : f32
    %38 = vector.broadcast %cst_9 : f32 to vector<1x2048xf32>
    %39 = arith.mulf %37, %38 : vector<1x2048xf32>
    %cst_10 = arith.constant 1.500000e+01 : f32
    %40 = vector.broadcast %cst_10 : f32 to vector<1x2048xf32>
    %41 = arith.mulf %39, %40 : vector<1x2048xf32>
    %cst_11 = arith.constant 0.000000e+00 : f32
    %cst_12 = arith.constant 1.500000e+01 : f32
    %42 = vector.broadcast %cst_11 : f32 to vector<1x2048xf32>
    %43 = arith.maximumf %42, %41 : vector<1x2048xf32>
    %44 = vector.broadcast %cst_12 : f32 to vector<1x2048xf32>
    %45 = arith.minimumf %44, %43 : vector<1x2048xf32>
    %46 = math.floor %45 : vector<1x2048xf32>
    %47 = arith.subf %45, %46 : vector<1x2048xf32>
    %48 = arith.fptosi %46 : vector<1x2048xf32> to vector<1x2048xi32>
    %c1_i32_13 = arith.constant 1 : i32
    %49 = vector.broadcast %c1_i32_13 : i32 to vector<1x2048xi32>
    %50 = arith.addi %48, %49 : vector<1x2048xi32>
    %c15_i32_14 = arith.constant 15 : i32
    %51 = vector.broadcast %c15_i32_14 : i32 to vector<1x2048xi32>
    %52 = arith.minsi %50, %51 : vector<1x2048xi32>
    %53 = tpu.iota {dimensions = array<i32: 0>} : vector<16x2048xi32>
    %54 = vector.broadcast %48 : vector<1x2048xi32> to vector<16x2048xi32>
    %55 = arith.cmpi eq, %53, %54 : vector<16x2048xi32>
    %cst_15 = arith.constant 1.000000e+00 : f32
    %56 = vector.broadcast %cst_15 : f32 to vector<1x2048xf32>
    %57 = arith.subf %56, %47 : vector<1x2048xf32>
    %cst_16 = arith.constant 0.000000e+00 : f32
    %58 = vector.shape_cast %57 : vector<1x2048xf32> to vector<1x2048xf32>
    %59 = vector.broadcast %58 : vector<1x2048xf32> to vector<16x2048xf32>
    %60 = vector.broadcast %cst_16 : f32 to vector<16x2048xf32>
    %61 = arith.select %55, %59, %60 : vector<16x2048xi1>, vector<16x2048xf32>
    %62 = vector.broadcast %52 : vector<1x2048xi32> to vector<16x2048xi32>
    %63 = arith.cmpi eq, %53, %62 : vector<16x2048xi32>
    %cst_17 = arith.constant 0.000000e+00 : f32
    %64 = vector.shape_cast %47 : vector<1x2048xf32> to vector<1x2048xf32>
    %65 = vector.broadcast %64 : vector<1x2048xf32> to vector<16x2048xf32>
    %66 = vector.broadcast %cst_17 : f32 to vector<16x2048xf32>
    %67 = arith.select %63, %65, %66 : vector<16x2048xi1>, vector<16x2048xf32>
    %68 = arith.addf %61, %67 : vector<16x2048xf32>
    %69 = vector.extract_strided_slice %0 {offsets = [2, 0], sizes = [1, 2048], strides = [1, 1]} : vector<3x2048xf32> to vector<1x2048xf32>
    %cst_18 = arith.constant 1.000000e+00 : f32
    %70 = vector.broadcast %cst_18 : f32 to vector<1x2048xf32>
    %71 = arith.addf %69, %70 : vector<1x2048xf32>
    %cst_19 = arith.constant 5.000000e-01 : f32
    %72 = vector.broadcast %cst_19 : f32 to vector<1x2048xf32>
    %73 = arith.mulf %71, %72 : vector<1x2048xf32>
    %cst_20 = arith.constant 1.500000e+01 : f32
    %74 = vector.broadcast %cst_20 : f32 to vector<1x2048xf32>
    %75 = arith.mulf %73, %74 : vector<1x2048xf32>
    %cst_21 = arith.constant 0.000000e+00 : f32
    %cst_22 = arith.constant 1.500000e+01 : f32
    %76 = vector.broadcast %cst_21 : f32 to vector<1x2048xf32>
    %77 = arith.maximumf %76, %75 : vector<1x2048xf32>
    %78 = vector.broadcast %cst_22 : f32 to vector<1x2048xf32>
    %79 = arith.minimumf %78, %77 : vector<1x2048xf32>
    %80 = math.floor %79 : vector<1x2048xf32>
    %81 = arith.subf %79, %80 : vector<1x2048xf32>
    %82 = arith.fptosi %80 : vector<1x2048xf32> to vector<1x2048xi32>
    %c1_i32_23 = arith.constant 1 : i32
    %83 = vector.broadcast %c1_i32_23 : i32 to vector<1x2048xi32>
    %84 = arith.addi %82, %83 : vector<1x2048xi32>
    %c15_i32_24 = arith.constant 15 : i32
    %85 = vector.broadcast %c15_i32_24 : i32 to vector<1x2048xi32>
    %86 = arith.minsi %84, %85 : vector<1x2048xi32>
    %87 = tpu.iota {dimensions = array<i32: 0>} : vector<16x2048xi32>
    %88 = vector.broadcast %82 : vector<1x2048xi32> to vector<16x2048xi32>
    %89 = arith.cmpi eq, %87, %88 : vector<16x2048xi32>
    %cst_25 = arith.constant 1.000000e+00 : f32
    %90 = vector.broadcast %cst_25 : f32 to vector<1x2048xf32>
    %91 = arith.subf %90, %81 : vector<1x2048xf32>
    %cst_26 = arith.constant 0.000000e+00 : f32
    %92 = vector.shape_cast %91 : vector<1x2048xf32> to vector<1x2048xf32>
    %93 = vector.broadcast %92 : vector<1x2048xf32> to vector<16x2048xf32>
    %94 = vector.broadcast %cst_26 : f32 to vector<16x2048xf32>
    %95 = arith.select %89, %93, %94 : vector<16x2048xi1>, vector<16x2048xf32>
    %96 = vector.broadcast %86 : vector<1x2048xi32> to vector<16x2048xi32>
    %97 = arith.cmpi eq, %87, %96 : vector<16x2048xi32>
    %cst_27 = arith.constant 0.000000e+00 : f32
    %98 = vector.shape_cast %81 : vector<1x2048xf32> to vector<1x2048xf32>
    %99 = vector.broadcast %98 : vector<1x2048xf32> to vector<16x2048xf32>
    %100 = vector.broadcast %cst_27 : f32 to vector<16x2048xf32>
    %101 = arith.select %97, %99, %100 : vector<16x2048xi1>, vector<16x2048xf32>
    %102 = arith.addf %95, %101 : vector<16x2048xf32>
    %103 = tpu.concatenate %34, %68, %102 in 0 : vector<16x2048xf32>, vector<16x2048xf32>, vector<16x2048xf32> -> vector<48x2048xf32>
    %104 = arith.truncf %103 : vector<48x2048xf32> to vector<48x2048xbf16>
    %c0_28 = arith.constant 0 : index
    %c0_29 = arith.constant 0 : index
    %105 = vector.load %arg2[%c0_28, %c0_29] : memref<408x48xbf16, #tpu.memory_space<vmem>>, vector<408x48xbf16>
    %cst_30 = arith.constant dense<0.000000e+00> : vector<408x2048xf32>
    %106 = tpu.matmul %105, %104, %cst_30 {dimension_numbers = #tpu.dot_dimension_numbers<[1], [0], [0], [1], [0, 0, 1, 1], [], []>} : vector<408x48xbf16>, vector<48x2048xbf16>, vector<408x2048xf32> -> vector<408x2048xf32>
    %107 = vector.extract_strided_slice %106 {offsets = [0, 0], sizes = [128, 2048], strides = [1, 1]} : vector<408x2048xf32> to vector<128x2048xf32>
    %108 = vector.shape_cast %107 : vector<128x2048xf32> to vector<8x16x2048xf32>
    %109 = vector.extract_strided_slice %106 {offsets = [128, 0], sizes = [256, 2048], strides = [1, 1]} : vector<408x2048xf32> to vector<256x2048xf32>
    %110 = vector.shape_cast %109 : vector<256x2048xf32> to vector<16x16x2048xf32>
    %111 = vector.extract_strided_slice %106 {offsets = [384, 0], sizes = [24, 2048], strides = [1, 1]} : vector<408x2048xf32> to vector<24x2048xf32>
    %112 = vector.shape_cast %68 : vector<16x2048xf32> to vector<1x16x2048xf32>
    %113 = vector.broadcast %112 : vector<1x16x2048xf32> to vector<8x16x2048xf32>
    %114 = arith.mulf %108, %113 : vector<8x16x2048xf32>
    %cst_31 = arith.constant dense<0.000000e+00> : vector<8x2048xf32>
    %115 = vector.multi_reduction <add>, %114, %cst_31 [1] : vector<8x16x2048xf32> to vector<8x2048xf32>
    %116 = vector.shape_cast %102 : vector<16x2048xf32> to vector<1x16x2048xf32>
    %117 = vector.broadcast %116 : vector<1x16x2048xf32> to vector<16x16x2048xf32>
    %118 = arith.mulf %110, %117 : vector<16x16x2048xf32>
    %cst_32 = arith.constant dense<0.000000e+00> : vector<16x2048xf32>
    %119 = vector.multi_reduction <add>, %118, %cst_32 [1] : vector<16x16x2048xf32> to vector<16x2048xf32>
    %120 = tpu.concatenate %115, %119 in 0 : vector<8x2048xf32>, vector<16x2048xf32> -> vector<24x2048xf32>
    %121 = arith.mulf %120, %111 : vector<24x2048xf32>
    %c0_33 = arith.constant 0 : index
    %c0_34 = arith.constant 0 : index
    %122 = vector.load %arg3[%c0_33, %c0_34] : memref<4x24xf32, #tpu.memory_space<vmem>>, vector<4x24xf32>
    %cst_35 = arith.constant dense<0.000000e+00> : vector<4x2048xf32>
    %123 = tpu.matmul %122, %121, %cst_35 {dimension_numbers = #tpu.dot_dimension_numbers<[1], [0], [0], [1], [0, 0, 1, 1], [], []>} : vector<4x24xf32>, vector<24x2048xf32>, vector<4x2048xf32> -> vector<4x2048xf32>
    %c0_36 = arith.constant 0 : index
    %c0_37 = arith.constant 0 : index
    %124 = vector.load %arg4[%c0_36, %c0_37] : memref<4x2048xf32, #tpu.memory_space<vmem>>, vector<4x2048xf32>
    tpu.vector_store %arg4[%c0_36, %c0_37], %123 {strides = array<i32>} : memref<4x2048xf32, #tpu.memory_space<vmem>>, vector<4x2048xf32>,
    return
  }
  func.func @transform_0(%arg0: i32) -> (i32, i32) {
    %c0_i32 = arith.constant 0 : i32
    %c0_i32_0 = arith.constant 0 : i32
    return %c0_i32, %arg0 : i32, i32
  }
  func.func @transform_1(%arg0: i32) -> (i32, i32) {
    %c0_i32 = arith.constant 0 : i32
    %c0_i32_0 = arith.constant 0 : i32
    %c0_i32_1 = arith.constant 0 : i32
    return %c0_i32, %c0_i32_0 : i32, i32
  }
  func.func @transform_2(%arg0: i32) -> (i32, i32) {
    %c0_i32 = arith.constant 0 : i32
    %c0_i32_0 = arith.constant 0 : i32
    %c0_i32_1 = arith.constant 0 : i32
    return %c0_i32, %c0_i32_0 : i32, i32
  }
  func.func @transform_3(%arg0: i32) -> (i32, i32) {
    %c0_i32 = arith.constant 0 : i32
    %c0_i32_0 = arith.constant 0 : i32
    return %c0_i32, %arg0 : i32, i32
  }
}

</mosaic_0001>

<llo_original>
// kernel: tpu_custom_call.1
$region0: #{tpu_custom_call.1}
  #allocation0 [shape = 'u32[]', space=smem, size = 0x4, offset = 0x4, fixed_abs, tag = 'smem constant byte address 0x4 - core index']
  #allocation1 [shape = 'u32[72,128]{1,0:T(1,128)}', space=vmem, size = 0x9000, scoped, tag = 'internal scratch']
  %s0 = inlined_call_operand.vmem [shape: f32[3,6144], index: 0, kind: input, shape index: {}]
  %s1 = inlined_call_operand.vmem [shape: bf16[408,48], index: 1, kind: input, shape index: {}]
  %s2 = inlined_call_operand.vmem [shape: f32[4,24], index: 2, kind: input, shape index: {}]
  %s3 = inlined_call_operand.hbm [shape: f32[4,6144], index: 3, kind: output, shape index: {}]
  %s4 = sld [smem:[#allocation0]]
  $region45: #{tpu_custom_call.1} parent=0
    _
  %s6 = ssub.s32 1, %s4
  %s7 = scalar_select 0, %s6, %s4
  $region1: #{tpu_custom_call.1} parent=0
    #allocation2 [shape = 'u8[65536]{0}', space=vmem, size = 0x10000, scoped, tag = 'output window, operand 0']
    #allocation3 [shape = 's32[2]{0}', space=sflag, size = 0x8, scoped, tag = 'scoped memory for tpu_custom_call.1']
    %8 = vsyncpa [#allocation3], 0
    %s9 = scalar_lea.sflag [#allocation3], 1
    %10 = vsyncpa %s9, 0
    loop: start=0, step=1, limit=5
    $region2: #{tpu_custom_call.1} parent=1 // loop_pre_header
      _
    $region3: #{tpu_custom_call.1} parent=1 // loop_header
      %s12 = sphi 0, %s16
      %p13 = scmp.ge.s32.totalorder %s12, 5
      %s22 = sphi 0, %s24
      %s25 = sphi 0, %s22
      %s26 = sphi 0, %s25
      %s42 = sphi 0, %s26
      %s46 = sphi 0, %s46
      %s48 = sphi 0, %s46
      %s49 = sphi 0, %s48
      %s63 = sphi 0, %s49
      %s67 = sphi 0, %s67
      %s69 = sphi 0, %s67
      %s70 = sphi 0, %s69
      %s84 = sphi 0, %s70
      %s90 = sphi 0, %s92
      %s93 = sphi 0, %s90
      %s94 = sphi 0, %s93
      %s110 = sphi 0, %s94
    $region4: #{tpu_custom_call.1} parent=1 // loop_header_branch
      %15 = sbr.rel (%p13) target = $region8
    $region5: #{tpu_custom_call.1} parent=1 // loop_body
      %s17 = ssub.s32 %s12, 1
      %s18 = ssub.s32 %s12, 2
      %s19 = sadd.s32 %s12, 1
      %s20 = ssub.s32 %s12, %s19
      %p21 = scmp.eq.s32.totalorder %s20, 0
      %s23 = sadd.s32 %s22, 1
      %s24 = scalar_select %p21, %s22, %s23
      %p27 = pneg %p21
      %p28 = scmp.eq.s32.totalorder %s12, 2
      %p29 = por %p27, %p28
      %p30 = scmp.ne.s32.totalorder %s22, %s25
      %p31 = scmp.eq.s32.totalorder %s12, 0
      %p32 = por %p30, %p31
      %p33 = scmp.ne.s32.totalorder %s22, %s25
      %p34 = scmp.eq.s32.totalorder %s17, 2
      %p35 = por %p33, %p34
      %p36 = scmp.ne.s32.totalorder %s25, %s26
      %p37 = scmp.eq.s32.totalorder %s17, 0
      %p38 = por %p36, %p37
      %p39 = scmp.ne.s32.totalorder %s25, %s26
      %p40 = scmp.eq.s32.totalorder %s18, 2
      %p41 = por %p39, %p40
      %p43 = scmp.ne.s32.totalorder %s26, %s42
      %p44 = scmp.eq.s32.totalorder %s18, 0
      %p45 = por %p43, %p44
      %s47 = sadd.s32 %s46, 1
      %p50 = scmp.eq.s32.totalorder %s12, 2
      %p51 = scmp.ne.s32.totalorder %s46, %s48
      %p52 = scmp.eq.s32.totalorder %s12, 0
      %p53 = por %p51, %p52
      %p54 = scmp.ne.s32.totalorder %s46, %s48
      %p55 = scmp.eq.s32.totalorder %s17, 2
      %p56 = por %p54, %p55
      %p57 = scmp.ne.s32.totalorder %s48, %s49
      %p58 = scmp.eq.s32.totalorder %s17, 0
      %p59 = por %p57, %p58
      %p60 = scmp.ne.s32.totalorder %s48, %s49
      %p61 = scmp.eq.s32.totalorder %s18, 2
      %p62 = por %p60, %p61
      %p64 = scmp.ne.s32.totalorder %s49, %s63
      %p65 = scmp.eq.s32.totalorder %s18, 0
      %p66 = por %p64, %p65
      %s68 = sadd.s32 %s67, 1
      %p71 = scmp.eq.s32.totalorder %s12, 2
      %p72 = scmp.ne.s32.totalorder %s67, %s69
      %p73 = scmp.eq.s32.totalorder %s12, 0
      %p74 = por %p72, %p73
      %p75 = scmp.ne.s32.totalorder %s67, %s69
      %p76 = scmp.eq.s32.totalorder %s17, 2
      %p77 = por %p75, %p76
      %p78 = scmp.ne.s32.totalorder %s69, %s70
      %p79 = scmp.eq.s32.totalorder %s17, 0
      %p80 = por %p78, %p79
      %p81 = scmp.ne.s32.totalorder %s69, %s70
      %p82 = scmp.eq.s32.totalorder %s18, 2
      %p83 = por %p81, %p82
      %p85 = scmp.ne.s32.totalorder %s70, %s84
      %p86 = scmp.eq.s32.totalorder %s18, 0
      %p87 = por %p85, %p86
      %s88 = ssub.s32 %s12, %s19
      %p89 = scmp.eq.s32.totalorder %s88, 0
      %s91 = sadd.s32 %s90, 1
      %s92 = scalar_select %p89, %s90, %s91
      %p95 = pneg %p89
      %p96 = scmp.eq.s32.totalorder %s12, 2
      %p97 = por %p95, %p96
      %p98 = scmp.ne.s32.totalorder %s90, %s93
      %p99 = scmp.eq.s32.totalorder %s12, 0
      %p100 = por %p98, %p99
      %p101 = scmp.ne.s32.totalorder %s90, %s93
      %p102 = scmp.eq.s32.totalorder %s17, 2
      %p103 = por %p101, %p102
      %p104 = scmp.ne.s32.totalorder %s93, %s94
      %p105 = scmp.eq.s32.totalorder %s17, 0
      %p106 = por %p104, %p105
      %p107 = scmp.ne.s32.totalorder %s93, %s94
      %p108 = scmp.eq.s32.totalorder %s18, 2
      %p109 = por %p107, %p108
      %p111 = scmp.ne.s32.totalorder %s94, %s110
      %p112 = scmp.eq.s32.totalorder %s18, 0
      %p113 = por %p111, %p112
      %p114 = scmp.le.s32.totalorder 1, %s12
      %p115 = scmp.lt.s32.totalorder %s12, 4
      %p116 = pnand %p114, %p115
      %p117 = pneg %p116
      // Predicated region
      $region9: #{tpu_custom_call.1} parent=5 // pred_check
        _
      $region10: #{tpu_custom_call.1} parent=5 // pred_check_branch
        %119 = sbr.rel (%p116) target = $region12
      $region11: #{tpu_custom_call.1} parent=5 // pred_region
        %s120 = ssub.s32 %s12, 1
        // Predicated region
        $region13: #{tpu_custom_call.1} parent=11 // pred_check
          %p121 = pneg %p59
        $region14: #{tpu_custom_call.1} parent=11 // pred_check_branch
          %123 = sbr.rel (%p121) target = $region16
        $region15: #{tpu_custom_call.1} parent=11 // pred_region
          _
        $region16: #{tpu_custom_call.1} parent=11 // pred_fallthru
          _
        // Predicated region
        $region17: #{tpu_custom_call.1} parent=11 // pred_check
          %p124 = pneg %p80
        $region18: #{tpu_custom_call.1} parent=11 // pred_check_branch
          %126 = sbr.rel (%p124) target = $region20
        $region19: #{tpu_custom_call.1} parent=11 // pred_region
          _
        $region20: #{tpu_custom_call.1} parent=11 // pred_fallthru
          _
      $region12: #{tpu_custom_call.1} parent=5 // pred_fallthru
        _
      %p127 = scmp.lt.s32.totalorder %s12, 3
      // Predicated region
      $region21: #{tpu_custom_call.1} parent=5 // pred_check
        %p128 = pneg %p127
      $region22: #{tpu_custom_call.1} parent=5 // pred_check_branch
        %130 = sbr.rel (%p128) target = $region24
      $region23: #{tpu_custom_call.1} parent=5 // pred_region
        // Predicated region
        $region25: #{tpu_custom_call.1} parent=23 // pred_check
          %p131 = pneg %p32
        $region26: #{tpu_custom_call.1} parent=23 // pred_check_branch
          %133 = sbr.rel (%p131) target = $region28
        $region27: #{tpu_custom_call.1} parent=23 // pred_region
          %s134 = smul.u32 16, %s12
          %p135 = scmp.lt.s32.totalorder %s134, 47
          %s136 = scalar_select %p135, %s134, 47
          %s137 = smul.addr %s136, 4
          %s138 = scalar_lea.vmem %s0, %s137
          %s139 = smul.u32 16, %s12
        $region28: #{tpu_custom_call.1} parent=23 // pred_fallthru
          _
      $region24: #{tpu_custom_call.1} parent=5 // pred_fallthru
        _
      %p140 = scmp.le.s32.totalorder 1, %s12
      %p141 = scmp.lt.s32.totalorder %s12, 4
      %p142 = pnand %p140, %p141
      %p143 = pneg %p142
      // Predicated region
      $region29: #{tpu_custom_call.1} parent=5 // pred_check
        _
      $region30: #{tpu_custom_call.1} parent=5 // pred_check_branch
        %145 = sbr.rel (%p142) target = $region32
      $region31: #{tpu_custom_call.1} parent=5 // pred_region
        %s146 = ssub.s32 %s12, 1
        %s147 = smul.u32 16, %s17
        %p148 = scmp.lt.s32.totalorder %s147, 47
        %s149 = scalar_select %p148, %s147, 47
        %s150 = smul.addr %s149, 4
        %s151 = scalar_lea.vmem %s0, %s150
        %p152 = pneg %p38
        %p153 = pneg %p35
        %p154 = pneg %p59
        %p155 = pneg %p56
        %p156 = pneg %p80
        %p157 = pneg %p77
        %p158 = pneg %p106
        %p159 = pneg %p103
        %s160 = sand.u32 %s93, 1
        %s161 = scalar_lea.sflag [#allocation3], %s160
        %s162 = sand.u32 %s93, 1
        %s163 = smul.addr %s162, 64
        %s164 = scalar_lea.vmem [#allocation2], %s163
        %s165 = smul.u32 16, %s17
        %p166 = scmp.lt.s32.totalorder %s165, 47
        %s167 = scalar_select %p166, %s165, 47
        %s168 = smul.addr %s167, 4
        %s169 = scalar_lea.vmem %s0, %s168
        %s170 = smul.u32 16, %s17
        %s171 = smul.u32 16, %s17
        %v173 = vld [vmem:[%s169] sm:$0x77]
        %v174 = vld [vmem:[%s169 + $0x8] sm:$0x77]
        %v175 = vld [vmem:[%s169 + $0x10] sm:$0x77]
        %v176 = vld [vmem:[%s169 + $0x18] sm:$0x77]
        %v177 = vld [vmem:[%s169 + $0x20] sm:$0x77]
        %v178 = vld [vmem:[%s169 + $0x28] sm:$0x77]
        %v179 = vld [vmem:[%s169 + $0x30] sm:$0x77]
        %v180 = vld [vmem:[%s169 + $0x38] sm:$0x77]
        %v181 = vadd.f32 %v173, 1.0
        %v182 = vadd.f32 %v174, 1.0
        %v183 = vadd.f32 %v175, 1.0
        %v184 = vadd.f32 %v176, 1.0
        %v185 = vadd.f32 %v177, 1.0
        %v186 = vadd.f32 %v178, 1.0
        %v187 = vadd.f32 %v179, 1.0
        %v188 = vadd.f32 %v180, 1.0
        %v189 = vmul.f32 %v181, 0.5
        %v190 = vmul.f32 %v182, 0.5
        %v191 = vmul.f32 %v183, 0.5
        %v192 = vmul.f32 %v184, 0.5
        %v193 = vmul.f32 %v185, 0.5
        %v194 = vmul.f32 %v186, 0.5
        %v195 = vmul.f32 %v187, 0.5
        %v196 = vmul.f32 %v188, 0.5
        %v197 = vmul.f32 %v189, 15.0
        %v198 = vmul.f32 %v190, 15.0
        %v199 = vmul.f32 %v191, 15.0
        %v200 = vmul.f32 %v192, 15.0
        %v201 = vmul.f32 %v193, 15.0
        %v202 = vmul.f32 %v194, 15.0
        %v203 = vmul.f32 %v195, 15.0
        %v204 = vmul.f32 %v196, 15.0
        %v205 = vmax.f32 %v197, 0.0
        %v206 = vmax.f32 %v198, 0.0
        %v207 = vmax.f32 %v199, 0.0
        %v208 = vmax.f32 %v200, 0.0
        %v209 = vmax.f32 %v201, 0.0
        %v210 = vmax.f32 %v202, 0.0
        %v211 = vmax.f32 %v203, 0.0
        %v212 = vmax.f32 %v204, 0.0
        %v213 = vmin.f32 %v205, 15.0
        %v214 = vmin.f32 %v206, 15.0
        %v215 = vmin.f32 %v207, 15.0
        %v216 = vmin.f32 %v208, 15.0
        %v217 = vmin.f32 %v209, 15.0
        %v218 = vmin.f32 %v210, 15.0
        %v219 = vmin.f32 %v211, 15.0
        %v220 = vmin.f32 %v212, 15.0
        %v221 = vfloor.f32 %v213
        %v222 = vfloor.f32 %v214
        %v223 = vfloor.f32 %v215
        %v224 = vfloor.f32 %v216
        %v225 = vfloor.f32 %v217
        %v226 = vfloor.f32 %v218
        %v227 = vfloor.f32 %v219
        %v228 = vfloor.f32 %v220
        %v229 = vsub.f32 %v213, %v221
        %v230 = vsub.f32 %v214, %v222
        %v231 = vsub.f32 %v215, %v223
        %v232 = vsub.f32 %v216, %v224
        %v233 = vsub.f32 %v217, %v225
        %v234 = vsub.f32 %v218, %v226
        %v235 = vsub.f32 %v219, %v227
        %v236 = vsub.f32 %v220, %v228
        %v237 = vcvt.f32.s32.to.zero.pseudo %v221
        %v238 = vcvt.f32.s32.to.zero.pseudo %v222
        %v239 = vcvt.f32.s32.to.zero.pseudo %v223
        %v240 = vcvt.f32.s32.to.zero.pseudo %v224
        %v241 = vcvt.f32.s32.to.zero.pseudo %v225
        %v242 = vcvt.f32.s32.to.zero.pseudo %v226
        %v243 = vcvt.f32.s32.to.zero.pseudo %v227
        %v244 = vcvt.f32.s32.to.zero.pseudo %v228
        %v245 = vadd.s32 %v237, 1
        %v246 = vadd.s32 %v238, 1
        %v247 = vadd.s32 %v239, 1
        %v248 = vadd.s32 %v240, 1
        %v249 = vadd.s32 %v241, 1
        %v250 = vadd.s32 %v242, 1
        %v251 = vadd.s32 %v243, 1
        %v252 = vadd.s32 %v244, 1
        %vm253 = vcmp.lt.s32.totalorder %v245, 15
        %v254 = vsel %vm253, %v245, 15
        %vm255 = vcmp.lt.s32.totalorder %v246, 15
        %v256 = vsel %vm255, %v246, 15
        %vm257 = vcmp.lt.s32.totalorder %v247, 15
        %v258 = vsel %vm257, %v247, 15
        %vm259 = vcmp.lt.s32.totalorder %v248, 15
        %v260 = vsel %vm259, %v248, 15
        %vm261 = vcmp.lt.s32.totalorder %v249, 15
        %v262 = vsel %vm261, %v249, 15
        %vm263 = vcmp.lt.s32.totalorder %v250, 15
        %v264 = vsel %vm263, %v250, 15
        %vm265 = vcmp.lt.s32.totalorder %v251, 15
        %v266 = vsel %vm265, %v251, 15
        %vm267 = vcmp.lt.s32.totalorder %v252, 15
        %v268 = vsel %vm267, %v252, 15
        %v269 = vlaneseq
        %v270 = vshrl.u32 %v269, 7
        %v271 = vadd.s32 %v270, 8
        %v272 = vperm.slane %v237, 0
        %v273 = vperm.slane %v237, 4
        %v274 = vperm.slane %v238, 0
        %v275 = vperm.slane %v238, 4
        %v276 = vperm.slane %v239, 0
        %v277 = vperm.slane %v239, 4
        %v278 = vperm.slane %v240, 0
        %v279 = vperm.slane %v240, 4
        %v280 = vperm.slane %v241, 0
        %v281 = vperm.slane %v241, 4
        %v282 = vperm.slane %v242, 0
        %v283 = vperm.slane %v242, 4
        %v284 = vperm.slane %v243, 0
        %v285 = vperm.slane %v243, 4
        %v286 = vperm.slane %v244, 0
        %v287 = vperm.slane %v244, 4
        %v288 = vperm.slane %v272, 0
        %v289 = vperm.slane %v273, 0
        %v290 = vperm.slane %v274, 0
        %v291 = vperm.slane %v275, 0
        %v292 = vperm.slane %v276, 0
        %v293 = vperm.slane %v277, 0
        %v294 = vperm.slane %v278, 0
        %v295 = vperm.slane %v279, 0
        %v296 = vperm.slane %v280, 0
        %v297 = vperm.slane %v281, 0
        %v298 = vperm.slane %v282, 0
        %v299 = vperm.slane %v283, 0
        %v300 = vperm.slane %v284, 0
        %v301 = vperm.slane %v285, 0
        %v302 = vperm.slane %v286, 0
        %v303 = vperm.slane %v287, 0
        %vm304 = vcmp.eq.s32.totalorder %v270, %v288
        %vm305 = vcmp.eq.s32.totalorder %v270, %v289
        %vm306 = vcmp.eq.s32.totalorder %v270, %v290
        %vm307 = vcmp.eq.s32.totalorder %v270, %v291
        %vm308 = vcmp.eq.s32.totalorder %v270, %v292
        %vm309 = vcmp.eq.s32.totalorder %v270, %v293
        %vm310 = vcmp.eq.s32.totalorder %v270, %v294
        %vm311 = vcmp.eq.s32.totalorder %v270, %v295
        %vm312 = vcmp.eq.s32.totalorder %v270, %v296
        %vm313 = vcmp.eq.s32.totalorder %v270, %v297
        %vm314 = vcmp.eq.s32.totalorder %v270, %v298
        %vm315 = vcmp.eq.s32.totalorder %v270, %v299
        %vm316 = vcmp.eq.s32.totalorder %v270, %v300
        %vm317 = vcmp.eq.s32.totalorder %v270, %v301
        %vm318 = vcmp.eq.s32.totalorder %v270, %v302
        %vm319 = vcmp.eq.s32.totalorder %v270, %v303
        %vm320 = vcmp.eq.s32.totalorder %v271, %v288
        %vm321 = vcmp.eq.s32.totalorder %v271, %v289
        %vm322 = vcmp.eq.s32.totalorder %v271, %v290
        %vm323 = vcmp.eq.s32.totalorder %v271, %v291
        %vm324 = vcmp.eq.s32.totalorder %v271, %v292
        %vm325 = vcmp.eq.s32.totalorder %v271, %v293
        %vm326 = vcmp.eq.s32.totalorder %v271, %v294
        %vm327 = vcmp.eq.s32.totalorder %v271, %v295
        %vm328 = vcmp.eq.s32.totalorder %v271, %v296
        %vm329 = vcmp.eq.s32.totalorder %v271, %v297
        %vm330 = vcmp.eq.s32.totalorder %v271, %v298
        %vm331 = vcmp.eq.s32.totalorder %v271, %v299
        %vm332 = vcmp.eq.s32.totalorder %v271, %v300
        %vm333 = vcmp.eq.s32.totalorder %v271, %v301
        %vm334 = vcmp.eq.s32.totalorder %v271, %v302
        %vm335 = vcmp.eq.s32.totalorder %v271, %v303
        %v336 = vsub.f32 1.0, %v229
        %v337 = vsub.f32 1.0, %v230
        %v338 = vsub.f32 1.0, %v231
        %v339 = vsub.f32 1.0, %v232
        %v340 = vsub.f32 1.0, %v233
        %v341 = vsub.f32 1.0, %v234
        %v342 = vsub.f32 1.0, %v235
        %v343 = vsub.f32 1.0, %v236
        %v352 = vperm.slane %v336, 0
        %v353 = vperm.slane %v336, 4
        %v354 = vperm.slane %v337, 0
        %v355 = vperm.slane %v337, 4
        %v356 = vperm.slane %v338, 0
        %v357 = vperm.slane %v338, 4
        %v358 = vperm.slane %v339, 0
        %v359 = vperm.slane %v339, 4
        %v360 = vperm.slane %v340, 0
        %v361 = vperm.slane %v340, 4
        %v362 = vperm.slane %v341, 0
        %v363 = vperm.slane %v341, 4
        %v364 = vperm.slane %v342, 0
        %v365 = vperm.slane %v342, 4
        %v366 = vperm.slane %v343, 0
        %v367 = vperm.slane %v343, 4
        %v384 = vperm.slane %v352, 0
        %v385 = vperm.slane %v353, 0
        %v386 = vperm.slane %v354, 0
        %v387 = vperm.slane %v355, 0
        %v388 = vperm.slane %v356, 0
        %v389 = vperm.slane %v357, 0
        %v390 = vperm.slane %v358, 0
        %v391 = vperm.slane %v359, 0
        %v392 = vperm.slane %v360, 0
        %v393 = vperm.slane %v361, 0
        %v394 = vperm.slane %v362, 0
        %v395 = vperm.slane %v363, 0
        %v396 = vperm.slane %v364, 0
        %v397 = vperm.slane %v365, 0
        %v398 = vperm.slane %v366, 0
        %v399 = vperm.slane %v367, 0
        %v400 = vsel %vm304, %v384, 0.0
        %v401 = vsel %vm305, %v385, 0.0
        %v402 = vsel %vm306, %v386, 0.0
        %v403 = vsel %vm307, %v387, 0.0
        %v404 = vsel %vm308, %v388, 0.0
        %v405 = vsel %vm309, %v389, 0.0
        %v406 = vsel %vm310, %v390, 0.0
        %v407 = vsel %vm311, %v391, 0.0
        %v408 = vsel %vm312, %v392, 0.0
        %v409 = vsel %vm313, %v393, 0.0
        %v410 = vsel %vm314, %v394, 0.0
        %v411 = vsel %vm315, %v395, 0.0
        %v412 = vsel %vm316, %v396, 0.0
        %v413 = vsel %vm317, %v397, 0.0
        %v414 = vsel %vm318, %v398, 0.0
        %v415 = vsel %vm319, %v399, 0.0
        %v416 = vsel %vm320, %v384, 0.0
        %v417 = vsel %vm321, %v385, 0.0
        %v418 = vsel %vm322, %v386, 0.0
        %v419 = vsel %vm323, %v387, 0.0
        %v420 = vsel %vm324, %v388, 0.0
        %v421 = vsel %vm325, %v389, 0.0
        %v422 = vsel %vm326, %v390, 0.0
        %v423 = vsel %vm327, %v391, 0.0
        %v424 = vsel %vm328, %v392, 0.0
        %v425 = vsel %vm329, %v393, 0.0
        %v426 = vsel %vm330, %v394, 0.0
        %v427 = vsel %vm331, %v395, 0.0
        %v428 = vsel %vm332, %v396, 0.0
        %v429 = vsel %vm333, %v397, 0.0
        %v430 = vsel %vm334, %v398, 0.0
        %v431 = vsel %vm335, %v399, 0.0
        %v432 = vperm.slane %v254, 0
        %v433 = vperm.slane %v254, 4
        %v434 = vperm.slane %v256, 0
        %v435 = vperm.slane %v256, 4
        %v436 = vperm.slane %v258, 0
        %v437 = vperm.slane %v258, 4
        %v438 = vperm.slane %v260, 0
        %v439 = vperm.slane %v260, 4
        %v440 = vperm.slane %v262, 0
        %v441 = vperm.slane %v262, 4
        %v442 = vperm.slane %v264, 0
        %v443 = vperm.slane %v264, 4
        %v444 = vperm.slane %v266, 0
        %v445 = vperm.slane %v266, 4
        %v446 = vperm.slane %v268, 0
        %v447 = vperm.slane %v268, 4
        %v448 = vperm.slane %v432, 0
        %v449 = vperm.slane %v433, 0
        %v450 = vperm.slane %v434, 0
        %v451 = vperm.slane %v435, 0
        %v452 = vperm.slane %v436, 0
        %v453 = vperm.slane %v437, 0
        %v454 = vperm.slane %v438, 0
        %v455 = vperm.slane %v439, 0
        %v456 = vperm.slane %v440, 0
        %v457 = vperm.slane %v441, 0
        %v458 = vperm.slane %v442, 0
        %v459 = vperm.slane %v443, 0
        %v460 = vperm.slane %v444, 0
        %v461 = vperm.slane %v445, 0
        %v462 = vperm.slane %v446, 0
        %v463 = vperm.slane %v447, 0
        %vm464 = vcmp.eq.s32.totalorder %v270, %v448
        %vm465 = vcmp.eq.s32.totalorder %v270, %v449
        %vm466 = vcmp.eq.s32.totalorder %v270, %v450
        %vm467 = vcmp.eq.s32.totalorder %v270, %v451
        %vm468 = vcmp.eq.s32.totalorder %v270, %v452
        %vm469 = vcmp.eq.s32.totalorder %v270, %v453
        %vm470 = vcmp.eq.s32.totalorder %v270, %v454
        %vm471 = vcmp.eq.s32.totalorder %v270, %v455
        %vm472 = vcmp.eq.s32.totalorder %v270, %v456
        %vm473 = vcmp.eq.s32.totalorder %v270, %v457
        %vm474 = vcmp.eq.s32.totalorder %v270, %v458
        %vm475 = vcmp.eq.s32.totalorder %v270, %v459
        %vm476 = vcmp.eq.s32.totalorder %v270, %v460
        %vm477 = vcmp.eq.s32.totalorder %v270, %v461
        %vm478 = vcmp.eq.s32.totalorder %v270, %v462
        %vm479 = vcmp.eq.s32.totalorder %v270, %v463
        %vm480 = vcmp.eq.s32.totalorder %v271, %v448
        %vm481 = vcmp.eq.s32.totalorder %v271, %v449
        %vm482 = vcmp.eq.s32.totalorder %v271, %v450
        %vm483 = vcmp.eq.s32.totalorder %v271, %v451
        %vm484 = vcmp.eq.s32.totalorder %v271, %v452
        %vm485 = vcmp.eq.s32.totalorder %v271, %v453
        %vm486 = vcmp.eq.s32.totalorder %v271, %v454
        %vm487 = vcmp.eq.s32.totalorder %v271, %v455
        %vm488 = vcmp.eq.s32.totalorder %v271, %v456
        %vm489 = vcmp.eq.s32.totalorder %v271, %v457
        %vm490 = vcmp.eq.s32.totalorder %v271, %v458
        %vm491 = vcmp.eq.s32.totalorder %v271, %v459
        %vm492 = vcmp.eq.s32.totalorder %v271, %v460
        %vm493 = vcmp.eq.s32.totalorder %v271, %v461
        %vm494 = vcmp.eq.s32.totalorder %v271, %v462
        %vm495 = vcmp.eq.s32.totalorder %v271, %v463
        %v504 = vperm.slane %v229, 0
        %v505 = vperm.slane %v229, 4
        %v506 = vperm.slane %v230, 0
        %v507 = vperm.slane %v230, 4
        %v508 = vperm.slane %v231, 0
        %v509 = vperm.slane %v231, 4
        %v510 = vperm.slane %v232, 0
        %v511 = vperm.slane %v232, 4
        %v512 = vperm.slane %v233, 0
        %v513 = vperm.slane %v233, 4
        %v514 = vperm.slane %v234, 0
        %v515 = vperm.slane %v234, 4
        %v516 = vperm.slane %v235, 0
        %v517 = vperm.slane %v235, 4
        %v518 = vperm.slane %v236, 0
        %v519 = vperm.slane %v236, 4
        %v536 = vperm.slane %v504, 0
        %v537 = vperm.slane %v505, 0
        %v538 = vperm.slane %v506, 0
        %v539 = vperm.slane %v507, 0
        %v540 = vperm.slane %v508, 0
        %v541 = vperm.slane %v509, 0
        %v542 = vperm.slane %v510, 0
        %v543 = vperm.slane %v511, 0
        %v544 = vperm.slane %v512, 0
        %v545 = vperm.slane %v513, 0
        %v546 = vperm.slane %v514, 0
        %v547 = vperm.slane %v515, 0
        %v548 = vperm.slane %v516, 0
        %v549 = vperm.slane %v517, 0
        %v550 = vperm.slane %v518, 0
        %v551 = vperm.slane %v519, 0
        %v552 = vsel %vm464, %v536, 0.0
        %v553 = vsel %vm465, %v537, 0.0
        %v554 = vsel %vm466, %v538, 0.0
        %v555 = vsel %vm467, %v539, 0.0
        %v556 = vsel %vm468, %v540, 0.0
        %v557 = vsel %vm469, %v541, 0.0
        %v558 = vsel %vm470, %v542, 0.0
        %v559 = vsel %vm471, %v543, 0.0
        %v560 = vsel %vm472, %v544, 0.0
        %v561 = vsel %vm473, %v545, 0.0
        %v562 = vsel %vm474, %v546, 0.0
        %v563 = vsel %vm475, %v547, 0.0
        %v564 = vsel %vm476, %v548, 0.0
        %v565 = vsel %vm477, %v549, 0.0
        %v566 = vsel %vm478, %v550, 0.0
        %v567 = vsel %vm479, %v551, 0.0
        %v568 = vsel %vm480, %v536, 0.0
        %v569 = vsel %vm481, %v537, 0.0
        %v570 = vsel %vm482, %v538, 0.0
        %v571 = vsel %vm483, %v539, 0.0
        %v572 = vsel %vm484, %v540, 0.0
        %v573 = vsel %vm485, %v541, 0.0
        %v574 = vsel %vm486, %v542, 0.0
        %v575 = vsel %vm487, %v543, 0.0
        %v576 = vsel %vm488, %v544, 0.0
        %v577 = vsel %vm489, %v545, 0.0
        %v578 = vsel %vm490, %v546, 0.0
        %v579 = vsel %vm491, %v547, 0.0
        %v580 = vsel %vm492, %v548, 0.0
        %v581 = vsel %vm493, %v549, 0.0
        %v582 = vsel %vm494, %v550, 0.0
        %v583 = vsel %vm495, %v551, 0.0
        %v584 = vadd.f32 %v400, %v552
        %v585 = vadd.f32 %v401, %v553
        %v586 = vadd.f32 %v402, %v554
        %v587 = vadd.f32 %v403, %v555
        %v588 = vadd.f32 %v404, %v556
        %v589 = vadd.f32 %v405, %v557
        %v590 = vadd.f32 %v406, %v558
        %v591 = vadd.f32 %v407, %v559
        %v592 = vadd.f32 %v408, %v560
        %v593 = vadd.f32 %v409, %v561
        %v594 = vadd.f32 %v410, %v562
        %v595 = vadd.f32 %v411, %v563
        %v596 = vadd.f32 %v412, %v564
        %v597 = vadd.f32 %v413, %v565
        %v598 = vadd.f32 %v414, %v566
        %v599 = vadd.f32 %v415, %v567
        %v600 = vadd.f32 %v416, %v568
        %v601 = vadd.f32 %v417, %v569
        %v602 = vadd.f32 %v418, %v570
        %v603 = vadd.f32 %v419, %v571
        %v604 = vadd.f32 %v420, %v572
        %v605 = vadd.f32 %v421, %v573
        %v606 = vadd.f32 %v422, %v574
        %v607 = vadd.f32 %v423, %v575
        %v608 = vadd.f32 %v424, %v576
        %v609 = vadd.f32 %v425, %v577
        %v610 = vadd.f32 %v426, %v578
        %v611 = vadd.f32 %v427, %v579
        %v612 = vadd.f32 %v428, %v580
        %v613 = vadd.f32 %v429, %v581
        %v614 = vadd.f32 %v430, %v582
        %v615 = vadd.f32 %v431, %v583
        %v616 = vperm.slane %v237, 1
        %v617 = vperm.slane %v237, 5
        %v618 = vperm.slane %v238, 1
        %v619 = vperm.slane %v238, 5
        %v620 = vperm.slane %v239, 1
        %v621 = vperm.slane %v239, 5
        %v622 = vperm.slane %v240, 1
        %v623 = vperm.slane %v240, 5
        %v624 = vperm.slane %v241, 1
        %v625 = vperm.slane %v241, 5
        %v626 = vperm.slane %v242, 1
        %v627 = vperm.slane %v242, 5
        %v628 = vperm.slane %v243, 1
        %v629 = vperm.slane %v243, 5
        %v630 = vperm.slane %v244, 1
        %v631 = vperm.slane %v244, 5
        %v632 = vperm.slane %v616, 1
        %v633 = vperm.slane %v617, 1
        %v634 = vperm.slane %v618, 1
        %v635 = vperm.slane %v619, 1
        %v636 = vperm.slane %v620, 1
        %v637 = vperm.slane %v621, 1
        %v638 = vperm.slane %v622, 1
        %v639 = vperm.slane %v623, 1
        %v640 = vperm.slane %v624, 1
        %v641 = vperm.slane %v625, 1
        %v642 = vperm.slane %v626, 1
        %v643 = vperm.slane %v627, 1
        %v644 = vperm.slane %v628, 1
        %v645 = vperm.slane %v629, 1
        %v646 = vperm.slane %v630, 1
        %v647 = vperm.slane %v631, 1
        %vm648 = vcmp.eq.s32.totalorder %v270, %v632
        %vm649 = vcmp.eq.s32.totalorder %v270, %v633
        %vm650 = vcmp.eq.s32.totalorder %v270, %v634
        %vm651 = vcmp.eq.s32.totalorder %v270, %v635
        %vm652 = vcmp.eq.s32.totalorder %v270, %v636
        %vm653 = vcmp.eq.s32.totalorder %v270, %v637
        %vm654 = vcmp.eq.s32.totalorder %v270, %v638
        %vm655 = vcmp.eq.s32.totalorder %v270, %v639
        %vm656 = vcmp.eq.s32.totalorder %v270, %v640
        %vm657 = vcmp.eq.s32.totalorder %v270, %v641
        %vm658 = vcmp.eq.s32.totalorder %v270, %v642
        %vm659 = vcmp.eq.s32.totalorder %v270, %v643
        %vm660 = vcmp.eq.s32.totalorder %v270, %v644
        %vm661 = vcmp.eq.s32.totalorder %v270, %v645
        %vm662 = vcmp.eq.s32.totalorder %v270, %v646
        %vm663 = vcmp.eq.s32.totalorder %v270, %v647
        %vm664 = vcmp.eq.s32.totalorder %v271, %v632
        %vm665 = vcmp.eq.s32.totalorder %v271, %v633
        %vm666 = vcmp.eq.s32.totalorder %v271, %v634
        %vm667 = vcmp.eq.s32.totalorder %v271, %v635
        %vm668 = vcmp.eq.s32.totalorder %v271, %v636
        %vm669 = vcmp.eq.s32.totalorder %v271, %v637
        %vm670 = vcmp.eq.s32.totalorder %v271, %v638
        %vm671 = vcmp.eq.s32.totalorder %v271, %v639
        %vm672 = vcmp.eq.s32.totalorder %v271, %v640
        %vm673 = vcmp.eq.s32.totalorder %v271, %v641
        %vm674 = vcmp.eq.s32.totalorder %v271, %v642
        %vm675 = vcmp.eq.s32.totalorder %v271, %v643
        %vm676 = vcmp.eq.s32.totalorder %v271, %v644
        %vm677 = vcmp.eq.s32.totalorder %v271, %v645
        %vm678 = vcmp.eq.s32.totalorder %v271, %v646
        %vm679 = vcmp.eq.s32.totalorder %v271, %v647
        %v680 = vperm.slane %v336, 1
        %v681 = vperm.slane %v336, 5
        %v682 = vperm.slane %v337, 1
        %v683 = vperm.slane %v337, 5
        %v684 = vperm.slane %v338, 1
        %v685 = vperm.slane %v338, 5
        %v686 = vperm.slane %v339, 1
        %v687 = vperm.slane %v339, 5
        %v688 = vperm.slane %v340, 1
        %v689 = vperm.slane %v340, 5
        %v690 = vperm.slane %v341, 1
        %v691 = vperm.slane %v341, 5
        %v692 = vperm.slane %v342, 1
        %v693 = vperm.slane %v342, 5
        %v694 = vperm.slane %v343, 1
        %v695 = vperm.slane %v343, 5
        %v712 = vperm.slane %v680, 1
        %v713 = vperm.slane %v681, 1
        %v714 = vperm.slane %v682, 1
        %v715 = vperm.slane %v683, 1
        %v716 = vperm.slane %v684, 1
        %v717 = vperm.slane %v685, 1
        %v718 = vperm.slane %v686, 1
        %v719 = vperm.slane %v687, 1
        %v720 = vperm.slane %v688, 1
        %v721 = vperm.slane %v689, 1
        %v722 = vperm.slane %v690, 1
        %v723 = vperm.slane %v691, 1
        %v724 = vperm.slane %v692, 1
        %v725 = vperm.slane %v693, 1
        %v726 = vperm.slane %v694, 1
        %v727 = vperm.slane %v695, 1
        %v728 = vsel %vm648, %v712, 0.0
        %v729 = vsel %vm649, %v713, 0.0
        %v730 = vsel %vm650, %v714, 0.0
        %v731 = vsel %vm651, %v715, 0.0
        %v732 = vsel %vm652, %v716, 0.0
        %v733 = vsel %vm653, %v717, 0.0
        %v734 = vsel %vm654, %v718, 0.0
        %v735 = vsel %vm655, %v719, 0.0
        %v736 = vsel %vm656, %v720, 0.0
        %v737 = vsel %vm657, %v721, 0.0
        %v738 = vsel %vm658, %v722, 0.0
        %v739 = vsel %vm659, %v723, 0.0
        %v740 = vsel %vm660, %v724, 0.0
        %v741 = vsel %vm661, %v725, 0.0
        %v742 = vsel %vm662, %v726, 0.0
        %v743 = vsel %vm663, %v727, 0.0
        %v744 = vsel %vm664, %v712, 0.0
        %v745 = vsel %vm665, %v713, 0.0
        %v746 = vsel %vm666, %v714, 0.0
        %v747 = vsel %vm667, %v715, 0.0
        %v748 = vsel %vm668, %v716, 0.0
        %v749 = vsel %vm669, %v717, 0.0
        %v750 = vsel %vm670, %v718, 0.0
        %v751 = vsel %vm671, %v719, 0.0
        %v752 = vsel %vm672, %v720, 0.0
        %v753 = vsel %vm673, %v721, 0.0
        %v754 = vsel %vm674, %v722, 0.0
        %v755 = vsel %vm675, %v723, 0.0
        %v756 = vsel %vm676, %v724, 0.0
        %v757 = vsel %vm677, %v725, 0.0
        %v758 = vsel %vm678, %v726, 0.0
        %v759 = vsel %vm679, %v727, 0.0
        %v760 = vperm.slane %v254, 1
        %v761 = vperm.slane %v254, 5
        %v762 = vperm.slane %v256, 1
        %v763 = vperm.slane %v256, 5
        %v764 = vperm.slane %v258, 1
        %v765 = vperm.slane %v258, 5
        %v766 = vperm.slane %v260, 1
        %v767 = vperm.slane %v260, 5
        %v768 = vperm.slane %v262, 1
        %v769 = vperm.slane %v262, 5
        %v770 = vperm.slane %v264, 1
        %v771 = vperm.slane %v264, 5
        %v772 = vperm.slane %v266, 1
        %v773 = vperm.slane %v266, 5
        %v774 = vperm.slane %v268, 1
        %v775 = vperm.slane %v268, 5
        %v776 = vperm.slane %v760, 1
        %v777 = vperm.slane %v761, 1
        %v778 = vperm.slane %v762, 1
        %v779 = vperm.slane %v763, 1
        %v780 = vperm.slane %v764, 1
        %v781 = vperm.slane %v765, 1
        %v782 = vperm.slane %v766, 1
        %v783 = vperm.slane %v767, 1
        %v784 = vperm.slane %v768, 1
        %v785 = vperm.slane %v769, 1
        %v786 = vperm.slane %v770, 1
        %v787 = vperm.slane %v771, 1
        %v788 = vperm.slane %v772, 1
        %v789 = vperm.slane %v773, 1
        %v790 = vperm.slane %v774, 1
        %v791 = vperm.slane %v775, 1
        %vm792 = vcmp.eq.s32.totalorder %v270, %v776
        %vm793 = vcmp.eq.s32.totalorder %v270, %v777
        %vm794 = vcmp.eq.s32.totalorder %v270, %v778
        %vm795 = vcmp.eq.s32.totalorder %v270, %v779
        %vm796 = vcmp.eq.s32.totalorder %v270, %v780
        %vm797 = vcmp.eq.s32.totalorder %v270, %v781
        %vm798 = vcmp.eq.s32.totalorder %v270, %v782
        %vm799 = vcmp.eq.s32.totalorder %v270, %v783
        %vm800 = vcmp.eq.s32.totalorder %v270, %v784
        %vm801 = vcmp.eq.s32.totalorder %v270, %v785
        %vm802 = vcmp.eq.s32.totalorder %v270, %v786
        %vm803 = vcmp.eq.s32.totalorder %v270, %v787
        %vm804 = vcmp.eq.s32.totalorder %v270, %v788
        %vm805 = vcmp.eq.s32.totalorder %v270, %v789
        %vm806 = vcmp.eq.s32.totalorder %v270, %v790
        %vm807 = vcmp.eq.s32.totalorder %v270, %v791
        %vm808 = vcmp.eq.s32.totalorder %v271, %v776
        %vm809 = vcmp.eq.s32.totalorder %v271, %v777
        %vm810 = vcmp.eq.s32.totalorder %v271, %v778
        %vm811 = vcmp.eq.s32.totalorder %v271, %v779
        %vm812 = vcmp.eq.s32.totalorder %v271, %v780
        %vm813 = vcmp.eq.s32.totalorder %v271, %v781
        %vm814 = vcmp.eq.s32.totalorder %v271, %v782
        %vm815 = vcmp.eq.s32.totalorder %v271, %v783
        %vm816 = vcmp.eq.s32.totalorder %v271, %v784
        %vm817 = vcmp.eq.s32.totalorder %v271, %v785
        %vm818 = vcmp.eq.s32.totalorder %v271, %v786
        %vm819 = vcmp.eq.s32.totalorder %v271, %v787
        %vm820 = vcmp.eq.s32.totalorder %v271, %v788
        %vm821 = vcmp.eq.s32.totalorder %v271, %v789
        %vm822 = vcmp.eq.s32.totalorder %v271, %v790
        %vm823 = vcmp.eq.s32.totalorder %v271, %v791
        %v824 = vperm.slane %v229, 1
        %v825 = vperm.slane %v229, 5
        %v826 = vperm.slane %v230, 1
        %v827 = vperm.slane %v230, 5
        %v828 = vperm.slane %v231, 1
        %v829 = vperm.slane %v231, 5
        %v830 = vperm.slane %v232, 1
        %v831 = vperm.slane %v232, 5
        %v832 = vperm.slane %v233, 1
        %v833 = vperm.slane %v233, 5
        %v834 = vperm.slane %v234, 1
        %v835 = vperm.slane %v234, 5
        %v836 = vperm.slane %v235, 1
        %v837 = vperm.slane %v235, 5
        %v838 = vperm.slane %v236, 1
        %v839 = vperm.slane %v236, 5
        %v856 = vperm.slane %v824, 1
        %v857 = vperm.slane %v825, 1
        %v858 = vperm.slane %v826, 1
        %v859 = vperm.slane %v827, 1
        %v860 = vperm.slane %v828, 1
        %v861 = vperm.slane %v829, 1
        %v862 = vperm.slane %v830, 1
        %v863 = vperm.slane %v831, 1
        %v864 = vperm.slane %v832, 1
        %v865 = vperm.slane %v833, 1
        %v866 = vperm.slane %v834, 1
        %v867 = vperm.slane %v835, 1
        %v868 = vperm.slane %v836, 1
        %v869 = vperm.slane %v837, 1
        %v870 = vperm.slane %v838, 1
        %v871 = vperm.slane %v839, 1
        %v872 = vsel %vm792, %v856, 0.0
        %v873 = vsel %vm793, %v857, 0.0
        %v874 = vsel %vm794, %v858, 0.0
        %v875 = vsel %vm795, %v859, 0.0
        %v876 = vsel %vm796, %v860, 0.0
        %v877 = vsel %vm797, %v861, 0.0
        %v878 = vsel %vm798, %v862, 0.0
        %v879 = vsel %vm799, %v863, 0.0
        %v880 = vsel %vm800, %v864, 0.0
        %v881 = vsel %vm801, %v865, 0.0
        %v882 = vsel %vm802, %v866, 0.0
        %v883 = vsel %vm803, %v867, 0.0
        %v884 = vsel %vm804, %v868, 0.0
        %v885 = vsel %vm805, %v869, 0.0
        %v886 = vsel %vm806, %v870, 0.0
        %v887 = vsel %vm807, %v871, 0.0
        %v888 = vsel %vm808, %v856, 0.0
        %v889 = vsel %vm809, %v857, 0.0
        %v890 = vsel %vm810, %v858, 0.0
        %v891 = vsel %vm811, %v859, 0.0
        %v892 = vsel %vm812, %v860, 0.0
        %v893 = vsel %vm813, %v861, 0.0
        %v894 = vsel %vm814, %v862, 0.0
        %v895 = vsel %vm815, %v863, 0.0
        %v896 = vsel %vm816, %v864, 0.0
        %v897 = vsel %vm817, %v865, 0.0
        %v898 = vsel %vm818, %v866, 0.0
        %v899 = vsel %vm819, %v867, 0.0
        %v900 = vsel %vm820, %v868, 0.0
        %v901 = vsel %vm821, %v869, 0.0
        %v902 = vsel %vm822, %v870, 0.0
        %v903 = vsel %vm823, %v871, 0.0
        %v904 = vadd.f32 %v728, %v872
        %v905 = vadd.f32 %v729, %v873
        %v906 = vadd.f32 %v730, %v874
        %v907 = vadd.f32 %v731, %v875
        %v908 = vadd.f32 %v732, %v876
        %v909 = vadd.f32 %v733, %v877
        %v910 = vadd.f32 %v734, %v878
        %v911 = vadd.f32 %v735, %v879
        %v912 = vadd.f32 %v736, %v880
        %v913 = vadd.f32 %v737, %v881
        %v914 = vadd.f32 %v738, %v882
        %v915 = vadd.f32 %v739, %v883
        %v916 = vadd.f32 %v740, %v884
        %v917 = vadd.f32 %v741, %v885
        %v918 = vadd.f32 %v742, %v886
        %v919 = vadd.f32 %v743, %v887
        %v920 = vadd.f32 %v744, %v888
        %v921 = vadd.f32 %v745, %v889
        %v922 = vadd.f32 %v746, %v890
        %v923 = vadd.f32 %v747, %v891
        %v924 = vadd.f32 %v748, %v892
        %v925 = vadd.f32 %v749, %v893
        %v926 = vadd.f32 %v750, %v894
        %v927 = vadd.f32 %v751, %v895
        %v928 = vadd.f32 %v752, %v896
        %v929 = vadd.f32 %v753, %v897
        %v930 = vadd.f32 %v754, %v898
        %v931 = vadd.f32 %v755, %v899
        %v932 = vadd.f32 %v756, %v900
        %v933 = vadd.f32 %v757, %v901
        %v934 = vadd.f32 %v758, %v902
        %v935 = vadd.f32 %v759, %v903
        %v936 = vperm.slane %v237, 2
        %v937 = vperm.slane %v237, 6
        %v938 = vperm.slane %v238, 2
        %v939 = vperm.slane %v238, 6
        %v940 = vperm.slane %v239, 2
        %v941 = vperm.slane %v239, 6
        %v942 = vperm.slane %v240, 2
        %v943 = vperm.slane %v240, 6
        %v944 = vperm.slane %v241, 2
        %v945 = vperm.slane %v241, 6
        %v946 = vperm.slane %v242, 2
        %v947 = vperm.slane %v242, 6
        %v948 = vperm.slane %v243, 2
        %v949 = vperm.slane %v243, 6
        %v950 = vperm.slane %v244, 2
        %v951 = vperm.slane %v244, 6
        %v952 = vperm.slane %v936, 2
        %v953 = vperm.slane %v937, 2
        %v954 = vperm.slane %v938, 2
        %v955 = vperm.slane %v939, 2
        %v956 = vperm.slane %v940, 2
        %v957 = vperm.slane %v941, 2
        %v958 = vperm.slane %v942, 2
        %v959 = vperm.slane %v943, 2
        %v960 = vperm.slane %v944, 2
        %v961 = vperm.slane %v945, 2
        %v962 = vperm.slane %v946, 2
        %v963 = vperm.slane %v947, 2
        %v964 = vperm.slane %v948, 2
        %v965 = vperm.slane %v949, 2
        %v966 = vperm.slane %v950, 2
        %v967 = vperm.slane %v951, 2
        %vm968 = vcmp.eq.s32.totalorder %v270, %v952
        %vm969 = vcmp.eq.s32.totalorder %v270, %v953
        %vm970 = vcmp.eq.s32.totalorder %v270, %v954
        %vm971 = vcmp.eq.s32.totalorder %v270, %v955
        %vm972 = vcmp.eq.s32.totalorder %v270, %v956
        %vm973 = vcmp.eq.s32.totalorder %v270, %v957
        %vm974 = vcmp.eq.s32.totalorder %v270, %v958
        %vm975 = vcmp.eq.s32.totalorder %v270, %v959
        %vm976 = vcmp.eq.s32.totalorder %v270, %v960
        %vm977 = vcmp.eq.s32.totalorder %v270, %v961
        %vm978 = vcmp.eq.s32.totalorder %v270, %v962
        %vm979 = vcmp.eq.s32.totalorder %v270, %v963
        %vm980 = vcmp.eq.s32.totalorder %v270, %v964
        %vm981 = vcmp.eq.s32.totalorder %v270, %v965
        %vm982 = vcmp.eq.s32.totalorder %v270, %v966
        %vm983 = vcmp.eq.s32.totalorder %v270, %v967
        %vm984 = vcmp.eq.s32.totalorder %v271, %v952
        %vm985 = vcmp.eq.s32.totalorder %v271, %v953
        %vm986 = vcmp.eq.s32.totalorder %v271, %v954
        %vm987 = vcmp.eq.s32.totalorder %v271, %v955
        %vm988 = vcmp.eq.s32.totalorder %v271, %v956
        %vm989 = vcmp.eq.s32.totalorder %v271, %v957
        %vm990 = vcmp.eq.s32.totalorder %v271, %v958
        %vm991 = vcmp.eq.s32.totalorder %v271, %v959
        %vm992 = vcmp.eq.s32.totalorder %v271, %v960
        %vm993 = vcmp.eq.s32.totalorder %v271, %v961
        %vm994 = vcmp.eq.s32.totalorder %v271, %v962
        %vm995 = vcmp.eq.s32.totalorder %v271, %v963
        %vm996 = vcmp.eq.s32.totalorder %v271, %v964
        %vm997 = vcmp.eq.s32.totalorder %v271, %v965
        %vm998 = vcmp.eq.s32.totalorder %v271, %v966
        %vm999 = vcmp.eq.s32.totalorder %v271, %v967
        %v1000 = vperm.slane %v336, 2
        %v1001 = vperm.slane %v336, 6
        %v1002 = vperm.slane %v337, 2
        %v1003 = vperm.slane %v337, 6
        %v1004 = vperm.slane %v338, 2
        %v1005 = vperm.slane %v338, 6
        %v1006 = vperm.slane %v339, 2
        %v1007 = vperm.slane %v339, 6
        %v1008 = vperm.slane %v340, 2
        %v1009 = vperm.slane %v340, 6
        %v1010 = vperm.slane %v341, 2
        %v1011 = vperm.slane %v341, 6
        %v1012 = vperm.slane %v342, 2
        %v1013 = vperm.slane %v342, 6
        %v1014 = vperm.slane %v343, 2
        %v1015 = vperm.slane %v343, 6
        %v1032 = vperm.slane %v1000, 2
        %v1033 = vperm.slane %v1001, 2
        %v1034 = vperm.slane %v1002, 2
        %v1035 = vperm.slane %v1003, 2
        %v1036 = vperm.slane %v1004, 2
        %v1037 = vperm.slane %v1005, 2
        %v1038 = vperm.slane %v1006, 2
        %v1039 = vperm.slane %v1007, 2
        %v1040 = vperm.slane %v1008, 2
        %v1041 = vperm.slane %v1009, 2
        %v1042 = vperm.slane %v1010, 2
        %v1043 = vperm.slane %v1011, 2
        %v1044 = vperm.slane %v1012, 2
        %v1045 = vperm.slane %v1013, 2
        %v1046 = vperm.slane %v1014, 2
        %v1047 = vperm.slane %v1015, 2
        %v1048 = vsel %vm968, %v1032, 0.0
        %v1049 = vsel %vm969, %v1033, 0.0
        %v1050 = vsel %vm970, %v1034, 0.0
        %v1051 = vsel %vm971, %v1035, 0.0
        %v1052 = vsel %vm972, %v1036, 0.0
        %v1053 = vsel %vm973, %v1037, 0.0
        %v1054 = vsel %vm974, %v1038, 0.0
        %v1055 = vsel %vm975, %v1039, 0.0
        %v1056 = vsel %vm976, %v1040, 0.0
        %v1057 = vsel %vm977, %v1041, 0.0
        %v1058 = vsel %vm978, %v1042, 0.0
        %v1059 = vsel %vm979, %v1043, 0.0
        %v1060 = vsel %vm980, %v1044, 0.0
        %v1061 = vsel %vm981, %v1045, 0.0
        %v1062 = vsel %vm982, %v1046, 0.0
        %v1063 = vsel %vm983, %v1047, 0.0
        %v1064 = vsel %vm984, %v1032, 0.0
        %v1065 = vsel %vm985, %v1033, 0.0
        %v1066 = vsel %vm986, %v1034, 0.0
        %v1067 = vsel %vm987, %v1035, 0.0
        %v1068 = vsel %vm988, %v1036, 0.0
        %v1069 = vsel %vm989, %v1037, 0.0
        %v1070 = vsel %vm990, %v1038, 0.0
        %v1071 = vsel %vm991, %v1039, 0.0
        %v1072 = vsel %vm992, %v1040, 0.0
        %v1073 = vsel %vm993, %v1041, 0.0
        %v1074 = vsel %vm994, %v1042, 0.0
        %v1075 = vsel %vm995, %v1043, 0.0
        %v1076 = vsel %vm996, %v1044, 0.0
        %v1077 = vsel %vm997, %v1045, 0.0
        %v1078 = vsel %vm998, %v1046, 0.0
        %v1079 = vsel %vm999, %v1047, 0.0
        %v1080 = vperm.slane %v254, 2
        %v1081 = vperm.slane %v254, 6
        %v1082 = vperm.slane %v256, 2
        %v1083 = vperm.slane %v256, 6
        %v1084 = vperm.slane %v258, 2
        %v1085 = vperm.slane %v258, 6
        %v1086 = vperm.slane %v260, 2
        %v1087 = vperm.slane %v260, 6
        %v1088 = vperm.slane %v262, 2
        %v1089 = vperm.slane %v262, 6
        %v1090 = vperm.slane %v264, 2
        %v1091 = vperm.slane %v264, 6
        %v1092 = vperm.slane %v266, 2
        %v1093 = vperm.slane %v266, 6
        %v1094 = vperm.slane %v268, 2
        %v1095 = vperm.slane %v268, 6
        %v1096 = vperm.slane %v1080, 2
        %v1097 = vperm.slane %v1081, 2
        %v1098 = vperm.slane %v1082, 2
        %v1099 = vperm.slane %v1083, 2
        %v1100 = vperm.slane %v1084, 2
        %v1101 = vperm.slane %v1085, 2
        %v1102 = vperm.slane %v1086, 2
        %v1103 = vperm.slane %v1087, 2
        %v1104 = vperm.slane %v1088, 2
        %v1105 = vperm.slane %v1089, 2
        %v1106 = vperm.slane %v1090, 2
        %v1107 = vperm.slane %v1091, 2
        %v1108 = vperm.slane %v1092, 2
        %v1109 = vperm.slane %v1093, 2
        %v1110 = vperm.slane %v1094, 2
        %v1111 = vperm.slane %v1095, 2
        %vm1112 = vcmp.eq.s32.totalorder %v270, %v1096
        %vm1113 = vcmp.eq.s32.totalorder %v270, %v1097
        %vm1114 = vcmp.eq.s32.totalorder %v270, %v1098
        %vm1115 = vcmp.eq.s32.totalorder %v270, %v1099
        %vm1116 = vcmp.eq.s32.totalorder %v270, %v1100
        %vm1117 = vcmp.eq.s32.totalorder %v270, %v1101
        %vm1118 = vcmp.eq.s32.totalorder %v270, %v1102
        %vm1119 = vcmp.eq.s32.totalorder %v270, %v1103
        %vm1120 = vcmp.eq.s32.totalorder %v270, %v1104
        %vm1121 = vcmp.eq.s32.totalorder %v270, %v1105
        %vm1122 = vcmp.eq.s32.totalorder %v270, %v1106
        %vm1123 = vcmp.eq.s32.totalorder %v270, %v1107
        %vm1124 = vcmp.eq.s32.totalorder %v270, %v1108
        %vm1125 = vcmp.eq.s32.totalorder %v270, %v1109
        %vm1126 = vcmp.eq.s32.totalorder %v270, %v1110
        %vm1127 = vcmp.eq.s32.totalorder %v270, %v1111
        %vm1128 = vcmp.eq.s32.totalorder %v271, %v1096
        %vm1129 = vcmp.eq.s32.totalorder %v271, %v1097
        %vm1130 = vcmp.eq.s32.totalorder %v271, %v1098
        %vm1131 = vcmp.eq.s32.totalorder %v271, %v1099
        %vm1132 = vcmp.eq.s32.totalorder %v271, %v1100
        %vm1133 = vcmp.eq.s32.totalorder %v271, %v1101
        %vm1134 = vcmp.eq.s32.totalorder %v271, %v1102
        %vm1135 = vcmp.eq.s32.totalorder %v271, %v1103
        %vm1136 = vcmp.eq.s32.totalorder %v271, %v1104
        %vm1137 = vcmp.eq.s32.totalorder %v271, %v1105
        %vm1138 = vcmp.eq.s32.totalorder %v271, %v1106
        %vm1139 = vcmp.eq.s32.totalorder %v271, %v1107
        %vm1140 = vcmp.eq.s32.totalorder %v271, %v1108
        %vm1141 = vcmp.eq.s32.totalorder %v271, %v1109
        %vm1142 = vcmp.eq.s32.totalorder %v271, %v1110
        %vm1143 = vcmp.eq.s32.totalorder %v271, %v1111
        %v1144 = vperm.slane %v229, 2
        %v1145 = vperm.slane %v229, 6
        %v1146 = vperm.slane %v230, 2
        %v1147 = vperm.slane %v230, 6
        %v1148 = vperm.slane %v231, 2
        %v1149 = vperm.slane %v231, 6
        %v1150 = vperm.slane %v232, 2
        %v1151 = vperm.slane %v232, 6
        %v1152 = vperm.slane %v233, 2
        %v1153 = vperm.slane %v233, 6
        %v1154 = vperm.slane %v234, 2
        %v1155 = vperm.slane %v234, 6
        %v1156 = vperm.slane %v235, 2
        %v1157 = vperm.slane %v235, 6
        %v1158 = vperm.slane %v236, 2
        %v1159 = vperm.slane %v236, 6
        %v1176 = vperm.slane %v1144, 2
        %v1177 = vperm.slane %v1145, 2
        %v1178 = vperm.slane %v1146, 2
        %v1179 = vperm.slane %v1147, 2
        %v1180 = vperm.slane %v1148, 2
        %v1181 = vperm.slane %v1149, 2
        %v1182 = vperm.slane %v1150, 2
        %v1183 = vperm.slane %v1151, 2
        %v1184 = vperm.slane %v1152, 2
        %v1185 = vperm.slane %v1153, 2
        %v1186 = vperm.slane %v1154, 2
        %v1187 = vperm.slane %v1155, 2
        %v1188 = vperm.slane %v1156, 2
        %v1189 = vperm.slane %v1157, 2
        %v1190 = vperm.slane %v1158, 2
        %v1191 = vperm.slane %v1159, 2
        %v1192 = vsel %vm1112, %v1176, 0.0
        %v1193 = vsel %vm1113, %v1177, 0.0
        %v1194 = vsel %vm1114, %v1178, 0.0
        %v1195 = vsel %vm1115, %v1179, 0.0
        %v1196 = vsel %vm1116, %v1180, 0.0
        %v1197 = vsel %vm1117, %v1181, 0.0
        %v1198 = vsel %vm1118, %v1182, 0.0
        %v1199 = vsel %vm1119, %v1183, 0.0
        %v1200 = vsel %vm1120, %v1184, 0.0
        %v1201 = vsel %vm1121, %v1185, 0.0
        %v1202 = vsel %vm1122, %v1186, 0.0
        %v1203 = vsel %vm1123, %v1187, 0.0
        %v1204 = vsel %vm1124, %v1188, 0.0
        %v1205 = vsel %vm1125, %v1189, 0.0
        %v1206 = vsel %vm1126, %v1190, 0.0
        %v1207 = vsel %vm1127, %v1191, 0.0
        %v1208 = vsel %vm1128, %v1176, 0.0
        %v1209 = vsel %vm1129, %v1177, 0.0
        %v1210 = vsel %vm1130, %v1178, 0.0
        %v1211 = vsel %vm1131, %v1179, 0.0
        %v1212 = vsel %vm1132, %v1180, 0.0
        %v1213 = vsel %vm1133, %v1181, 0.0
        %v1214 = vsel %vm1134, %v1182, 0.0
        %v1215 = vsel %vm1135, %v1183, 0.0
        %v1216 = vsel %vm1136, %v1184, 0.0
        %v1217 = vsel %vm1137, %v1185, 0.0
        %v1218 = vsel %vm1138, %v1186, 0.0
        %v1219 = vsel %vm1139, %v1187, 0.0
        %v1220 = vsel %vm1140, %v1188, 0.0
        %v1221 = vsel %vm1141, %v1189, 0.0
        %v1222 = vsel %vm1142, %v1190, 0.0
        %v1223 = vsel %vm1143, %v1191, 0.0
        %v1224 = vadd.f32 %v1048, %v1192
        %v1225 = vadd.f32 %v1049, %v1193
        %v1226 = vadd.f32 %v1050, %v1194
        %v1227 = vadd.f32 %v1051, %v1195
        %v1228 = vadd.f32 %v1052, %v1196
        %v1229 = vadd.f32 %v1053, %v1197
        %v1230 = vadd.f32 %v1054, %v1198
        %v1231 = vadd.f32 %v1055, %v1199
        %v1232 = vadd.f32 %v1056, %v1200
        %v1233 = vadd.f32 %v1057, %v1201
        %v1234 = vadd.f32 %v1058, %v1202
        %v1235 = vadd.f32 %v1059, %v1203
        %v1236 = vadd.f32 %v1060, %v1204
        %v1237 = vadd.f32 %v1061, %v1205
        %v1238 = vadd.f32 %v1062, %v1206
        %v1239 = vadd.f32 %v1063, %v1207
        %v1240 = vadd.f32 %v1064, %v1208
        %v1241 = vadd.f32 %v1065, %v1209
        %v1242 = vadd.f32 %v1066, %v1210
        %v1243 = vadd.f32 %v1067, %v1211
        %v1244 = vadd.f32 %v1068, %v1212
        %v1245 = vadd.f32 %v1069, %v1213
        %v1246 = vadd.f32 %v1070, %v1214
        %v1247 = vadd.f32 %v1071, %v1215
        %v1248 = vadd.f32 %v1072, %v1216
        %v1249 = vadd.f32 %v1073, %v1217
        %v1250 = vadd.f32 %v1074, %v1218
        %v1251 = vadd.f32 %v1075, %v1219
        %v1252 = vadd.f32 %v1076, %v1220
        %v1253 = vadd.f32 %v1077, %v1221
        %v1254 = vadd.f32 %v1078, %v1222
        %v1255 = vadd.f32 %v1079, %v1223
        %v1256 = vpack.c.bf16 %v600, %v584
        %v1257 = vpack.c.bf16 %v601, %v585
        %v1258 = vpack.c.bf16 %v602, %v586
        %v1259 = vpack.c.bf16 %v603, %v587
        %v1260 = vpack.c.bf16 %v604, %v588
        %v1261 = vpack.c.bf16 %v605, %v589
        %v1262 = vpack.c.bf16 %v606, %v590
        %v1263 = vpack.c.bf16 %v607, %v591
        %v1264 = vpack.c.bf16 %v608, %v592
        %v1265 = vpack.c.bf16 %v609, %v593
        %v1266 = vpack.c.bf16 %v610, %v594
        %v1267 = vpack.c.bf16 %v611, %v595
        %v1268 = vpack.c.bf16 %v612, %v596
        %v1269 = vpack.c.bf16 %v613, %v597
        %v1270 = vpack.c.bf16 %v614, %v598
        %v1271 = vpack.c.bf16 %v615, %v599
        %v1272 = vpack.c.bf16 %v920, %v904
        %v1273 = vpack.c.bf16 %v921, %v905
        %v1274 = vpack.c.bf16 %v922, %v906
        %v1275 = vpack.c.bf16 %v923, %v907
        %v1276 = vpack.c.bf16 %v924, %v908
        %v1277 = vpack.c.bf16 %v925, %v909
        %v1278 = vpack.c.bf16 %v926, %v910
        %v1279 = vpack.c.bf16 %v927, %v911
        %v1280 = vpack.c.bf16 %v928, %v912
        %v1281 = vpack.c.bf16 %v929, %v913
        %v1282 = vpack.c.bf16 %v930, %v914
        %v1283 = vpack.c.bf16 %v931, %v915
        %v1284 = vpack.c.bf16 %v932, %v916
        %v1285 = vpack.c.bf16 %v933, %v917
        %v1286 = vpack.c.bf16 %v934, %v918
        %v1287 = vpack.c.bf16 %v935, %v919
        %v1288 = vpack.c.bf16 %v1240, %v1224
        %v1289 = vpack.c.bf16 %v1241, %v1225
        %v1290 = vpack.c.bf16 %v1242, %v1226
        %v1291 = vpack.c.bf16 %v1243, %v1227
        %v1292 = vpack.c.bf16 %v1244, %v1228
        %v1293 = vpack.c.bf16 %v1245, %v1229
        %v1294 = vpack.c.bf16 %v1246, %v1230
        %v1295 = vpack.c.bf16 %v1247, %v1231
        %v1296 = vpack.c.bf16 %v1248, %v1232
        %v1297 = vpack.c.bf16 %v1249, %v1233
        %v1298 = vpack.c.bf16 %v1250, %v1234
        %v1299 = vpack.c.bf16 %v1251, %v1235
        %v1300 = vpack.c.bf16 %v1252, %v1236
        %v1301 = vpack.c.bf16 %v1253, %v1237
        %v1302 = vpack.c.bf16 %v1254, %v1238
        %v1303 = vpack.c.bf16 %v1255, %v1239
        %v1304 = vld [vmem:[%s1] sm:$0xf]
        %v1305 = vld [vmem:[%s1 + $0x4] sm:$0xf]
        %v1306 = vld [vmem:[%s1 + $0x8] sm:$0xf]
        %v1307 = vld [vmem:[%s1 + $0xc] sm:$0xf]
        %v1308 = vld [vmem:[%s1 + $0x10] sm:$0xf]
        %v1309 = vld [vmem:[%s1 + $0x14] sm:$0xf]
        %v1310 = vld [vmem:[%s1 + $0x18] sm:$0xf]
        %v1311 = vld [vmem:[%s1 + $0x1c] sm:$0xf]
        %v1312 = vld [vmem:[%s1 + $0x20] sm:$0xf]
        %v1313 = vld [vmem:[%s1 + $0x24] sm:$0xf]
        %v1314 = vld [vmem:[%s1 + $0x28] sm:$0xf]
        %v1315 = vld [vmem:[%s1 + $0x2c] sm:$0xf]
        %v1316 = vld [vmem:[%s1 + $0x30] sm:$0xf]
        %v1317 = vld [vmem:[%s1 + $0x34] sm:$0xf]
        %v1318 = vld [vmem:[%s1 + $0x38] sm:$0xf]
        %v1319 = vld [vmem:[%s1 + $0x3c] sm:$0xf]
        %v1320 = vld [vmem:[%s1 + $0x40] sm:$0xf]
        %v1321 = vld [vmem:[%s1 + $0x44] sm:$0xf]
        %v1322 = vld [vmem:[%s1 + $0x48] sm:$0xf]
        %v1323 = vld [vmem:[%s1 + $0x4c] sm:$0xf]
        %v1324 = vld [vmem:[%s1 + $0x50] sm:$0xf]
        %v1325 = vld [vmem:[%s1 + $0x54] sm:$0xf]
        %v1326 = vld [vmem:[%s1 + $0x58] sm:$0xf]
        %v1327 = vld [vmem:[%s1 + $0x5c] sm:$0xf]
        %v1328 = vld [vmem:[%s1 + $0x60] sm:$0xf]
        %v1329 = vld [vmem:[%s1 + $0x64] sm:$0xf]
        %v1330 = vld [vmem:[%s1 + $0x68] sm:$0xf]
        %v1331 = vld [vmem:[%s1 + $0x6c] sm:$0xf]
        %v1332 = vld [vmem:[%s1 + $0x70] sm:$0xf]
        %v1333 = vld [vmem:[%s1 + $0x74] sm:$0xf]
        %v1334 = vld [vmem:[%s1 + $0x78] sm:$0xf]
        %v1335 = vld [vmem:[%s1 + $0x7c] sm:$0xf]
        %v1336 = vld [vmem:[%s1 + $0x80] sm:$0xf]
        %v1337 = vld [vmem:[%s1 + $0x84] sm:$0xf]
        %v1338 = vld [vmem:[%s1 + $0x88] sm:$0xf]
        %v1339 = vld [vmem:[%s1 + $0x8c] sm:$0xf]
        %v1340 = vld [vmem:[%s1 + $0x90] sm:$0xf]
        %v1341 = vld [vmem:[%s1 + $0x94] sm:$0xf]
        %v1342 = vld [vmem:[%s1 + $0x98] sm:$0xf]
        %v1343 = vld [vmem:[%s1 + $0x9c] sm:$0xf]
        %v1344 = vld [vmem:[%s1 + $0xa0] sm:$0xf]
        %v1345 = vld [vmem:[%s1 + $0xa4] sm:$0xf]
        %v1346 = vld [vmem:[%s1 + $0xa8] sm:$0xf]
        %v1347 = vld [vmem:[%s1 + $0xac] sm:$0xf]
        %v1348 = vld [vmem:[%s1 + $0xb0] sm:$0xf]
        %v1349 = vld [vmem:[%s1 + $0xb4] sm:$0xf]
        %v1350 = vld [vmem:[%s1 + $0xb8] sm:$0xf]
        %v1351 = vld [vmem:[%s1 + $0xbc] sm:$0xf]
        %v1352 = vld [vmem:[%s1 + $0xc0] sm:$0xf]
        %v1353 = vld [vmem:[%s1 + $0xc4] sm:$0xf]
        %v1354 = vld [vmem:[%s1 + $0xc8] sm:$0xf]
        %v1406 = vunpack.c.l.b16 %v1304
        %v1407 = vunpack.c.l.b16 %v1305
        %v1408 = vunpack.c.l.b16 %v1306
        %v1409 = vunpack.c.l.b16 %v1307
        %v1410 = vunpack.c.l.b16 %v1308
        %v1411 = vunpack.c.l.b16 %v1309
        %v1412 = vunpack.c.l.b16 %v1310
        %v1413 = vunpack.c.l.b16 %v1311
        %v1414 = vunpack.c.l.b16 %v1312
        %v1415 = vunpack.c.l.b16 %v1313
        %v1416 = vunpack.c.l.b16 %v1314
        %v1417 = vunpack.c.l.b16 %v1315
        %v1418 = vunpack.c.l.b16 %v1316
        %v1419 = vunpack.c.l.b16 %v1317
        %v1420 = vunpack.c.l.b16 %v1318
        %v1421 = vunpack.c.l.b16 %v1319
        %v1422 = vunpack.c.l.b16 %v1320
        %v1423 = vunpack.c.l.b16 %v1321
        %v1424 = vunpack.c.l.b16 %v1322
        %v1425 = vunpack.c.l.b16 %v1323
        %v1426 = vunpack.c.l.b16 %v1324
        %v1427 = vunpack.c.l.b16 %v1325
        %v1428 = vunpack.c.l.b16 %v1326
        %v1429 = vunpack.c.l.b16 %v1327
        %v1430 = vunpack.c.l.b16 %v1328
        %v1431 = vunpack.c.l.b16 %v1329
        %v1432 = vunpack.c.l.b16 %v1330
        %v1433 = vunpack.c.l.b16 %v1331
        %v1434 = vunpack.c.l.b16 %v1332
        %v1435 = vunpack.c.l.b16 %v1333
        %v1436 = vunpack.c.l.b16 %v1334
        %v1437 = vunpack.c.l.b16 %v1335
        %v1438 = vunpack.c.l.b16 %v1336
        %v1439 = vunpack.c.l.b16 %v1337
        %v1440 = vunpack.c.l.b16 %v1338
        %v1441 = vunpack.c.l.b16 %v1339
        %v1442 = vunpack.c.l.b16 %v1340
        %v1443 = vunpack.c.l.b16 %v1341
        %v1444 = vunpack.c.l.b16 %v1342
        %v1445 = vunpack.c.l.b16 %v1343
        %v1446 = vunpack.c.l.b16 %v1344
        %v1447 = vunpack.c.l.b16 %v1345
        %v1448 = vunpack.c.l.b16 %v1346
        %v1449 = vunpack.c.l.b16 %v1347
        %v1450 = vunpack.c.l.b16 %v1348
        %v1451 = vunpack.c.l.b16 %v1349
        %v1452 = vunpack.c.l.b16 %v1350
        %v1453 = vunpack.c.l.b16 %v1351
        %v1454 = vunpack.c.l.b16 %v1352
        %v1455 = vunpack.c.l.b16 %v1353
        %v1456 = vunpack.c.l.b16 %v1354
        %v1457 = vpack.c.b16 %v1407, %v1406
        %v1458 = vpack.c.b16 %v1409, %v1408
        %v1459 = vpack.c.b16 %v1411, %v1410
        %v1460 = vpack.c.b16 %v1413, %v1412
        %v1461 = vpack.c.b16 %v1415, %v1414
        %v1462 = vpack.c.b16 %v1417, %v1416
        %v1463 = vpack.c.b16 %v1419, %v1418
        %v1464 = vpack.c.b16 %v1421, %v1420
        %v1465 = vpack.c.b16 %v1423, %v1422
        %v1466 = vpack.c.b16 %v1425, %v1424
        %v1467 = vpack.c.b16 %v1427, %v1426
        %v1468 = vpack.c.b16 %v1429, %v1428
        %v1469 = vpack.c.b16 %v1431, %v1430
        %v1470 = vpack.c.b16 %v1433, %v1432
        %v1471 = vpack.c.b16 %v1435, %v1434
        %v1472 = vpack.c.b16 %v1437, %v1436
        %v1473 = vpack.c.b16 %v1439, %v1438
        %v1474 = vpack.c.b16 %v1441, %v1440
        %v1475 = vpack.c.b16 %v1443, %v1442
        %v1476 = vpack.c.b16 %v1445, %v1444
        %v1477 = vpack.c.b16 %v1447, %v1446
        %v1478 = vpack.c.b16 %v1449, %v1448
        %v1479 = vpack.c.b16 %v1451, %v1450
        %v1480 = vpack.c.b16 %v1453, %v1452
        %v1481 = vpack.c.b16 %v1455, %v1454
        %v1482 = vpack.c.b16 %v1456, %v1456
        %vm1483 = vcmask 392192
        %v1485 = vsel %vm1483, %v1457, 0
        %v1488 = vsel %vm1483, %v1458, 0
        %v1491 = vsel %vm1483, %v1459, 0
        %v1494 = vsel %vm1483, %v1460, 0
        %v1497 = vsel %vm1483, %v1461, 0
        %v1500 = vsel %vm1483, %v1462, 0
        %v1503 = vsel %vm1483, %v1463, 0
        %v1506 = vsel %vm1483, %v1464, 0
        %v1509 = vsel %vm1483, %v1465, 0
        %v1512 = vsel %vm1483, %v1466, 0
        %v1515 = vsel %vm1483, %v1467, 0
        %v1518 = vsel %vm1483, %v1468, 0
        %v1521 = vsel %vm1483, %v1469, 0
        %v1524 = vsel %vm1483, %v1470, 0
        %v1527 = vsel %vm1483, %v1471, 0
        %v1530 = vsel %vm1483, %v1472, 0
        %v1533 = vsel %vm1483, %v1473, 0
        %v1536 = vsel %vm1483, %v1474, 0
        %v1539 = vsel %vm1483, %v1475, 0
        %v1542 = vsel %vm1483, %v1476, 0
        %v1545 = vsel %vm1483, %v1477, 0
        %v1548 = vsel %vm1483, %v1478, 0
        %v1551 = vsel %vm1483, %v1479, 0
        %v1554 = vsel %vm1483, %v1480, 0
        %v1557 = vsel %vm1483, %v1481, 0
        %v1560 = vsel %vm1483, %v1482, 0
        %1562 = vmatpush.bf16.msra.mxu0 0
        %1563 = vmatpush.bf16.msra.mxu0 0
        %1564 = vmatpush.bf16.msra.mxu0 0
        %1565 = vmatpush.bf16.msra.mxu0 0
        %1566 = vmatpush.bf16.msra.mxu0 0
        %1567 = vmatpush.bf16.msra.mxu0 %v1288
        %1568 = vmatpush.bf16.msra.mxu0 %v1272
        %1569 = vmatpush.bf16.msra.mxu0 %v1256
        %1570 = vmatmul.bf16.gmra.mxu0 %v1485
        %v1571 = vpop.f32.mrf.mxu0
        %v1572 = vadd.f32 0.0, %v1571
        %v1573 = vpop.f32.mrf.mxu0
        %v1574 = vadd.f32 0.0, %v1573
        %1575 = vmatmul.bf16.gmra.mxu0 %v1488
        %v1576 = vpop.f32.mrf.mxu0
        %v1577 = vadd.f32 0.0, %v1576
        %v1578 = vpop.f32.mrf.mxu0
        %v1579 = vadd.f32 0.0, %v1578
        %1580 = vmatmul.bf16.gmra.mxu0 %v1491
        %v1581 = vpop.f32.mrf.mxu0
        %v1582 = vadd.f32 0.0, %v1581
        %v1583 = vpop.f32.mrf.mxu0
        %v1584 = vadd.f32 0.0, %v1583
        %1585 = vmatmul.bf16.gmra.mxu0 %v1494
        %v1586 = vpop.f32.mrf.mxu0
        %v1587 = vadd.f32 0.0, %v1586
        %v1588 = vpop.f32.mrf.mxu0
        %v1589 = vadd.f32 0.0, %v1588
        %1590 = vmatmul.bf16.gmra.mxu0 %v1497
        %v1591 = vpop.f32.mrf.mxu0
        %v1592 = vadd.f32 0.0, %v1591
        %v1593 = vpop.f32.mrf.mxu0
        %v1594 = vadd.f32 0.0, %v1593
        %1595 = vmatmul.bf16.gmra.mxu0 %v1500
        %v1596 = vpop.f32.mrf.mxu0
        %v1597 = vadd.f32 0.0, %v1596
        %v1598 = vpop.f32.mrf.mxu0
        %v1599 = vadd.f32 0.0, %v1598
        %1600 = vmatmul.bf16.gmra.mxu0 %v1503
        %v1601 = vpop.f32.mrf.mxu0
        %v1602 = vadd.f32 0.0, %v1601
        %v1603 = vpop.f32.mrf.mxu0
        %v1604 = vadd.f32 0.0, %v1603
        %1605 = vmatmul.bf16.gmra.mxu0 %v1506
        %v1606 = vpop.f32.mrf.mxu0
        %v1607 = vadd.f32 0.0, %v1606
        %v1608 = vpop.f32.mrf.mxu0
        %v1609 = vadd.f32 0.0, %v1608
        %1610 = vmatmul.bf16.gmra.mxu0 %v1509
        %v1611 = vpop.f32.mrf.mxu0
        %v1612 = vadd.f32 0.0, %v1611
        %v1613 = vpop.f32.mrf.mxu0
        %v1614 = vadd.f32 0.0, %v1613
        %1615 = vmatmul.bf16.gmra.mxu0 %v1512
        %v1616 = vpop.f32.mrf.mxu0
        %v1617 = vadd.f32 0.0, %v1616
        %v1618 = vpop.f32.mrf.mxu0
        %v1619 = vadd.f32 0.0, %v1618
        %1620 = vmatmul.bf16.gmra.mxu0 %v1515
        %v1621 = vpop.f32.mrf.mxu0
        %v1622 = vadd.f32 0.0, %v1621
        %v1623 = vpop.f32.mrf.mxu0
        %v1624 = vadd.f32 0.0, %v1623
        %1625 = vmatmul.bf16.gmra.mxu0 %v1518
        %v1626 = vpop.f32.mrf.mxu0
        %v1627 = vadd.f32 0.0, %v1626
        %v1628 = vpop.f32.mrf.mxu0
        %v1629 = vadd.f32 0.0, %v1628
        %1630 = vmatmul.bf16.gmra.mxu0 %v1521
        %v1631 = vpop.f32.mrf.mxu0
        %v1632 = vadd.f32 0.0, %v1631
        %v1633 = vpop.f32.mrf.mxu0
        %v1634 = vadd.f32 0.0, %v1633
        %1635 = vmatmul.bf16.gmra.mxu0 %v1524
        %v1636 = vpop.f32.mrf.mxu0
        %v1637 = vadd.f32 0.0, %v1636
        %v1638 = vpop.f32.mrf.mxu0
        %v1639 = vadd.f32 0.0, %v1638
        %1640 = vmatmul.bf16.gmra.mxu0 %v1527
        %v1641 = vpop.f32.mrf.mxu0
        %v1642 = vadd.f32 0.0, %v1641
        %v1643 = vpop.f32.mrf.mxu0
        %v1644 = vadd.f32 0.0, %v1643
        %1645 = vmatmul.bf16.gmra.mxu0 %v1530
        %v1646 = vpop.f32.mrf.mxu0
        %v1647 = vadd.f32 0.0, %v1646
        %v1648 = vpop.f32.mrf.mxu0
        %v1649 = vadd.f32 0.0, %v1648
        %1650 = vmatmul.bf16.gmra.mxu0 %v1533
        %v1651 = vpop.f32.mrf.mxu0
        %v1652 = vadd.f32 0.0, %v1651
        %v1653 = vpop.f32.mrf.mxu0
        %v1654 = vadd.f32 0.0, %v1653
        %1655 = vmatmul.bf16.gmra.mxu0 %v1536
        %v1656 = vpop.f32.mrf.mxu0
        %v1657 = vadd.f32 0.0, %v1656
        %v1658 = vpop.f32.mrf.mxu0
        %v1659 = vadd.f32 0.0, %v1658
        %1660 = vmatmul.bf16.gmra.mxu0 %v1539
        %v1661 = vpop.f32.mrf.mxu0
        %v1662 = vadd.f32 0.0, %v1661
        %v1663 = vpop.f32.mrf.mxu0
        %v1664 = vadd.f32 0.0, %v1663
        %1665 = vmatmul.bf16.gmra.mxu0 %v1542
        %v1666 = vpop.f32.mrf.mxu0
        %v1667 = vadd.f32 0.0, %v1666
        %v1668 = vpop.f32.mrf.mxu0
        %v1669 = vadd.f32 0.0, %v1668
        %1670 = vmatmul.bf16.gmra.mxu0 %v1545
        %v1671 = vpop.f32.mrf.mxu0
        %v1672 = vadd.f32 0.0, %v1671
        %v1673 = vpop.f32.mrf.mxu0
        %v1674 = vadd.f32 0.0, %v1673
        %1675 = vmatmul.bf16.gmra.mxu0 %v1548
        %v1676 = vpop.f32.mrf.mxu0
        %v1677 = vadd.f32 0.0, %v1676
        %v1678 = vpop.f32.mrf.mxu0
        %v1679 = vadd.f32 0.0, %v1678
        %1680 = vmatmul.bf16.gmra.mxu0 %v1551
        %v1681 = vpop.f32.mrf.mxu0
        %v1682 = vadd.f32 0.0, %v1681
        %v1683 = vpop.f32.mrf.mxu0
        %v1684 = vadd.f32 0.0, %v1683
        %1685 = vmatmul.bf16.gmra.mxu0 %v1554
        %v1686 = vpop.f32.mrf.mxu0
        %v1687 = vadd.f32 0.0, %v1686
        %v1688 = vpop.f32.mrf.mxu0
        %v1689 = vadd.f32 0.0, %v1688
        %1690 = vmatmul.bf16.gmra.mxu0 %v1557
        %v1691 = vpop.f32.mrf.mxu0
        %v1692 = vadd.f32 0.0, %v1691
        %v1693 = vpop.f32.mrf.mxu0
        %v1694 = vadd.f32 0.0, %v1693
        %1695 = vmatmul.bf16.gmra.mxu0 %v1560
        %v1696 = vpop.f32.mrf.mxu0
        %v1697 = vadd.f32 0.0, %v1696
        %v1698 = vpop.f32.mrf.mxu0
        %1699 = vdwg.mxu0
        %1700 = vmatpush.bf16.msra.mxu0 0
        %1701 = vmatpush.bf16.msra.mxu0 0
        %1702 = vmatpush.bf16.msra.mxu0 0
        %1703 = vmatpush.bf16.msra.mxu0 0
        %1704 = vmatpush.bf16.msra.mxu0 0
        %1705 = vmatpush.bf16.msra.mxu0 %v1289
        %1706 = vmatpush.bf16.msra.mxu0 %v1273
        %1707 = vmatpush.bf16.msra.mxu0 %v1257
        %1708 = vmatmul.bf16.gmra.mxu0 %v1485
        %v1709 = vpop.f32.mrf.mxu0
        %v1710 = vadd.f32 0.0, %v1709
        %v1711 = vpop.f32.mrf.mxu0
        %v1712 = vadd.f32 0.0, %v1711
        %1713 = vmatmul.bf16.gmra.mxu0 %v1488
        %v1714 = vpop.f32.mrf.mxu0
        %v1715 = vadd.f32 0.0, %v1714
        %v1716 = vpop.f32.mrf.mxu0
        %v1717 = vadd.f32 0.0, %v1716
        %1718 = vmatmul.bf16.gmra.mxu0 %v1491
        %v1719 = vpop.f32.mrf.mxu0
        %v1720 = vadd.f32 0.0, %v1719
        %v1721 = vpop.f32.mrf.mxu0
        %v1722 = vadd.f32 0.0, %v1721
        %1723 = vmatmul.bf16.gmra.mxu0 %v1494
        %v1724 = vpop.f32.mrf.mxu0
        %v1725 = vadd.f32 0.0, %v1724
        %v1726 = vpop.f32.mrf.mxu0
        %v1727 = vadd.f32 0.0, %v1726
        %1728 = vmatmul.bf16.gmra.mxu0 %v1497
        %v1729 = vpop.f32.mrf.mxu0
        %v1730 = vadd.f32 0.0, %v1729
        %v1731 = vpop.f32.mrf.mxu0
        %v1732 = vadd.f32 0.0, %v1731
        %1733 = vmatmul.bf16.gmra.mxu0 %v1500
        %v1734 = vpop.f32.mrf.mxu0
        %v1735 = vadd.f32 0.0, %v1734
        %v1736 = vpop.f32.mrf.mxu0
        %v1737 = vadd.f32 0.0, %v1736
        %1738 = vmatmul.bf16.gmra.mxu0 %v1503
        %v1739 = vpop.f32.mrf.mxu0
        %v1740 = vadd.f32 0.0, %v1739
        %v1741 = vpop.f32.mrf.mxu0
        %v1742 = vadd.f32 0.0, %v1741
        %1743 = vmatmul.bf16.gmra.mxu0 %v1506
        %v1744 = vpop.f32.mrf.mxu0
        %v1745 = vadd.f32 0.0, %v1744
        %v1746 = vpop.f32.mrf.mxu0
        %v1747 = vadd.f32 0.0, %v1746
        %1748 = vmatmul.bf16.gmra.mxu0 %v1509
        %v1749 = vpop.f32.mrf.mxu0
        %v1750 = vadd.f32 0.0, %v1749
        %v1751 = vpop.f32.mrf.mxu0
        %v1752 = vadd.f32 0.0, %v1751
        %1753 = vmatmul.bf16.gmra.mxu0 %v1512
        %v1754 = vpop.f32.mrf.mxu0
        %v1755 = vadd.f32 0.0, %v1754
        %v1756 = vpop.f32.mrf.mxu0
        %v1757 = vadd.f32 0.0, %v1756
        %1758 = vmatmul.bf16.gmra.mxu0 %v1515
        %v1759 = vpop.f32.mrf.mxu0
        %v1760 = vadd.f32 0.0, %v1759
        %v1761 = vpop.f32.mrf.mxu0
        %v1762 = vadd.f32 0.0, %v1761
        %1763 = vmatmul.bf16.gmra.mxu0 %v1518
        %v1764 = vpop.f32.mrf.mxu0
        %v1765 = vadd.f32 0.0, %v1764
        %v1766 = vpop.f32.mrf.mxu0
        %v1767 = vadd.f32 0.0, %v1766
        %1768 = vmatmul.bf16.gmra.mxu0 %v1521
        %v1769 = vpop.f32.mrf.mxu0
        %v1770 = vadd.f32 0.0, %v1769
        %v1771 = vpop.f32.mrf.mxu0
        %v1772 = vadd.f32 0.0, %v1771
        %1773 = vmatmul.bf16.gmra.mxu0 %v1524
        %v1774 = vpop.f32.mrf.mxu0
        %v1775 = vadd.f32 0.0, %v1774
        %v1776 = vpop.f32.mrf.mxu0
        %v1777 = vadd.f32 0.0, %v1776
        %1778 = vmatmul.bf16.gmra.mxu0 %v1527
        %v1779 = vpop.f32.mrf.mxu0
        %v1780 = vadd.f32 0.0, %v1779
        %v1781 = vpop.f32.mrf.mxu0
        %v1782 = vadd.f32 0.0, %v1781
        %1783 = vmatmul.bf16.gmra.mxu0 %v1530
        %v1784 = vpop.f32.mrf.mxu0
        %v1785 = vadd.f32 0.0, %v1784
        %v1786 = vpop.f32.mrf.mxu0
        %v1787 = vadd.f32 0.0, %v1786
        %1788 = vmatmul.bf16.gmra.mxu0 %v1533
        %v1789 = vpop.f32.mrf.mxu0
        %v1790 = vadd.f32 0.0, %v1789
        %v1791 = vpop.f32.mrf.mxu0
        %v1792 = vadd.f32 0.0, %v1791
        %1793 = vmatmul.bf16.gmra.mxu0 %v1536
        %v1794 = vpop.f32.mrf.mxu0
        %v1795 = vadd.f32 0.0, %v1794
        %v1796 = vpop.f32.mrf.mxu0
        %v1797 = vadd.f32 0.0, %v1796
        %1798 = vmatmul.bf16.gmra.mxu0 %v1539
        %v1799 = vpop.f32.mrf.mxu0
        %v1800 = vadd.f32 0.0, %v1799
        %v1801 = vpop.f32.mrf.mxu0
        %v1802 = vadd.f32 0.0, %v1801
        %1803 = vmatmul.bf16.gmra.mxu0 %v1542
        %v1804 = vpop.f32.mrf.mxu0
        %v1805 = vadd.f32 0.0, %v1804
        %v1806 = vpop.f32.mrf.mxu0
        %v1807 = vadd.f32 0.0, %v1806
        %1808 = vmatmul.bf16.gmra.mxu0 %v1545
        %v1809 = vpop.f32.mrf.mxu0
        %v1810 = vadd.f32 0.0, %v1809
        %v1811 = vpop.f32.mrf.mxu0
        %v1812 = vadd.f32 0.0, %v1811
        %1813 = vmatmul.bf16.gmra.mxu0 %v1548
        %v1814 = vpop.f32.mrf.mxu0
        %v1815 = vadd.f32 0.0, %v1814
        %v1816 = vpop.f32.mrf.mxu0
        %v1817 = vadd.f32 0.0, %v1816
        %1818 = vmatmul.bf16.gmra.mxu0 %v1551
        %v1819 = vpop.f32.mrf.mxu0
        %v1820 = vadd.f32 0.0, %v1819
        %v1821 = vpop.f32.mrf.mxu0
        %v1822 = vadd.f32 0.0, %v1821
        %1823 = vmatmul.bf16.gmra.mxu0 %v1554
        %v1824 = vpop.f32.mrf.mxu0
        %v1825 = vadd.f32 0.0, %v1824
        %v1826 = vpop.f32.mrf.mxu0
        %v1827 = vadd.f32 0.0, %v1826
        %1828 = vmatmul.bf16.gmra.mxu0 %v1557
        %v1829 = vpop.f32.mrf.mxu0
        %v1830 = vadd.f32 0.0, %v1829
        %v1831 = vpop.f32.mrf.mxu0
        %v1832 = vadd.f32 0.0, %v1831
        %1833 = vmatmul.bf16.gmra.mxu0 %v1560
        %v1834 = vpop.f32.mrf.mxu0
        %v1835 = vadd.f32 0.0, %v1834
        %v1836 = vpop.f32.mrf.mxu0
        %1837 = vdwg.mxu0
        %1838 = vmatpush.bf16.msra.mxu0 0
        %1839 = vmatpush.bf16.msra.mxu0 0
        %1840 = vmatpush.bf16.msra.mxu0 0
        %1841 = vmatpush.bf16.msra.mxu0 0
        %1842 = vmatpush.bf16.msra.mxu0 0
        %1843 = vmatpush.bf16.msra.mxu0 %v1290
        %1844 = vmatpush.bf16.msra.mxu0 %v1274
        %1845 = vmatpush.bf16.msra.mxu0 %v1258
        %1846 = vmatmul.bf16.gmra.mxu0 %v1485
        %v1847 = vpop.f32.mrf.mxu0
        %v1848 = vadd.f32 0.0, %v1847
        %v1849 = vpop.f32.mrf.mxu0
        %v1850 = vadd.f32 0.0, %v1849
        %1851 = vmatmul.bf16.gmra.mxu0 %v1488
        %v1852 = vpop.f32.mrf.mxu0
        %v1853 = vadd.f32 0.0, %v1852
        %v1854 = vpop.f32.mrf.mxu0
        %v1855 = vadd.f32 0.0, %v1854
        %1856 = vmatmul.bf16.gmra.mxu0 %v1491
        %v1857 = vpop.f32.mrf.mxu0
        %v1858 = vadd.f32 0.0, %v1857
        %v1859 = vpop.f32.mrf.mxu0
        %v1860 = vadd.f32 0.0, %v1859
        %1861 = vmatmul.bf16.gmra.mxu0 %v1494
        %v1862 = vpop.f32.mrf.mxu0
        %v1863 = vadd.f32 0.0, %v1862
        %v1864 = vpop.f32.mrf.mxu0
        %v1865 = vadd.f32 0.0, %v1864
        %1866 = vmatmul.bf16.gmra.mxu0 %v1497
        %v1867 = vpop.f32.mrf.mxu0
        %v1868 = vadd.f32 0.0, %v1867
        %v1869 = vpop.f32.mrf.mxu0
        %v1870 = vadd.f32 0.0, %v1869
        %1871 = vmatmul.bf16.gmra.mxu0 %v1500
        %v1872 = vpop.f32.mrf.mxu0
        %v1873 = vadd.f32 0.0, %v1872
        %v1874 = vpop.f32.mrf.mxu0
        %v1875 = vadd.f32 0.0, %v1874
        %1876 = vmatmul.bf16.gmra.mxu0 %v1503
        %v1877 = vpop.f32.mrf.mxu0
        %v1878 = vadd.f32 0.0, %v1877
        %v1879 = vpop.f32.mrf.mxu0
        %v1880 = vadd.f32 0.0, %v1879
        %1881 = vmatmul.bf16.gmra.mxu0 %v1506
        %v1882 = vpop.f32.mrf.mxu0
        %v1883 = vadd.f32 0.0, %v1882
        %v1884 = vpop.f32.mrf.mxu0
        %v1885 = vadd.f32 0.0, %v1884
        %1886 = vmatmul.bf16.gmra.mxu0 %v1509
        %v1887 = vpop.f32.mrf.mxu0
        %v1888 = vadd.f32 0.0, %v1887
        %v1889 = vpop.f32.mrf.mxu0
        %v1890 = vadd.f32 0.0, %v1889
        %1891 = vmatmul.bf16.gmra.mxu0 %v1512
        %v1892 = vpop.f32.mrf.mxu0
        %v1893 = vadd.f32 0.0, %v1892
        %v1894 = vpop.f32.mrf.mxu0
        %v1895 = vadd.f32 0.0, %v1894
        %1896 = vmatmul.bf16.gmra.mxu0 %v1515
        %v1897 = vpop.f32.mrf.mxu0
        %v1898 = vadd.f32 0.0, %v1897
        %v1899 = vpop.f32.mrf.mxu0
        %v1900 = vadd.f32 0.0, %v1899
        %1901 = vmatmul.bf16.gmra.mxu0 %v1518
        %v1902 = vpop.f32.mrf.mxu0
        %v1903 = vadd.f32 0.0, %v1902
        %v1904 = vpop.f32.mrf.mxu0
        %v1905 = vadd.f32 0.0, %v1904
        %1906 = vmatmul.bf16.gmra.mxu0 %v1521
        %v1907 = vpop.f32.mrf.mxu0
        %v1908 = vadd.f32 0.0, %v1907
        %v1909 = vpop.f32.mrf.mxu0
        %v1910 = vadd.f32 0.0, %v1909
        %1911 = vmatmul.bf16.gmra.mxu0 %v1524
        %v1912 = vpop.f32.mrf.mxu0
        %v1913 = vadd.f32 0.0, %v1912
        %v1914 = vpop.f32.mrf.mxu0
        %v1915 = vadd.f32 0.0, %v1914
        %1916 = vmatmul.bf16.gmra.mxu0 %v1527
        %v1917 = vpop.f32.mrf.mxu0
        %v1918 = vadd.f32 0.0, %v1917
        %v1919 = vpop.f32.mrf.mxu0
        %v1920 = vadd.f32 0.0, %v1919
        %1921 = vmatmul.bf16.gmra.mxu0 %v1530
        %v1922 = vpop.f32.mrf.mxu0
        %v1923 = vadd.f32 0.0, %v1922
        %v1924 = vpop.f32.mrf.mxu0
        %v1925 = vadd.f32 0.0, %v1924
        %1926 = vmatmul.bf16.gmra.mxu0 %v1533
        %v1927 = vpop.f32.mrf.mxu0
        %v1928 = vadd.f32 0.0, %v1927
        %v1929 = vpop.f32.mrf.mxu0
        %v1930 = vadd.f32 0.0, %v1929
        %1931 = vmatmul.bf16.gmra.mxu0 %v1536
        %v1932 = vpop.f32.mrf.mxu0
        %v1933 = vadd.f32 0.0, %v1932
        %v1934 = vpop.f32.mrf.mxu0
        %v1935 = vadd.f32 0.0, %v1934
        %1936 = vmatmul.bf16.gmra.mxu0 %v1539
        %v1937 = vpop.f32.mrf.mxu0
        %v1938 = vadd.f32 0.0, %v1937
        %v1939 = vpop.f32.mrf.mxu0
        %v1940 = vadd.f32 0.0, %v1939
        %1941 = vmatmul.bf16.gmra.mxu0 %v1542
        %v1942 = vpop.f32.mrf.mxu0
        %v1943 = vadd.f32 0.0, %v1942
        %v1944 = vpop.f32.mrf.mxu0
        %v1945 = vadd.f32 0.0, %v1944
        %1946 = vmatmul.bf16.gmra.mxu0 %v1545
        %v1947 = vpop.f32.mrf.mxu0
        %v1948 = vadd.f32 0.0, %v1947
        %v1949 = vpop.f32.mrf.mxu0
        %v1950 = vadd.f32 0.0, %v1949
        %1951 = vmatmul.bf16.gmra.mxu0 %v1548
        %v1952 = vpop.f32.mrf.mxu0
        %v1953 = vadd.f32 0.0, %v1952
        %v1954 = vpop.f32.mrf.mxu0
        %v1955 = vadd.f32 0.0, %v1954
        %1956 = vmatmul.bf16.gmra.mxu0 %v1551
        %v1957 = vpop.f32.mrf.mxu0
        %v1958 = vadd.f32 0.0, %v1957
        %v1959 = vpop.f32.mrf.mxu0
        %v1960 = vadd.f32 0.0, %v1959
        %1961 = vmatmul.bf16.gmra.mxu0 %v1554
        %v1962 = vpop.f32.mrf.mxu0
        %v1963 = vadd.f32 0.0, %v1962
        %v1964 = vpop.f32.mrf.mxu0
        %v1965 = vadd.f32 0.0, %v1964
        %1966 = vmatmul.bf16.gmra.mxu0 %v1557
        %v1967 = vpop.f32.mrf.mxu0
        %v1968 = vadd.f32 0.0, %v1967
        %v1969 = vpop.f32.mrf.mxu0
        %v1970 = vadd.f32 0.0, %v1969
        %1971 = vmatmul.bf16.gmra.mxu0 %v1560
        %v1972 = vpop.f32.mrf.mxu0
        %v1973 = vadd.f32 0.0, %v1972
        %v1974 = vpop.f32.mrf.mxu0
        %1975 = vdwg.mxu0
        %1976 = vmatpush.bf16.msra.mxu0 0
        %1977 = vmatpush.bf16.msra.mxu0 0
        %1978 = vmatpush.bf16.msra.mxu0 0
        %1979 = vmatpush.bf16.msra.mxu0 0
        %1980 = vmatpush.bf16.msra.mxu0 0
        %1981 = vmatpush.bf16.msra.mxu0 %v1291
        %1982 = vmatpush.bf16.msra.mxu0 %v1275
        %1983 = vmatpush.bf16.msra.mxu0 %v1259
        %1984 = vmatmul.bf16.gmra.mxu0 %v1485
        %v1985 = vpop.f32.mrf.mxu0
        %v1986 = vadd.f32 0.0, %v1985
        %v1987 = vpop.f32.mrf.mxu0
        %v1988 = vadd.f32 0.0, %v1987
        %1989 = vmatmul.bf16.gmra.mxu0 %v1488
        %v1990 = vpop.f32.mrf.mxu0
        %v1991 = vadd.f32 0.0, %v1990
        %v1992 = vpop.f32.mrf.mxu0
        %v1993 = vadd.f32 0.0, %v1992
        %1994 = vmatmul.bf16.gmra.mxu0 %v1491
        %v1995 = vpop.f32.mrf.mxu0
        %v1996 = vadd.f32 0.0, %v1995
        %v1997 = vpop.f32.mrf.mxu0
        %v1998 = vadd.f32 0.0, %v1997
        %1999 = vmatmul.bf16.gmra.mxu0 %v1494
        %v2000 = vpop.f32.mrf.mxu0
        %v2001 = vadd.f32 0.0, %v2000
        %v2002 = vpop.f32.mrf.mxu0
        %v2003 = vadd.f32 0.0, %v2002
        %2004 = vmatmul.bf16.gmra.mxu0 %v1497
        %v2005 = vpop.f32.mrf.mxu0
        %v2006 = vadd.f32 0.0, %v2005
        %v2007 = vpop.f32.mrf.mxu0
        %v2008 = vadd.f32 0.0, %v2007
        %2009 = vmatmul.bf16.gmra.mxu0 %v1500
        %v2010 = vpop.f32.mrf.mxu0
        %v2011 = vadd.f32 0.0, %v2010
        %v2012 = vpop.f32.mrf.mxu0
        %v2013 = vadd.f32 0.0, %v2012
        %2014 = vmatmul.bf16.gmra.mxu0 %v1503
        %v2015 = vpop.f32.mrf.mxu0
        %v2016 = vadd.f32 0.0, %v2015
        %v2017 = vpop.f32.mrf.mxu0
        %v2018 = vadd.f32 0.0, %v2017
        %2019 = vmatmul.bf16.gmra.mxu0 %v1506
        %v2020 = vpop.f32.mrf.mxu0
        %v2021 = vadd.f32 0.0, %v2020
        %v2022 = vpop.f32.mrf.mxu0
        %v2023 = vadd.f32 0.0, %v2022
        %2024 = vmatmul.bf16.gmra.mxu0 %v1509
        %v2025 = vpop.f32.mrf.mxu0
        %v2026 = vadd.f32 0.0, %v2025
        %v2027 = vpop.f32.mrf.mxu0
        %v2028 = vadd.f32 0.0, %v2027
        %2029 = vmatmul.bf16.gmra.mxu0 %v1512
        %v2030 = vpop.f32.mrf.mxu0
        %v2031 = vadd.f32 0.0, %v2030
        %v2032 = vpop.f32.mrf.mxu0
        %v2033 = vadd.f32 0.0, %v2032
        %2034 = vmatmul.bf16.gmra.mxu0 %v1515
        %v2035 = vpop.f32.mrf.mxu0
        %v2036 = vadd.f32 0.0, %v2035
        %v2037 = vpop.f32.mrf.mxu0
        %v2038 = vadd.f32 0.0, %v2037
        %2039 = vmatmul.bf16.gmra.mxu0 %v1518
        %v2040 = vpop.f32.mrf.mxu0
        %v2041 = vadd.f32 0.0, %v2040
        %v2042 = vpop.f32.mrf.mxu0
        %v2043 = vadd.f32 0.0, %v2042
        %2044 = vmatmul.bf16.gmra.mxu0 %v1521
        %v2045 = vpop.f32.mrf.mxu0
        %v2046 = vadd.f32 0.0, %v2045
        %v2047 = vpop.f32.mrf.mxu0
        %v2048 = vadd.f32 0.0, %v2047
        %2049 = vmatmul.bf16.gmra.mxu0 %v1524
        %v2050 = vpop.f32.mrf.mxu0
        %v2051 = vadd.f32 0.0, %v2050
        %v2052 = vpop.f32.mrf.mxu0
        %v2053 = vadd.f32 0.0, %v2052
        %2054 = vmatmul.bf16.gmra.mxu0 %v1527
        %v2055 = vpop.f32.mrf.mxu0
        %v2056 = vadd.f32 0.0, %v2055
        %v2057 = vpop.f32.mrf.mxu0
        %v2058 = vadd.f32 0.0, %v2057
        %2059 = vmatmul.bf16.gmra.mxu0 %v1530
        %v2060 = vpop.f32.mrf.mxu0
        %v2061 = vadd.f32 0.0, %v2060
        %v2062 = vpop.f32.mrf.mxu0
        %v2063 = vadd.f32 0.0, %v2062
        %2064 = vmatmul.bf16.gmra.mxu0 %v1533
        %v2065 = vpop.f32.mrf.mxu0
        %v2066 = vadd.f32 0.0, %v2065
        %v2067 = vpop.f32.mrf.mxu0
        %v2068 = vadd.f32 0.0, %v2067
        %2069 = vmatmul.bf16.gmra.mxu0 %v1536
        %v2070 = vpop.f32.mrf.mxu0
        %v2071 = vadd.f32 0.0, %v2070
        %v2072 = vpop.f32.mrf.mxu0
        %v2073 = vadd.f32 0.0, %v2072
        %2074 = vmatmul.bf16.gmra.mxu0 %v1539
        %v2075 = vpop.f32.mrf.mxu0
        %v2076 = vadd.f32 0.0, %v2075
        %v2077 = vpop.f32.mrf.mxu0
        %v2078 = vadd.f32 0.0, %v2077
        %2079 = vmatmul.bf16.gmra.mxu0 %v1542
        %v2080 = vpop.f32.mrf.mxu0
        %v2081 = vadd.f32 0.0, %v2080
        %v2082 = vpop.f32.mrf.mxu0
        %v2083 = vadd.f32 0.0, %v2082
        %2084 = vmatmul.bf16.gmra.mxu0 %v1545
        %v2085 = vpop.f32.mrf.mxu0
        %v2086 = vadd.f32 0.0, %v2085
        %v2087 = vpop.f32.mrf.mxu0
        %v2088 = vadd.f32 0.0, %v2087
        %2089 = vmatmul.bf16.gmra.mxu0 %v1548
        %v2090 = vpop.f32.mrf.mxu0
        %v2091 = vadd.f32 0.0, %v2090
        %v2092 = vpop.f32.mrf.mxu0
        %v2093 = vadd.f32 0.0, %v2092
        %2094 = vmatmul.bf16.gmra.mxu0 %v1551
        %v2095 = vpop.f32.mrf.mxu0
        %v2096 = vadd.f32 0.0, %v2095
        %v2097 = vpop.f32.mrf.mxu0
        %v2098 = vadd.f32 0.0, %v2097
        %2099 = vmatmul.bf16.gmra.mxu0 %v1554
        %v2100 = vpop.f32.mrf.mxu0
        %v2101 = vadd.f32 0.0, %v2100
        %v2102 = vpop.f32.mrf.mxu0
        %v2103 = vadd.f32 0.0, %v2102
        %2104 = vmatmul.bf16.gmra.mxu0 %v1557
        %v2105 = vpop.f32.mrf.mxu0
        %v2106 = vadd.f32 0.0, %v2105
        %v2107 = vpop.f32.mrf.mxu0
        %v2108 = vadd.f32 0.0, %v2107
        %2109 = vmatmul.bf16.gmra.mxu0 %v1560
        %v2110 = vpop.f32.mrf.mxu0
        %v2111 = vadd.f32 0.0, %v2110
        %v2112 = vpop.f32.mrf.mxu0
        %2113 = vdwg.mxu0
        %2114 = vmatpush.bf16.msra.mxu0 0
        %2115 = vmatpush.bf16.msra.mxu0 0
        %2116 = vmatpush.bf16.msra.mxu0 0
        %2117 = vmatpush.bf16.msra.mxu0 0
        %2118 = vmatpush.bf16.msra.mxu0 0
        %2119 = vmatpush.bf16.msra.mxu0 %v1292
        %2120 = vmatpush.bf16.msra.mxu0 %v1276
        %2121 = vmatpush.bf16.msra.mxu0 %v1260
        %2122 = vmatmul.bf16.gmra.mxu0 %v1485
        %v2123 = vpop.f32.mrf.mxu0
        %v2124 = vadd.f32 0.0, %v2123
        %v2125 = vpop.f32.mrf.mxu0
        %v2126 = vadd.f32 0.0, %v2125
        %2127 = vmatmul.bf16.gmra.mxu0 %v1488
        %v2128 = vpop.f32.mrf.mxu0
        %v2129 = vadd.f32 0.0, %v2128
        %v2130 = vpop.f32.mrf.mxu0
        %v2131 = vadd.f32 0.0, %v2130
        %2132 = vmatmul.bf16.gmra.mxu0 %v1491
        %v2133 = vpop.f32.mrf.mxu0
        %v2134 = vadd.f32 0.0, %v2133
        %v2135 = vpop.f32.mrf.mxu0
        %v2136 = vadd.f32 0.0, %v2135
        %2137 = vmatmul.bf16.gmra.mxu0 %v1494
        %v2138 = vpop.f32.mrf.mxu0
        %v2139 = vadd.f32 0.0, %v2138
        %v2140 = vpop.f32.mrf.mxu0
        %v2141 = vadd.f32 0.0, %v2140
        %2142 = vmatmul.bf16.gmra.mxu0 %v1497
        %v2143 = vpop.f32.mrf.mxu0
        %v2144 = vadd.f32 0.0, %v2143
        %v2145 = vpop.f32.mrf.mxu0
        %v2146 = vadd.f32 0.0, %v2145
        %2147 = vmatmul.bf16.gmra.mxu0 %v1500
        %v2148 = vpop.f32.mrf.mxu0
        %v2149 = vadd.f32 0.0, %v2148
        %v2150 = vpop.f32.mrf.mxu0
        %v2151 = vadd.f32 0.0, %v2150
        %2152 = vmatmul.bf16.gmra.mxu0 %v1503
        %v2153 = vpop.f32.mrf.mxu0
        %v2154 = vadd.f32 0.0, %v2153
        %v2155 = vpop.f32.mrf.mxu0
        %v2156 = vadd.f32 0.0, %v2155
        %2157 = vmatmul.bf16.gmra.mxu0 %v1506
        %v2158 = vpop.f32.mrf.mxu0
        %v2159 = vadd.f32 0.0, %v2158
        %v2160 = vpop.f32.mrf.mxu0
        %v2161 = vadd.f32 0.0, %v2160
        %2162 = vmatmul.bf16.gmra.mxu0 %v1509
        %v2163 = vpop.f32.mrf.mxu0
        %v2164 = vadd.f32 0.0, %v2163
        %v2165 = vpop.f32.mrf.mxu0
        %v2166 = vadd.f32 0.0, %v2165
        %2167 = vmatmul.bf16.gmra.mxu0 %v1512
        %v2168 = vpop.f32.mrf.mxu0
        %v2169 = vadd.f32 0.0, %v2168
        %v2170 = vpop.f32.mrf.mxu0
        %v2171 = vadd.f32 0.0, %v2170
        %2172 = vmatmul.bf16.gmra.mxu0 %v1515
        %v2173 = vpop.f32.mrf.mxu0
        %v2174 = vadd.f32 0.0, %v2173
        %v2175 = vpop.f32.mrf.mxu0
        %v2176 = vadd.f32 0.0, %v2175
        %2177 = vmatmul.bf16.gmra.mxu0 %v1518
        %v2178 = vpop.f32.mrf.mxu0
        %v2179 = vadd.f32 0.0, %v2178
        %v2180 = vpop.f32.mrf.mxu0
        %v2181 = vadd.f32 0.0, %v2180
        %2182 = vmatmul.bf16.gmra.mxu0 %v1521
        %v2183 = vpop.f32.mrf.mxu0
        %v2184 = vadd.f32 0.0, %v2183
        %v2185 = vpop.f32.mrf.mxu0
        %v2186 = vadd.f32 0.0, %v2185
        %2187 = vmatmul.bf16.gmra.mxu0 %v1524
        %v2188 = vpop.f32.mrf.mxu0
        %v2189 = vadd.f32 0.0, %v2188
        %v2190 = vpop.f32.mrf.mxu0
        %v2191 = vadd.f32 0.0, %v2190
        %2192 = vmatmul.bf16.gmra.mxu0 %v1527
        %v2193 = vpop.f32.mrf.mxu0
        %v2194 = vadd.f32 0.0, %v2193
        %v2195 = vpop.f32.mrf.mxu0
        %v2196 = vadd.f32 0.0, %v2195
        %2197 = vmatmul.bf16.gmra.mxu0 %v1530
        %v2198 = vpop.f32.mrf.mxu0
        %v2199 = vadd.f32 0.0, %v2198
        %v2200 = vpop.f32.mrf.mxu0
        %v2201 = vadd.f32 0.0, %v2200
        %2202 = vmatmul.bf16.gmra.mxu0 %v1533
        %v2203 = vpop.f32.mrf.mxu0
        %v2204 = vadd.f32 0.0, %v2203
        %v2205 = vpop.f32.mrf.mxu0
        %v2206 = vadd.f32 0.0, %v2205
        %2207 = vmatmul.bf16.gmra.mxu0 %v1536
        %v2208 = vpop.f32.mrf.mxu0
        %v2209 = vadd.f32 0.0, %v2208
        %v2210 = vpop.f32.mrf.mxu0
        %v2211 = vadd.f32 0.0, %v2210
        %2212 = vmatmul.bf16.gmra.mxu0 %v1539
        %v2213 = vpop.f32.mrf.mxu0
        %v2214 = vadd.f32 0.0, %v2213
        %v2215 = vpop.f32.mrf.mxu0
        %v2216 = vadd.f32 0.0, %v2215
        %2217 = vmatmul.bf16.gmra.mxu0 %v1542
        %v2218 = vpop.f32.mrf.mxu0
        %v2219 = vadd.f32 0.0, %v2218
        %v2220 = vpop.f32.mrf.mxu0
        %v2221 = vadd.f32 0.0, %v2220
        %2222 = vmatmul.bf16.gmra.mxu0 %v1545
        %v2223 = vpop.f32.mrf.mxu0
        %v2224 = vadd.f32 0.0, %v2223
        %v2225 = vpop.f32.mrf.mxu0
        %v2226 = vadd.f32 0.0, %v2225
        %2227 = vmatmul.bf16.gmra.mxu0 %v1548
        %v2228 = vpop.f32.mrf.mxu0
        %v2229 = vadd.f32 0.0, %v2228
        %v2230 = vpop.f32.mrf.mxu0
        %v2231 = vadd.f32 0.0, %v2230
        %2232 = vmatmul.bf16.gmra.mxu0 %v1551
        %v2233 = vpop.f32.mrf.mxu0
        %v2234 = vadd.f32 0.0, %v2233
        %v2235 = vpop.f32.mrf.mxu0
        %v2236 = vadd.f32 0.0, %v2235
        %2237 = vmatmul.bf16.gmra.mxu0 %v1554
        %v2238 = vpop.f32.mrf.mxu0
        %v2239 = vadd.f32 0.0, %v2238
        %v2240 = vpop.f32.mrf.mxu0
        %v2241 = vadd.f32 0.0, %v2240
        %2242 = vmatmul.bf16.gmra.mxu0 %v1557
        %v2243 = vpop.f32.mrf.mxu0
        %v2244 = vadd.f32 0.0, %v2243
        %v2245 = vpop.f32.mrf.mxu0
        %v2246 = vadd.f32 0.0, %v2245
        %2247 = vmatmul.bf16.gmra.mxu0 %v1560
        %v2248 = vpop.f32.mrf.mxu0
        %v2249 = vadd.f32 0.0, %v2248
        %v2250 = vpop.f32.mrf.mxu0
        %2251 = vdwg.mxu0
        %2252 = vmatpush.bf16.msra.mxu0 0
        %2253 = vmatpush.bf16.msra.mxu0 0
        %2254 = vmatpush.bf16.msra.mxu0 0
        %2255 = vmatpush.bf16.msra.mxu0 0
        %2256 = vmatpush.bf16.msra.mxu0 0
        %2257 = vmatpush.bf16.msra.mxu0 %v1293
        %2258 = vmatpush.bf16.msra.mxu0 %v1277
        %2259 = vmatpush.bf16.msra.mxu0 %v1261
        %2260 = vmatmul.bf16.gmra.mxu0 %v1485
        %v2261 = vpop.f32.mrf.mxu0
        %v2262 = vadd.f32 0.0, %v2261
        %v2263 = vpop.f32.mrf.mxu0
        %v2264 = vadd.f32 0.0, %v2263
        %2265 = vmatmul.bf16.gmra.mxu0 %v1488
        %v2266 = vpop.f32.mrf.mxu0
        %v2267 = vadd.f32 0.0, %v2266
        %v2268 = vpop.f32.mrf.mxu0
        %v2269 = vadd.f32 0.0, %v2268
        %2270 = vmatmul.bf16.gmra.mxu0 %v1491
        %v2271 = vpop.f32.mrf.mxu0
        %v2272 = vadd.f32 0.0, %v2271
        %v2273 = vpop.f32.mrf.mxu0
        %v2274 = vadd.f32 0.0, %v2273
        %2275 = vmatmul.bf16.gmra.mxu0 %v1494
        %v2276 = vpop.f32.mrf.mxu0
        %v2277 = vadd.f32 0.0, %v2276
        %v2278 = vpop.f32.mrf.mxu0
        %v2279 = vadd.f32 0.0, %v2278
        %2280 = vmatmul.bf16.gmra.mxu0 %v1497
        %v2281 = vpop.f32.mrf.mxu0
        %v2282 = vadd.f32 0.0, %v2281
        %v2283 = vpop.f32.mrf.mxu0
        %v2284 = vadd.f32 0.0, %v2283
        %2285 = vmatmul.bf16.gmra.mxu0 %v1500
        %v2286 = vpop.f32.mrf.mxu0
        %v2287 = vadd.f32 0.0, %v2286
        %v2288 = vpop.f32.mrf.mxu0
        %v2289 = vadd.f32 0.0, %v2288
        %2290 = vmatmul.bf16.gmra.mxu0 %v1503
        %v2291 = vpop.f32.mrf.mxu0
        %v2292 = vadd.f32 0.0, %v2291
        %v2293 = vpop.f32.mrf.mxu0
        %v2294 = vadd.f32 0.0, %v2293
        %2295 = vmatmul.bf16.gmra.mxu0 %v1506
        %v2296 = vpop.f32.mrf.mxu0
        %v2297 = vadd.f32 0.0, %v2296
        %v2298 = vpop.f32.mrf.mxu0
        %v2299 = vadd.f32 0.0, %v2298
        %2300 = vmatmul.bf16.gmra.mxu0 %v1509
        %v2301 = vpop.f32.mrf.mxu0
        %v2302 = vadd.f32 0.0, %v2301
        %v2303 = vpop.f32.mrf.mxu0
        %v2304 = vadd.f32 0.0, %v2303
        %2305 = vmatmul.bf16.gmra.mxu0 %v1512
        %v2306 = vpop.f32.mrf.mxu0
        %v2307 = vadd.f32 0.0, %v2306
        %v2308 = vpop.f32.mrf.mxu0
        %v2309 = vadd.f32 0.0, %v2308
        %2310 = vmatmul.bf16.gmra.mxu0 %v1515
        %v2311 = vpop.f32.mrf.mxu0
        %v2312 = vadd.f32 0.0, %v2311
        %v2313 = vpop.f32.mrf.mxu0
        %v2314 = vadd.f32 0.0, %v2313
        %2315 = vmatmul.bf16.gmra.mxu0 %v1518
        %v2316 = vpop.f32.mrf.mxu0
        %v2317 = vadd.f32 0.0, %v2316
        %v2318 = vpop.f32.mrf.mxu0
        %v2319 = vadd.f32 0.0, %v2318
        %2320 = vmatmul.bf16.gmra.mxu0 %v1521
        %v2321 = vpop.f32.mrf.mxu0
        %v2322 = vadd.f32 0.0, %v2321
        %v2323 = vpop.f32.mrf.mxu0
        %v2324 = vadd.f32 0.0, %v2323
        %2325 = vmatmul.bf16.gmra.mxu0 %v1524
        %v2326 = vpop.f32.mrf.mxu0
        %v2327 = vadd.f32 0.0, %v2326
        %v2328 = vpop.f32.mrf.mxu0
        %v2329 = vadd.f32 0.0, %v2328
        %2330 = vmatmul.bf16.gmra.mxu0 %v1527
        %v2331 = vpop.f32.mrf.mxu0
        %v2332 = vadd.f32 0.0, %v2331
        %v2333 = vpop.f32.mrf.mxu0
        %v2334 = vadd.f32 0.0, %v2333
        %2335 = vmatmul.bf16.gmra.mxu0 %v1530
        %v2336 = vpop.f32.mrf.mxu0
        %v2337 = vadd.f32 0.0, %v2336
        %v2338 = vpop.f32.mrf.mxu0
        %v2339 = vadd.f32 0.0, %v2338
        %2340 = vmatmul.bf16.gmra.mxu0 %v1533
        %v2341 = vpop.f32.mrf.mxu0
        %v2342 = vadd.f32 0.0, %v2341
        %v2343 = vpop.f32.mrf.mxu0
        %v2344 = vadd.f32 0.0, %v2343
        %2345 = vmatmul.bf16.gmra.mxu0 %v1536
        %v2346 = vpop.f32.mrf.mxu0
        %v2347 = vadd.f32 0.0, %v2346
        %v2348 = vpop.f32.mrf.mxu0
        %v2349 = vadd.f32 0.0, %v2348
        %2350 = vmatmul.bf16.gmra.mxu0 %v1539
        %v2351 = vpop.f32.mrf.mxu0
        %v2352 = vadd.f32 0.0, %v2351
        %v2353 = vpop.f32.mrf.mxu0
        %v2354 = vadd.f32 0.0, %v2353
        %2355 = vmatmul.bf16.gmra.mxu0 %v1542
        %v2356 = vpop.f32.mrf.mxu0
        %v2357 = vadd.f32 0.0, %v2356
        %v2358 = vpop.f32.mrf.mxu0
        %v2359 = vadd.f32 0.0, %v2358
        %2360 = vmatmul.bf16.gmra.mxu0 %v1545
        %v2361 = vpop.f32.mrf.mxu0
        %v2362 = vadd.f32 0.0, %v2361
        %v2363 = vpop.f32.mrf.mxu0
        %v2364 = vadd.f32 0.0, %v2363
        %2365 = vmatmul.bf16.gmra.mxu0 %v1548
        %v2366 = vpop.f32.mrf.mxu0
        %v2367 = vadd.f32 0.0, %v2366
        %v2368 = vpop.f32.mrf.mxu0
        %v2369 = vadd.f32 0.0, %v2368
        %2370 = vmatmul.bf16.gmra.mxu0 %v1551
        %v2371 = vpop.f32.mrf.mxu0
        %v2372 = vadd.f32 0.0, %v2371
        %v2373 = vpop.f32.mrf.mxu0
        %v2374 = vadd.f32 0.0, %v2373
        %2375 = vmatmul.bf16.gmra.mxu0 %v1554
        %v2376 = vpop.f32.mrf.mxu0
        %v2377 = vadd.f32 0.0, %v2376
        %v2378 = vpop.f32.mrf.mxu0
        %v2379 = vadd.f32 0.0, %v2378
        %2380 = vmatmul.bf16.gmra.mxu0 %v1557
        %v2381 = vpop.f32.mrf.mxu0
        %v2382 = vadd.f32 0.0, %v2381
        %v2383 = vpop.f32.mrf.mxu0
        %v2384 = vadd.f32 0.0, %v2383
        %2385 = vmatmul.bf16.gmra.mxu0 %v1560
        %v2386 = vpop.f32.mrf.mxu0
        %v2387 = vadd.f32 0.0, %v2386
        %v2388 = vpop.f32.mrf.mxu0
        %2389 = vdwg.mxu0
        %2390 = vmatpush.bf16.msra.mxu0 0
        %2391 = vmatpush.bf16.msra.mxu0 0
        %2392 = vmatpush.bf16.msra.mxu0 0
        %2393 = vmatpush.bf16.msra.mxu0 0
        %2394 = vmatpush.bf16.msra.mxu0 0
        %2395 = vmatpush.bf16.msra.mxu0 %v1294
        %2396 = vmatpush.bf16.msra.mxu0 %v1278
        %2397 = vmatpush.bf16.msra.mxu0 %v1262
        %2398 = vmatmul.bf16.gmra.mxu0 %v1485
        %v2399 = vpop.f32.mrf.mxu0
        %v2400 = vadd.f32 0.0, %v2399
        %v2401 = vpop.f32.mrf.mxu0
        %v2402 = vadd.f32 0.0, %v2401
        %2403 = vmatmul.bf16.gmra.mxu0 %v1488
        %v2404 = vpop.f32.mrf.mxu0
        %v2405 = vadd.f32 0.0, %v2404
        %v2406 = vpop.f32.mrf.mxu0
        %v2407 = vadd.f32 0.0, %v2406
        %2408 = vmatmul.bf16.gmra.mxu0 %v1491
        %v2409 = vpop.f32.mrf.mxu0
        %v2410 = vadd.f32 0.0, %v2409
        %v2411 = vpop.f32.mrf.mxu0
        %v2412 = vadd.f32 0.0, %v2411
        %2413 = vmatmul.bf16.gmra.mxu0 %v1494
        %v2414 = vpop.f32.mrf.mxu0
        %v2415 = vadd.f32 0.0, %v2414
        %v2416 = vpop.f32.mrf.mxu0
        %v2417 = vadd.f32 0.0, %v2416
        %2418 = vmatmul.bf16.gmra.mxu0 %v1497
        %v2419 = vpop.f32.mrf.mxu0
        %v2420 = vadd.f32 0.0, %v2419
        %v2421 = vpop.f32.mrf.mxu0
        %v2422 = vadd.f32 0.0, %v2421
        %2423 = vmatmul.bf16.gmra.mxu0 %v1500
        %v2424 = vpop.f32.mrf.mxu0
        %v2425 = vadd.f32 0.0, %v2424
        %v2426 = vpop.f32.mrf.mxu0
        %v2427 = vadd.f32 0.0, %v2426
        %2428 = vmatmul.bf16.gmra.mxu0 %v1503
        %v2429 = vpop.f32.mrf.mxu0
        %v2430 = vadd.f32 0.0, %v2429
        %v2431 = vpop.f32.mrf.mxu0
        %v2432 = vadd.f32 0.0, %v2431
        %2433 = vmatmul.bf16.gmra.mxu0 %v1506
        %v2434 = vpop.f32.mrf.mxu0
        %v2435 = vadd.f32 0.0, %v2434
        %v2436 = vpop.f32.mrf.mxu0
        %v2437 = vadd.f32 0.0, %v2436
        %2438 = vmatmul.bf16.gmra.mxu0 %v1509
        %v2439 = vpop.f32.mrf.mxu0
        %v2440 = vadd.f32 0.0, %v2439
        %v2441 = vpop.f32.mrf.mxu0
        %v2442 = vadd.f32 0.0, %v2441
        %2443 = vmatmul.bf16.gmra.mxu0 %v1512
        %v2444 = vpop.f32.mrf.mxu0
        %v2445 = vadd.f32 0.0, %v2444
        %v2446 = vpop.f32.mrf.mxu0
        %v2447 = vadd.f32 0.0, %v2446
        %2448 = vmatmul.bf16.gmra.mxu0 %v1515
        %v2449 = vpop.f32.mrf.mxu0
        %v2450 = vadd.f32 0.0, %v2449
        %v2451 = vpop.f32.mrf.mxu0
        %v2452 = vadd.f32 0.0, %v2451
        %2453 = vmatmul.bf16.gmra.mxu0 %v1518
        %v2454 = vpop.f32.mrf.mxu0
        %v2455 = vadd.f32 0.0, %v2454
        %v2456 = vpop.f32.mrf.mxu0
        %v2457 = vadd.f32 0.0, %v2456
        %2458 = vmatmul.bf16.gmra.mxu0 %v1521
        %v2459 = vpop.f32.mrf.mxu0
        %v2460 = vadd.f32 0.0, %v2459
        %v2461 = vpop.f32.mrf.mxu0
        %v2462 = vadd.f32 0.0, %v2461
        %2463 = vmatmul.bf16.gmra.mxu0 %v1524
        %v2464 = vpop.f32.mrf.mxu0
        %v2465 = vadd.f32 0.0, %v2464
        %v2466 = vpop.f32.mrf.mxu0
        %v2467 = vadd.f32 0.0, %v2466
        %2468 = vmatmul.bf16.gmra.mxu0 %v1527
        %v2469 = vpop.f32.mrf.mxu0
        %v2470 = vadd.f32 0.0, %v2469
        %v2471 = vpop.f32.mrf.mxu0
        %v2472 = vadd.f32 0.0, %v2471
        %2473 = vmatmul.bf16.gmra.mxu0 %v1530
        %v2474 = vpop.f32.mrf.mxu0
        %v2475 = vadd.f32 0.0, %v2474
        %v2476 = vpop.f32.mrf.mxu0
        %v2477 = vadd.f32 0.0, %v2476
        %2478 = vmatmul.bf16.gmra.mxu0 %v1533
        %v2479 = vpop.f32.mrf.mxu0
        %v2480 = vadd.f32 0.0, %v2479
        %v2481 = vpop.f32.mrf.mxu0
        %v2482 = vadd.f32 0.0, %v2481
        %2483 = vmatmul.bf16.gmra.mxu0 %v1536
        %v2484 = vpop.f32.mrf.mxu0
        %v2485 = vadd.f32 0.0, %v2484
        %v2486 = vpop.f32.mrf.mxu0
        %v2487 = vadd.f32 0.0, %v2486
        %2488 = vmatmul.bf16.gmra.mxu0 %v1539
        %v2489 = vpop.f32.mrf.mxu0
        %v2490 = vadd.f32 0.0, %v2489
        %v2491 = vpop.f32.mrf.mxu0
        %v2492 = vadd.f32 0.0, %v2491
        %2493 = vmatmul.bf16.gmra.mxu0 %v1542
        %v2494 = vpop.f32.mrf.mxu0
        %v2495 = vadd.f32 0.0, %v2494
        %v2496 = vpop.f32.mrf.mxu0
        %v2497 = vadd.f32 0.0, %v2496
        %2498 = vmatmul.bf16.gmra.mxu0 %v1545
        %v2499 = vpop.f32.mrf.mxu0
        %v2500 = vadd.f32 0.0, %v2499
        %v2501 = vpop.f32.mrf.mxu0
        %v2502 = vadd.f32 0.0, %v2501
        %2503 = vmatmul.bf16.gmra.mxu0 %v1548
        %v2504 = vpop.f32.mrf.mxu0
        %v2505 = vadd.f32 0.0, %v2504
        %v2506 = vpop.f32.mrf.mxu0
        %v2507 = vadd.f32 0.0, %v2506
        %2508 = vmatmul.bf16.gmra.mxu0 %v1551
        %v2509 = vpop.f32.mrf.mxu0
        %v2510 = vadd.f32 0.0, %v2509
        %v2511 = vpop.f32.mrf.mxu0
        %v2512 = vadd.f32 0.0, %v2511
        %2513 = vmatmul.bf16.gmra.mxu0 %v1554
        %v2514 = vpop.f32.mrf.mxu0
        %v2515 = vadd.f32 0.0, %v2514
        %v2516 = vpop.f32.mrf.mxu0
        %v2517 = vadd.f32 0.0, %v2516
        %2518 = vmatmul.bf16.gmra.mxu0 %v1557
        %v2519 = vpop.f32.mrf.mxu0
        %v2520 = vadd.f32 0.0, %v2519
        %v2521 = vpop.f32.mrf.mxu0
        %v2522 = vadd.f32 0.0, %v2521
        %2523 = vmatmul.bf16.gmra.mxu0 %v1560
        %v2524 = vpop.f32.mrf.mxu0
        %v2525 = vadd.f32 0.0, %v2524
        %v2526 = vpop.f32.mrf.mxu0
        %2527 = vdwg.mxu0
        %2528 = vmatpush.bf16.msra.mxu0 0
        %2529 = vmatpush.bf16.msra.mxu0 0
        %2530 = vmatpush.bf16.msra.mxu0 0
        %2531 = vmatpush.bf16.msra.mxu0 0
        %2532 = vmatpush.bf16.msra.mxu0 0
        %2533 = vmatpush.bf16.msra.mxu0 %v1295
        %2534 = vmatpush.bf16.msra.mxu0 %v1279
        %2535 = vmatpush.bf16.msra.mxu0 %v1263
        %2536 = vmatmul.bf16.gmra.mxu0 %v1485
        %v2537 = vpop.f32.mrf.mxu0
        %v2538 = vadd.f32 0.0, %v2537
        %v2539 = vpop.f32.mrf.mxu0
        %v2540 = vadd.f32 0.0, %v2539
        %2541 = vmatmul.bf16.gmra.mxu0 %v1488
        %v2542 = vpop.f32.mrf.mxu0
        %v2543 = vadd.f32 0.0, %v2542
        %v2544 = vpop.f32.mrf.mxu0
        %v2545 = vadd.f32 0.0, %v2544
        %2546 = vmatmul.bf16.gmra.mxu0 %v1491
        %v2547 = vpop.f32.mrf.mxu0
        %v2548 = vadd.f32 0.0, %v2547
        %v2549 = vpop.f32.mrf.mxu0
        %v2550 = vadd.f32 0.0, %v2549
        %2551 = vmatmul.bf16.gmra.mxu0 %v1494
        %v2552 = vpop.f32.mrf.mxu0
        %v2553 = vadd.f32 0.0, %v2552
        %v2554 = vpop.f32.mrf.mxu0
        %v2555 = vadd.f32 0.0, %v2554
        %2556 = vmatmul.bf16.gmra.mxu0 %v1497
        %v2557 = vpop.f32.mrf.mxu0
        %v2558 = vadd.f32 0.0, %v2557
        %v2559 = vpop.f32.mrf.mxu0
        %v2560 = vadd.f32 0.0, %v2559
        %2561 = vmatmul.bf16.gmra.mxu0 %v1500
        %v2562 = vpop.f32.mrf.mxu0
        %v2563 = vadd.f32 0.0, %v2562
        %v2564 = vpop.f32.mrf.mxu0
        %v2565 = vadd.f32 0.0, %v2564
        %2566 = vmatmul.bf16.gmra.mxu0 %v1503
        %v2567 = vpop.f32.mrf.mxu0
        %v2568 = vadd.f32 0.0, %v2567
        %v2569 = vpop.f32.mrf.mxu0
        %v2570 = vadd.f32 0.0, %v2569
        %2571 = vmatmul.bf16.gmra.mxu0 %v1506
        %v2572 = vpop.f32.mrf.mxu0
        %v2573 = vadd.f32 0.0, %v2572
        %v2574 = vpop.f32.mrf.mxu0
        %v2575 = vadd.f32 0.0, %v2574
        %2576 = vmatmul.bf16.gmra.mxu0 %v1509
        %v2577 = vpop.f32.mrf.mxu0
        %v2578 = vadd.f32 0.0, %v2577
        %v2579 = vpop.f32.mrf.mxu0
        %v2580 = vadd.f32 0.0, %v2579
        %2581 = vmatmul.bf16.gmra.mxu0 %v1512
        %v2582 = vpop.f32.mrf.mxu0
        %v2583 = vadd.f32 0.0, %v2582
        %v2584 = vpop.f32.mrf.mxu0
        %v2585 = vadd.f32 0.0, %v2584
        %2586 = vmatmul.bf16.gmra.mxu0 %v1515
        %v2587 = vpop.f32.mrf.mxu0
        %v2588 = vadd.f32 0.0, %v2587
        %v2589 = vpop.f32.mrf.mxu0
        %v2590 = vadd.f32 0.0, %v2589
        %2591 = vmatmul.bf16.gmra.mxu0 %v1518
        %v2592 = vpop.f32.mrf.mxu0
        %v2593 = vadd.f32 0.0, %v2592
        %v2594 = vpop.f32.mrf.mxu0
        %v2595 = vadd.f32 0.0, %v2594
        %2596 = vmatmul.bf16.gmra.mxu0 %v1521
        %v2597 = vpop.f32.mrf.mxu0
        %v2598 = vadd.f32 0.0, %v2597
        %v2599 = vpop.f32.mrf.mxu0
        %v2600 = vadd.f32 0.0, %v2599
        %2601 = vmatmul.bf16.gmra.mxu0 %v1524
        %v2602 = vpop.f32.mrf.mxu0
        %v2603 = vadd.f32 0.0, %v2602
        %v2604 = vpop.f32.mrf.mxu0
        %v2605 = vadd.f32 0.0, %v2604
        %2606 = vmatmul.bf16.gmra.mxu0 %v1527
        %v2607 = vpop.f32.mrf.mxu0
        %v2608 = vadd.f32 0.0, %v2607
        %v2609 = vpop.f32.mrf.mxu0
        %v2610 = vadd.f32 0.0, %v2609
        %2611 = vmatmul.bf16.gmra.mxu0 %v1530
        %v2612 = vpop.f32.mrf.mxu0
        %v2613 = vadd.f32 0.0, %v2612
        %v2614 = vpop.f32.mrf.mxu0
        %v2615 = vadd.f32 0.0, %v2614
        %2616 = vmatmul.bf16.gmra.mxu0 %v1533
        %v2617 = vpop.f32.mrf.mxu0
        %v2618 = vadd.f32 0.0, %v2617
        %v2619 = vpop.f32.mrf.mxu0
        %v2620 = vadd.f32 0.0, %v2619
        %2621 = vmatmul.bf16.gmra.mxu0 %v1536
        %v2622 = vpop.f32.mrf.mxu0
        %v2623 = vadd.f32 0.0, %v2622
        %v2624 = vpop.f32.mrf.mxu0
        %v2625 = vadd.f32 0.0, %v2624
        %2626 = vmatmul.bf16.gmra.mxu0 %v1539
        %v2627 = vpop.f32.mrf.mxu0
        %v2628 = vadd.f32 0.0, %v2627
        %v2629 = vpop.f32.mrf.mxu0
        %v2630 = vadd.f32 0.0, %v2629
        %2631 = vmatmul.bf16.gmra.mxu0 %v1542
        %v2632 = vpop.f32.mrf.mxu0
        %v2633 = vadd.f32 0.0, %v2632
        %v2634 = vpop.f32.mrf.mxu0
        %v2635 = vadd.f32 0.0, %v2634
        %2636 = vmatmul.bf16.gmra.mxu0 %v1545
        %v2637 = vpop.f32.mrf.mxu0
        %v2638 = vadd.f32 0.0, %v2637
        %v2639 = vpop.f32.mrf.mxu0
        %v2640 = vadd.f32 0.0, %v2639
        %2641 = vmatmul.bf16.gmra.mxu0 %v1548
        %v2642 = vpop.f32.mrf.mxu0
        %v2643 = vadd.f32 0.0, %v2642
        %v2644 = vpop.f32.mrf.mxu0
        %v2645 = vadd.f32 0.0, %v2644
        %2646 = vmatmul.bf16.gmra.mxu0 %v1551
        %v2647 = vpop.f32.mrf.mxu0
        %v2648 = vadd.f32 0.0, %v2647
        %v2649 = vpop.f32.mrf.mxu0
        %v2650 = vadd.f32 0.0, %v2649
        %2651 = vmatmul.bf16.gmra.mxu0 %v1554
        %v2652 = vpop.f32.mrf.mxu0
        %v2653 = vadd.f32 0.0, %v2652
        %v2654 = vpop.f32.mrf.mxu0
        %v2655 = vadd.f32 0.0, %v2654
        %2656 = vmatmul.bf16.gmra.mxu0 %v1557
        %v2657 = vpop.f32.mrf.mxu0
        %v2658 = vadd.f32 0.0, %v2657
        %v2659 = vpop.f32.mrf.mxu0
        %v2660 = vadd.f32 0.0, %v2659
        %2661 = vmatmul.bf16.gmra.mxu0 %v1560
        %v2662 = vpop.f32.mrf.mxu0
        %v2663 = vadd.f32 0.0, %v2662
        %v2664 = vpop.f32.mrf.mxu0
        %2665 = vdwg.mxu0
        %2666 = vmatpush.bf16.msra.mxu0 0
        %2667 = vmatpush.bf16.msra.mxu0 0
        %2668 = vmatpush.bf16.msra.mxu0 0
        %2669 = vmatpush.bf16.msra.mxu0 0
        %2670 = vmatpush.bf16.msra.mxu0 0
        %2671 = vmatpush.bf16.msra.mxu0 %v1296
        %2672 = vmatpush.bf16.msra.mxu0 %v1280
        %2673 = vmatpush.bf16.msra.mxu0 %v1264
        %2674 = vmatmul.bf16.gmra.mxu0 %v1485
        %v2675 = vpop.f32.mrf.mxu0
        %v2676 = vadd.f32 0.0, %v2675
        %v2677 = vpop.f32.mrf.mxu0
        %v2678 = vadd.f32 0.0, %v2677
        %2679 = vmatmul.bf16.gmra.mxu0 %v1488
        %v2680 = vpop.f32.mrf.mxu0
        %v2681 = vadd.f32 0.0, %v2680
        %v2682 = vpop.f32.mrf.mxu0
        %v2683 = vadd.f32 0.0, %v2682
        %2684 = vmatmul.bf16.gmra.mxu0 %v1491
        %v2685 = vpop.f32.mrf.mxu0
        %v2686 = vadd.f32 0.0, %v2685
        %v2687 = vpop.f32.mrf.mxu0
        %v2688 = vadd.f32 0.0, %v2687
        %2689 = vmatmul.bf16.gmra.mxu0 %v1494
        %v2690 = vpop.f32.mrf.mxu0
        %v2691 = vadd.f32 0.0, %v2690
        %v2692 = vpop.f32.mrf.mxu0
        %v2693 = vadd.f32 0.0, %v2692
        %2694 = vmatmul.bf16.gmra.mxu0 %v1497
        %v2695 = vpop.f32.mrf.mxu0
        %v2696 = vadd.f32 0.0, %v2695
        %v2697 = vpop.f32.mrf.mxu0
        %v2698 = vadd.f32 0.0, %v2697
        %2699 = vmatmul.bf16.gmra.mxu0 %v1500
        %v2700 = vpop.f32.mrf.mxu0
        %v2701 = vadd.f32 0.0, %v2700
        %v2702 = vpop.f32.mrf.mxu0
        %v2703 = vadd.f32 0.0, %v2702
        %2704 = vmatmul.bf16.gmra.mxu0 %v1503
        %v2705 = vpop.f32.mrf.mxu0
        %v2706 = vadd.f32 0.0, %v2705
        %v2707 = vpop.f32.mrf.mxu0
        %v2708 = vadd.f32 0.0, %v2707
        %2709 = vmatmul.bf16.gmra.mxu0 %v1506
        %v2710 = vpop.f32.mrf.mxu0
        %v2711 = vadd.f32 0.0, %v2710
        %v2712 = vpop.f32.mrf.mxu0
        %v2713 = vadd.f32 0.0, %v2712
        %2714 = vmatmul.bf16.gmra.mxu0 %v1509
        %v2715 = vpop.f32.mrf.mxu0
        %v2716 = vadd.f32 0.0, %v2715
        %v2717 = vpop.f32.mrf.mxu0
        %v2718 = vadd.f32 0.0, %v2717
        %2719 = vmatmul.bf16.gmra.mxu0 %v1512
        %v2720 = vpop.f32.mrf.mxu0
        %v2721 = vadd.f32 0.0, %v2720
        %v2722 = vpop.f32.mrf.mxu0
        %v2723 = vadd.f32 0.0, %v2722
        %2724 = vmatmul.bf16.gmra.mxu0 %v1515
        %v2725 = vpop.f32.mrf.mxu0
        %v2726 = vadd.f32 0.0, %v2725
        %v2727 = vpop.f32.mrf.mxu0
        %v2728 = vadd.f32 0.0, %v2727
        %2729 = vmatmul.bf16.gmra.mxu0 %v1518
        %v2730 = vpop.f32.mrf.mxu0
        %v2731 = vadd.f32 0.0, %v2730
        %v2732 = vpop.f32.mrf.mxu0
        %v2733 = vadd.f32 0.0, %v2732
        %2734 = vmatmul.bf16.gmra.mxu0 %v1521
        %v2735 = vpop.f32.mrf.mxu0
        %v2736 = vadd.f32 0.0, %v2735
        %v2737 = vpop.f32.mrf.mxu0
        %v2738 = vadd.f32 0.0, %v2737
        %2739 = vmatmul.bf16.gmra.mxu0 %v1524
        %v2740 = vpop.f32.mrf.mxu0
        %v2741 = vadd.f32 0.0, %v2740
        %v2742 = vpop.f32.mrf.mxu0
        %v2743 = vadd.f32 0.0, %v2742
        %2744 = vmatmul.bf16.gmra.mxu0 %v1527
        %v2745 = vpop.f32.mrf.mxu0
        %v2746 = vadd.f32 0.0, %v2745
        %v2747 = vpop.f32.mrf.mxu0
        %v2748 = vadd.f32 0.0, %v2747
        %2749 = vmatmul.bf16.gmra.mxu0 %v1530
        %v2750 = vpop.f32.mrf.mxu0
        %v2751 = vadd.f32 0.0, %v2750
        %v2752 = vpop.f32.mrf.mxu0
        %v2753 = vadd.f32 0.0, %v2752
        %2754 = vmatmul.bf16.gmra.mxu0 %v1533
        %v2755 = vpop.f32.mrf.mxu0
        %v2756 = vadd.f32 0.0, %v2755
        %v2757 = vpop.f32.mrf.mxu0
        %v2758 = vadd.f32 0.0, %v2757
        %2759 = vmatmul.bf16.gmra.mxu0 %v1536
        %v2760 = vpop.f32.mrf.mxu0
        %v2761 = vadd.f32 0.0, %v2760
        %v2762 = vpop.f32.mrf.mxu0
        %v2763 = vadd.f32 0.0, %v2762
        %2764 = vmatmul.bf16.gmra.mxu0 %v1539
        %v2765 = vpop.f32.mrf.mxu0
        %v2766 = vadd.f32 0.0, %v2765
        %v2767 = vpop.f32.mrf.mxu0
        %v2768 = vadd.f32 0.0, %v2767
        %2769 = vmatmul.bf16.gmra.mxu0 %v1542
        %v2770 = vpop.f32.mrf.mxu0
        %v2771 = vadd.f32 0.0, %v2770
        %v2772 = vpop.f32.mrf.mxu0
        %v2773 = vadd.f32 0.0, %v2772
        %2774 = vmatmul.bf16.gmra.mxu0 %v1545
        %v2775 = vpop.f32.mrf.mxu0
        %v2776 = vadd.f32 0.0, %v2775
        %v2777 = vpop.f32.mrf.mxu0
        %v2778 = vadd.f32 0.0, %v2777
        %2779 = vmatmul.bf16.gmra.mxu0 %v1548
        %v2780 = vpop.f32.mrf.mxu0
        %v2781 = vadd.f32 0.0, %v2780
        %v2782 = vpop.f32.mrf.mxu0
        %v2783 = vadd.f32 0.0, %v2782
        %2784 = vmatmul.bf16.gmra.mxu0 %v1551
        %v2785 = vpop.f32.mrf.mxu0
        %v2786 = vadd.f32 0.0, %v2785
        %v2787 = vpop.f32.mrf.mxu0
        %v2788 = vadd.f32 0.0, %v2787
        %2789 = vmatmul.bf16.gmra.mxu0 %v1554
        %v2790 = vpop.f32.mrf.mxu0
        %v2791 = vadd.f32 0.0, %v2790
        %v2792 = vpop.f32.mrf.mxu0
        %v2793 = vadd.f32 0.0, %v2792
        %2794 = vmatmul.bf16.gmra.mxu0 %v1557
        %v2795 = vpop.f32.mrf.mxu0
        %v2796 = vadd.f32 0.0, %v2795
        %v2797 = vpop.f32.mrf.mxu0
        %v2798 = vadd.f32 0.0, %v2797
        %2799 = vmatmul.bf16.gmra.mxu0 %v1560
        %v2800 = vpop.f32.mrf.mxu0
        %v2801 = vadd.f32 0.0, %v2800
        %v2802 = vpop.f32.mrf.mxu0
        %2803 = vdwg.mxu0
        %2804 = vmatpush.bf16.msra.mxu0 0
        %2805 = vmatpush.bf16.msra.mxu0 0
        %2806 = vmatpush.bf16.msra.mxu0 0
        %2807 = vmatpush.bf16.msra.mxu0 0
        %2808 = vmatpush.bf16.msra.mxu0 0
        %2809 = vmatpush.bf16.msra.mxu0 %v1297
        %2810 = vmatpush.bf16.msra.mxu0 %v1281
        %2811 = vmatpush.bf16.msra.mxu0 %v1265
        %2812 = vmatmul.bf16.gmra.mxu0 %v1485
        %v2813 = vpop.f32.mrf.mxu0
        %v2814 = vadd.f32 0.0, %v2813
        %v2815 = vpop.f32.mrf.mxu0
        %v2816 = vadd.f32 0.0, %v2815
        %2817 = vmatmul.bf16.gmra.mxu0 %v1488
        %v2818 = vpop.f32.mrf.mxu0
        %v2819 = vadd.f32 0.0, %v2818
        %v2820 = vpop.f32.mrf.mxu0
        %v2821 = vadd.f32 0.0, %v2820
        %2822 = vmatmul.bf16.gmra.mxu0 %v1491
        %v2823 = vpop.f32.mrf.mxu0
        %v2824 = vadd.f32 0.0, %v2823
        %v2825 = vpop.f32.mrf.mxu0
        %v2826 = vadd.f32 0.0, %v2825
        %2827 = vmatmul.bf16.gmra.mxu0 %v1494
        %v2828 = vpop.f32.mrf.mxu0
        %v2829 = vadd.f32 0.0, %v2828
        %v2830 = vpop.f32.mrf.mxu0
        %v2831 = vadd.f32 0.0, %v2830
        %2832 = vmatmul.bf16.gmra.mxu0 %v1497
        %v2833 = vpop.f32.mrf.mxu0
        %v2834 = vadd.f32 0.0, %v2833
        %v2835 = vpop.f32.mrf.mxu0
        %v2836 = vadd.f32 0.0, %v2835
        %2837 = vmatmul.bf16.gmra.mxu0 %v1500
        %v2838 = vpop.f32.mrf.mxu0
        %v2839 = vadd.f32 0.0, %v2838
        %v2840 = vpop.f32.mrf.mxu0
        %v2841 = vadd.f32 0.0, %v2840
        %2842 = vmatmul.bf16.gmra.mxu0 %v1503
        %v2843 = vpop.f32.mrf.mxu0
        %v2844 = vadd.f32 0.0, %v2843
        %v2845 = vpop.f32.mrf.mxu0
        %v2846 = vadd.f32 0.0, %v2845
        %2847 = vmatmul.bf16.gmra.mxu0 %v1506
        %v2848 = vpop.f32.mrf.mxu0
        %v2849 = vadd.f32 0.0, %v2848
        %v2850 = vpop.f32.mrf.mxu0
        %v2851 = vadd.f32 0.0, %v2850
        %2852 = vmatmul.bf16.gmra.mxu0 %v1509
        %v2853 = vpop.f32.mrf.mxu0
        %v2854 = vadd.f32 0.0, %v2853
        %v2855 = vpop.f32.mrf.mxu0
        %v2856 = vadd.f32 0.0, %v2855
        %2857 = vmatmul.bf16.gmra.mxu0 %v1512
        %v2858 = vpop.f32.mrf.mxu0
        %v2859 = vadd.f32 0.0, %v2858
        %v2860 = vpop.f32.mrf.mxu0
        %v2861 = vadd.f32 0.0, %v2860
        %2862 = vmatmul.bf16.gmra.mxu0 %v1515
        %v2863 = vpop.f32.mrf.mxu0
        %v2864 = vadd.f32 0.0, %v2863
        %v2865 = vpop.f32.mrf.mxu0
        %v2866 = vadd.f32 0.0, %v2865
        %2867 = vmatmul.bf16.gmra.mxu0 %v1518
        %v2868 = vpop.f32.mrf.mxu0
        %v2869 = vadd.f32 0.0, %v2868
        %v2870 = vpop.f32.mrf.mxu0
        %v2871 = vadd.f32 0.0, %v2870
        %2872 = vmatmul.bf16.gmra.mxu0 %v1521
        %v2873 = vpop.f32.mrf.mxu0
        %v2874 = vadd.f32 0.0, %v2873
        %v2875 = vpop.f32.mrf.mxu0
        %v2876 = vadd.f32 0.0, %v2875
        %2877 = vmatmul.bf16.gmra.mxu0 %v1524
        %v2878 = vpop.f32.mrf.mxu0
        %v2879 = vadd.f32 0.0, %v2878
        %v2880 = vpop.f32.mrf.mxu0
        %v2881 = vadd.f32 0.0, %v2880
        %2882 = vmatmul.bf16.gmra.mxu0 %v1527
        %v2883 = vpop.f32.mrf.mxu0
        %v2884 = vadd.f32 0.0, %v2883
        %v2885 = vpop.f32.mrf.mxu0
        %v2886 = vadd.f32 0.0, %v2885
        %2887 = vmatmul.bf16.gmra.mxu0 %v1530
        %v2888 = vpop.f32.mrf.mxu0
        %v2889 = vadd.f32 0.0, %v2888
        %v2890 = vpop.f32.mrf.mxu0
        %v2891 = vadd.f32 0.0, %v2890
        %2892 = vmatmul.bf16.gmra.mxu0 %v1533
        %v2893 = vpop.f32.mrf.mxu0
        %v2894 = vadd.f32 0.0, %v2893
        %v2895 = vpop.f32.mrf.mxu0
        %v2896 = vadd.f32 0.0, %v2895
        %2897 = vmatmul.bf16.gmra.mxu0 %v1536
        %v2898 = vpop.f32.mrf.mxu0
        %v2899 = vadd.f32 0.0, %v2898
        %v2900 = vpop.f32.mrf.mxu0
        %v2901 = vadd.f32 0.0, %v2900
        %2902 = vmatmul.bf16.gmra.mxu0 %v1539
        %v2903 = vpop.f32.mrf.mxu0
        %v2904 = vadd.f32 0.0, %v2903
        %v2905 = vpop.f32.mrf.mxu0
        %v2906 = vadd.f32 0.0, %v2905
        %2907 = vmatmul.bf16.gmra.mxu0 %v1542
        %v2908 = vpop.f32.mrf.mxu0
        %v2909 = vadd.f32 0.0, %v2908
        %v2910 = vpop.f32.mrf.mxu0
        %v2911 = vadd.f32 0.0, %v2910
        %2912 = vmatmul.bf16.gmra.mxu0 %v1545
        %v2913 = vpop.f32.mrf.mxu0
        %v2914 = vadd.f32 0.0, %v2913
        %v2915 = vpop.f32.mrf.mxu0
        %v2916 = vadd.f32 0.0, %v2915
        %2917 = vmatmul.bf16.gmra.mxu0 %v1548
        %v2918 = vpop.f32.mrf.mxu0
        %v2919 = vadd.f32 0.0, %v2918
        %v2920 = vpop.f32.mrf.mxu0
        %v2921 = vadd.f32 0.0, %v2920
        %2922 = vmatmul.bf16.gmra.mxu0 %v1551
        %v2923 = vpop.f32.mrf.mxu0
        %v2924 = vadd.f32 0.0, %v2923
        %v2925 = vpop.f32.mrf.mxu0
        %v2926 = vadd.f32 0.0, %v2925
        %2927 = vmatmul.bf16.gmra.mxu0 %v1554
        %v2928 = vpop.f32.mrf.mxu0
        %v2929 = vadd.f32 0.0, %v2928
        %v2930 = vpop.f32.mrf.mxu0
        %v2931 = vadd.f32 0.0, %v2930
        %2932 = vmatmul.bf16.gmra.mxu0 %v1557
        %v2933 = vpop.f32.mrf.mxu0
        %v2934 = vadd.f32 0.0, %v2933
        %v2935 = vpop.f32.mrf.mxu0
        %v2936 = vadd.f32 0.0, %v2935
        %2937 = vmatmul.bf16.gmra.mxu0 %v1560
        %v2938 = vpop.f32.mrf.mxu0
        %v2939 = vadd.f32 0.0, %v2938
        %v2940 = vpop.f32.mrf.mxu0
        %2941 = vdwg.mxu0
        %2942 = vmatpush.bf16.msra.mxu0 0
        %2943 = vmatpush.bf16.msra.mxu0 0
        %2944 = vmatpush.bf16.msra.mxu0 0
        %2945 = vmatpush.bf16.msra.mxu0 0
        %2946 = vmatpush.bf16.msra.mxu0 0
        %2947 = vmatpush.bf16.msra.mxu0 %v1298
        %2948 = vmatpush.bf16.msra.mxu0 %v1282
        %2949 = vmatpush.bf16.msra.mxu0 %v1266
        %2950 = vmatmul.bf16.gmra.mxu0 %v1485
        %v2951 = vpop.f32.mrf.mxu0
        %v2952 = vadd.f32 0.0, %v2951
        %v2953 = vpop.f32.mrf.mxu0
        %v2954 = vadd.f32 0.0, %v2953
        %2955 = vmatmul.bf16.gmra.mxu0 %v1488
        %v2956 = vpop.f32.mrf.mxu0
        %v2957 = vadd.f32 0.0, %v2956
        %v2958 = vpop.f32.mrf.mxu0
        %v2959 = vadd.f32 0.0, %v2958
        %2960 = vmatmul.bf16.gmra.mxu0 %v1491
        %v2961 = vpop.f32.mrf.mxu0
        %v2962 = vadd.f32 0.0, %v2961
        %v2963 = vpop.f32.mrf.mxu0
        %v2964 = vadd.f32 0.0, %v2963
        %2965 = vmatmul.bf16.gmra.mxu0 %v1494
        %v2966 = vpop.f32.mrf.mxu0
        %v2967 = vadd.f32 0.0, %v2966
        %v2968 = vpop.f32.mrf.mxu0
        %v2969 = vadd.f32 0.0, %v2968
        %2970 = vmatmul.bf16.gmra.mxu0 %v1497
        %v2971 = vpop.f32.mrf.mxu0
        %v2972 = vadd.f32 0.0, %v2971
        %v2973 = vpop.f32.mrf.mxu0
        %v2974 = vadd.f32 0.0, %v2973
        %2975 = vmatmul.bf16.gmra.mxu0 %v1500
        %v2976 = vpop.f32.mrf.mxu0
        %v2977 = vadd.f32 0.0, %v2976
        %v2978 = vpop.f32.mrf.mxu0
        %v2979 = vadd.f32 0.0, %v2978
        %2980 = vmatmul.bf16.gmra.mxu0 %v1503
        %v2981 = vpop.f32.mrf.mxu0
        %v2982 = vadd.f32 0.0, %v2981
        %v2983 = vpop.f32.mrf.mxu0
        %v2984 = vadd.f32 0.0, %v2983
        %2985 = vmatmul.bf16.gmra.mxu0 %v1506
        %v2986 = vpop.f32.mrf.mxu0
        %v2987 = vadd.f32 0.0, %v2986
        %v2988 = vpop.f32.mrf.mxu0
        %v2989 = vadd.f32 0.0, %v2988
        %2990 = vmatmul.bf16.gmra.mxu0 %v1509
        %v2991 = vpop.f32.mrf.mxu0
        %v2992 = vadd.f32 0.0, %v2991
        %v2993 = vpop.f32.mrf.mxu0
        %v2994 = vadd.f32 0.0, %v2993
        %2995 = vmatmul.bf16.gmra.mxu0 %v1512
        %v2996 = vpop.f32.mrf.mxu0
        %v2997 = vadd.f32 0.0, %v2996
        %v2998 = vpop.f32.mrf.mxu0
        %v2999 = vadd.f32 0.0, %v2998
        %3000 = vmatmul.bf16.gmra.mxu0 %v1515
        %v3001 = vpop.f32.mrf.mxu0
        %v3002 = vadd.f32 0.0, %v3001
        %v3003 = vpop.f32.mrf.mxu0
        %v3004 = vadd.f32 0.0, %v3003
        %3005 = vmatmul.bf16.gmra.mxu0 %v1518
        %v3006 = vpop.f32.mrf.mxu0
        %v3007 = vadd.f32 0.0, %v3006
        %v3008 = vpop.f32.mrf.mxu0
        %v3009 = vadd.f32 0.0, %v3008
        %3010 = vmatmul.bf16.gmra.mxu0 %v1521
        %v3011 = vpop.f32.mrf.mxu0
        %v3012 = vadd.f32 0.0, %v3011
        %v3013 = vpop.f32.mrf.mxu0
        %v3014 = vadd.f32 0.0, %v3013
        %3015 = vmatmul.bf16.gmra.mxu0 %v1524
        %v3016 = vpop.f32.mrf.mxu0
        %v3017 = vadd.f32 0.0, %v3016
        %v3018 = vpop.f32.mrf.mxu0
        %v3019 = vadd.f32 0.0, %v3018
        %3020 = vmatmul.bf16.gmra.mxu0 %v1527
        %v3021 = vpop.f32.mrf.mxu0
        %v3022 = vadd.f32 0.0, %v3021
        %v3023 = vpop.f32.mrf.mxu0
        %v3024 = vadd.f32 0.0, %v3023
        %3025 = vmatmul.bf16.gmra.mxu0 %v1530
        %v3026 = vpop.f32.mrf.mxu0
        %v3027 = vadd.f32 0.0, %v3026
        %v3028 = vpop.f32.mrf.mxu0
        %v3029 = vadd.f32 0.0, %v3028
        %3030 = vmatmul.bf16.gmra.mxu0 %v1533
        %v3031 = vpop.f32.mrf.mxu0
        %v3032 = vadd.f32 0.0, %v3031
        %v3033 = vpop.f32.mrf.mxu0
        %v3034 = vadd.f32 0.0, %v3033
        %3035 = vmatmul.bf16.gmra.mxu0 %v1536
        %v3036 = vpop.f32.mrf.mxu0
        %v3037 = vadd.f32 0.0, %v3036
        %v3038 = vpop.f32.mrf.mxu0
        %v3039 = vadd.f32 0.0, %v3038
        %3040 = vmatmul.bf16.gmra.mxu0 %v1539
        %v3041 = vpop.f32.mrf.mxu0
        %v3042 = vadd.f32 0.0, %v3041
        %v3043 = vpop.f32.mrf.mxu0
        %v3044 = vadd.f32 0.0, %v3043
        %3045 = vmatmul.bf16.gmra.mxu0 %v1542
        %v3046 = vpop.f32.mrf.mxu0
        %v3047 = vadd.f32 0.0, %v3046
        %v3048 = vpop.f32.mrf.mxu0
        %v3049 = vadd.f32 0.0, %v3048
        %3050 = vmatmul.bf16.gmra.mxu0 %v1545
        %v3051 = vpop.f32.mrf.mxu0
        %v3052 = vadd.f32 0.0, %v3051
        %v3053 = vpop.f32.mrf.mxu0
        %v3054 = vadd.f32 0.0, %v3053
        %3055 = vmatmul.bf16.gmra.mxu0 %v1548
        %v3056 = vpop.f32.mrf.mxu0
        %v3057 = vadd.f32 0.0, %v3056
        %v3058 = vpop.f32.mrf.mxu0
        %v3059 = vadd.f32 0.0, %v3058
        %3060 = vmatmul.bf16.gmra.mxu0 %v1551
        %v3061 = vpop.f32.mrf.mxu0
        %v3062 = vadd.f32 0.0, %v3061
        %v3063 = vpop.f32.mrf.mxu0
        %v3064 = vadd.f32 0.0, %v3063
        %3065 = vmatmul.bf16.gmra.mxu0 %v1554
        %v3066 = vpop.f32.mrf.mxu0
        %v3067 = vadd.f32 0.0, %v3066
        %v3068 = vpop.f32.mrf.mxu0
        %v3069 = vadd.f32 0.0, %v3068
        %3070 = vmatmul.bf16.gmra.mxu0 %v1557
        %v3071 = vpop.f32.mrf.mxu0
        %v3072 = vadd.f32 0.0, %v3071
        %v3073 = vpop.f32.mrf.mxu0
        %v3074 = vadd.f32 0.0, %v3073
        %3075 = vmatmul.bf16.gmra.mxu0 %v1560
        %v3076 = vpop.f32.mrf.mxu0
        %v3077 = vadd.f32 0.0, %v3076
        %v3078 = vpop.f32.mrf.mxu0
        %3079 = vdwg.mxu0
        %3080 = vmatpush.bf16.msra.mxu0 0
        %3081 = vmatpush.bf16.msra.mxu0 0
        %3082 = vmatpush.bf16.msra.mxu0 0
        %3083 = vmatpush.bf16.msra.mxu0 0
        %3084 = vmatpush.bf16.msra.mxu0 0
        %3085 = vmatpush.bf16.msra.mxu0 %v1299
        %3086 = vmatpush.bf16.msra.mxu0 %v1283
        %3087 = vmatpush.bf16.msra.mxu0 %v1267
        %3088 = vmatmul.bf16.gmra.mxu0 %v1485
        %v3089 = vpop.f32.mrf.mxu0
        %v3090 = vadd.f32 0.0, %v3089
        %v3091 = vpop.f32.mrf.mxu0
        %v3092 = vadd.f32 0.0, %v3091
        %3093 = vmatmul.bf16.gmra.mxu0 %v1488
        %v3094 = vpop.f32.mrf.mxu0
        %v3095 = vadd.f32 0.0, %v3094
        %v3096 = vpop.f32.mrf.mxu0
        %v3097 = vadd.f32 0.0, %v3096
        %3098 = vmatmul.bf16.gmra.mxu0 %v1491
        %v3099 = vpop.f32.mrf.mxu0
        %v3100 = vadd.f32 0.0, %v3099
        %v3101 = vpop.f32.mrf.mxu0
        %v3102 = vadd.f32 0.0, %v3101
        %3103 = vmatmul.bf16.gmra.mxu0 %v1494
        %v3104 = vpop.f32.mrf.mxu0
        %v3105 = vadd.f32 0.0, %v3104
        %v3106 = vpop.f32.mrf.mxu0
        %v3107 = vadd.f32 0.0, %v3106
        %3108 = vmatmul.bf16.gmra.mxu0 %v1497
        %v3109 = vpop.f32.mrf.mxu0
        %v3110 = vadd.f32 0.0, %v3109
        %v3111 = vpop.f32.mrf.mxu0
        %v3112 = vadd.f32 0.0, %v3111
        %3113 = vmatmul.bf16.gmra.mxu0 %v1500
        %v3114 = vpop.f32.mrf.mxu0
        %v3115 = vadd.f32 0.0, %v3114
        %v3116 = vpop.f32.mrf.mxu0
        %v3117 = vadd.f32 0.0, %v3116
        %3118 = vmatmul.bf16.gmra.mxu0 %v1503
        %v3119 = vpop.f32.mrf.mxu0
        %v3120 = vadd.f32 0.0, %v3119
        %v3121 = vpop.f32.mrf.mxu0
        %v3122 = vadd.f32 0.0, %v3121
        %3123 = vmatmul.bf16.gmra.mxu0 %v1506
        %v3124 = vpop.f32.mrf.mxu0
        %v3125 = vadd.f32 0.0, %v3124
        %v3126 = vpop.f32.mrf.mxu0
        %v3127 = vadd.f32 0.0, %v3126
        %3128 = vmatmul.bf16.gmra.mxu0 %v1509
        %v3129 = vpop.f32.mrf.mxu0
        %v3130 = vadd.f32 0.0, %v3129
        %v3131 = vpop.f32.mrf.mxu0
        %v3132 = vadd.f32 0.0, %v3131
        %3133 = vmatmul.bf16.gmra.mxu0 %v1512
        %v3134 = vpop.f32.mrf.mxu0
        %v3135 = vadd.f32 0.0, %v3134
        %v3136 = vpop.f32.mrf.mxu0
        %v3137 = vadd.f32 0.0, %v3136
        %3138 = vmatmul.bf16.gmra.mxu0 %v1515
        %v3139 = vpop.f32.mrf.mxu0
        %v3140 = vadd.f32 0.0, %v3139
        %v3141 = vpop.f32.mrf.mxu0
        %v3142 = vadd.f32 0.0, %v3141
        %3143 = vmatmul.bf16.gmra.mxu0 %v1518
        %v3144 = vpop.f32.mrf.mxu0
        %v3145 = vadd.f32 0.0, %v3144
        %v3146 = vpop.f32.mrf.mxu0
        %v3147 = vadd.f32 0.0, %v3146
        %3148 = vmatmul.bf16.gmra.mxu0 %v1521
        %v3149 = vpop.f32.mrf.mxu0
        %v3150 = vadd.f32 0.0, %v3149
        %v3151 = vpop.f32.mrf.mxu0
        %v3152 = vadd.f32 0.0, %v3151
        %3153 = vmatmul.bf16.gmra.mxu0 %v1524
        %v3154 = vpop.f32.mrf.mxu0
        %v3155 = vadd.f32 0.0, %v3154
        %v3156 = vpop.f32.mrf.mxu0
        %v3157 = vadd.f32 0.0, %v3156
        %3158 = vmatmul.bf16.gmra.mxu0 %v1527
        %v3159 = vpop.f32.mrf.mxu0
        %v3160 = vadd.f32 0.0, %v3159
        %v3161 = vpop.f32.mrf.mxu0
        %v3162 = vadd.f32 0.0, %v3161
        %3163 = vmatmul.bf16.gmra.mxu0 %v1530
        %v3164 = vpop.f32.mrf.mxu0
        %v3165 = vadd.f32 0.0, %v3164
        %v3166 = vpop.f32.mrf.mxu0
        %v3167 = vadd.f32 0.0, %v3166
        %3168 = vmatmul.bf16.gmra.mxu0 %v1533
        %v3169 = vpop.f32.mrf.mxu0
        %v3170 = vadd.f32 0.0, %v3169
        %v3171 = vpop.f32.mrf.mxu0
        %v3172 = vadd.f32 0.0, %v3171
        %3173 = vmatmul.bf16.gmra.mxu0 %v1536
        %v3174 = vpop.f32.mrf.mxu0
        %v3175 = vadd.f32 0.0, %v3174
        %v3176 = vpop.f32.mrf.mxu0
        %v3177 = vadd.f32 0.0, %v3176
        %3178 = vmatmul.bf16.gmra.mxu0 %v1539
        %v3179 = vpop.f32.mrf.mxu0
        %v3180 = vadd.f32 0.0, %v3179
        %v3181 = vpop.f32.mrf.mxu0
        %v3182 = vadd.f32 0.0, %v3181
        %3183 = vmatmul.bf16.gmra.mxu0 %v1542
        %v3184 = vpop.f32.mrf.mxu0
        %v3185 = vadd.f32 0.0, %v3184
        %v3186 = vpop.f32.mrf.mxu0
        %v3187 = vadd.f32 0.0, %v3186
        %3188 = vmatmul.bf16.gmra.mxu0 %v1545
        %v3189 = vpop.f32.mrf.mxu0
        %v3190 = vadd.f32 0.0, %v3189
        %v3191 = vpop.f32.mrf.mxu0
        %v3192 = vadd.f32 0.0, %v3191
        %3193 = vmatmul.bf16.gmra.mxu0 %v1548
        %v3194 = vpop.f32.mrf.mxu0
        %v3195 = vadd.f32 0.0, %v3194
        %v3196 = vpop.f32.mrf.mxu0
        %v3197 = vadd.f32 0.0, %v3196
        %3198 = vmatmul.bf16.gmra.mxu0 %v1551
        %v3199 = vpop.f32.mrf.mxu0
        %v3200 = vadd.f32 0.0, %v3199
        %v3201 = vpop.f32.mrf.mxu0
        %v3202 = vadd.f32 0.0, %v3201
        %3203 = vmatmul.bf16.gmra.mxu0 %v1554
        %v3204 = vpop.f32.mrf.mxu0
        %v3205 = vadd.f32 0.0, %v3204
        %v3206 = vpop.f32.mrf.mxu0
        %v3207 = vadd.f32 0.0, %v3206
        %3208 = vmatmul.bf16.gmra.mxu0 %v1557
        %v3209 = vpop.f32.mrf.mxu0
        %v3210 = vadd.f32 0.0, %v3209
        %v3211 = vpop.f32.mrf.mxu0
        %v3212 = vadd.f32 0.0, %v3211
        %3213 = vmatmul.bf16.gmra.mxu0 %v1560
        %v3214 = vpop.f32.mrf.mxu0
        %v3215 = vadd.f32 0.0, %v3214
        %v3216 = vpop.f32.mrf.mxu0
        %3217 = vdwg.mxu0
        %3218 = vmatpush.bf16.msra.mxu0 0
        %3219 = vmatpush.bf16.msra.mxu0 0
        %3220 = vmatpush.bf16.msra.mxu0 0
        %3221 = vmatpush.bf16.msra.mxu0 0
        %3222 = vmatpush.bf16.msra.mxu0 0
        %3223 = vmatpush.bf16.msra.mxu0 %v1300
        %3224 = vmatpush.bf16.msra.mxu0 %v1284
        %3225 = vmatpush.bf16.msra.mxu0 %v1268
        %3226 = vmatmul.bf16.gmra.mxu0 %v1485
        %v3227 = vpop.f32.mrf.mxu0
        %v3228 = vadd.f32 0.0, %v3227
        %v3229 = vpop.f32.mrf.mxu0
        %v3230 = vadd.f32 0.0, %v3229
        %3231 = vmatmul.bf16.gmra.mxu0 %v1488
        %v3232 = vpop.f32.mrf.mxu0
        %v3233 = vadd.f32 0.0, %v3232
        %v3234 = vpop.f32.mrf.mxu0
        %v3235 = vadd.f32 0.0, %v3234
        %3236 = vmatmul.bf16.gmra.mxu0 %v1491
        %v3237 = vpop.f32.mrf.mxu0
        %v3238 = vadd.f32 0.0, %v3237
        %v3239 = vpop.f32.mrf.mxu0
        %v3240 = vadd.f32 0.0, %v3239
        %3241 = vmatmul.bf16.gmra.mxu0 %v1494
        %v3242 = vpop.f32.mrf.mxu0
        %v3243 = vadd.f32 0.0, %v3242
        %v3244 = vpop.f32.mrf.mxu0
        %v3245 = vadd.f32 0.0, %v3244
        %3246 = vmatmul.bf16.gmra.mxu0 %v1497
        %v3247 = vpop.f32.mrf.mxu0
        %v3248 = vadd.f32 0.0, %v3247
        %v3249 = vpop.f32.mrf.mxu0
        %v3250 = vadd.f32 0.0, %v3249
        %3251 = vmatmul.bf16.gmra.mxu0 %v1500
        %v3252 = vpop.f32.mrf.mxu0
        %v3253 = vadd.f32 0.0, %v3252
        %v3254 = vpop.f32.mrf.mxu0
        %v3255 = vadd.f32 0.0, %v3254
        %3256 = vmatmul.bf16.gmra.mxu0 %v1503
        %v3257 = vpop.f32.mrf.mxu0
        %v3258 = vadd.f32 0.0, %v3257
        %v3259 = vpop.f32.mrf.mxu0
        %v3260 = vadd.f32 0.0, %v3259
        %3261 = vmatmul.bf16.gmra.mxu0 %v1506
        %v3262 = vpop.f32.mrf.mxu0
        %v3263 = vadd.f32 0.0, %v3262
        %v3264 = vpop.f32.mrf.mxu0
        %v3265 = vadd.f32 0.0, %v3264
        %3266 = vmatmul.bf16.gmra.mxu0 %v1509
        %v3267 = vpop.f32.mrf.mxu0
        %v3268 = vadd.f32 0.0, %v3267
        %v3269 = vpop.f32.mrf.mxu0
        %v3270 = vadd.f32 0.0, %v3269
        %3271 = vmatmul.bf16.gmra.mxu0 %v1512
        %v3272 = vpop.f32.mrf.mxu0
        %v3273 = vadd.f32 0.0, %v3272
        %v3274 = vpop.f32.mrf.mxu0
        %v3275 = vadd.f32 0.0, %v3274
        %3276 = vmatmul.bf16.gmra.mxu0 %v1515
        %v3277 = vpop.f32.mrf.mxu0
        %v3278 = vadd.f32 0.0, %v3277
        %v3279 = vpop.f32.mrf.mxu0
        %v3280 = vadd.f32 0.0, %v3279
        %3281 = vmatmul.bf16.gmra.mxu0 %v1518
        %v3282 = vpop.f32.mrf.mxu0
        %v3283 = vadd.f32 0.0, %v3282
        %v3284 = vpop.f32.mrf.mxu0
        %v3285 = vadd.f32 0.0, %v3284
        %3286 = vmatmul.bf16.gmra.mxu0 %v1521
        %v3287 = vpop.f32.mrf.mxu0
        %v3288 = vadd.f32 0.0, %v3287
        %v3289 = vpop.f32.mrf.mxu0
        %v3290 = vadd.f32 0.0, %v3289
        %3291 = vmatmul.bf16.gmra.mxu0 %v1524
        %v3292 = vpop.f32.mrf.mxu0
        %v3293 = vadd.f32 0.0, %v3292
        %v3294 = vpop.f32.mrf.mxu0
        %v3295 = vadd.f32 0.0, %v3294
        %3296 = vmatmul.bf16.gmra.mxu0 %v1527
        %v3297 = vpop.f32.mrf.mxu0
        %v3298 = vadd.f32 0.0, %v3297
        %v3299 = vpop.f32.mrf.mxu0
        %v3300 = vadd.f32 0.0, %v3299
        %3301 = vmatmul.bf16.gmra.mxu0 %v1530
        %v3302 = vpop.f32.mrf.mxu0
        %v3303 = vadd.f32 0.0, %v3302
        %v3304 = vpop.f32.mrf.mxu0
        %v3305 = vadd.f32 0.0, %v3304
        %3306 = vmatmul.bf16.gmra.mxu0 %v1533
        %v3307 = vpop.f32.mrf.mxu0
        %v3308 = vadd.f32 0.0, %v3307
        %v3309 = vpop.f32.mrf.mxu0
        %v3310 = vadd.f32 0.0, %v3309
        %3311 = vmatmul.bf16.gmra.mxu0 %v1536
        %v3312 = vpop.f32.mrf.mxu0
        %v3313 = vadd.f32 0.0, %v3312
        %v3314 = vpop.f32.mrf.mxu0
        %v3315 = vadd.f32 0.0, %v3314
        %3316 = vmatmul.bf16.gmra.mxu0 %v1539
        %v3317 = vpop.f32.mrf.mxu0
        %v3318 = vadd.f32 0.0, %v3317
        %v3319 = vpop.f32.mrf.mxu0
        %v3320 = vadd.f32 0.0, %v3319
        %3321 = vmatmul.bf16.gmra.mxu0 %v1542
        %v3322 = vpop.f32.mrf.mxu0
        %v3323 = vadd.f32 0.0, %v3322
        %v3324 = vpop.f32.mrf.mxu0
        %v3325 = vadd.f32 0.0, %v3324
        %3326 = vmatmul.bf16.gmra.mxu0 %v1545
        %v3327 = vpop.f32.mrf.mxu0
        %v3328 = vadd.f32 0.0, %v3327
        %v3329 = vpop.f32.mrf.mxu0
        %v3330 = vadd.f32 0.0, %v3329
        %3331 = vmatmul.bf16.gmra.mxu0 %v1548
        %v3332 = vpop.f32.mrf.mxu0
        %v3333 = vadd.f32 0.0, %v3332
        %v3334 = vpop.f32.mrf.mxu0
        %v3335 = vadd.f32 0.0, %v3334
        %3336 = vmatmul.bf16.gmra.mxu0 %v1551
        %v3337 = vpop.f32.mrf.mxu0
        %v3338 = vadd.f32 0.0, %v3337
        %v3339 = vpop.f32.mrf.mxu0
        %v3340 = vadd.f32 0.0, %v3339
        %3341 = vmatmul.bf16.gmra.mxu0 %v1554
        %v3342 = vpop.f32.mrf.mxu0
        %v3343 = vadd.f32 0.0, %v3342
        %v3344 = vpop.f32.mrf.mxu0
        %v3345 = vadd.f32 0.0, %v3344
        %3346 = vmatmul.bf16.gmra.mxu0 %v1557
        %v3347 = vpop.f32.mrf.mxu0
        %v3348 = vadd.f32 0.0, %v3347
        %v3349 = vpop.f32.mrf.mxu0
        %v3350 = vadd.f32 0.0, %v3349
        %3351 = vmatmul.bf16.gmra.mxu0 %v1560
        %v3352 = vpop.f32.mrf.mxu0
        %v3353 = vadd.f32 0.0, %v3352
        %v3354 = vpop.f32.mrf.mxu0
        %3355 = vdwg.mxu0
        %3356 = vmatpush.bf16.msra.mxu0 0
        %3357 = vmatpush.bf16.msra.mxu0 0
        %3358 = vmatpush.bf16.msra.mxu0 0
        %3359 = vmatpush.bf16.msra.mxu0 0
        %3360 = vmatpush.bf16.msra.mxu0 0
        %3361 = vmatpush.bf16.msra.mxu0 %v1301
        %3362 = vmatpush.bf16.msra.mxu0 %v1285
        %3363 = vmatpush.bf16.msra.mxu0 %v1269
        %3364 = vmatmul.bf16.gmra.mxu0 %v1485
        %v3365 = vpop.f32.mrf.mxu0
        %v3366 = vadd.f32 0.0, %v3365
        %v3367 = vpop.f32.mrf.mxu0
        %v3368 = vadd.f32 0.0, %v3367
        %3369 = vmatmul.bf16.gmra.mxu0 %v1488
        %v3370 = vpop.f32.mrf.mxu0
        %v3371 = vadd.f32 0.0, %v3370
        %v3372 = vpop.f32.mrf.mxu0
        %v3373 = vadd.f32 0.0, %v3372
        %3374 = vmatmul.bf16.gmra.mxu0 %v1491
        %v3375 = vpop.f32.mrf.mxu0
        %v3376 = vadd.f32 0.0, %v3375
        %v3377 = vpop.f32.mrf.mxu0
        %v3378 = vadd.f32 0.0, %v3377
        %3379 = vmatmul.bf16.gmra.mxu0 %v1494
        %v3380 = vpop.f32.mrf.mxu0
        %v3381 = vadd.f32 0.0, %v3380
        %v3382 = vpop.f32.mrf.mxu0
        %v3383 = vadd.f32 0.0, %v3382
        %3384 = vmatmul.bf16.gmra.mxu0 %v1497
        %v3385 = vpop.f32.mrf.mxu0
        %v3386 = vadd.f32 0.0, %v3385
        %v3387 = vpop.f32.mrf.mxu0
        %v3388 = vadd.f32 0.0, %v3387
        %3389 = vmatmul.bf16.gmra.mxu0 %v1500
        %v3390 = vpop.f32.mrf.mxu0
        %v3391 = vadd.f32 0.0, %v3390
        %v3392 = vpop.f32.mrf.mxu0
        %v3393 = vadd.f32 0.0, %v3392
        %3394 = vmatmul.bf16.gmra.mxu0 %v1503
        %v3395 = vpop.f32.mrf.mxu0
        %v3396 = vadd.f32 0.0, %v3395
        %v3397 = vpop.f32.mrf.mxu0
        %v3398 = vadd.f32 0.0, %v3397
        %3399 = vmatmul.bf16.gmra.mxu0 %v1506
        %v3400 = vpop.f32.mrf.mxu0
        %v3401 = vadd.f32 0.0, %v3400
        %v3402 = vpop.f32.mrf.mxu0
        %v3403 = vadd.f32 0.0, %v3402
        %3404 = vmatmul.bf16.gmra.mxu0 %v1509
        %v3405 = vpop.f32.mrf.mxu0
        %v3406 = vadd.f32 0.0, %v3405
        %v3407 = vpop.f32.mrf.mxu0
        %v3408 = vadd.f32 0.0, %v3407
        %3409 = vmatmul.bf16.gmra.mxu0 %v1512
        %v3410 = vpop.f32.mrf.mxu0
        %v3411 = vadd.f32 0.0, %v3410
        %v3412 = vpop.f32.mrf.mxu0
        %v3413 = vadd.f32 0.0, %v3412
        %3414 = vmatmul.bf16.gmra.mxu0 %v1515
        %v3415 = vpop.f32.mrf.mxu0
        %v3416 = vadd.f32 0.0, %v3415
        %v3417 = vpop.f32.mrf.mxu0
        %v3418 = vadd.f32 0.0, %v3417
        %3419 = vmatmul.bf16.gmra.mxu0 %v1518
        %v3420 = vpop.f32.mrf.mxu0
        %v3421 = vadd.f32 0.0, %v3420
        %v3422 = vpop.f32.mrf.mxu0
        %v3423 = vadd.f32 0.0, %v3422
        %3424 = vmatmul.bf16.gmra.mxu0 %v1521
        %v3425 = vpop.f32.mrf.mxu0
        %v3426 = vadd.f32 0.0, %v3425
        %v3427 = vpop.f32.mrf.mxu0
        %v3428 = vadd.f32 0.0, %v3427
        %3429 = vmatmul.bf16.gmra.mxu0 %v1524
        %v3430 = vpop.f32.mrf.mxu0
        %v3431 = vadd.f32 0.0, %v3430
        %v3432 = vpop.f32.mrf.mxu0
        %v3433 = vadd.f32 0.0, %v3432
        %3434 = vmatmul.bf16.gmra.mxu0 %v1527
        %v3435 = vpop.f32.mrf.mxu0
        %v3436 = vadd.f32 0.0, %v3435
        %v3437 = vpop.f32.mrf.mxu0
        %v3438 = vadd.f32 0.0, %v3437
        %3439 = vmatmul.bf16.gmra.mxu0 %v1530
        %v3440 = vpop.f32.mrf.mxu0
        %v3441 = vadd.f32 0.0, %v3440
        %v3442 = vpop.f32.mrf.mxu0
        %v3443 = vadd.f32 0.0, %v3442
        %3444 = vmatmul.bf16.gmra.mxu0 %v1533
        %v3445 = vpop.f32.mrf.mxu0
        %v3446 = vadd.f32 0.0, %v3445
        %v3447 = vpop.f32.mrf.mxu0
        %v3448 = vadd.f32 0.0, %v3447
        %3449 = vmatmul.bf16.gmra.mxu0 %v1536
        %v3450 = vpop.f32.mrf.mxu0
        %v3451 = vadd.f32 0.0, %v3450
        %v3452 = vpop.f32.mrf.mxu0
        %v3453 = vadd.f32 0.0, %v3452
        %3454 = vmatmul.bf16.gmra.mxu0 %v1539
        %v3455 = vpop.f32.mrf.mxu0
        %v3456 = vadd.f32 0.0, %v3455
        %v3457 = vpop.f32.mrf.mxu0
        %v3458 = vadd.f32 0.0, %v3457
        %3459 = vmatmul.bf16.gmra.mxu0 %v1542
        %v3460 = vpop.f32.mrf.mxu0
        %v3461 = vadd.f32 0.0, %v3460
        %v3462 = vpop.f32.mrf.mxu0
        %v3463 = vadd.f32 0.0, %v3462
        %3464 = vmatmul.bf16.gmra.mxu0 %v1545
        %v3465 = vpop.f32.mrf.mxu0
        %v3466 = vadd.f32 0.0, %v3465
        %v3467 = vpop.f32.mrf.mxu0
        %v3468 = vadd.f32 0.0, %v3467
        %3469 = vmatmul.bf16.gmra.mxu0 %v1548
        %v3470 = vpop.f32.mrf.mxu0
        %v3471 = vadd.f32 0.0, %v3470
        %v3472 = vpop.f32.mrf.mxu0
        %v3473 = vadd.f32 0.0, %v3472
        %3474 = vmatmul.bf16.gmra.mxu0 %v1551
        %v3475 = vpop.f32.mrf.mxu0
        %v3476 = vadd.f32 0.0, %v3475
        %v3477 = vpop.f32.mrf.mxu0
        %v3478 = vadd.f32 0.0, %v3477
        %3479 = vmatmul.bf16.gmra.mxu0 %v1554
        %v3480 = vpop.f32.mrf.mxu0
        %v3481 = vadd.f32 0.0, %v3480
        %v3482 = vpop.f32.mrf.mxu0
        %v3483 = vadd.f32 0.0, %v3482
        %3484 = vmatmul.bf16.gmra.mxu0 %v1557
        %v3485 = vpop.f32.mrf.mxu0
        %v3486 = vadd.f32 0.0, %v3485
        %v3487 = vpop.f32.mrf.mxu0
        %v3488 = vadd.f32 0.0, %v3487
        %3489 = vmatmul.bf16.gmra.mxu0 %v1560
        %v3490 = vpop.f32.mrf.mxu0
        %v3491 = vadd.f32 0.0, %v3490
        %v3492 = vpop.f32.mrf.mxu0
        %3493 = vdwg.mxu0
        %3494 = vmatpush.bf16.msra.mxu0 0
        %3495 = vmatpush.bf16.msra.mxu0 0
        %3496 = vmatpush.bf16.msra.mxu0 0
        %3497 = vmatpush.bf16.msra.mxu0 0
        %3498 = vmatpush.bf16.msra.mxu0 0
        %3499 = vmatpush.bf16.msra.mxu0 %v1302
        %3500 = vmatpush.bf16.msra.mxu0 %v1286
        %3501 = vmatpush.bf16.msra.mxu0 %v1270
        %3502 = vmatmul.bf16.gmra.mxu0 %v1485
        %v3503 = vpop.f32.mrf.mxu0
        %v3504 = vadd.f32 0.0, %v3503
        %v3505 = vpop.f32.mrf.mxu0
        %v3506 = vadd.f32 0.0, %v3505
        %3507 = vmatmul.bf16.gmra.mxu0 %v1488
        %v3508 = vpop.f32.mrf.mxu0
        %v3509 = vadd.f32 0.0, %v3508
        %v3510 = vpop.f32.mrf.mxu0
        %v3511 = vadd.f32 0.0, %v3510
        %3512 = vmatmul.bf16.gmra.mxu0 %v1491
        %v3513 = vpop.f32.mrf.mxu0
        %v3514 = vadd.f32 0.0, %v3513
        %v3515 = vpop.f32.mrf.mxu0
        %v3516 = vadd.f32 0.0, %v3515
        %3517 = vmatmul.bf16.gmra.mxu0 %v1494
        %v3518 = vpop.f32.mrf.mxu0
        %v3519 = vadd.f32 0.0, %v3518
        %v3520 = vpop.f32.mrf.mxu0
        %v3521 = vadd.f32 0.0, %v3520
        %3522 = vmatmul.bf16.gmra.mxu0 %v1497
        %v3523 = vpop.f32.mrf.mxu0
        %v3524 = vadd.f32 0.0, %v3523
        %v3525 = vpop.f32.mrf.mxu0
        %v3526 = vadd.f32 0.0, %v3525
        %3527 = vmatmul.bf16.gmra.mxu0 %v1500
        %v3528 = vpop.f32.mrf.mxu0
        %v3529 = vadd.f32 0.0, %v3528
        %v3530 = vpop.f32.mrf.mxu0
        %v3531 = vadd.f32 0.0, %v3530
        %3532 = vmatmul.bf16.gmra.mxu0 %v1503
        %v3533 = vpop.f32.mrf.mxu0
        %v3534 = vadd.f32 0.0, %v3533
        %v3535 = vpop.f32.mrf.mxu0
        %v3536 = vadd.f32 0.0, %v3535
        %3537 = vmatmul.bf16.gmra.mxu0 %v1506
        %v3538 = vpop.f32.mrf.mxu0
        %v3539 = vadd.f32 0.0, %v3538
        %v3540 = vpop.f32.mrf.mxu0
        %v3541 = vadd.f32 0.0, %v3540
        %3542 = vmatmul.bf16.gmra.mxu0 %v1509
        %v3543 = vpop.f32.mrf.mxu0
        %v3544 = vadd.f32 0.0, %v3543
        %v3545 = vpop.f32.mrf.mxu0
        %v3546 = vadd.f32 0.0, %v3545
        %3547 = vmatmul.bf16.gmra.mxu0 %v1512
        %v3548 = vpop.f32.mrf.mxu0
        %v3549 = vadd.f32 0.0, %v3548
        %v3550 = vpop.f32.mrf.mxu0
        %v3551 = vadd.f32 0.0, %v3550
        %3552 = vmatmul.bf16.gmra.mxu0 %v1515
        %v3553 = vpop.f32.mrf.mxu0
        %v3554 = vadd.f32 0.0, %v3553
        %v3555 = vpop.f32.mrf.mxu0
        %v3556 = vadd.f32 0.0, %v3555
        %3557 = vmatmul.bf16.gmra.mxu0 %v1518
        %v3558 = vpop.f32.mrf.mxu0
        %v3559 = vadd.f32 0.0, %v3558
        %v3560 = vpop.f32.mrf.mxu0
        %v3561 = vadd.f32 0.0, %v3560
        %3562 = vmatmul.bf16.gmra.mxu0 %v1521
        %v3563 = vpop.f32.mrf.mxu0
        %v3564 = vadd.f32 0.0, %v3563
        %v3565 = vpop.f32.mrf.mxu0
        %v3566 = vadd.f32 0.0, %v3565
        %3567 = vmatmul.bf16.gmra.mxu0 %v1524
        %v3568 = vpop.f32.mrf.mxu0
        %v3569 = vadd.f32 0.0, %v3568
        %v3570 = vpop.f32.mrf.mxu0
        %v3571 = vadd.f32 0.0, %v3570
        %3572 = vmatmul.bf16.gmra.mxu0 %v1527
        %v3573 = vpop.f32.mrf.mxu0
        %v3574 = vadd.f32 0.0, %v3573
        %v3575 = vpop.f32.mrf.mxu0
        %v3576 = vadd.f32 0.0, %v3575
        %3577 = vmatmul.bf16.gmra.mxu0 %v1530
        %v3578 = vpop.f32.mrf.mxu0
        %v3579 = vadd.f32 0.0, %v3578
        %v3580 = vpop.f32.mrf.mxu0
        %v3581 = vadd.f32 0.0, %v3580
        %3582 = vmatmul.bf16.gmra.mxu0 %v1533
        %v3583 = vpop.f32.mrf.mxu0
        %v3584 = vadd.f32 0.0, %v3583
        %v3585 = vpop.f32.mrf.mxu0
        %v3586 = vadd.f32 0.0, %v3585
        %3587 = vmatmul.bf16.gmra.mxu0 %v1536
        %v3588 = vpop.f32.mrf.mxu0
        %v3589 = vadd.f32 0.0, %v3588
        %v3590 = vpop.f32.mrf.mxu0
        %v3591 = vadd.f32 0.0, %v3590
        %3592 = vmatmul.bf16.gmra.mxu0 %v1539
        %v3593 = vpop.f32.mrf.mxu0
        %v3594 = vadd.f32 0.0, %v3593
        %v3595 = vpop.f32.mrf.mxu0
        %v3596 = vadd.f32 0.0, %v3595
        %3597 = vmatmul.bf16.gmra.mxu0 %v1542
        %v3598 = vpop.f32.mrf.mxu0
        %v3599 = vadd.f32 0.0, %v3598
        %v3600 = vpop.f32.mrf.mxu0
        %v3601 = vadd.f32 0.0, %v3600
        %3602 = vmatmul.bf16.gmra.mxu0 %v1545
        %v3603 = vpop.f32.mrf.mxu0
        %v3604 = vadd.f32 0.0, %v3603
        %v3605 = vpop.f32.mrf.mxu0
        %v3606 = vadd.f32 0.0, %v3605
        %3607 = vmatmul.bf16.gmra.mxu0 %v1548
        %v3608 = vpop.f32.mrf.mxu0
        %v3609 = vadd.f32 0.0, %v3608
        %v3610 = vpop.f32.mrf.mxu0
        %v3611 = vadd.f32 0.0, %v3610
        %3612 = vmatmul.bf16.gmra.mxu0 %v1551
        %v3613 = vpop.f32.mrf.mxu0
        %v3614 = vadd.f32 0.0, %v3613
        %v3615 = vpop.f32.mrf.mxu0
        %v3616 = vadd.f32 0.0, %v3615
        %3617 = vmatmul.bf16.gmra.mxu0 %v1554
        %v3618 = vpop.f32.mrf.mxu0
        %v3619 = vadd.f32 0.0, %v3618
        %v3620 = vpop.f32.mrf.mxu0
        %v3621 = vadd.f32 0.0, %v3620
        %3622 = vmatmul.bf16.gmra.mxu0 %v1557
        %v3623 = vpop.f32.mrf.mxu0
        %v3624 = vadd.f32 0.0, %v3623
        %v3625 = vpop.f32.mrf.mxu0
        %v3626 = vadd.f32 0.0, %v3625
        %3627 = vmatmul.bf16.gmra.mxu0 %v1560
        %v3628 = vpop.f32.mrf.mxu0
        %v3629 = vadd.f32 0.0, %v3628
        %v3630 = vpop.f32.mrf.mxu0
        %3631 = vdwg.mxu0
        %3632 = vmatpush.bf16.msra.mxu0 0
        %3633 = vmatpush.bf16.msra.mxu0 0
        %3634 = vmatpush.bf16.msra.mxu0 0
        %3635 = vmatpush.bf16.msra.mxu0 0
        %3636 = vmatpush.bf16.msra.mxu0 0
        %3637 = vmatpush.bf16.msra.mxu0 %v1303
        %3638 = vmatpush.bf16.msra.mxu0 %v1287
        %3639 = vmatpush.bf16.msra.mxu0 %v1271
        %3640 = vmatmul.bf16.gmra.mxu0 %v1485
        %v3641 = vpop.f32.mrf.mxu0
        %v3642 = vadd.f32 0.0, %v3641
        %v3643 = vpop.f32.mrf.mxu0
        %v3644 = vadd.f32 0.0, %v3643
        %3645 = vmatmul.bf16.gmra.mxu0 %v1488
        %v3646 = vpop.f32.mrf.mxu0
        %v3647 = vadd.f32 0.0, %v3646
        %v3648 = vpop.f32.mrf.mxu0
        %v3649 = vadd.f32 0.0, %v3648
        %3650 = vmatmul.bf16.gmra.mxu0 %v1491
        %v3651 = vpop.f32.mrf.mxu0
        %v3652 = vadd.f32 0.0, %v3651
        %v3653 = vpop.f32.mrf.mxu0
        %v3654 = vadd.f32 0.0, %v3653
        %3655 = vmatmul.bf16.gmra.mxu0 %v1494
        %v3656 = vpop.f32.mrf.mxu0
        %v3657 = vadd.f32 0.0, %v3656
        %v3658 = vpop.f32.mrf.mxu0
        %v3659 = vadd.f32 0.0, %v3658
        %3660 = vmatmul.bf16.gmra.mxu0 %v1497
        %v3661 = vpop.f32.mrf.mxu0
        %v3662 = vadd.f32 0.0, %v3661
        %v3663 = vpop.f32.mrf.mxu0
        %v3664 = vadd.f32 0.0, %v3663
        %3665 = vmatmul.bf16.gmra.mxu0 %v1500
        %v3666 = vpop.f32.mrf.mxu0
        %v3667 = vadd.f32 0.0, %v3666
        %v3668 = vpop.f32.mrf.mxu0
        %v3669 = vadd.f32 0.0, %v3668
        %3670 = vmatmul.bf16.gmra.mxu0 %v1503
        %v3671 = vpop.f32.mrf.mxu0
        %v3672 = vadd.f32 0.0, %v3671
        %v3673 = vpop.f32.mrf.mxu0
        %v3674 = vadd.f32 0.0, %v3673
        %3675 = vmatmul.bf16.gmra.mxu0 %v1506
        %v3676 = vpop.f32.mrf.mxu0
        %v3677 = vadd.f32 0.0, %v3676
        %v3678 = vpop.f32.mrf.mxu0
        %v3679 = vadd.f32 0.0, %v3678
        %3680 = vmatmul.bf16.gmra.mxu0 %v1509
        %v3681 = vpop.f32.mrf.mxu0
        %v3682 = vadd.f32 0.0, %v3681
        %v3683 = vpop.f32.mrf.mxu0
        %v3684 = vadd.f32 0.0, %v3683
        %3685 = vmatmul.bf16.gmra.mxu0 %v1512
        %v3686 = vpop.f32.mrf.mxu0
        %v3687 = vadd.f32 0.0, %v3686
        %v3688 = vpop.f32.mrf.mxu0
        %v3689 = vadd.f32 0.0, %v3688
        %3690 = vmatmul.bf16.gmra.mxu0 %v1515
        %v3691 = vpop.f32.mrf.mxu0
        %v3692 = vadd.f32 0.0, %v3691
        %v3693 = vpop.f32.mrf.mxu0
        %v3694 = vadd.f32 0.0, %v3693
        %3695 = vmatmul.bf16.gmra.mxu0 %v1518
        %v3696 = vpop.f32.mrf.mxu0
        %v3697 = vadd.f32 0.0, %v3696
        %v3698 = vpop.f32.mrf.mxu0
        %v3699 = vadd.f32 0.0, %v3698
        %3700 = vmatmul.bf16.gmra.mxu0 %v1521
        %v3701 = vpop.f32.mrf.mxu0
        %v3702 = vadd.f32 0.0, %v3701
        %v3703 = vpop.f32.mrf.mxu0
        %v3704 = vadd.f32 0.0, %v3703
        %3705 = vmatmul.bf16.gmra.mxu0 %v1524
        %v3706 = vpop.f32.mrf.mxu0
        %v3707 = vadd.f32 0.0, %v3706
        %v3708 = vpop.f32.mrf.mxu0
        %v3709 = vadd.f32 0.0, %v3708
        %3710 = vmatmul.bf16.gmra.mxu0 %v1527
        %v3711 = vpop.f32.mrf.mxu0
        %v3712 = vadd.f32 0.0, %v3711
        %v3713 = vpop.f32.mrf.mxu0
        %v3714 = vadd.f32 0.0, %v3713
        %3715 = vmatmul.bf16.gmra.mxu0 %v1530
        %v3716 = vpop.f32.mrf.mxu0
        %v3717 = vadd.f32 0.0, %v3716
        %v3718 = vpop.f32.mrf.mxu0
        %v3719 = vadd.f32 0.0, %v3718
        %3720 = vmatmul.bf16.gmra.mxu0 %v1533
        %v3721 = vpop.f32.mrf.mxu0
        %v3722 = vadd.f32 0.0, %v3721
        %v3723 = vpop.f32.mrf.mxu0
        %v3724 = vadd.f32 0.0, %v3723
        %3725 = vmatmul.bf16.gmra.mxu0 %v1536
        %v3726 = vpop.f32.mrf.mxu0
        %v3727 = vadd.f32 0.0, %v3726
        %v3728 = vpop.f32.mrf.mxu0
        %v3729 = vadd.f32 0.0, %v3728
        %3730 = vmatmul.bf16.gmra.mxu0 %v1539
        %v3731 = vpop.f32.mrf.mxu0
        %v3732 = vadd.f32 0.0, %v3731
        %v3733 = vpop.f32.mrf.mxu0
        %v3734 = vadd.f32 0.0, %v3733
        %3735 = vmatmul.bf16.gmra.mxu0 %v1542
        %v3736 = vpop.f32.mrf.mxu0
        %v3737 = vadd.f32 0.0, %v3736
        %v3738 = vpop.f32.mrf.mxu0
        %v3739 = vadd.f32 0.0, %v3738
        %3740 = vmatmul.bf16.gmra.mxu0 %v1545
        %v3741 = vpop.f32.mrf.mxu0
        %v3742 = vadd.f32 0.0, %v3741
        %v3743 = vpop.f32.mrf.mxu0
        %v3744 = vadd.f32 0.0, %v3743
        %3745 = vmatmul.bf16.gmra.mxu0 %v1548
        %v3746 = vpop.f32.mrf.mxu0
        %v3747 = vadd.f32 0.0, %v3746
        %v3748 = vpop.f32.mrf.mxu0
        %v3749 = vadd.f32 0.0, %v3748
        %3750 = vmatmul.bf16.gmra.mxu0 %v1551
        %v3751 = vpop.f32.mrf.mxu0
        %v3752 = vadd.f32 0.0, %v3751
        %v3753 = vpop.f32.mrf.mxu0
        %v3754 = vadd.f32 0.0, %v3753
        %3755 = vmatmul.bf16.gmra.mxu0 %v1554
        %v3756 = vpop.f32.mrf.mxu0
        %v3757 = vadd.f32 0.0, %v3756
        %v3758 = vpop.f32.mrf.mxu0
        %v3759 = vadd.f32 0.0, %v3758
        %3760 = vmatmul.bf16.gmra.mxu0 %v1557
        %v3761 = vpop.f32.mrf.mxu0
        %v3762 = vadd.f32 0.0, %v3761
        %v3763 = vpop.f32.mrf.mxu0
        %v3764 = vadd.f32 0.0, %v3763
        %3765 = vmatmul.bf16.gmra.mxu0 %v1560
        %v3766 = vpop.f32.mrf.mxu0
        %v3767 = vadd.f32 0.0, %v3766
        %v3768 = vpop.f32.mrf.mxu0
        %3769 = vdwg.mxu0
        %v3770 = vmul.f32 %v1572, %v904
        %v3771 = vmul.f32 %v1710, %v905
        %v3772 = vmul.f32 %v1848, %v906
        %v3773 = vmul.f32 %v1986, %v907
        %v3774 = vmul.f32 %v2124, %v908
        %v3775 = vmul.f32 %v2262, %v909
        %v3776 = vmul.f32 %v2400, %v910
        %v3777 = vmul.f32 %v2538, %v911
        %v3778 = vmul.f32 %v2676, %v912
        %v3779 = vmul.f32 %v2814, %v913
        %v3780 = vmul.f32 %v2952, %v914
        %v3781 = vmul.f32 %v3090, %v915
        %v3782 = vmul.f32 %v3228, %v916
        %v3783 = vmul.f32 %v3366, %v917
        %v3784 = vmul.f32 %v3504, %v918
        %v3785 = vmul.f32 %v3642, %v919
        %v3786 = vmul.f32 %v1574, %v920
        %v3787 = vmul.f32 %v1712, %v921
        %v3788 = vmul.f32 %v1850, %v922
        %v3789 = vmul.f32 %v1988, %v923
        %v3790 = vmul.f32 %v2126, %v924
        %v3791 = vmul.f32 %v2264, %v925
        %v3792 = vmul.f32 %v2402, %v926
        %v3793 = vmul.f32 %v2540, %v927
        %v3794 = vmul.f32 %v2678, %v928
        %v3795 = vmul.f32 %v2816, %v929
        %v3796 = vmul.f32 %v2954, %v930
        %v3797 = vmul.f32 %v3092, %v931
        %v3798 = vmul.f32 %v3230, %v932
        %v3799 = vmul.f32 %v3368, %v933
        %v3800 = vmul.f32 %v3506, %v934
        %v3801 = vmul.f32 %v3644, %v935
        %v3802 = vmul.f32 %v1577, %v904
        %v3803 = vmul.f32 %v1715, %v905
        %v3804 = vmul.f32 %v1853, %v906
        %v3805 = vmul.f32 %v1991, %v907
        %v3806 = vmul.f32 %v2129, %v908
        %v3807 = vmul.f32 %v2267, %v909
        %v3808 = vmul.f32 %v2405, %v910
        %v3809 = vmul.f32 %v2543, %v911
        %v3810 = vmul.f32 %v2681, %v912
        %v3811 = vmul.f32 %v2819, %v913
        %v3812 = vmul.f32 %v2957, %v914
        %v3813 = vmul.f32 %v3095, %v915
        %v3814 = vmul.f32 %v3233, %v916
        %v3815 = vmul.f32 %v3371, %v917
        %v3816 = vmul.f32 %v3509, %v918
        %v3817 = vmul.f32 %v3647, %v919
        %v3818 = vmul.f32 %v1579, %v920
        %v3819 = vmul.f32 %v1717, %v921
        %v3820 = vmul.f32 %v1855, %v922
        %v3821 = vmul.f32 %v1993, %v923
        %v3822 = vmul.f32 %v2131, %v924
        %v3823 = vmul.f32 %v2269, %v925
        %v3824 = vmul.f32 %v2407, %v926
        %v3825 = vmul.f32 %v2545, %v927
        %v3826 = vmul.f32 %v2683, %v928
        %v3827 = vmul.f32 %v2821, %v929
        %v3828 = vmul.f32 %v2959, %v930
        %v3829 = vmul.f32 %v3097, %v931
        %v3830 = vmul.f32 %v3235, %v932
        %v3831 = vmul.f32 %v3373, %v933
        %v3832 = vmul.f32 %v3511, %v934
        %v3833 = vmul.f32 %v3649, %v935
        %v3834 = vmul.f32 %v1582, %v904
        %v3835 = vmul.f32 %v1720, %v905
        %v3836 = vmul.f32 %v1858, %v906
        %v3837 = vmul.f32 %v1996, %v907
        %v3838 = vmul.f32 %v2134, %v908
        %v3839 = vmul.f32 %v2272, %v909
        %v3840 = vmul.f32 %v2410, %v910
        %v3841 = vmul.f32 %v2548, %v911
        %v3842 = vmul.f32 %v2686, %v912
        %v3843 = vmul.f32 %v2824, %v913
        %v3844 = vmul.f32 %v2962, %v914
        %v3845 = vmul.f32 %v3100, %v915
        %v3846 = vmul.f32 %v3238, %v916
        %v3847 = vmul.f32 %v3376, %v917
        %v3848 = vmul.f32 %v3514, %v918
        %v3849 = vmul.f32 %v3652, %v919
        %v3850 = vmul.f32 %v1584, %v920
        %v3851 = vmul.f32 %v1722, %v921
        %v3852 = vmul.f32 %v1860, %v922
        %v3853 = vmul.f32 %v1998, %v923
        %v3854 = vmul.f32 %v2136, %v924
        %v3855 = vmul.f32 %v2274, %v925
        %v3856 = vmul.f32 %v2412, %v926
        %v3857 = vmul.f32 %v2550, %v927
        %v3858 = vmul.f32 %v2688, %v928
        %v3859 = vmul.f32 %v2826, %v929
        %v3860 = vmul.f32 %v2964, %v930
        %v3861 = vmul.f32 %v3102, %v931
        %v3862 = vmul.f32 %v3240, %v932
        %v3863 = vmul.f32 %v3378, %v933
        %v3864 = vmul.f32 %v3516, %v934
        %v3865 = vmul.f32 %v3654, %v935
        %v3866 = vmul.f32 %v1587, %v904
        %v3867 = vmul.f32 %v1725, %v905
        %v3868 = vmul.f32 %v1863, %v906
        %v3869 = vmul.f32 %v2001, %v907
        %v3870 = vmul.f32 %v2139, %v908
        %v3871 = vmul.f32 %v2277, %v909
        %v3872 = vmul.f32 %v2415, %v910
        %v3873 = vmul.f32 %v2553, %v911
        %v3874 = vmul.f32 %v2691, %v912
        %v3875 = vmul.f32 %v2829, %v913
        %v3876 = vmul.f32 %v2967, %v914
        %v3877 = vmul.f32 %v3105, %v915
        %v3878 = vmul.f32 %v3243, %v916
        %v3879 = vmul.f32 %v3381, %v917
        %v3880 = vmul.f32 %v3519, %v918
        %v3881 = vmul.f32 %v3657, %v919
        %v3882 = vmul.f32 %v1589, %v920
        %v3883 = vmul.f32 %v1727, %v921
        %v3884 = vmul.f32 %v1865, %v922
        %v3885 = vmul.f32 %v2003, %v923
        %v3886 = vmul.f32 %v2141, %v924
        %v3887 = vmul.f32 %v2279, %v925
        %v3888 = vmul.f32 %v2417, %v926
        %v3889 = vmul.f32 %v2555, %v927
        %v3890 = vmul.f32 %v2693, %v928
        %v3891 = vmul.f32 %v2831, %v929
        %v3892 = vmul.f32 %v2969, %v930
        %v3893 = vmul.f32 %v3107, %v931
        %v3894 = vmul.f32 %v3245, %v932
        %v3895 = vmul.f32 %v3383, %v933
        %v3896 = vmul.f32 %v3521, %v934
        %v3897 = vmul.f32 %v3659, %v935
        %v3898 = vmul.f32 %v1592, %v904
        %v3899 = vmul.f32 %v1730, %v905
        %v3900 = vmul.f32 %v1868, %v906
        %v3901 = vmul.f32 %v2006, %v907
        %v3902 = vmul.f32 %v2144, %v908
        %v3903 = vmul.f32 %v2282, %v909
        %v3904 = vmul.f32 %v2420, %v910
        %v3905 = vmul.f32 %v2558, %v911
        %v3906 = vmul.f32 %v2696, %v912
        %v3907 = vmul.f32 %v2834, %v913
        %v3908 = vmul.f32 %v2972, %v914
        %v3909 = vmul.f32 %v3110, %v915
        %v3910 = vmul.f32 %v3248, %v916
        %v3911 = vmul.f32 %v3386, %v917
        %v3912 = vmul.f32 %v3524, %v918
        %v3913 = vmul.f32 %v3662, %v919
        %v3914 = vmul.f32 %v1594, %v920
        %v3915 = vmul.f32 %v1732, %v921
        %v3916 = vmul.f32 %v1870, %v922
        %v3917 = vmul.f32 %v2008, %v923
        %v3918 = vmul.f32 %v2146, %v924
        %v3919 = vmul.f32 %v2284, %v925
        %v3920 = vmul.f32 %v2422, %v926
        %v3921 = vmul.f32 %v2560, %v927
        %v3922 = vmul.f32 %v2698, %v928
        %v3923 = vmul.f32 %v2836, %v929
        %v3924 = vmul.f32 %v2974, %v930
        %v3925 = vmul.f32 %v3112, %v931
        %v3926 = vmul.f32 %v3250, %v932
        %v3927 = vmul.f32 %v3388, %v933
        %v3928 = vmul.f32 %v3526, %v934
        %v3929 = vmul.f32 %v3664, %v935
        %v3930 = vmul.f32 %v1597, %v904
        %v3931 = vmul.f32 %v1735, %v905
        %v3932 = vmul.f32 %v1873, %v906
        %v3933 = vmul.f32 %v2011, %v907
        %v3934 = vmul.f32 %v2149, %v908
        %v3935 = vmul.f32 %v2287, %v909
        %v3936 = vmul.f32 %v2425, %v910
        %v3937 = vmul.f32 %v2563, %v911
        %v3938 = vmul.f32 %v2701, %v912
        %v3939 = vmul.f32 %v2839, %v913
        %v3940 = vmul.f32 %v2977, %v914
        %v3941 = vmul.f32 %v3115, %v915
        %v3942 = vmul.f32 %v3253, %v916
        %v3943 = vmul.f32 %v3391, %v917
        %v3944 = vmul.f32 %v3529, %v918
        %v3945 = vmul.f32 %v3667, %v919
        %v3946 = vmul.f32 %v1599, %v920
        %v3947 = vmul.f32 %v1737, %v921
        %v3948 = vmul.f32 %v1875, %v922
        %v3949 = vmul.f32 %v2013, %v923
        %v3950 = vmul.f32 %v2151, %v924
        %v3951 = vmul.f32 %v2289, %v925
        %v3952 = vmul.f32 %v2427, %v926
        %v3953 = vmul.f32 %v2565, %v927
        %v3954 = vmul.f32 %v2703, %v928
        %v3955 = vmul.f32 %v2841, %v929
        %v3956 = vmul.f32 %v2979, %v930
        %v3957 = vmul.f32 %v3117, %v931
        %v3958 = vmul.f32 %v3255, %v932
        %v3959 = vmul.f32 %v3393, %v933
        %v3960 = vmul.f32 %v3531, %v934
        %v3961 = vmul.f32 %v3669, %v935
        %v3962 = vmul.f32 %v1602, %v904
        %v3963 = vmul.f32 %v1740, %v905
        %v3964 = vmul.f32 %v1878, %v906
        %v3965 = vmul.f32 %v2016, %v907
        %v3966 = vmul.f32 %v2154, %v908
        %v3967 = vmul.f32 %v2292, %v909
        %v3968 = vmul.f32 %v2430, %v910
        %v3969 = vmul.f32 %v2568, %v911
        %v3970 = vmul.f32 %v2706, %v912
        %v3971 = vmul.f32 %v2844, %v913
        %v3972 = vmul.f32 %v2982, %v914
        %v3973 = vmul.f32 %v3120, %v915
        %v3974 = vmul.f32 %v3258, %v916
        %v3975 = vmul.f32 %v3396, %v917
        %v3976 = vmul.f32 %v3534, %v918
        %v3977 = vmul.f32 %v3672, %v919
        %v3978 = vmul.f32 %v1604, %v920
        %v3979 = vmul.f32 %v1742, %v921
        %v3980 = vmul.f32 %v1880, %v922
        %v3981 = vmul.f32 %v2018, %v923
        %v3982 = vmul.f32 %v2156, %v924
        %v3983 = vmul.f32 %v2294, %v925
        %v3984 = vmul.f32 %v2432, %v926
        %v3985 = vmul.f32 %v2570, %v927
        %v3986 = vmul.f32 %v2708, %v928
        %v3987 = vmul.f32 %v2846, %v929
        %v3988 = vmul.f32 %v2984, %v930
        %v3989 = vmul.f32 %v3122, %v931
        %v3990 = vmul.f32 %v3260, %v932
        %v3991 = vmul.f32 %v3398, %v933
        %v3992 = vmul.f32 %v3536, %v934
        %v3993 = vmul.f32 %v3674, %v935
        %v3994 = vmul.f32 %v1607, %v904
        %v3995 = vmul.f32 %v1745, %v905
        %v3996 = vmul.f32 %v1883, %v906
        %v3997 = vmul.f32 %v2021, %v907
        %v3998 = vmul.f32 %v2159, %v908
        %v3999 = vmul.f32 %v2297, %v909
        %v4000 = vmul.f32 %v2435, %v910
        %v4001 = vmul.f32 %v2573, %v911
        %v4002 = vmul.f32 %v2711, %v912
        %v4003 = vmul.f32 %v2849, %v913
        %v4004 = vmul.f32 %v2987, %v914
        %v4005 = vmul.f32 %v3125, %v915
        %v4006 = vmul.f32 %v3263, %v916
        %v4007 = vmul.f32 %v3401, %v917
        %v4008 = vmul.f32 %v3539, %v918
        %v4009 = vmul.f32 %v3677, %v919
        %v4010 = vmul.f32 %v1609, %v920
        %v4011 = vmul.f32 %v1747, %v921
        %v4012 = vmul.f32 %v1885, %v922
        %v4013 = vmul.f32 %v2023, %v923
        %v4014 = vmul.f32 %v2161, %v924
        %v4015 = vmul.f32 %v2299, %v925
        %v4016 = vmul.f32 %v2437, %v926
        %v4017 = vmul.f32 %v2575, %v927
        %v4018 = vmul.f32 %v2713, %v928
        %v4019 = vmul.f32 %v2851, %v929
        %v4020 = vmul.f32 %v2989, %v930
        %v4021 = vmul.f32 %v3127, %v931
        %v4022 = vmul.f32 %v3265, %v932
        %v4023 = vmul.f32 %v3403, %v933
        %v4024 = vmul.f32 %v3541, %v934
        %v4025 = vmul.f32 %v3679, %v935
        %v4026 = vadd.f32 %v3770, %v3786
        %v4027 = vrot.slane %v4026, 4
        %v4028 = vadd.f32 %v4026, %v4027
        %v4029 = vrot.slane %v4028, 2
        %v4030 = vadd.f32 %v4028, %v4029
        %v4031 = vrot.slane %v4030, 1
        %v4032 = vadd.f32 %v4030, %v4031
        %v4033 = vadd.f32 %v3771, %v3787
        %v4034 = vrot.slane %v4033, 4
        %v4035 = vadd.f32 %v4033, %v4034
        %v4036 = vrot.slane %v4035, 2
        %v4037 = vadd.f32 %v4035, %v4036
        %v4038 = vrot.slane %v4037, 1
        %v4039 = vadd.f32 %v4037, %v4038
        %v4040 = vadd.f32 %v3772, %v3788
        %v4041 = vrot.slane %v4040, 4
        %v4042 = vadd.f32 %v4040, %v4041
        %v4043 = vrot.slane %v4042, 2
        %v4044 = vadd.f32 %v4042, %v4043
        %v4045 = vrot.slane %v4044, 1
        %v4046 = vadd.f32 %v4044, %v4045
        %v4047 = vadd.f32 %v3773, %v3789
        %v4048 = vrot.slane %v4047, 4
        %v4049 = vadd.f32 %v4047, %v4048
        %v4050 = vrot.slane %v4049, 2
        %v4051 = vadd.f32 %v4049, %v4050
        %v4052 = vrot.slane %v4051, 1
        %v4053 = vadd.f32 %v4051, %v4052
        %v4054 = vadd.f32 %v3774, %v3790
        %v4055 = vrot.slane %v4054, 4
        %v4056 = vadd.f32 %v4054, %v4055
        %v4057 = vrot.slane %v4056, 2
        %v4058 = vadd.f32 %v4056, %v4057
        %v4059 = vrot.slane %v4058, 1
        %v4060 = vadd.f32 %v4058, %v4059
        %v4061 = vadd.f32 %v3775, %v3791
        %v4062 = vrot.slane %v4061, 4
        %v4063 = vadd.f32 %v4061, %v4062
        %v4064 = vrot.slane %v4063, 2
        %v4065 = vadd.f32 %v4063, %v4064
        %v4066 = vrot.slane %v4065, 1
        %v4067 = vadd.f32 %v4065, %v4066
        %v4068 = vadd.f32 %v3776, %v3792
        %v4069 = vrot.slane %v4068, 4
        %v4070 = vadd.f32 %v4068, %v4069
        %v4071 = vrot.slane %v4070, 2
        %v4072 = vadd.f32 %v4070, %v4071
        %v4073 = vrot.slane %v4072, 1
        %v4074 = vadd.f32 %v4072, %v4073
        %v4075 = vadd.f32 %v3777, %v3793
        %v4076 = vrot.slane %v4075, 4
        %v4077 = vadd.f32 %v4075, %v4076
        %v4078 = vrot.slane %v4077, 2
        %v4079 = vadd.f32 %v4077, %v4078
        %v4080 = vrot.slane %v4079, 1
        %v4081 = vadd.f32 %v4079, %v4080
        %v4082 = vadd.f32 %v3778, %v3794
        %v4083 = vrot.slane %v4082, 4
        %v4084 = vadd.f32 %v4082, %v4083
        %v4085 = vrot.slane %v4084, 2
        %v4086 = vadd.f32 %v4084, %v4085
        %v4087 = vrot.slane %v4086, 1
        %v4088 = vadd.f32 %v4086, %v4087
        %v4089 = vadd.f32 %v3779, %v3795
        %v4090 = vrot.slane %v4089, 4
        %v4091 = vadd.f32 %v4089, %v4090
        %v4092 = vrot.slane %v4091, 2
        %v4093 = vadd.f32 %v4091, %v4092
        %v4094 = vrot.slane %v4093, 1
        %v4095 = vadd.f32 %v4093, %v4094
        %v4096 = vadd.f32 %v3780, %v3796
        %v4097 = vrot.slane %v4096, 4
        %v4098 = vadd.f32 %v4096, %v4097
        %v4099 = vrot.slane %v4098, 2
        %v4100 = vadd.f32 %v4098, %v4099
        %v4101 = vrot.slane %v4100, 1
        %v4102 = vadd.f32 %v4100, %v4101
        %v4103 = vadd.f32 %v3781, %v3797
        %v4104 = vrot.slane %v4103, 4
        %v4105 = vadd.f32 %v4103, %v4104
        %v4106 = vrot.slane %v4105, 2
        %v4107 = vadd.f32 %v4105, %v4106
        %v4108 = vrot.slane %v4107, 1
        %v4109 = vadd.f32 %v4107, %v4108
        %v4110 = vadd.f32 %v3782, %v3798
        %v4111 = vrot.slane %v4110, 4
        %v4112 = vadd.f32 %v4110, %v4111
        %v4113 = vrot.slane %v4112, 2
        %v4114 = vadd.f32 %v4112, %v4113
        %v4115 = vrot.slane %v4114, 1
        %v4116 = vadd.f32 %v4114, %v4115
        %v4117 = vadd.f32 %v3783, %v3799
        %v4118 = vrot.slane %v4117, 4
        %v4119 = vadd.f32 %v4117, %v4118
        %v4120 = vrot.slane %v4119, 2
        %v4121 = vadd.f32 %v4119, %v4120
        %v4122 = vrot.slane %v4121, 1
        %v4123 = vadd.f32 %v4121, %v4122
        %v4124 = vadd.f32 %v3784, %v3800
        %v4125 = vrot.slane %v4124, 4
        %v4126 = vadd.f32 %v4124, %v4125
        %v4127 = vrot.slane %v4126, 2
        %v4128 = vadd.f32 %v4126, %v4127
        %v4129 = vrot.slane %v4128, 1
        %v4130 = vadd.f32 %v4128, %v4129
        %v4131 = vadd.f32 %v3785, %v3801
        %v4132 = vrot.slane %v4131, 4
        %v4133 = vadd.f32 %v4131, %v4132
        %v4134 = vrot.slane %v4133, 2
        %v4135 = vadd.f32 %v4133, %v4134
        %v4136 = vrot.slane %v4135, 1
        %v4137 = vadd.f32 %v4135, %v4136
        %v4138 = vadd.f32 %v3802, %v3818
        %v4139 = vrot.slane %v4138, 4
        %v4140 = vadd.f32 %v4138, %v4139
        %v4141 = vrot.slane %v4140, 2
        %v4142 = vadd.f32 %v4140, %v4141
        %v4143 = vrot.slane %v4142, 1
        %v4144 = vadd.f32 %v4142, %v4143
        %v4145 = vadd.f32 %v3803, %v3819
        %v4146 = vrot.slane %v4145, 4
        %v4147 = vadd.f32 %v4145, %v4146
        %v4148 = vrot.slane %v4147, 2
        %v4149 = vadd.f32 %v4147, %v4148
        %v4150 = vrot.slane %v4149, 1
        %v4151 = vadd.f32 %v4149, %v4150
        %v4152 = vadd.f32 %v3804, %v3820
        %v4153 = vrot.slane %v4152, 4
        %v4154 = vadd.f32 %v4152, %v4153
        %v4155 = vrot.slane %v4154, 2
        %v4156 = vadd.f32 %v4154, %v4155
        %v4157 = vrot.slane %v4156, 1
        %v4158 = vadd.f32 %v4156, %v4157
        %v4159 = vadd.f32 %v3805, %v3821
        %v4160 = vrot.slane %v4159, 4
        %v4161 = vadd.f32 %v4159, %v4160
        %v4162 = vrot.slane %v4161, 2
        %v4163 = vadd.f32 %v4161, %v4162
        %v4164 = vrot.slane %v4163, 1
        %v4165 = vadd.f32 %v4163, %v4164
        %v4166 = vadd.f32 %v3806, %v3822
        %v4167 = vrot.slane %v4166, 4
        %v4168 = vadd.f32 %v4166, %v4167
        %v4169 = vrot.slane %v4168, 2
        %v4170 = vadd.f32 %v4168, %v4169
        %v4171 = vrot.slane %v4170, 1
        %v4172 = vadd.f32 %v4170, %v4171
        %v4173 = vadd.f32 %v3807, %v3823
        %v4174 = vrot.slane %v4173, 4
        %v4175 = vadd.f32 %v4173, %v4174
        %v4176 = vrot.slane %v4175, 2
        %v4177 = vadd.f32 %v4175, %v4176
        %v4178 = vrot.slane %v4177, 1
        %v4179 = vadd.f32 %v4177, %v4178
        %v4180 = vadd.f32 %v3808, %v3824
        %v4181 = vrot.slane %v4180, 4
        %v4182 = vadd.f32 %v4180, %v4181
        %v4183 = vrot.slane %v4182, 2
        %v4184 = vadd.f32 %v4182, %v4183
        %v4185 = vrot.slane %v4184, 1
        %v4186 = vadd.f32 %v4184, %v4185
        %v4187 = vadd.f32 %v3809, %v3825
        %v4188 = vrot.slane %v4187, 4
        %v4189 = vadd.f32 %v4187, %v4188
        %v4190 = vrot.slane %v4189, 2
        %v4191 = vadd.f32 %v4189, %v4190
        %v4192 = vrot.slane %v4191, 1
        %v4193 = vadd.f32 %v4191, %v4192
        %v4194 = vadd.f32 %v3810, %v3826
        %v4195 = vrot.slane %v4194, 4
        %v4196 = vadd.f32 %v4194, %v4195
        %v4197 = vrot.slane %v4196, 2
        %v4198 = vadd.f32 %v4196, %v4197
        %v4199 = vrot.slane %v4198, 1
        %v4200 = vadd.f32 %v4198, %v4199
        %v4201 = vadd.f32 %v3811, %v3827
        %v4202 = vrot.slane %v4201, 4
        %v4203 = vadd.f32 %v4201, %v4202
        %v4204 = vrot.slane %v4203, 2
        %v4205 = vadd.f32 %v4203, %v4204
        %v4206 = vrot.slane %v4205, 1
        %v4207 = vadd.f32 %v4205, %v4206
        %v4208 = vadd.f32 %v3812, %v3828
        %v4209 = vrot.slane %v4208, 4
        %v4210 = vadd.f32 %v4208, %v4209
        %v4211 = vrot.slane %v4210, 2
        %v4212 = vadd.f32 %v4210, %v4211
        %v4213 = vrot.slane %v4212, 1
        %v4214 = vadd.f32 %v4212, %v4213
        %v4215 = vadd.f32 %v3813, %v3829
        %v4216 = vrot.slane %v4215, 4
        %v4217 = vadd.f32 %v4215, %v4216
        %v4218 = vrot.slane %v4217, 2
        %v4219 = vadd.f32 %v4217, %v4218
        %v4220 = vrot.slane %v4219, 1
        %v4221 = vadd.f32 %v4219, %v4220
        %v4222 = vadd.f32 %v3814, %v3830
        %v4223 = vrot.slane %v4222, 4
        %v4224 = vadd.f32 %v4222, %v4223
        %v4225 = vrot.slane %v4224, 2
        %v4226 = vadd.f32 %v4224, %v4225
        %v4227 = vrot.slane %v4226, 1
        %v4228 = vadd.f32 %v4226, %v4227
        %v4229 = vadd.f32 %v3815, %v3831
        %v4230 = vrot.slane %v4229, 4
        %v4231 = vadd.f32 %v4229, %v4230
        %v4232 = vrot.slane %v4231, 2
        %v4233 = vadd.f32 %v4231, %v4232
        %v4234 = vrot.slane %v4233, 1
        %v4235 = vadd.f32 %v4233, %v4234
        %v4236 = vadd.f32 %v3816, %v3832
        %v4237 = vrot.slane %v4236, 4
        %v4238 = vadd.f32 %v4236, %v4237
        %v4239 = vrot.slane %v4238, 2
        %v4240 = vadd.f32 %v4238, %v4239
        %v4241 = vrot.slane %v4240, 1
        %v4242 = vadd.f32 %v4240, %v4241
        %v4243 = vadd.f32 %v3817, %v3833
        %v4244 = vrot.slane %v4243, 4
        %v4245 = vadd.f32 %v4243, %v4244
        %v4246 = vrot.slane %v4245, 2
        %v4247 = vadd.f32 %v4245, %v4246
        %v4248 = vrot.slane %v4247, 1
        %v4249 = vadd.f32 %v4247, %v4248
        %v4250 = vadd.f32 %v3834, %v3850
        %v4251 = vrot.slane %v4250, 4
        %v4252 = vadd.f32 %v4250, %v4251
        %v4253 = vrot.slane %v4252, 2
        %v4254 = vadd.f32 %v4252, %v4253
        %v4255 = vrot.slane %v4254, 1
        %v4256 = vadd.f32 %v4254, %v4255
        %v4257 = vadd.f32 %v3835, %v3851
        %v4258 = vrot.slane %v4257, 4
        %v4259 = vadd.f32 %v4257, %v4258
        %v4260 = vrot.slane %v4259, 2
        %v4261 = vadd.f32 %v4259, %v4260
        %v4262 = vrot.slane %v4261, 1
        %v4263 = vadd.f32 %v4261, %v4262
        %v4264 = vadd.f32 %v3836, %v3852
        %v4265 = vrot.slane %v4264, 4
        %v4266 = vadd.f32 %v4264, %v4265
        %v4267 = vrot.slane %v4266, 2
        %v4268 = vadd.f32 %v4266, %v4267
        %v4269 = vrot.slane %v4268, 1
        %v4270 = vadd.f32 %v4268, %v4269
        %v4271 = vadd.f32 %v3837, %v3853
        %v4272 = vrot.slane %v4271, 4
        %v4273 = vadd.f32 %v4271, %v4272
        %v4274 = vrot.slane %v4273, 2
        %v4275 = vadd.f32 %v4273, %v4274
        %v4276 = vrot.slane %v4275, 1
        %v4277 = vadd.f32 %v4275, %v4276
        %v4278 = vadd.f32 %v3838, %v3854
        %v4279 = vrot.slane %v4278, 4
        %v4280 = vadd.f32 %v4278, %v4279
        %v4281 = vrot.slane %v4280, 2
        %v4282 = vadd.f32 %v4280, %v4281
        %v4283 = vrot.slane %v4282, 1
        %v4284 = vadd.f32 %v4282, %v4283
        %v4285 = vadd.f32 %v3839, %v3855
        %v4286 = vrot.slane %v4285, 4
        %v4287 = vadd.f32 %v4285, %v4286
        %v4288 = vrot.slane %v4287, 2
        %v4289 = vadd.f32 %v4287, %v4288
        %v4290 = vrot.slane %v4289, 1
        %v4291 = vadd.f32 %v4289, %v4290
        %v4292 = vadd.f32 %v3840, %v3856
        %v4293 = vrot.slane %v4292, 4
        %v4294 = vadd.f32 %v4292, %v4293
        %v4295 = vrot.slane %v4294, 2
        %v4296 = vadd.f32 %v4294, %v4295
        %v4297 = vrot.slane %v4296, 1
        %v4298 = vadd.f32 %v4296, %v4297
        %v4299 = vadd.f32 %v3841, %v3857
        %v4300 = vrot.slane %v4299, 4
        %v4301 = vadd.f32 %v4299, %v4300
        %v4302 = vrot.slane %v4301, 2
        %v4303 = vadd.f32 %v4301, %v4302
        %v4304 = vrot.slane %v4303, 1
        %v4305 = vadd.f32 %v4303, %v4304
        %v4306 = vadd.f32 %v3842, %v3858
        %v4307 = vrot.slane %v4306, 4
        %v4308 = vadd.f32 %v4306, %v4307
        %v4309 = vrot.slane %v4308, 2
        %v4310 = vadd.f32 %v4308, %v4309
        %v4311 = vrot.slane %v4310, 1
        %v4312 = vadd.f32 %v4310, %v4311
        %v4313 = vadd.f32 %v3843, %v3859
        %v4314 = vrot.slane %v4313, 4
        %v4315 = vadd.f32 %v4313, %v4314
        %v4316 = vrot.slane %v4315, 2
        %v4317 = vadd.f32 %v4315, %v4316
        %v4318 = vrot.slane %v4317, 1
        %v4319 = vadd.f32 %v4317, %v4318
        %v4320 = vadd.f32 %v3844, %v3860
        %v4321 = vrot.slane %v4320, 4
        %v4322 = vadd.f32 %v4320, %v4321
        %v4323 = vrot.slane %v4322, 2
        %v4324 = vadd.f32 %v4322, %v4323
        %v4325 = vrot.slane %v4324, 1
        %v4326 = vadd.f32 %v4324, %v4325
        %v4327 = vadd.f32 %v3845, %v3861
        %v4328 = vrot.slane %v4327, 4
        %v4329 = vadd.f32 %v4327, %v4328
        %v4330 = vrot.slane %v4329, 2
        %v4331 = vadd.f32 %v4329, %v4330
        %v4332 = vrot.slane %v4331, 1
        %v4333 = vadd.f32 %v4331, %v4332
        %v4334 = vadd.f32 %v3846, %v3862
        %v4335 = vrot.slane %v4334, 4
        %v4336 = vadd.f32 %v4334, %v4335
        %v4337 = vrot.slane %v4336, 2
        %v4338 = vadd.f32 %v4336, %v4337
        %v4339 = vrot.slane %v4338, 1
        %v4340 = vadd.f32 %v4338, %v4339
        %v4341 = vadd.f32 %v3847, %v3863
        %v4342 = vrot.slane %v4341, 4
        %v4343 = vadd.f32 %v4341, %v4342
        %v4344 = vrot.slane %v4343, 2
        %v4345 = vadd.f32 %v4343, %v4344
        %v4346 = vrot.slane %v4345, 1
        %v4347 = vadd.f32 %v4345, %v4346
        %v4348 = vadd.f32 %v3848, %v3864
        %v4349 = vrot.slane %v4348, 4
        %v4350 = vadd.f32 %v4348, %v4349
        %v4351 = vrot.slane %v4350, 2
        %v4352 = vadd.f32 %v4350, %v4351
        %v4353 = vrot.slane %v4352, 1
        %v4354 = vadd.f32 %v4352, %v4353
        %v4355 = vadd.f32 %v3849, %v3865
        %v4356 = vrot.slane %v4355, 4
        %v4357 = vadd.f32 %v4355, %v4356
        %v4358 = vrot.slane %v4357, 2
        %v4359 = vadd.f32 %v4357, %v4358
        %v4360 = vrot.slane %v4359, 1
        %v4361 = vadd.f32 %v4359, %v4360
        %v4362 = vadd.f32 %v3866, %v3882
        %v4363 = vrot.slane %v4362, 4
        %v4364 = vadd.f32 %v4362, %v4363
        %v4365 = vrot.slane %v4364, 2
        %v4366 = vadd.f32 %v4364, %v4365
        %v4367 = vrot.slane %v4366, 1
        %v4368 = vadd.f32 %v4366, %v4367
        %v4369 = vadd.f32 %v3867, %v3883
        %v4370 = vrot.slane %v4369, 4
        %v4371 = vadd.f32 %v4369, %v4370
        %v4372 = vrot.slane %v4371, 2
        %v4373 = vadd.f32 %v4371, %v4372
        %v4374 = vrot.slane %v4373, 1
        %v4375 = vadd.f32 %v4373, %v4374
        %v4376 = vadd.f32 %v3868, %v3884
        %v4377 = vrot.slane %v4376, 4
        %v4378 = vadd.f32 %v4376, %v4377
        %v4379 = vrot.slane %v4378, 2
        %v4380 = vadd.f32 %v4378, %v4379
        %v4381 = vrot.slane %v4380, 1
        %v4382 = vadd.f32 %v4380, %v4381
        %v4383 = vadd.f32 %v3869, %v3885
        %v4384 = vrot.slane %v4383, 4
        %v4385 = vadd.f32 %v4383, %v4384
        %v4386 = vrot.slane %v4385, 2
        %v4387 = vadd.f32 %v4385, %v4386
        %v4388 = vrot.slane %v4387, 1
        %v4389 = vadd.f32 %v4387, %v4388
        %v4390 = vadd.f32 %v3870, %v3886
        %v4391 = vrot.slane %v4390, 4
        %v4392 = vadd.f32 %v4390, %v4391
        %v4393 = vrot.slane %v4392, 2
        %v4394 = vadd.f32 %v4392, %v4393
        %v4395 = vrot.slane %v4394, 1
        %v4396 = vadd.f32 %v4394, %v4395
        %v4397 = vadd.f32 %v3871, %v3887
        %v4398 = vrot.slane %v4397, 4
        %v4399 = vadd.f32 %v4397, %v4398
        %v4400 = vrot.slane %v4399, 2
        %v4401 = vadd.f32 %v4399, %v4400
        %v4402 = vrot.slane %v4401, 1
        %v4403 = vadd.f32 %v4401, %v4402
        %v4404 = vadd.f32 %v3872, %v3888
        %v4405 = vrot.slane %v4404, 4
        %v4406 = vadd.f32 %v4404, %v4405
        %v4407 = vrot.slane %v4406, 2
        %v4408 = vadd.f32 %v4406, %v4407
        %v4409 = vrot.slane %v4408, 1
        %v4410 = vadd.f32 %v4408, %v4409
        %v4411 = vadd.f32 %v3873, %v3889
        %v4412 = vrot.slane %v4411, 4
        %v4413 = vadd.f32 %v4411, %v4412
        %v4414 = vrot.slane %v4413, 2
        %v4415 = vadd.f32 %v4413, %v4414
        %v4416 = vrot.slane %v4415, 1
        %v4417 = vadd.f32 %v4415, %v4416
        %v4418 = vadd.f32 %v3874, %v3890
        %v4419 = vrot.slane %v4418, 4
        %v4420 = vadd.f32 %v4418, %v4419
        %v4421 = vrot.slane %v4420, 2
        %v4422 = vadd.f32 %v4420, %v4421
        %v4423 = vrot.slane %v4422, 1
        %v4424 = vadd.f32 %v4422, %v4423
        %v4425 = vadd.f32 %v3875, %v3891
        %v4426 = vrot.slane %v4425, 4
        %v4427 = vadd.f32 %v4425, %v4426
        %v4428 = vrot.slane %v4427, 2
        %v4429 = vadd.f32 %v4427, %v4428
        %v4430 = vrot.slane %v4429, 1
        %v4431 = vadd.f32 %v4429, %v4430
        %v4432 = vadd.f32 %v3876, %v3892
        %v4433 = vrot.slane %v4432, 4
        %v4434 = vadd.f32 %v4432, %v4433
        %v4435 = vrot.slane %v4434, 2
        %v4436 = vadd.f32 %v4434, %v4435
        %v4437 = vrot.slane %v4436, 1
        %v4438 = vadd.f32 %v4436, %v4437
        %v4439 = vadd.f32 %v3877, %v3893
        %v4440 = vrot.slane %v4439, 4
        %v4441 = vadd.f32 %v4439, %v4440
        %v4442 = vrot.slane %v4441, 2
        %v4443 = vadd.f32 %v4441, %v4442
        %v4444 = vrot.slane %v4443, 1
        %v4445 = vadd.f32 %v4443, %v4444
        %v4446 = vadd.f32 %v3878, %v3894
        %v4447 = vrot.slane %v4446, 4
        %v4448 = vadd.f32 %v4446, %v4447
        %v4449 = vrot.slane %v4448, 2
        %v4450 = vadd.f32 %v4448, %v4449
        %v4451 = vrot.slane %v4450, 1
        %v4452 = vadd.f32 %v4450, %v4451
        %v4453 = vadd.f32 %v3879, %v3895
        %v4454 = vrot.slane %v4453, 4
        %v4455 = vadd.f32 %v4453, %v4454
        %v4456 = vrot.slane %v4455, 2
        %v4457 = vadd.f32 %v4455, %v4456
        %v4458 = vrot.slane %v4457, 1
        %v4459 = vadd.f32 %v4457, %v4458
        %v4460 = vadd.f32 %v3880, %v3896
        %v4461 = vrot.slane %v4460, 4
        %v4462 = vadd.f32 %v4460, %v4461
        %v4463 = vrot.slane %v4462, 2
        %v4464 = vadd.f32 %v4462, %v4463
        %v4465 = vrot.slane %v4464, 1
        %v4466 = vadd.f32 %v4464, %v4465
        %v4467 = vadd.f32 %v3881, %v3897
        %v4468 = vrot.slane %v4467, 4
        %v4469 = vadd.f32 %v4467, %v4468
        %v4470 = vrot.slane %v4469, 2
        %v4471 = vadd.f32 %v4469, %v4470
        %v4472 = vrot.slane %v4471, 1
        %v4473 = vadd.f32 %v4471, %v4472
        %v4474 = vadd.f32 %v3898, %v3914
        %v4475 = vrot.slane %v4474, 4
        %v4476 = vadd.f32 %v4474, %v4475
        %v4477 = vrot.slane %v4476, 2
        %v4478 = vadd.f32 %v4476, %v4477
        %v4479 = vrot.slane %v4478, 1
        %v4480 = vadd.f32 %v4478, %v4479
        %v4481 = vadd.f32 %v3899, %v3915
        %v4482 = vrot.slane %v4481, 4
        %v4483 = vadd.f32 %v4481, %v4482
        %v4484 = vrot.slane %v4483, 2
        %v4485 = vadd.f32 %v4483, %v4484
        %v4486 = vrot.slane %v4485, 1
        %v4487 = vadd.f32 %v4485, %v4486
        %v4488 = vadd.f32 %v3900, %v3916
        %v4489 = vrot.slane %v4488, 4
        %v4490 = vadd.f32 %v4488, %v4489
        %v4491 = vrot.slane %v4490, 2
        %v4492 = vadd.f32 %v4490, %v4491
        %v4493 = vrot.slane %v4492, 1
        %v4494 = vadd.f32 %v4492, %v4493
        %v4495 = vadd.f32 %v3901, %v3917
        %v4496 = vrot.slane %v4495, 4
        %v4497 = vadd.f32 %v4495, %v4496
        %v4498 = vrot.slane %v4497, 2
        %v4499 = vadd.f32 %v4497, %v4498
        %v4500 = vrot.slane %v4499, 1
        %v4501 = vadd.f32 %v4499, %v4500
        %v4502 = vadd.f32 %v3902, %v3918
        %v4503 = vrot.slane %v4502, 4
        %v4504 = vadd.f32 %v4502, %v4503
        %v4505 = vrot.slane %v4504, 2
        %v4506 = vadd.f32 %v4504, %v4505
        %v4507 = vrot.slane %v4506, 1
        %v4508 = vadd.f32 %v4506, %v4507
        %v4509 = vadd.f32 %v3903, %v3919
        %v4510 = vrot.slane %v4509, 4
        %v4511 = vadd.f32 %v4509, %v4510
        %v4512 = vrot.slane %v4511, 2
        %v4513 = vadd.f32 %v4511, %v4512
        %v4514 = vrot.slane %v4513, 1
        %v4515 = vadd.f32 %v4513, %v4514
        %v4516 = vadd.f32 %v3904, %v3920
        %v4517 = vrot.slane %v4516, 4
        %v4518 = vadd.f32 %v4516, %v4517
        %v4519 = vrot.slane %v4518, 2
        %v4520 = vadd.f32 %v4518, %v4519
        %v4521 = vrot.slane %v4520, 1
        %v4522 = vadd.f32 %v4520, %v4521
        %v4523 = vadd.f32 %v3905, %v3921
        %v4524 = vrot.slane %v4523, 4
        %v4525 = vadd.f32 %v4523, %v4524
        %v4526 = vrot.slane %v4525, 2
        %v4527 = vadd.f32 %v4525, %v4526
        %v4528 = vrot.slane %v4527, 1
        %v4529 = vadd.f32 %v4527, %v4528
        %v4530 = vadd.f32 %v3906, %v3922
        %v4531 = vrot.slane %v4530, 4
        %v4532 = vadd.f32 %v4530, %v4531
        %v4533 = vrot.slane %v4532, 2
        %v4534 = vadd.f32 %v4532, %v4533
        %v4535 = vrot.slane %v4534, 1
        %v4536 = vadd.f32 %v4534, %v4535
        %v4537 = vadd.f32 %v3907, %v3923
        %v4538 = vrot.slane %v4537, 4
        %v4539 = vadd.f32 %v4537, %v4538
        %v4540 = vrot.slane %v4539, 2
        %v4541 = vadd.f32 %v4539, %v4540
        %v4542 = vrot.slane %v4541, 1
        %v4543 = vadd.f32 %v4541, %v4542
        %v4544 = vadd.f32 %v3908, %v3924
        %v4545 = vrot.slane %v4544, 4
        %v4546 = vadd.f32 %v4544, %v4545
        %v4547 = vrot.slane %v4546, 2
        %v4548 = vadd.f32 %v4546, %v4547
        %v4549 = vrot.slane %v4548, 1
        %v4550 = vadd.f32 %v4548, %v4549
        %v4551 = vadd.f32 %v3909, %v3925
        %v4552 = vrot.slane %v4551, 4
        %v4553 = vadd.f32 %v4551, %v4552
        %v4554 = vrot.slane %v4553, 2
        %v4555 = vadd.f32 %v4553, %v4554
        %v4556 = vrot.slane %v4555, 1
        %v4557 = vadd.f32 %v4555, %v4556
        %v4558 = vadd.f32 %v3910, %v3926
        %v4559 = vrot.slane %v4558, 4
        %v4560 = vadd.f32 %v4558, %v4559
        %v4561 = vrot.slane %v4560, 2
        %v4562 = vadd.f32 %v4560, %v4561
        %v4563 = vrot.slane %v4562, 1
        %v4564 = vadd.f32 %v4562, %v4563
        %v4565 = vadd.f32 %v3911, %v3927
        %v4566 = vrot.slane %v4565, 4
        %v4567 = vadd.f32 %v4565, %v4566
        %v4568 = vrot.slane %v4567, 2
        %v4569 = vadd.f32 %v4567, %v4568
        %v4570 = vrot.slane %v4569, 1
        %v4571 = vadd.f32 %v4569, %v4570
        %v4572 = vadd.f32 %v3912, %v3928
        %v4573 = vrot.slane %v4572, 4
        %v4574 = vadd.f32 %v4572, %v4573
        %v4575 = vrot.slane %v4574, 2
        %v4576 = vadd.f32 %v4574, %v4575
        %v4577 = vrot.slane %v4576, 1
        %v4578 = vadd.f32 %v4576, %v4577
        %v4579 = vadd.f32 %v3913, %v3929
        %v4580 = vrot.slane %v4579, 4
        %v4581 = vadd.f32 %v4579, %v4580
        %v4582 = vrot.slane %v4581, 2
        %v4583 = vadd.f32 %v4581, %v4582
        %v4584 = vrot.slane %v4583, 1
        %v4585 = vadd.f32 %v4583, %v4584
        %v4586 = vadd.f32 %v3930, %v3946
        %v4587 = vrot.slane %v4586, 4
        %v4588 = vadd.f32 %v4586, %v4587
        %v4589 = vrot.slane %v4588, 2
        %v4590 = vadd.f32 %v4588, %v4589
        %v4591 = vrot.slane %v4590, 1
        %v4592 = vadd.f32 %v4590, %v4591
        %v4593 = vadd.f32 %v3931, %v3947
        %v4594 = vrot.slane %v4593, 4
        %v4595 = vadd.f32 %v4593, %v4594
        %v4596 = vrot.slane %v4595, 2
        %v4597 = vadd.f32 %v4595, %v4596
        %v4598 = vrot.slane %v4597, 1
        %v4599 = vadd.f32 %v4597, %v4598
        %v4600 = vadd.f32 %v3932, %v3948
        %v4601 = vrot.slane %v4600, 4
        %v4602 = vadd.f32 %v4600, %v4601
        %v4603 = vrot.slane %v4602, 2
        %v4604 = vadd.f32 %v4602, %v4603
        %v4605 = vrot.slane %v4604, 1
        %v4606 = vadd.f32 %v4604, %v4605
        %v4607 = vadd.f32 %v3933, %v3949
        %v4608 = vrot.slane %v4607, 4
        %v4609 = vadd.f32 %v4607, %v4608
        %v4610 = vrot.slane %v4609, 2
        %v4611 = vadd.f32 %v4609, %v4610
        %v4612 = vrot.slane %v4611, 1
        %v4613 = vadd.f32 %v4611, %v4612
        %v4614 = vadd.f32 %v3934, %v3950
        %v4615 = vrot.slane %v4614, 4
        %v4616 = vadd.f32 %v4614, %v4615
        %v4617 = vrot.slane %v4616, 2
        %v4618 = vadd.f32 %v4616, %v4617
        %v4619 = vrot.slane %v4618, 1
        %v4620 = vadd.f32 %v4618, %v4619
        %v4621 = vadd.f32 %v3935, %v3951
        %v4622 = vrot.slane %v4621, 4
        %v4623 = vadd.f32 %v4621, %v4622
        %v4624 = vrot.slane %v4623, 2
        %v4625 = vadd.f32 %v4623, %v4624
        %v4626 = vrot.slane %v4625, 1
        %v4627 = vadd.f32 %v4625, %v4626
        %v4628 = vadd.f32 %v3936, %v3952
        %v4629 = vrot.slane %v4628, 4
        %v4630 = vadd.f32 %v4628, %v4629
        %v4631 = vrot.slane %v4630, 2
        %v4632 = vadd.f32 %v4630, %v4631
        %v4633 = vrot.slane %v4632, 1
        %v4634 = vadd.f32 %v4632, %v4633
        %v4635 = vadd.f32 %v3937, %v3953
        %v4636 = vrot.slane %v4635, 4
        %v4637 = vadd.f32 %v4635, %v4636
        %v4638 = vrot.slane %v4637, 2
        %v4639 = vadd.f32 %v4637, %v4638
        %v4640 = vrot.slane %v4639, 1
        %v4641 = vadd.f32 %v4639, %v4640
        %v4642 = vadd.f32 %v3938, %v3954
        %v4643 = vrot.slane %v4642, 4
        %v4644 = vadd.f32 %v4642, %v4643
        %v4645 = vrot.slane %v4644, 2
        %v4646 = vadd.f32 %v4644, %v4645
        %v4647 = vrot.slane %v4646, 1
        %v4648 = vadd.f32 %v4646, %v4647
        %v4649 = vadd.f32 %v3939, %v3955
        %v4650 = vrot.slane %v4649, 4
        %v4651 = vadd.f32 %v4649, %v4650
        %v4652 = vrot.slane %v4651, 2
        %v4653 = vadd.f32 %v4651, %v4652
        %v4654 = vrot.slane %v4653, 1
        %v4655 = vadd.f32 %v4653, %v4654
        %v4656 = vadd.f32 %v3940, %v3956
        %v4657 = vrot.slane %v4656, 4
        %v4658 = vadd.f32 %v4656, %v4657
        %v4659 = vrot.slane %v4658, 2
        %v4660 = vadd.f32 %v4658, %v4659
        %v4661 = vrot.slane %v4660, 1
        %v4662 = vadd.f32 %v4660, %v4661
        %v4663 = vadd.f32 %v3941, %v3957
        %v4664 = vrot.slane %v4663, 4
        %v4665 = vadd.f32 %v4663, %v4664
        %v4666 = vrot.slane %v4665, 2
        %v4667 = vadd.f32 %v4665, %v4666
        %v4668 = vrot.slane %v4667, 1
        %v4669 = vadd.f32 %v4667, %v4668
        %v4670 = vadd.f32 %v3942, %v3958
        %v4671 = vrot.slane %v4670, 4
        %v4672 = vadd.f32 %v4670, %v4671
        %v4673 = vrot.slane %v4672, 2
        %v4674 = vadd.f32 %v4672, %v4673
        %v4675 = vrot.slane %v4674, 1
        %v4676 = vadd.f32 %v4674, %v4675
        %v4677 = vadd.f32 %v3943, %v3959
        %v4678 = vrot.slane %v4677, 4
        %v4679 = vadd.f32 %v4677, %v4678
        %v4680 = vrot.slane %v4679, 2
        %v4681 = vadd.f32 %v4679, %v4680
        %v4682 = vrot.slane %v4681, 1
        %v4683 = vadd.f32 %v4681, %v4682
        %v4684 = vadd.f32 %v3944, %v3960
        %v4685 = vrot.slane %v4684, 4
        %v4686 = vadd.f32 %v4684, %v4685
        %v4687 = vrot.slane %v4686, 2
        %v4688 = vadd.f32 %v4686, %v4687
        %v4689 = vrot.slane %v4688, 1
        %v4690 = vadd.f32 %v4688, %v4689
        %v4691 = vadd.f32 %v3945, %v3961
        %v4692 = vrot.slane %v4691, 4
        %v4693 = vadd.f32 %v4691, %v4692
        %v4694 = vrot.slane %v4693, 2
        %v4695 = vadd.f32 %v4693, %v4694
        %v4696 = vrot.slane %v4695, 1
        %v4697 = vadd.f32 %v4695, %v4696
        %v4698 = vadd.f32 %v3962, %v3978
        %v4699 = vrot.slane %v4698, 4
        %v4700 = vadd.f32 %v4698, %v4699
        %v4701 = vrot.slane %v4700, 2
        %v4702 = vadd.f32 %v4700, %v4701
        %v4703 = vrot.slane %v4702, 1
        %v4704 = vadd.f32 %v4702, %v4703
        %v4705 = vadd.f32 %v3963, %v3979
        %v4706 = vrot.slane %v4705, 4
        %v4707 = vadd.f32 %v4705, %v4706
        %v4708 = vrot.slane %v4707, 2
        %v4709 = vadd.f32 %v4707, %v4708
        %v4710 = vrot.slane %v4709, 1
        %v4711 = vadd.f32 %v4709, %v4710
        %v4712 = vadd.f32 %v3964, %v3980
        %v4713 = vrot.slane %v4712, 4
        %v4714 = vadd.f32 %v4712, %v4713
        %v4715 = vrot.slane %v4714, 2
        %v4716 = vadd.f32 %v4714, %v4715
        %v4717 = vrot.slane %v4716, 1
        %v4718 = vadd.f32 %v4716, %v4717
        %v4719 = vadd.f32 %v3965, %v3981
        %v4720 = vrot.slane %v4719, 4
        %v4721 = vadd.f32 %v4719, %v4720
        %v4722 = vrot.slane %v4721, 2
        %v4723 = vadd.f32 %v4721, %v4722
        %v4724 = vrot.slane %v4723, 1
        %v4725 = vadd.f32 %v4723, %v4724
        %v4726 = vadd.f32 %v3966, %v3982
        %v4727 = vrot.slane %v4726, 4
        %v4728 = vadd.f32 %v4726, %v4727
        %v4729 = vrot.slane %v4728, 2
        %v4730 = vadd.f32 %v4728, %v4729
        %v4731 = vrot.slane %v4730, 1
        %v4732 = vadd.f32 %v4730, %v4731
        %v4733 = vadd.f32 %v3967, %v3983
        %v4734 = vrot.slane %v4733, 4
        %v4735 = vadd.f32 %v4733, %v4734
        %v4736 = vrot.slane %v4735, 2
        %v4737 = vadd.f32 %v4735, %v4736
        %v4738 = vrot.slane %v4737, 1
        %v4739 = vadd.f32 %v4737, %v4738
        %v4740 = vadd.f32 %v3968, %v3984
        %v4741 = vrot.slane %v4740, 4
        %v4742 = vadd.f32 %v4740, %v4741
        %v4743 = vrot.slane %v4742, 2
        %v4744 = vadd.f32 %v4742, %v4743
        %v4745 = vrot.slane %v4744, 1
        %v4746 = vadd.f32 %v4744, %v4745
        %v4747 = vadd.f32 %v3969, %v3985
        %v4748 = vrot.slane %v4747, 4
        %v4749 = vadd.f32 %v4747, %v4748
        %v4750 = vrot.slane %v4749, 2
        %v4751 = vadd.f32 %v4749, %v4750
        %v4752 = vrot.slane %v4751, 1
        %v4753 = vadd.f32 %v4751, %v4752
        %v4754 = vadd.f32 %v3970, %v3986
        %v4755 = vrot.slane %v4754, 4
        %v4756 = vadd.f32 %v4754, %v4755
        %v4757 = vrot.slane %v4756, 2
        %v4758 = vadd.f32 %v4756, %v4757
        %v4759 = vrot.slane %v4758, 1
        %v4760 = vadd.f32 %v4758, %v4759
        %v4761 = vadd.f32 %v3971, %v3987
        %v4762 = vrot.slane %v4761, 4
        %v4763 = vadd.f32 %v4761, %v4762
        %v4764 = vrot.slane %v4763, 2
        %v4765 = vadd.f32 %v4763, %v4764
        %v4766 = vrot.slane %v4765, 1
        %v4767 = vadd.f32 %v4765, %v4766
        %v4768 = vadd.f32 %v3972, %v3988
        %v4769 = vrot.slane %v4768, 4
        %v4770 = vadd.f32 %v4768, %v4769
        %v4771 = vrot.slane %v4770, 2
        %v4772 = vadd.f32 %v4770, %v4771
        %v4773 = vrot.slane %v4772, 1
        %v4774 = vadd.f32 %v4772, %v4773
        %v4775 = vadd.f32 %v3973, %v3989
        %v4776 = vrot.slane %v4775, 4
        %v4777 = vadd.f32 %v4775, %v4776
        %v4778 = vrot.slane %v4777, 2
        %v4779 = vadd.f32 %v4777, %v4778
        %v4780 = vrot.slane %v4779, 1
        %v4781 = vadd.f32 %v4779, %v4780
        %v4782 = vadd.f32 %v3974, %v3990
        %v4783 = vrot.slane %v4782, 4
        %v4784 = vadd.f32 %v4782, %v4783
        %v4785 = vrot.slane %v4784, 2
        %v4786 = vadd.f32 %v4784, %v4785
        %v4787 = vrot.slane %v4786, 1
        %v4788 = vadd.f32 %v4786, %v4787
        %v4789 = vadd.f32 %v3975, %v3991
        %v4790 = vrot.slane %v4789, 4
        %v4791 = vadd.f32 %v4789, %v4790
        %v4792 = vrot.slane %v4791, 2
        %v4793 = vadd.f32 %v4791, %v4792
        %v4794 = vrot.slane %v4793, 1
        %v4795 = vadd.f32 %v4793, %v4794
        %v4796 = vadd.f32 %v3976, %v3992
        %v4797 = vrot.slane %v4796, 4
        %v4798 = vadd.f32 %v4796, %v4797
        %v4799 = vrot.slane %v4798, 2
        %v4800 = vadd.f32 %v4798, %v4799
        %v4801 = vrot.slane %v4800, 1
        %v4802 = vadd.f32 %v4800, %v4801
        %v4803 = vadd.f32 %v3977, %v3993
        %v4804 = vrot.slane %v4803, 4
        %v4805 = vadd.f32 %v4803, %v4804
        %v4806 = vrot.slane %v4805, 2
        %v4807 = vadd.f32 %v4805, %v4806
        %v4808 = vrot.slane %v4807, 1
        %v4809 = vadd.f32 %v4807, %v4808
        %v4810 = vadd.f32 %v3994, %v4010
        %v4811 = vrot.slane %v4810, 4
        %v4812 = vadd.f32 %v4810, %v4811
        %v4813 = vrot.slane %v4812, 2
        %v4814 = vadd.f32 %v4812, %v4813
        %v4815 = vrot.slane %v4814, 1
        %v4816 = vadd.f32 %v4814, %v4815
        %v4817 = vadd.f32 %v3995, %v4011
        %v4818 = vrot.slane %v4817, 4
        %v4819 = vadd.f32 %v4817, %v4818
        %v4820 = vrot.slane %v4819, 2
        %v4821 = vadd.f32 %v4819, %v4820
        %v4822 = vrot.slane %v4821, 1
        %v4823 = vadd.f32 %v4821, %v4822
        %v4824 = vadd.f32 %v3996, %v4012
        %v4825 = vrot.slane %v4824, 4
        %v4826 = vadd.f32 %v4824, %v4825
        %v4827 = vrot.slane %v4826, 2
        %v4828 = vadd.f32 %v4826, %v4827
        %v4829 = vrot.slane %v4828, 1
        %v4830 = vadd.f32 %v4828, %v4829
        %v4831 = vadd.f32 %v3997, %v4013
        %v4832 = vrot.slane %v4831, 4
        %v4833 = vadd.f32 %v4831, %v4832
        %v4834 = vrot.slane %v4833, 2
        %v4835 = vadd.f32 %v4833, %v4834
        %v4836 = vrot.slane %v4835, 1
        %v4837 = vadd.f32 %v4835, %v4836
        %v4838 = vadd.f32 %v3998, %v4014
        %v4839 = vrot.slane %v4838, 4
        %v4840 = vadd.f32 %v4838, %v4839
        %v4841 = vrot.slane %v4840, 2
        %v4842 = vadd.f32 %v4840, %v4841
        %v4843 = vrot.slane %v4842, 1
        %v4844 = vadd.f32 %v4842, %v4843
        %v4845 = vadd.f32 %v3999, %v4015
        %v4846 = vrot.slane %v4845, 4
        %v4847 = vadd.f32 %v4845, %v4846
        %v4848 = vrot.slane %v4847, 2
        %v4849 = vadd.f32 %v4847, %v4848
        %v4850 = vrot.slane %v4849, 1
        %v4851 = vadd.f32 %v4849, %v4850
        %v4852 = vadd.f32 %v4000, %v4016
        %v4853 = vrot.slane %v4852, 4
        %v4854 = vadd.f32 %v4852, %v4853
        %v4855 = vrot.slane %v4854, 2
        %v4856 = vadd.f32 %v4854, %v4855
        %v4857 = vrot.slane %v4856, 1
        %v4858 = vadd.f32 %v4856, %v4857
        %v4859 = vadd.f32 %v4001, %v4017
        %v4860 = vrot.slane %v4859, 4
        %v4861 = vadd.f32 %v4859, %v4860
        %v4862 = vrot.slane %v4861, 2
        %v4863 = vadd.f32 %v4861, %v4862
        %v4864 = vrot.slane %v4863, 1
        %v4865 = vadd.f32 %v4863, %v4864
        %v4866 = vadd.f32 %v4002, %v4018
        %v4867 = vrot.slane %v4866, 4
        %v4868 = vadd.f32 %v4866, %v4867
        %v4869 = vrot.slane %v4868, 2
        %v4870 = vadd.f32 %v4868, %v4869
        %v4871 = vrot.slane %v4870, 1
        %v4872 = vadd.f32 %v4870, %v4871
        %v4873 = vadd.f32 %v4003, %v4019
        %v4874 = vrot.slane %v4873, 4
        %v4875 = vadd.f32 %v4873, %v4874
        %v4876 = vrot.slane %v4875, 2
        %v4877 = vadd.f32 %v4875, %v4876
        %v4878 = vrot.slane %v4877, 1
        %v4879 = vadd.f32 %v4877, %v4878
        %v4880 = vadd.f32 %v4004, %v4020
        %v4881 = vrot.slane %v4880, 4
        %v4882 = vadd.f32 %v4880, %v4881
        %v4883 = vrot.slane %v4882, 2
        %v4884 = vadd.f32 %v4882, %v4883
        %v4885 = vrot.slane %v4884, 1
        %v4886 = vadd.f32 %v4884, %v4885
        %v4887 = vadd.f32 %v4005, %v4021
        %v4888 = vrot.slane %v4887, 4
        %v4889 = vadd.f32 %v4887, %v4888
        %v4890 = vrot.slane %v4889, 2
        %v4891 = vadd.f32 %v4889, %v4890
        %v4892 = vrot.slane %v4891, 1
        %v4893 = vadd.f32 %v4891, %v4892
        %v4894 = vadd.f32 %v4006, %v4022
        %v4895 = vrot.slane %v4894, 4
        %v4896 = vadd.f32 %v4894, %v4895
        %v4897 = vrot.slane %v4896, 2
        %v4898 = vadd.f32 %v4896, %v4897
        %v4899 = vrot.slane %v4898, 1
        %v4900 = vadd.f32 %v4898, %v4899
        %v4901 = vadd.f32 %v4007, %v4023
        %v4902 = vrot.slane %v4901, 4
        %v4903 = vadd.f32 %v4901, %v4902
        %v4904 = vrot.slane %v4903, 2
        %v4905 = vadd.f32 %v4903, %v4904
        %v4906 = vrot.slane %v4905, 1
        %v4907 = vadd.f32 %v4905, %v4906
        %v4908 = vadd.f32 %v4008, %v4024
        %v4909 = vrot.slane %v4908, 4
        %v4910 = vadd.f32 %v4908, %v4909
        %v4911 = vrot.slane %v4910, 2
        %v4912 = vadd.f32 %v4910, %v4911
        %v4913 = vrot.slane %v4912, 1
        %v4914 = vadd.f32 %v4912, %v4913
        %v4915 = vadd.f32 %v4009, %v4025
        %v4916 = vrot.slane %v4915, 4
        %v4917 = vadd.f32 %v4915, %v4916
        %v4918 = vrot.slane %v4917, 2
        %v4919 = vadd.f32 %v4917, %v4918
        %v4920 = vrot.slane %v4919, 1
        %v4921 = vadd.f32 %v4919, %v4920
        %v4922 = vmul.f32 %v1612, %v1224
        %v4923 = vmul.f32 %v1750, %v1225
        %v4924 = vmul.f32 %v1888, %v1226
        %v4925 = vmul.f32 %v2026, %v1227
        %v4926 = vmul.f32 %v2164, %v1228
        %v4927 = vmul.f32 %v2302, %v1229
        %v4928 = vmul.f32 %v2440, %v1230
        %v4929 = vmul.f32 %v2578, %v1231
        %v4930 = vmul.f32 %v2716, %v1232
        %v4931 = vmul.f32 %v2854, %v1233
        %v4932 = vmul.f32 %v2992, %v1234
        %v4933 = vmul.f32 %v3130, %v1235
        %v4934 = vmul.f32 %v3268, %v1236
        %v4935 = vmul.f32 %v3406, %v1237
        %v4936 = vmul.f32 %v3544, %v1238
        %v4937 = vmul.f32 %v3682, %v1239
        %v4938 = vmul.f32 %v1614, %v1240
        %v4939 = vmul.f32 %v1752, %v1241
        %v4940 = vmul.f32 %v1890, %v1242
        %v4941 = vmul.f32 %v2028, %v1243
        %v4942 = vmul.f32 %v2166, %v1244
        %v4943 = vmul.f32 %v2304, %v1245
        %v4944 = vmul.f32 %v2442, %v1246
        %v4945 = vmul.f32 %v2580, %v1247
        %v4946 = vmul.f32 %v2718, %v1248
        %v4947 = vmul.f32 %v2856, %v1249
        %v4948 = vmul.f32 %v2994, %v1250
        %v4949 = vmul.f32 %v3132, %v1251
        %v4950 = vmul.f32 %v3270, %v1252
        %v4951 = vmul.f32 %v3408, %v1253
        %v4952 = vmul.f32 %v3546, %v1254
        %v4953 = vmul.f32 %v3684, %v1255
        %v4954 = vmul.f32 %v1617, %v1224
        %v4955 = vmul.f32 %v1755, %v1225
        %v4956 = vmul.f32 %v1893, %v1226
        %v4957 = vmul.f32 %v2031, %v1227
        %v4958 = vmul.f32 %v2169, %v1228
        %v4959 = vmul.f32 %v2307, %v1229
        %v4960 = vmul.f32 %v2445, %v1230
        %v4961 = vmul.f32 %v2583, %v1231
        %v4962 = vmul.f32 %v2721, %v1232
        %v4963 = vmul.f32 %v2859, %v1233
        %v4964 = vmul.f32 %v2997, %v1234
        %v4965 = vmul.f32 %v3135, %v1235
        %v4966 = vmul.f32 %v3273, %v1236
        %v4967 = vmul.f32 %v3411, %v1237
        %v4968 = vmul.f32 %v3549, %v1238
        %v4969 = vmul.f32 %v3687, %v1239
        %v4970 = vmul.f32 %v1619, %v1240
        %v4971 = vmul.f32 %v1757, %v1241
        %v4972 = vmul.f32 %v1895, %v1242
        %v4973 = vmul.f32 %v2033, %v1243
        %v4974 = vmul.f32 %v2171, %v1244
        %v4975 = vmul.f32 %v2309, %v1245
        %v4976 = vmul.f32 %v2447, %v1246
        %v4977 = vmul.f32 %v2585, %v1247
        %v4978 = vmul.f32 %v2723, %v1248
        %v4979 = vmul.f32 %v2861, %v1249
        %v4980 = vmul.f32 %v2999, %v1250
        %v4981 = vmul.f32 %v3137, %v1251
        %v4982 = vmul.f32 %v3275, %v1252
        %v4983 = vmul.f32 %v3413, %v1253
        %v4984 = vmul.f32 %v3551, %v1254
        %v4985 = vmul.f32 %v3689, %v1255
        %v4986 = vmul.f32 %v1622, %v1224
        %v4987 = vmul.f32 %v1760, %v1225
        %v4988 = vmul.f32 %v1898, %v1226
        %v4989 = vmul.f32 %v2036, %v1227
        %v4990 = vmul.f32 %v2174, %v1228
        %v4991 = vmul.f32 %v2312, %v1229
        %v4992 = vmul.f32 %v2450, %v1230
        %v4993 = vmul.f32 %v2588, %v1231
        %v4994 = vmul.f32 %v2726, %v1232
        %v4995 = vmul.f32 %v2864, %v1233
        %v4996 = vmul.f32 %v3002, %v1234
        %v4997 = vmul.f32 %v3140, %v1235
        %v4998 = vmul.f32 %v3278, %v1236
        %v4999 = vmul.f32 %v3416, %v1237
        %v5000 = vmul.f32 %v3554, %v1238
        %v5001 = vmul.f32 %v3692, %v1239
        %v5002 = vmul.f32 %v1624, %v1240
        %v5003 = vmul.f32 %v1762, %v1241
        %v5004 = vmul.f32 %v1900, %v1242
        %v5005 = vmul.f32 %v2038, %v1243
        %v5006 = vmul.f32 %v2176, %v1244
        %v5007 = vmul.f32 %v2314, %v1245
        %v5008 = vmul.f32 %v2452, %v1246
        %v5009 = vmul.f32 %v2590, %v1247
        %v5010 = vmul.f32 %v2728, %v1248
        %v5011 = vmul.f32 %v2866, %v1249
        %v5012 = vmul.f32 %v3004, %v1250
        %v5013 = vmul.f32 %v3142, %v1251
        %v5014 = vmul.f32 %v3280, %v1252
        %v5015 = vmul.f32 %v3418, %v1253
        %v5016 = vmul.f32 %v3556, %v1254
        %v5017 = vmul.f32 %v3694, %v1255
        %v5018 = vmul.f32 %v1627, %v1224
        %v5019 = vmul.f32 %v1765, %v1225
        %v5020 = vmul.f32 %v1903, %v1226
        %v5021 = vmul.f32 %v2041, %v1227
        %v5022 = vmul.f32 %v2179, %v1228
        %v5023 = vmul.f32 %v2317, %v1229
        %v5024 = vmul.f32 %v2455, %v1230
        %v5025 = vmul.f32 %v2593, %v1231
        %v5026 = vmul.f32 %v2731, %v1232
        %v5027 = vmul.f32 %v2869, %v1233
        %v5028 = vmul.f32 %v3007, %v1234
        %v5029 = vmul.f32 %v3145, %v1235
        %v5030 = vmul.f32 %v3283, %v1236
        %v5031 = vmul.f32 %v3421, %v1237
        %v5032 = vmul.f32 %v3559, %v1238
        %v5033 = vmul.f32 %v3697, %v1239
        %v5034 = vmul.f32 %v1629, %v1240
        %v5035 = vmul.f32 %v1767, %v1241
        %v5036 = vmul.f32 %v1905, %v1242
        %v5037 = vmul.f32 %v2043, %v1243
        %v5038 = vmul.f32 %v2181, %v1244
        %v5039 = vmul.f32 %v2319, %v1245
        %v5040 = vmul.f32 %v2457, %v1246
        %v5041 = vmul.f32 %v2595, %v1247
        %v5042 = vmul.f32 %v2733, %v1248
        %v5043 = vmul.f32 %v2871, %v1249
        %v5044 = vmul.f32 %v3009, %v1250
        %v5045 = vmul.f32 %v3147, %v1251
        %v5046 = vmul.f32 %v3285, %v1252
        %v5047 = vmul.f32 %v3423, %v1253
        %v5048 = vmul.f32 %v3561, %v1254
        %v5049 = vmul.f32 %v3699, %v1255
        %v5050 = vmul.f32 %v1632, %v1224
        %v5051 = vmul.f32 %v1770, %v1225
        %v5052 = vmul.f32 %v1908, %v1226
        %v5053 = vmul.f32 %v2046, %v1227
        %v5054 = vmul.f32 %v2184, %v1228
        %v5055 = vmul.f32 %v2322, %v1229
        %v5056 = vmul.f32 %v2460, %v1230
        %v5057 = vmul.f32 %v2598, %v1231
        %v5058 = vmul.f32 %v2736, %v1232
        %v5059 = vmul.f32 %v2874, %v1233
        %v5060 = vmul.f32 %v3012, %v1234
        %v5061 = vmul.f32 %v3150, %v1235
        %v5062 = vmul.f32 %v3288, %v1236
        %v5063 = vmul.f32 %v3426, %v1237
        %v5064 = vmul.f32 %v3564, %v1238
        %v5065 = vmul.f32 %v3702, %v1239
        %v5066 = vmul.f32 %v1634, %v1240
        %v5067 = vmul.f32 %v1772, %v1241
        %v5068 = vmul.f32 %v1910, %v1242
        %v5069 = vmul.f32 %v2048, %v1243
        %v5070 = vmul.f32 %v2186, %v1244
        %v5071 = vmul.f32 %v2324, %v1245
        %v5072 = vmul.f32 %v2462, %v1246
        %v5073 = vmul.f32 %v2600, %v1247
        %v5074 = vmul.f32 %v2738, %v1248
        %v5075 = vmul.f32 %v2876, %v1249
        %v5076 = vmul.f32 %v3014, %v1250
        %v5077 = vmul.f32 %v3152, %v1251
        %v5078 = vmul.f32 %v3290, %v1252
        %v5079 = vmul.f32 %v3428, %v1253
        %v5080 = vmul.f32 %v3566, %v1254
        %v5081 = vmul.f32 %v3704, %v1255
        %v5082 = vmul.f32 %v1637, %v1224
        %v5083 = vmul.f32 %v1775, %v1225
        %v5084 = vmul.f32 %v1913, %v1226
        %v5085 = vmul.f32 %v2051, %v1227
        %v5086 = vmul.f32 %v2189, %v1228
        %v5087 = vmul.f32 %v2327, %v1229
        %v5088 = vmul.f32 %v2465, %v1230
        %v5089 = vmul.f32 %v2603, %v1231
        %v5090 = vmul.f32 %v2741, %v1232
        %v5091 = vmul.f32 %v2879, %v1233
        %v5092 = vmul.f32 %v3017, %v1234
        %v5093 = vmul.f32 %v3155, %v1235
        %v5094 = vmul.f32 %v3293, %v1236
        %v5095 = vmul.f32 %v3431, %v1237
        %v5096 = vmul.f32 %v3569, %v1238
        %v5097 = vmul.f32 %v3707, %v1239
        %v5098 = vmul.f32 %v1639, %v1240
        %v5099 = vmul.f32 %v1777, %v1241
        %v5100 = vmul.f32 %v1915, %v1242
        %v5101 = vmul.f32 %v2053, %v1243
        %v5102 = vmul.f32 %v2191, %v1244
        %v5103 = vmul.f32 %v2329, %v1245
        %v5104 = vmul.f32 %v2467, %v1246
        %v5105 = vmul.f32 %v2605, %v1247
        %v5106 = vmul.f32 %v2743, %v1248
        %v5107 = vmul.f32 %v2881, %v1249
        %v5108 = vmul.f32 %v3019, %v1250
        %v5109 = vmul.f32 %v3157, %v1251
        %v5110 = vmul.f32 %v3295, %v1252
        %v5111 = vmul.f32 %v3433, %v1253
        %v5112 = vmul.f32 %v3571, %v1254
        %v5113 = vmul.f32 %v3709, %v1255
        %v5114 = vmul.f32 %v1642, %v1224
        %v5115 = vmul.f32 %v1780, %v1225
        %v5116 = vmul.f32 %v1918, %v1226
        %v5117 = vmul.f32 %v2056, %v1227
        %v5118 = vmul.f32 %v2194, %v1228
        %v5119 = vmul.f32 %v2332, %v1229
        %v5120 = vmul.f32 %v2470, %v1230
        %v5121 = vmul.f32 %v2608, %v1231
        %v5122 = vmul.f32 %v2746, %v1232
        %v5123 = vmul.f32 %v2884, %v1233
        %v5124 = vmul.f32 %v3022, %v1234
        %v5125 = vmul.f32 %v3160, %v1235
        %v5126 = vmul.f32 %v3298, %v1236
        %v5127 = vmul.f32 %v3436, %v1237
        %v5128 = vmul.f32 %v3574, %v1238
        %v5129 = vmul.f32 %v3712, %v1239
        %v5130 = vmul.f32 %v1644, %v1240
        %v5131 = vmul.f32 %v1782, %v1241
        %v5132 = vmul.f32 %v1920, %v1242
        %v5133 = vmul.f32 %v2058, %v1243
        %v5134 = vmul.f32 %v2196, %v1244
        %v5135 = vmul.f32 %v2334, %v1245
        %v5136 = vmul.f32 %v2472, %v1246
        %v5137 = vmul.f32 %v2610, %v1247
        %v5138 = vmul.f32 %v2748, %v1248
        %v5139 = vmul.f32 %v2886, %v1249
        %v5140 = vmul.f32 %v3024, %v1250
        %v5141 = vmul.f32 %v3162, %v1251
        %v5142 = vmul.f32 %v3300, %v1252
        %v5143 = vmul.f32 %v3438, %v1253
        %v5144 = vmul.f32 %v3576, %v1254
        %v5145 = vmul.f32 %v3714, %v1255
        %v5146 = vmul.f32 %v1647, %v1224
        %v5147 = vmul.f32 %v1785, %v1225
        %v5148 = vmul.f32 %v1923, %v1226
        %v5149 = vmul.f32 %v2061, %v1227
        %v5150 = vmul.f32 %v2199, %v1228
        %v5151 = vmul.f32 %v2337, %v1229
        %v5152 = vmul.f32 %v2475, %v1230
        %v5153 = vmul.f32 %v2613, %v1231
        %v5154 = vmul.f32 %v2751, %v1232
        %v5155 = vmul.f32 %v2889, %v1233
        %v5156 = vmul.f32 %v3027, %v1234
        %v5157 = vmul.f32 %v3165, %v1235
        %v5158 = vmul.f32 %v3303, %v1236
        %v5159 = vmul.f32 %v3441, %v1237
        %v5160 = vmul.f32 %v3579, %v1238
        %v5161 = vmul.f32 %v3717, %v1239
        %v5162 = vmul.f32 %v1649, %v1240
        %v5163 = vmul.f32 %v1787, %v1241
        %v5164 = vmul.f32 %v1925, %v1242
        %v5165 = vmul.f32 %v2063, %v1243
        %v5166 = vmul.f32 %v2201, %v1244
        %v5167 = vmul.f32 %v2339, %v1245
        %v5168 = vmul.f32 %v2477, %v1246
        %v5169 = vmul.f32 %v2615, %v1247
        %v5170 = vmul.f32 %v2753, %v1248
        %v5171 = vmul.f32 %v2891, %v1249
        %v5172 = vmul.f32 %v3029, %v1250
        %v5173 = vmul.f32 %v3167, %v1251
        %v5174 = vmul.f32 %v3305, %v1252
        %v5175 = vmul.f32 %v3443, %v1253
        %v5176 = vmul.f32 %v3581, %v1254
        %v5177 = vmul.f32 %v3719, %v1255
        %v5178 = vmul.f32 %v1652, %v1224
        %v5179 = vmul.f32 %v1790, %v1225
        %v5180 = vmul.f32 %v1928, %v1226
        %v5181 = vmul.f32 %v2066, %v1227
        %v5182 = vmul.f32 %v2204, %v1228
        %v5183 = vmul.f32 %v2342, %v1229
        %v5184 = vmul.f32 %v2480, %v1230
        %v5185 = vmul.f32 %v2618, %v1231
        %v5186 = vmul.f32 %v2756, %v1232
        %v5187 = vmul.f32 %v2894, %v1233
        %v5188 = vmul.f32 %v3032, %v1234
        %v5189 = vmul.f32 %v3170, %v1235
        %v5190 = vmul.f32 %v3308, %v1236
        %v5191 = vmul.f32 %v3446, %v1237
        %v5192 = vmul.f32 %v3584, %v1238
        %v5193 = vmul.f32 %v3722, %v1239
        %v5194 = vmul.f32 %v1654, %v1240
        %v5195 = vmul.f32 %v1792, %v1241
        %v5196 = vmul.f32 %v1930, %v1242
        %v5197 = vmul.f32 %v2068, %v1243
        %v5198 = vmul.f32 %v2206, %v1244
        %v5199 = vmul.f32 %v2344, %v1245
        %v5200 = vmul.f32 %v2482, %v1246
        %v5201 = vmul.f32 %v2620, %v1247
        %v5202 = vmul.f32 %v2758, %v1248
        %v5203 = vmul.f32 %v2896, %v1249
        %v5204 = vmul.f32 %v3034, %v1250
        %v5205 = vmul.f32 %v3172, %v1251
        %v5206 = vmul.f32 %v3310, %v1252
        %v5207 = vmul.f32 %v3448, %v1253
        %v5208 = vmul.f32 %v3586, %v1254
        %v5209 = vmul.f32 %v3724, %v1255
        %v5210 = vmul.f32 %v1657, %v1224
        %v5211 = vmul.f32 %v1795, %v1225
        %v5212 = vmul.f32 %v1933, %v1226
        %v5213 = vmul.f32 %v2071, %v1227
        %v5214 = vmul.f32 %v2209, %v1228
        %v5215 = vmul.f32 %v2347, %v1229
        %v5216 = vmul.f32 %v2485, %v1230
        %v5217 = vmul.f32 %v2623, %v1231
        %v5218 = vmul.f32 %v2761, %v1232
        %v5219 = vmul.f32 %v2899, %v1233
        %v5220 = vmul.f32 %v3037, %v1234
        %v5221 = vmul.f32 %v3175, %v1235
        %v5222 = vmul.f32 %v3313, %v1236
        %v5223 = vmul.f32 %v3451, %v1237
        %v5224 = vmul.f32 %v3589, %v1238
        %v5225 = vmul.f32 %v3727, %v1239
        %v5226 = vmul.f32 %v1659, %v1240
        %v5227 = vmul.f32 %v1797, %v1241
        %v5228 = vmul.f32 %v1935, %v1242
        %v5229 = vmul.f32 %v2073, %v1243
        %v5230 = vmul.f32 %v2211, %v1244
        %v5231 = vmul.f32 %v2349, %v1245
        %v5232 = vmul.f32 %v2487, %v1246
        %v5233 = vmul.f32 %v2625, %v1247
        %v5234 = vmul.f32 %v2763, %v1248
        %v5235 = vmul.f32 %v2901, %v1249
        %v5236 = vmul.f32 %v3039, %v1250
        %v5237 = vmul.f32 %v3177, %v1251
        %v5238 = vmul.f32 %v3315, %v1252
        %v5239 = vmul.f32 %v3453, %v1253
        %v5240 = vmul.f32 %v3591, %v1254
        %v5241 = vmul.f32 %v3729, %v1255
        %v5242 = vmul.f32 %v1662, %v1224
        %v5243 = vmul.f32 %v1800, %v1225
        %v5244 = vmul.f32 %v1938, %v1226
        %v5245 = vmul.f32 %v2076, %v1227
        %v5246 = vmul.f32 %v2214, %v1228
        %v5247 = vmul.f32 %v2352, %v1229
        %v5248 = vmul.f32 %v2490, %v1230
        %v5249 = vmul.f32 %v2628, %v1231
        %v5250 = vmul.f32 %v2766, %v1232
        %v5251 = vmul.f32 %v2904, %v1233
        %v5252 = vmul.f32 %v3042, %v1234
        %v5253 = vmul.f32 %v3180, %v1235
        %v5254 = vmul.f32 %v3318, %v1236
        %v5255 = vmul.f32 %v3456, %v1237
        %v5256 = vmul.f32 %v3594, %v1238
        %v5257 = vmul.f32 %v3732, %v1239
        %v5258 = vmul.f32 %v1664, %v1240
        %v5259 = vmul.f32 %v1802, %v1241
        %v5260 = vmul.f32 %v1940, %v1242
        %v5261 = vmul.f32 %v2078, %v1243
        %v5262 = vmul.f32 %v2216, %v1244
        %v5263 = vmul.f32 %v2354, %v1245
        %v5264 = vmul.f32 %v2492, %v1246
        %v5265 = vmul.f32 %v2630, %v1247
        %v5266 = vmul.f32 %v2768, %v1248
        %v5267 = vmul.f32 %v2906, %v1249
        %v5268 = vmul.f32 %v3044, %v1250
        %v5269 = vmul.f32 %v3182, %v1251
        %v5270 = vmul.f32 %v3320, %v1252
        %v5271 = vmul.f32 %v3458, %v1253
        %v5272 = vmul.f32 %v3596, %v1254
        %v5273 = vmul.f32 %v3734, %v1255
        %v5274 = vmul.f32 %v1667, %v1224
        %v5275 = vmul.f32 %v1805, %v1225
        %v5276 = vmul.f32 %v1943, %v1226
        %v5277 = vmul.f32 %v2081, %v1227
        %v5278 = vmul.f32 %v2219, %v1228
        %v5279 = vmul.f32 %v2357, %v1229
        %v5280 = vmul.f32 %v2495, %v1230
        %v5281 = vmul.f32 %v2633, %v1231
        %v5282 = vmul.f32 %v2771, %v1232
        %v5283 = vmul.f32 %v2909, %v1233
        %v5284 = vmul.f32 %v3047, %v1234
        %v5285 = vmul.f32 %v3185, %v1235
        %v5286 = vmul.f32 %v3323, %v1236
        %v5287 = vmul.f32 %v3461, %v1237
        %v5288 = vmul.f32 %v3599, %v1238
        %v5289 = vmul.f32 %v3737, %v1239
        %v5290 = vmul.f32 %v1669, %v1240
        %v5291 = vmul.f32 %v1807, %v1241
        %v5292 = vmul.f32 %v1945, %v1242
        %v5293 = vmul.f32 %v2083, %v1243
        %v5294 = vmul.f32 %v2221, %v1244
        %v5295 = vmul.f32 %v2359, %v1245
        %v5296 = vmul.f32 %v2497, %v1246
        %v5297 = vmul.f32 %v2635, %v1247
        %v5298 = vmul.f32 %v2773, %v1248
        %v5299 = vmul.f32 %v2911, %v1249
        %v5300 = vmul.f32 %v3049, %v1250
        %v5301 = vmul.f32 %v3187, %v1251
        %v5302 = vmul.f32 %v3325, %v1252
        %v5303 = vmul.f32 %v3463, %v1253
        %v5304 = vmul.f32 %v3601, %v1254
        %v5305 = vmul.f32 %v3739, %v1255
        %v5306 = vmul.f32 %v1672, %v1224
        %v5307 = vmul.f32 %v1810, %v1225
        %v5308 = vmul.f32 %v1948, %v1226
        %v5309 = vmul.f32 %v2086, %v1227
        %v5310 = vmul.f32 %v2224, %v1228
        %v5311 = vmul.f32 %v2362, %v1229
        %v5312 = vmul.f32 %v2500, %v1230
        %v5313 = vmul.f32 %v2638, %v1231
        %v5314 = vmul.f32 %v2776, %v1232
        %v5315 = vmul.f32 %v2914, %v1233
        %v5316 = vmul.f32 %v3052, %v1234
        %v5317 = vmul.f32 %v3190, %v1235
        %v5318 = vmul.f32 %v3328, %v1236
        %v5319 = vmul.f32 %v3466, %v1237
        %v5320 = vmul.f32 %v3604, %v1238
        %v5321 = vmul.f32 %v3742, %v1239
        %v5322 = vmul.f32 %v1674, %v1240
        %v5323 = vmul.f32 %v1812, %v1241
        %v5324 = vmul.f32 %v1950, %v1242
        %v5325 = vmul.f32 %v2088, %v1243
        %v5326 = vmul.f32 %v2226, %v1244
        %v5327 = vmul.f32 %v2364, %v1245
        %v5328 = vmul.f32 %v2502, %v1246
        %v5329 = vmul.f32 %v2640, %v1247
        %v5330 = vmul.f32 %v2778, %v1248
        %v5331 = vmul.f32 %v2916, %v1249
        %v5332 = vmul.f32 %v3054, %v1250
        %v5333 = vmul.f32 %v3192, %v1251
        %v5334 = vmul.f32 %v3330, %v1252
        %v5335 = vmul.f32 %v3468, %v1253
        %v5336 = vmul.f32 %v3606, %v1254
        %v5337 = vmul.f32 %v3744, %v1255
        %v5338 = vmul.f32 %v1677, %v1224
        %v5339 = vmul.f32 %v1815, %v1225
        %v5340 = vmul.f32 %v1953, %v1226
        %v5341 = vmul.f32 %v2091, %v1227
        %v5342 = vmul.f32 %v2229, %v1228
        %v5343 = vmul.f32 %v2367, %v1229
        %v5344 = vmul.f32 %v2505, %v1230
        %v5345 = vmul.f32 %v2643, %v1231
        %v5346 = vmul.f32 %v2781, %v1232
        %v5347 = vmul.f32 %v2919, %v1233
        %v5348 = vmul.f32 %v3057, %v1234
        %v5349 = vmul.f32 %v3195, %v1235
        %v5350 = vmul.f32 %v3333, %v1236
        %v5351 = vmul.f32 %v3471, %v1237
        %v5352 = vmul.f32 %v3609, %v1238
        %v5353 = vmul.f32 %v3747, %v1239
        %v5354 = vmul.f32 %v1679, %v1240
        %v5355 = vmul.f32 %v1817, %v1241
        %v5356 = vmul.f32 %v1955, %v1242
        %v5357 = vmul.f32 %v2093, %v1243
        %v5358 = vmul.f32 %v2231, %v1244
        %v5359 = vmul.f32 %v2369, %v1245
        %v5360 = vmul.f32 %v2507, %v1246
        %v5361 = vmul.f32 %v2645, %v1247
        %v5362 = vmul.f32 %v2783, %v1248
        %v5363 = vmul.f32 %v2921, %v1249
        %v5364 = vmul.f32 %v3059, %v1250
        %v5365 = vmul.f32 %v3197, %v1251
        %v5366 = vmul.f32 %v3335, %v1252
        %v5367 = vmul.f32 %v3473, %v1253
        %v5368 = vmul.f32 %v3611, %v1254
        %v5369 = vmul.f32 %v3749, %v1255
        %v5370 = vmul.f32 %v1682, %v1224
        %v5371 = vmul.f32 %v1820, %v1225
        %v5372 = vmul.f32 %v1958, %v1226
        %v5373 = vmul.f32 %v2096, %v1227
        %v5374 = vmul.f32 %v2234, %v1228
        %v5375 = vmul.f32 %v2372, %v1229
        %v5376 = vmul.f32 %v2510, %v1230
        %v5377 = vmul.f32 %v2648, %v1231
        %v5378 = vmul.f32 %v2786, %v1232
        %v5379 = vmul.f32 %v2924, %v1233
        %v5380 = vmul.f32 %v3062, %v1234
        %v5381 = vmul.f32 %v3200, %v1235
        %v5382 = vmul.f32 %v3338, %v1236
        %v5383 = vmul.f32 %v3476, %v1237
        %v5384 = vmul.f32 %v3614, %v1238
        %v5385 = vmul.f32 %v3752, %v1239
        %v5386 = vmul.f32 %v1684, %v1240
        %v5387 = vmul.f32 %v1822, %v1241
        %v5388 = vmul.f32 %v1960, %v1242
        %v5389 = vmul.f32 %v2098, %v1243
        %v5390 = vmul.f32 %v2236, %v1244
        %v5391 = vmul.f32 %v2374, %v1245
        %v5392 = vmul.f32 %v2512, %v1246
        %v5393 = vmul.f32 %v2650, %v1247
        %v5394 = vmul.f32 %v2788, %v1248
        %v5395 = vmul.f32 %v2926, %v1249
        %v5396 = vmul.f32 %v3064, %v1250
        %v5397 = vmul.f32 %v3202, %v1251
        %v5398 = vmul.f32 %v3340, %v1252
        %v5399 = vmul.f32 %v3478, %v1253
        %v5400 = vmul.f32 %v3616, %v1254
        %v5401 = vmul.f32 %v3754, %v1255
        %v5402 = vmul.f32 %v1687, %v1224
        %v5403 = vmul.f32 %v1825, %v1225
        %v5404 = vmul.f32 %v1963, %v1226
        %v5405 = vmul.f32 %v2101, %v1227
        %v5406 = vmul.f32 %v2239, %v1228
        %v5407 = vmul.f32 %v2377, %v1229
        %v5408 = vmul.f32 %v2515, %v1230
        %v5409 = vmul.f32 %v2653, %v1231
        %v5410 = vmul.f32 %v2791, %v1232
        %v5411 = vmul.f32 %v2929, %v1233
        %v5412 = vmul.f32 %v3067, %v1234
        %v5413 = vmul.f32 %v3205, %v1235
        %v5414 = vmul.f32 %v3343, %v1236
        %v5415 = vmul.f32 %v3481, %v1237
        %v5416 = vmul.f32 %v3619, %v1238
        %v5417 = vmul.f32 %v3757, %v1239
        %v5418 = vmul.f32 %v1689, %v1240
        %v5419 = vmul.f32 %v1827, %v1241
        %v5420 = vmul.f32 %v1965, %v1242
        %v5421 = vmul.f32 %v2103, %v1243
        %v5422 = vmul.f32 %v2241, %v1244
        %v5423 = vmul.f32 %v2379, %v1245
        %v5424 = vmul.f32 %v2517, %v1246
        %v5425 = vmul.f32 %v2655, %v1247
        %v5426 = vmul.f32 %v2793, %v1248
        %v5427 = vmul.f32 %v2931, %v1249
        %v5428 = vmul.f32 %v3069, %v1250
        %v5429 = vmul.f32 %v3207, %v1251
        %v5430 = vmul.f32 %v3345, %v1252
        %v5431 = vmul.f32 %v3483, %v1253
        %v5432 = vmul.f32 %v3621, %v1254
        %v5433 = vmul.f32 %v3759, %v1255
        %v5434 = vadd.f32 %v4922, %v4938
        %v5435 = vrot.slane %v5434, 4
        %v5436 = vadd.f32 %v5434, %v5435
        %v5437 = vrot.slane %v5436, 2
        %v5438 = vadd.f32 %v5436, %v5437
        %v5439 = vrot.slane %v5438, 1
        %v5440 = vadd.f32 %v5438, %v5439
        %v5441 = vadd.f32 %v4923, %v4939
        %v5442 = vrot.slane %v5441, 4
        %v5443 = vadd.f32 %v5441, %v5442
        %v5444 = vrot.slane %v5443, 2
        %v5445 = vadd.f32 %v5443, %v5444
        %v5446 = vrot.slane %v5445, 1
        %v5447 = vadd.f32 %v5445, %v5446
        %v5448 = vadd.f32 %v4924, %v4940
        %v5449 = vrot.slane %v5448, 4
        %v5450 = vadd.f32 %v5448, %v5449
        %v5451 = vrot.slane %v5450, 2
        %v5452 = vadd.f32 %v5450, %v5451
        %v5453 = vrot.slane %v5452, 1
        %v5454 = vadd.f32 %v5452, %v5453
        %v5455 = vadd.f32 %v4925, %v4941
        %v5456 = vrot.slane %v5455, 4
        %v5457 = vadd.f32 %v5455, %v5456
        %v5458 = vrot.slane %v5457, 2
        %v5459 = vadd.f32 %v5457, %v5458
        %v5460 = vrot.slane %v5459, 1
        %v5461 = vadd.f32 %v5459, %v5460
        %v5462 = vadd.f32 %v4926, %v4942
        %v5463 = vrot.slane %v5462, 4
        %v5464 = vadd.f32 %v5462, %v5463
        %v5465 = vrot.slane %v5464, 2
        %v5466 = vadd.f32 %v5464, %v5465
        %v5467 = vrot.slane %v5466, 1
        %v5468 = vadd.f32 %v5466, %v5467
        %v5469 = vadd.f32 %v4927, %v4943
        %v5470 = vrot.slane %v5469, 4
        %v5471 = vadd.f32 %v5469, %v5470
        %v5472 = vrot.slane %v5471, 2
        %v5473 = vadd.f32 %v5471, %v5472
        %v5474 = vrot.slane %v5473, 1
        %v5475 = vadd.f32 %v5473, %v5474
        %v5476 = vadd.f32 %v4928, %v4944
        %v5477 = vrot.slane %v5476, 4
        %v5478 = vadd.f32 %v5476, %v5477
        %v5479 = vrot.slane %v5478, 2
        %v5480 = vadd.f32 %v5478, %v5479
        %v5481 = vrot.slane %v5480, 1
        %v5482 = vadd.f32 %v5480, %v5481
        %v5483 = vadd.f32 %v4929, %v4945
        %v5484 = vrot.slane %v5483, 4
        %v5485 = vadd.f32 %v5483, %v5484
        %v5486 = vrot.slane %v5485, 2
        %v5487 = vadd.f32 %v5485, %v5486
        %v5488 = vrot.slane %v5487, 1
        %v5489 = vadd.f32 %v5487, %v5488
        %v5490 = vadd.f32 %v4930, %v4946
        %v5491 = vrot.slane %v5490, 4
        %v5492 = vadd.f32 %v5490, %v5491
        %v5493 = vrot.slane %v5492, 2
        %v5494 = vadd.f32 %v5492, %v5493
        %v5495 = vrot.slane %v5494, 1
        %v5496 = vadd.f32 %v5494, %v5495
        %v5497 = vadd.f32 %v4931, %v4947
        %v5498 = vrot.slane %v5497, 4
        %v5499 = vadd.f32 %v5497, %v5498
        %v5500 = vrot.slane %v5499, 2
        %v5501 = vadd.f32 %v5499, %v5500
        %v5502 = vrot.slane %v5501, 1
        %v5503 = vadd.f32 %v5501, %v5502
        %v5504 = vadd.f32 %v4932, %v4948
        %v5505 = vrot.slane %v5504, 4
        %v5506 = vadd.f32 %v5504, %v5505
        %v5507 = vrot.slane %v5506, 2
        %v5508 = vadd.f32 %v5506, %v5507
        %v5509 = vrot.slane %v5508, 1
        %v5510 = vadd.f32 %v5508, %v5509
        %v5511 = vadd.f32 %v4933, %v4949
        %v5512 = vrot.slane %v5511, 4
        %v5513 = vadd.f32 %v5511, %v5512
        %v5514 = vrot.slane %v5513, 2
        %v5515 = vadd.f32 %v5513, %v5514
        %v5516 = vrot.slane %v5515, 1
        %v5517 = vadd.f32 %v5515, %v5516
        %v5518 = vadd.f32 %v4934, %v4950
        %v5519 = vrot.slane %v5518, 4
        %v5520 = vadd.f32 %v5518, %v5519
        %v5521 = vrot.slane %v5520, 2
        %v5522 = vadd.f32 %v5520, %v5521
        %v5523 = vrot.slane %v5522, 1
        %v5524 = vadd.f32 %v5522, %v5523
        %v5525 = vadd.f32 %v4935, %v4951
        %v5526 = vrot.slane %v5525, 4
        %v5527 = vadd.f32 %v5525, %v5526
        %v5528 = vrot.slane %v5527, 2
        %v5529 = vadd.f32 %v5527, %v5528
        %v5530 = vrot.slane %v5529, 1
        %v5531 = vadd.f32 %v5529, %v5530
        %v5532 = vadd.f32 %v4936, %v4952
        %v5533 = vrot.slane %v5532, 4
        %v5534 = vadd.f32 %v5532, %v5533
        %v5535 = vrot.slane %v5534, 2
        %v5536 = vadd.f32 %v5534, %v5535
        %v5537 = vrot.slane %v5536, 1
        %v5538 = vadd.f32 %v5536, %v5537
        %v5539 = vadd.f32 %v4937, %v4953
        %v5540 = vrot.slane %v5539, 4
        %v5541 = vadd.f32 %v5539, %v5540
        %v5542 = vrot.slane %v5541, 2
        %v5543 = vadd.f32 %v5541, %v5542
        %v5544 = vrot.slane %v5543, 1
        %v5545 = vadd.f32 %v5543, %v5544
        %v5546 = vadd.f32 %v4954, %v4970
        %v5547 = vrot.slane %v5546, 4
        %v5548 = vadd.f32 %v5546, %v5547
        %v5549 = vrot.slane %v5548, 2
        %v5550 = vadd.f32 %v5548, %v5549
        %v5551 = vrot.slane %v5550, 1
        %v5552 = vadd.f32 %v5550, %v5551
        %v5553 = vadd.f32 %v4955, %v4971
        %v5554 = vrot.slane %v5553, 4
        %v5555 = vadd.f32 %v5553, %v5554
        %v5556 = vrot.slane %v5555, 2
        %v5557 = vadd.f32 %v5555, %v5556
        %v5558 = vrot.slane %v5557, 1
        %v5559 = vadd.f32 %v5557, %v5558
        %v5560 = vadd.f32 %v4956, %v4972
        %v5561 = vrot.slane %v5560, 4
        %v5562 = vadd.f32 %v5560, %v5561
        %v5563 = vrot.slane %v5562, 2
        %v5564 = vadd.f32 %v5562, %v5563
        %v5565 = vrot.slane %v5564, 1
        %v5566 = vadd.f32 %v5564, %v5565
        %v5567 = vadd.f32 %v4957, %v4973
        %v5568 = vrot.slane %v5567, 4
        %v5569 = vadd.f32 %v5567, %v5568
        %v5570 = vrot.slane %v5569, 2
        %v5571 = vadd.f32 %v5569, %v5570
        %v5572 = vrot.slane %v5571, 1
        %v5573 = vadd.f32 %v5571, %v5572
        %v5574 = vadd.f32 %v4958, %v4974
        %v5575 = vrot.slane %v5574, 4
        %v5576 = vadd.f32 %v5574, %v5575
        %v5577 = vrot.slane %v5576, 2
        %v5578 = vadd.f32 %v5576, %v5577
        %v5579 = vrot.slane %v5578, 1
        %v5580 = vadd.f32 %v5578, %v5579
        %v5581 = vadd.f32 %v4959, %v4975
        %v5582 = vrot.slane %v5581, 4
        %v5583 = vadd.f32 %v5581, %v5582
        %v5584 = vrot.slane %v5583, 2
        %v5585 = vadd.f32 %v5583, %v5584
        %v5586 = vrot.slane %v5585, 1
        %v5587 = vadd.f32 %v5585, %v5586
        %v5588 = vadd.f32 %v4960, %v4976
        %v5589 = vrot.slane %v5588, 4
        %v5590 = vadd.f32 %v5588, %v5589
        %v5591 = vrot.slane %v5590, 2
        %v5592 = vadd.f32 %v5590, %v5591
        %v5593 = vrot.slane %v5592, 1
        %v5594 = vadd.f32 %v5592, %v5593
        %v5595 = vadd.f32 %v4961, %v4977
        %v5596 = vrot.slane %v5595, 4
        %v5597 = vadd.f32 %v5595, %v5596
        %v5598 = vrot.slane %v5597, 2
        %v5599 = vadd.f32 %v5597, %v5598
        %v5600 = vrot.slane %v5599, 1
        %v5601 = vadd.f32 %v5599, %v5600
        %v5602 = vadd.f32 %v4962, %v4978
        %v5603 = vrot.slane %v5602, 4
        %v5604 = vadd.f32 %v5602, %v5603
        %v5605 = vrot.slane %v5604, 2
        %v5606 = vadd.f32 %v5604, %v5605
        %v5607 = vrot.slane %v5606, 1
        %v5608 = vadd.f32 %v5606, %v5607
        %v5609 = vadd.f32 %v4963, %v4979
        %v5610 = vrot.slane %v5609, 4
        %v5611 = vadd.f32 %v5609, %v5610
        %v5612 = vrot.slane %v5611, 2
        %v5613 = vadd.f32 %v5611, %v5612
        %v5614 = vrot.slane %v5613, 1
        %v5615 = vadd.f32 %v5613, %v5614
        %v5616 = vadd.f32 %v4964, %v4980
        %v5617 = vrot.slane %v5616, 4
        %v5618 = vadd.f32 %v5616, %v5617
        %v5619 = vrot.slane %v5618, 2
        %v5620 = vadd.f32 %v5618, %v5619
        %v5621 = vrot.slane %v5620, 1
        %v5622 = vadd.f32 %v5620, %v5621
        %v5623 = vadd.f32 %v4965, %v4981
        %v5624 = vrot.slane %v5623, 4
        %v5625 = vadd.f32 %v5623, %v5624
        %v5626 = vrot.slane %v5625, 2
        %v5627 = vadd.f32 %v5625, %v5626
        %v5628 = vrot.slane %v5627, 1
        %v5629 = vadd.f32 %v5627, %v5628
        %v5630 = vadd.f32 %v4966, %v4982
        %v5631 = vrot.slane %v5630, 4
        %v5632 = vadd.f32 %v5630, %v5631
        %v5633 = vrot.slane %v5632, 2
        %v5634 = vadd.f32 %v5632, %v5633
        %v5635 = vrot.slane %v5634, 1
        %v5636 = vadd.f32 %v5634, %v5635
        %v5637 = vadd.f32 %v4967, %v4983
        %v5638 = vrot.slane %v5637, 4
        %v5639 = vadd.f32 %v5637, %v5638
        %v5640 = vrot.slane %v5639, 2
        %v5641 = vadd.f32 %v5639, %v5640
        %v5642 = vrot.slane %v5641, 1
        %v5643 = vadd.f32 %v5641, %v5642
        %v5644 = vadd.f32 %v4968, %v4984
        %v5645 = vrot.slane %v5644, 4
        %v5646 = vadd.f32 %v5644, %v5645
        %v5647 = vrot.slane %v5646, 2
        %v5648 = vadd.f32 %v5646, %v5647
        %v5649 = vrot.slane %v5648, 1
        %v5650 = vadd.f32 %v5648, %v5649
        %v5651 = vadd.f32 %v4969, %v4985
        %v5652 = vrot.slane %v5651, 4
        %v5653 = vadd.f32 %v5651, %v5652
        %v5654 = vrot.slane %v5653, 2
        %v5655 = vadd.f32 %v5653, %v5654
        %v5656 = vrot.slane %v5655, 1
        %v5657 = vadd.f32 %v5655, %v5656
        %v5658 = vadd.f32 %v4986, %v5002
        %v5659 = vrot.slane %v5658, 4
        %v5660 = vadd.f32 %v5658, %v5659
        %v5661 = vrot.slane %v5660, 2
        %v5662 = vadd.f32 %v5660, %v5661
        %v5663 = vrot.slane %v5662, 1
        %v5664 = vadd.f32 %v5662, %v5663
        %v5665 = vadd.f32 %v4987, %v5003
        %v5666 = vrot.slane %v5665, 4
        %v5667 = vadd.f32 %v5665, %v5666
        %v5668 = vrot.slane %v5667, 2
        %v5669 = vadd.f32 %v5667, %v5668
        %v5670 = vrot.slane %v5669, 1
        %v5671 = vadd.f32 %v5669, %v5670
        %v5672 = vadd.f32 %v4988, %v5004
        %v5673 = vrot.slane %v5672, 4
        %v5674 = vadd.f32 %v5672, %v5673
        %v5675 = vrot.slane %v5674, 2
        %v5676 = vadd.f32 %v5674, %v5675
        %v5677 = vrot.slane %v5676, 1
        %v5678 = vadd.f32 %v5676, %v5677
        %v5679 = vadd.f32 %v4989, %v5005
        %v5680 = vrot.slane %v5679, 4
        %v5681 = vadd.f32 %v5679, %v5680
        %v5682 = vrot.slane %v5681, 2
        %v5683 = vadd.f32 %v5681, %v5682
        %v5684 = vrot.slane %v5683, 1
        %v5685 = vadd.f32 %v5683, %v5684
        %v5686 = vadd.f32 %v4990, %v5006
        %v5687 = vrot.slane %v5686, 4
        %v5688 = vadd.f32 %v5686, %v5687
        %v5689 = vrot.slane %v5688, 2
        %v5690 = vadd.f32 %v5688, %v5689
        %v5691 = vrot.slane %v5690, 1
        %v5692 = vadd.f32 %v5690, %v5691
        %v5693 = vadd.f32 %v4991, %v5007
        %v5694 = vrot.slane %v5693, 4
        %v5695 = vadd.f32 %v5693, %v5694
        %v5696 = vrot.slane %v5695, 2
        %v5697 = vadd.f32 %v5695, %v5696
        %v5698 = vrot.slane %v5697, 1
        %v5699 = vadd.f32 %v5697, %v5698
        %v5700 = vadd.f32 %v4992, %v5008
        %v5701 = vrot.slane %v5700, 4
        %v5702 = vadd.f32 %v5700, %v5701
        %v5703 = vrot.slane %v5702, 2
        %v5704 = vadd.f32 %v5702, %v5703
        %v5705 = vrot.slane %v5704, 1
        %v5706 = vadd.f32 %v5704, %v5705
        %v5707 = vadd.f32 %v4993, %v5009
        %v5708 = vrot.slane %v5707, 4
        %v5709 = vadd.f32 %v5707, %v5708
        %v5710 = vrot.slane %v5709, 2
        %v5711 = vadd.f32 %v5709, %v5710
        %v5712 = vrot.slane %v5711, 1
        %v5713 = vadd.f32 %v5711, %v5712
        %v5714 = vadd.f32 %v4994, %v5010
        %v5715 = vrot.slane %v5714, 4
        %v5716 = vadd.f32 %v5714, %v5715
        %v5717 = vrot.slane %v5716, 2
        %v5718 = vadd.f32 %v5716, %v5717
        %v5719 = vrot.slane %v5718, 1
        %v5720 = vadd.f32 %v5718, %v5719
        %v5721 = vadd.f32 %v4995, %v5011
        %v5722 = vrot.slane %v5721, 4
        %v5723 = vadd.f32 %v5721, %v5722
        %v5724 = vrot.slane %v5723, 2
        %v5725 = vadd.f32 %v5723, %v5724
        %v5726 = vrot.slane %v5725, 1
        %v5727 = vadd.f32 %v5725, %v5726
        %v5728 = vadd.f32 %v4996, %v5012
        %v5729 = vrot.slane %v5728, 4
        %v5730 = vadd.f32 %v5728, %v5729
        %v5731 = vrot.slane %v5730, 2
        %v5732 = vadd.f32 %v5730, %v5731
        %v5733 = vrot.slane %v5732, 1
        %v5734 = vadd.f32 %v5732, %v5733
        %v5735 = vadd.f32 %v4997, %v5013
        %v5736 = vrot.slane %v5735, 4
        %v5737 = vadd.f32 %v5735, %v5736
        %v5738 = vrot.slane %v5737, 2
        %v5739 = vadd.f32 %v5737, %v5738
        %v5740 = vrot.slane %v5739, 1
        %v5741 = vadd.f32 %v5739, %v5740
        %v5742 = vadd.f32 %v4998, %v5014
        %v5743 = vrot.slane %v5742, 4
        %v5744 = vadd.f32 %v5742, %v5743
        %v5745 = vrot.slane %v5744, 2
        %v5746 = vadd.f32 %v5744, %v5745
        %v5747 = vrot.slane %v5746, 1
        %v5748 = vadd.f32 %v5746, %v5747
        %v5749 = vadd.f32 %v4999, %v5015
        %v5750 = vrot.slane %v5749, 4
        %v5751 = vadd.f32 %v5749, %v5750
        %v5752 = vrot.slane %v5751, 2
        %v5753 = vadd.f32 %v5751, %v5752
        %v5754 = vrot.slane %v5753, 1
        %v5755 = vadd.f32 %v5753, %v5754
        %v5756 = vadd.f32 %v5000, %v5016
        %v5757 = vrot.slane %v5756, 4
        %v5758 = vadd.f32 %v5756, %v5757
        %v5759 = vrot.slane %v5758, 2
        %v5760 = vadd.f32 %v5758, %v5759
        %v5761 = vrot.slane %v5760, 1
        %v5762 = vadd.f32 %v5760, %v5761
        %v5763 = vadd.f32 %v5001, %v5017
        %v5764 = vrot.slane %v5763, 4
        %v5765 = vadd.f32 %v5763, %v5764
        %v5766 = vrot.slane %v5765, 2
        %v5767 = vadd.f32 %v5765, %v5766
        %v5768 = vrot.slane %v5767, 1
        %v5769 = vadd.f32 %v5767, %v5768
        %v5770 = vadd.f32 %v5018, %v5034
        %v5771 = vrot.slane %v5770, 4
        %v5772 = vadd.f32 %v5770, %v5771
        %v5773 = vrot.slane %v5772, 2
        %v5774 = vadd.f32 %v5772, %v5773
        %v5775 = vrot.slane %v5774, 1
        %v5776 = vadd.f32 %v5774, %v5775
        %v5777 = vadd.f32 %v5019, %v5035
        %v5778 = vrot.slane %v5777, 4
        %v5779 = vadd.f32 %v5777, %v5778
        %v5780 = vrot.slane %v5779, 2
        %v5781 = vadd.f32 %v5779, %v5780
        %v5782 = vrot.slane %v5781, 1
        %v5783 = vadd.f32 %v5781, %v5782
        %v5784 = vadd.f32 %v5020, %v5036
        %v5785 = vrot.slane %v5784, 4
        %v5786 = vadd.f32 %v5784, %v5785
        %v5787 = vrot.slane %v5786, 2
        %v5788 = vadd.f32 %v5786, %v5787
        %v5789 = vrot.slane %v5788, 1
        %v5790 = vadd.f32 %v5788, %v5789
        %v5791 = vadd.f32 %v5021, %v5037
        %v5792 = vrot.slane %v5791, 4
        %v5793 = vadd.f32 %v5791, %v5792
        %v5794 = vrot.slane %v5793, 2
        %v5795 = vadd.f32 %v5793, %v5794
        %v5796 = vrot.slane %v5795, 1
        %v5797 = vadd.f32 %v5795, %v5796
        %v5798 = vadd.f32 %v5022, %v5038
        %v5799 = vrot.slane %v5798, 4
        %v5800 = vadd.f32 %v5798, %v5799
        %v5801 = vrot.slane %v5800, 2
        %v5802 = vadd.f32 %v5800, %v5801
        %v5803 = vrot.slane %v5802, 1
        %v5804 = vadd.f32 %v5802, %v5803
        %v5805 = vadd.f32 %v5023, %v5039
        %v5806 = vrot.slane %v5805, 4
        %v5807 = vadd.f32 %v5805, %v5806
        %v5808 = vrot.slane %v5807, 2
        %v5809 = vadd.f32 %v5807, %v5808
        %v5810 = vrot.slane %v5809, 1
        %v5811 = vadd.f32 %v5809, %v5810
        %v5812 = vadd.f32 %v5024, %v5040
        %v5813 = vrot.slane %v5812, 4
        %v5814 = vadd.f32 %v5812, %v5813
        %v5815 = vrot.slane %v5814, 2
        %v5816 = vadd.f32 %v5814, %v5815
        %v5817 = vrot.slane %v5816, 1
        %v5818 = vadd.f32 %v5816, %v5817
        %v5819 = vadd.f32 %v5025, %v5041
        %v5820 = vrot.slane %v5819, 4
        %v5821 = vadd.f32 %v5819, %v5820
        %v5822 = vrot.slane %v5821, 2
        %v5823 = vadd.f32 %v5821, %v5822
        %v5824 = vrot.slane %v5823, 1
        %v5825 = vadd.f32 %v5823, %v5824
        %v5826 = vadd.f32 %v5026, %v5042
        %v5827 = vrot.slane %v5826, 4
        %v5828 = vadd.f32 %v5826, %v5827
        %v5829 = vrot.slane %v5828, 2
        %v5830 = vadd.f32 %v5828, %v5829
        %v5831 = vrot.slane %v5830, 1
        %v5832 = vadd.f32 %v5830, %v5831
        %v5833 = vadd.f32 %v5027, %v5043
        %v5834 = vrot.slane %v5833, 4
        %v5835 = vadd.f32 %v5833, %v5834
        %v5836 = vrot.slane %v5835, 2
        %v5837 = vadd.f32 %v5835, %v5836
        %v5838 = vrot.slane %v5837, 1
        %v5839 = vadd.f32 %v5837, %v5838
        %v5840 = vadd.f32 %v5028, %v5044
        %v5841 = vrot.slane %v5840, 4
        %v5842 = vadd.f32 %v5840, %v5841
        %v5843 = vrot.slane %v5842, 2
        %v5844 = vadd.f32 %v5842, %v5843
        %v5845 = vrot.slane %v5844, 1
        %v5846 = vadd.f32 %v5844, %v5845
        %v5847 = vadd.f32 %v5029, %v5045
        %v5848 = vrot.slane %v5847, 4
        %v5849 = vadd.f32 %v5847, %v5848
        %v5850 = vrot.slane %v5849, 2
        %v5851 = vadd.f32 %v5849, %v5850
        %v5852 = vrot.slane %v5851, 1
        %v5853 = vadd.f32 %v5851, %v5852
        %v5854 = vadd.f32 %v5030, %v5046
        %v5855 = vrot.slane %v5854, 4
        %v5856 = vadd.f32 %v5854, %v5855
        %v5857 = vrot.slane %v5856, 2
        %v5858 = vadd.f32 %v5856, %v5857
        %v5859 = vrot.slane %v5858, 1
        %v5860 = vadd.f32 %v5858, %v5859
        %v5861 = vadd.f32 %v5031, %v5047
        %v5862 = vrot.slane %v5861, 4
        %v5863 = vadd.f32 %v5861, %v5862
        %v5864 = vrot.slane %v5863, 2
        %v5865 = vadd.f32 %v5863, %v5864
        %v5866 = vrot.slane %v5865, 1
        %v5867 = vadd.f32 %v5865, %v5866
        %v5868 = vadd.f32 %v5032, %v5048
        %v5869 = vrot.slane %v5868, 4
        %v5870 = vadd.f32 %v5868, %v5869
        %v5871 = vrot.slane %v5870, 2
        %v5872 = vadd.f32 %v5870, %v5871
        %v5873 = vrot.slane %v5872, 1
        %v5874 = vadd.f32 %v5872, %v5873
        %v5875 = vadd.f32 %v5033, %v5049
        %v5876 = vrot.slane %v5875, 4
        %v5877 = vadd.f32 %v5875, %v5876
        %v5878 = vrot.slane %v5877, 2
        %v5879 = vadd.f32 %v5877, %v5878
        %v5880 = vrot.slane %v5879, 1
        %v5881 = vadd.f32 %v5879, %v5880
        %v5882 = vadd.f32 %v5050, %v5066
        %v5883 = vrot.slane %v5882, 4
        %v5884 = vadd.f32 %v5882, %v5883
        %v5885 = vrot.slane %v5884, 2
        %v5886 = vadd.f32 %v5884, %v5885
        %v5887 = vrot.slane %v5886, 1
        %v5888 = vadd.f32 %v5886, %v5887
        %v5889 = vadd.f32 %v5051, %v5067
        %v5890 = vrot.slane %v5889, 4
        %v5891 = vadd.f32 %v5889, %v5890
        %v5892 = vrot.slane %v5891, 2
        %v5893 = vadd.f32 %v5891, %v5892
        %v5894 = vrot.slane %v5893, 1
        %v5895 = vadd.f32 %v5893, %v5894
        %v5896 = vadd.f32 %v5052, %v5068
        %v5897 = vrot.slane %v5896, 4
        %v5898 = vadd.f32 %v5896, %v5897
        %v5899 = vrot.slane %v5898, 2
        %v5900 = vadd.f32 %v5898, %v5899
        %v5901 = vrot.slane %v5900, 1
        %v5902 = vadd.f32 %v5900, %v5901
        %v5903 = vadd.f32 %v5053, %v5069
        %v5904 = vrot.slane %v5903, 4
        %v5905 = vadd.f32 %v5903, %v5904
        %v5906 = vrot.slane %v5905, 2
        %v5907 = vadd.f32 %v5905, %v5906
        %v5908 = vrot.slane %v5907, 1
        %v5909 = vadd.f32 %v5907, %v5908
        %v5910 = vadd.f32 %v5054, %v5070
        %v5911 = vrot.slane %v5910, 4
        %v5912 = vadd.f32 %v5910, %v5911
        %v5913 = vrot.slane %v5912, 2
        %v5914 = vadd.f32 %v5912, %v5913
        %v5915 = vrot.slane %v5914, 1
        %v5916 = vadd.f32 %v5914, %v5915
        %v5917 = vadd.f32 %v5055, %v5071
        %v5918 = vrot.slane %v5917, 4
        %v5919 = vadd.f32 %v5917, %v5918
        %v5920 = vrot.slane %v5919, 2
        %v5921 = vadd.f32 %v5919, %v5920
        %v5922 = vrot.slane %v5921, 1
        %v5923 = vadd.f32 %v5921, %v5922
        %v5924 = vadd.f32 %v5056, %v5072
        %v5925 = vrot.slane %v5924, 4
        %v5926 = vadd.f32 %v5924, %v5925
        %v5927 = vrot.slane %v5926, 2
        %v5928 = vadd.f32 %v5926, %v5927
        %v5929 = vrot.slane %v5928, 1
        %v5930 = vadd.f32 %v5928, %v5929
        %v5931 = vadd.f32 %v5057, %v5073
        %v5932 = vrot.slane %v5931, 4
        %v5933 = vadd.f32 %v5931, %v5932
        %v5934 = vrot.slane %v5933, 2
        %v5935 = vadd.f32 %v5933, %v5934
        %v5936 = vrot.slane %v5935, 1
        %v5937 = vadd.f32 %v5935, %v5936
        %v5938 = vadd.f32 %v5058, %v5074
        %v5939 = vrot.slane %v5938, 4
        %v5940 = vadd.f32 %v5938, %v5939
        %v5941 = vrot.slane %v5940, 2
        %v5942 = vadd.f32 %v5940, %v5941
        %v5943 = vrot.slane %v5942, 1
        %v5944 = vadd.f32 %v5942, %v5943
        %v5945 = vadd.f32 %v5059, %v5075
        %v5946 = vrot.slane %v5945, 4
        %v5947 = vadd.f32 %v5945, %v5946
        %v5948 = vrot.slane %v5947, 2
        %v5949 = vadd.f32 %v5947, %v5948
        %v5950 = vrot.slane %v5949, 1
        %v5951 = vadd.f32 %v5949, %v5950
        %v5952 = vadd.f32 %v5060, %v5076
        %v5953 = vrot.slane %v5952, 4
        %v5954 = vadd.f32 %v5952, %v5953
        %v5955 = vrot.slane %v5954, 2
        %v5956 = vadd.f32 %v5954, %v5955
        %v5957 = vrot.slane %v5956, 1
        %v5958 = vadd.f32 %v5956, %v5957
        %v5959 = vadd.f32 %v5061, %v5077
        %v5960 = vrot.slane %v5959, 4
        %v5961 = vadd.f32 %v5959, %v5960
        %v5962 = vrot.slane %v5961, 2
        %v5963 = vadd.f32 %v5961, %v5962
        %v5964 = vrot.slane %v5963, 1
        %v5965 = vadd.f32 %v5963, %v5964
        %v5966 = vadd.f32 %v5062, %v5078
        %v5967 = vrot.slane %v5966, 4
        %v5968 = vadd.f32 %v5966, %v5967
        %v5969 = vrot.slane %v5968, 2
        %v5970 = vadd.f32 %v5968, %v5969
        %v5971 = vrot.slane %v5970, 1
        %v5972 = vadd.f32 %v5970, %v5971
        %v5973 = vadd.f32 %v5063, %v5079
        %v5974 = vrot.slane %v5973, 4
        %v5975 = vadd.f32 %v5973, %v5974
        %v5976 = vrot.slane %v5975, 2
        %v5977 = vadd.f32 %v5975, %v5976
        %v5978 = vrot.slane %v5977, 1
        %v5979 = vadd.f32 %v5977, %v5978
        %v5980 = vadd.f32 %v5064, %v5080
        %v5981 = vrot.slane %v5980, 4
        %v5982 = vadd.f32 %v5980, %v5981
        %v5983 = vrot.slane %v5982, 2
        %v5984 = vadd.f32 %v5982, %v5983
        %v5985 = vrot.slane %v5984, 1
        %v5986 = vadd.f32 %v5984, %v5985
        %v5987 = vadd.f32 %v5065, %v5081
        %v5988 = vrot.slane %v5987, 4
        %v5989 = vadd.f32 %v5987, %v5988
        %v5990 = vrot.slane %v5989, 2
        %v5991 = vadd.f32 %v5989, %v5990
        %v5992 = vrot.slane %v5991, 1
        %v5993 = vadd.f32 %v5991, %v5992
        %v5994 = vadd.f32 %v5082, %v5098
        %v5995 = vrot.slane %v5994, 4
        %v5996 = vadd.f32 %v5994, %v5995
        %v5997 = vrot.slane %v5996, 2
        %v5998 = vadd.f32 %v5996, %v5997
        %v5999 = vrot.slane %v5998, 1
        %v6000 = vadd.f32 %v5998, %v5999
        %v6001 = vadd.f32 %v5083, %v5099
        %v6002 = vrot.slane %v6001, 4
        %v6003 = vadd.f32 %v6001, %v6002
        %v6004 = vrot.slane %v6003, 2
        %v6005 = vadd.f32 %v6003, %v6004
        %v6006 = vrot.slane %v6005, 1
        %v6007 = vadd.f32 %v6005, %v6006
        %v6008 = vadd.f32 %v5084, %v5100
        %v6009 = vrot.slane %v6008, 4
        %v6010 = vadd.f32 %v6008, %v6009
        %v6011 = vrot.slane %v6010, 2
        %v6012 = vadd.f32 %v6010, %v6011
        %v6013 = vrot.slane %v6012, 1
        %v6014 = vadd.f32 %v6012, %v6013
        %v6015 = vadd.f32 %v5085, %v5101
        %v6016 = vrot.slane %v6015, 4
        %v6017 = vadd.f32 %v6015, %v6016
        %v6018 = vrot.slane %v6017, 2
        %v6019 = vadd.f32 %v6017, %v6018
        %v6020 = vrot.slane %v6019, 1
        %v6021 = vadd.f32 %v6019, %v6020
        %v6022 = vadd.f32 %v5086, %v5102
        %v6023 = vrot.slane %v6022, 4
        %v6024 = vadd.f32 %v6022, %v6023
        %v6025 = vrot.slane %v6024, 2
        %v6026 = vadd.f32 %v6024, %v6025
        %v6027 = vrot.slane %v6026, 1
        %v6028 = vadd.f32 %v6026, %v6027
        %v6029 = vadd.f32 %v5087, %v5103
        %v6030 = vrot.slane %v6029, 4
        %v6031 = vadd.f32 %v6029, %v6030
        %v6032 = vrot.slane %v6031, 2
        %v6033 = vadd.f32 %v6031, %v6032
        %v6034 = vrot.slane %v6033, 1
        %v6035 = vadd.f32 %v6033, %v6034
        %v6036 = vadd.f32 %v5088, %v5104
        %v6037 = vrot.slane %v6036, 4
        %v6038 = vadd.f32 %v6036, %v6037
        %v6039 = vrot.slane %v6038, 2
        %v6040 = vadd.f32 %v6038, %v6039
        %v6041 = vrot.slane %v6040, 1
        %v6042 = vadd.f32 %v6040, %v6041
        %v6043 = vadd.f32 %v5089, %v5105
        %v6044 = vrot.slane %v6043, 4
        %v6045 = vadd.f32 %v6043, %v6044
        %v6046 = vrot.slane %v6045, 2
        %v6047 = vadd.f32 %v6045, %v6046
        %v6048 = vrot.slane %v6047, 1
        %v6049 = vadd.f32 %v6047, %v6048
        %v6050 = vadd.f32 %v5090, %v5106
        %v6051 = vrot.slane %v6050, 4
        %v6052 = vadd.f32 %v6050, %v6051
        %v6053 = vrot.slane %v6052, 2
        %v6054 = vadd.f32 %v6052, %v6053
        %v6055 = vrot.slane %v6054, 1
        %v6056 = vadd.f32 %v6054, %v6055
        %v6057 = vadd.f32 %v5091, %v5107
        %v6058 = vrot.slane %v6057, 4
        %v6059 = vadd.f32 %v6057, %v6058
        %v6060 = vrot.slane %v6059, 2
        %v6061 = vadd.f32 %v6059, %v6060
        %v6062 = vrot.slane %v6061, 1
        %v6063 = vadd.f32 %v6061, %v6062
        %v6064 = vadd.f32 %v5092, %v5108
        %v6065 = vrot.slane %v6064, 4
        %v6066 = vadd.f32 %v6064, %v6065
        %v6067 = vrot.slane %v6066, 2
        %v6068 = vadd.f32 %v6066, %v6067
        %v6069 = vrot.slane %v6068, 1
        %v6070 = vadd.f32 %v6068, %v6069
        %v6071 = vadd.f32 %v5093, %v5109
        %v6072 = vrot.slane %v6071, 4
        %v6073 = vadd.f32 %v6071, %v6072
        %v6074 = vrot.slane %v6073, 2
        %v6075 = vadd.f32 %v6073, %v6074
        %v6076 = vrot.slane %v6075, 1
        %v6077 = vadd.f32 %v6075, %v6076
        %v6078 = vadd.f32 %v5094, %v5110
        %v6079 = vrot.slane %v6078, 4
        %v6080 = vadd.f32 %v6078, %v6079
        %v6081 = vrot.slane %v6080, 2
        %v6082 = vadd.f32 %v6080, %v6081
        %v6083 = vrot.slane %v6082, 1
        %v6084 = vadd.f32 %v6082, %v6083
        %v6085 = vadd.f32 %v5095, %v5111
        %v6086 = vrot.slane %v6085, 4
        %v6087 = vadd.f32 %v6085, %v6086
        %v6088 = vrot.slane %v6087, 2
        %v6089 = vadd.f32 %v6087, %v6088
        %v6090 = vrot.slane %v6089, 1
        %v6091 = vadd.f32 %v6089, %v6090
        %v6092 = vadd.f32 %v5096, %v5112
        %v6093 = vrot.slane %v6092, 4
        %v6094 = vadd.f32 %v6092, %v6093
        %v6095 = vrot.slane %v6094, 2
        %v6096 = vadd.f32 %v6094, %v6095
        %v6097 = vrot.slane %v6096, 1
        %v6098 = vadd.f32 %v6096, %v6097
        %v6099 = vadd.f32 %v5097, %v5113
        %v6100 = vrot.slane %v6099, 4
        %v6101 = vadd.f32 %v6099, %v6100
        %v6102 = vrot.slane %v6101, 2
        %v6103 = vadd.f32 %v6101, %v6102
        %v6104 = vrot.slane %v6103, 1
        %v6105 = vadd.f32 %v6103, %v6104
        %v6106 = vadd.f32 %v5114, %v5130
        %v6107 = vrot.slane %v6106, 4
        %v6108 = vadd.f32 %v6106, %v6107
        %v6109 = vrot.slane %v6108, 2
        %v6110 = vadd.f32 %v6108, %v6109
        %v6111 = vrot.slane %v6110, 1
        %v6112 = vadd.f32 %v6110, %v6111
        %v6113 = vadd.f32 %v5115, %v5131
        %v6114 = vrot.slane %v6113, 4
        %v6115 = vadd.f32 %v6113, %v6114
        %v6116 = vrot.slane %v6115, 2
        %v6117 = vadd.f32 %v6115, %v6116
        %v6118 = vrot.slane %v6117, 1
        %v6119 = vadd.f32 %v6117, %v6118
        %v6120 = vadd.f32 %v5116, %v5132
        %v6121 = vrot.slane %v6120, 4
        %v6122 = vadd.f32 %v6120, %v6121
        %v6123 = vrot.slane %v6122, 2
        %v6124 = vadd.f32 %v6122, %v6123
        %v6125 = vrot.slane %v6124, 1
        %v6126 = vadd.f32 %v6124, %v6125
        %v6127 = vadd.f32 %v5117, %v5133
        %v6128 = vrot.slane %v6127, 4
        %v6129 = vadd.f32 %v6127, %v6128
        %v6130 = vrot.slane %v6129, 2
        %v6131 = vadd.f32 %v6129, %v6130
        %v6132 = vrot.slane %v6131, 1
        %v6133 = vadd.f32 %v6131, %v6132
        %v6134 = vadd.f32 %v5118, %v5134
        %v6135 = vrot.slane %v6134, 4
        %v6136 = vadd.f32 %v6134, %v6135
        %v6137 = vrot.slane %v6136, 2
        %v6138 = vadd.f32 %v6136, %v6137
        %v6139 = vrot.slane %v6138, 1
        %v6140 = vadd.f32 %v6138, %v6139
        %v6141 = vadd.f32 %v5119, %v5135
        %v6142 = vrot.slane %v6141, 4
        %v6143 = vadd.f32 %v6141, %v6142
        %v6144 = vrot.slane %v6143, 2
        %v6145 = vadd.f32 %v6143, %v6144
        %v6146 = vrot.slane %v6145, 1
        %v6147 = vadd.f32 %v6145, %v6146
        %v6148 = vadd.f32 %v5120, %v5136
        %v6149 = vrot.slane %v6148, 4
        %v6150 = vadd.f32 %v6148, %v6149
        %v6151 = vrot.slane %v6150, 2
        %v6152 = vadd.f32 %v6150, %v6151
        %v6153 = vrot.slane %v6152, 1
        %v6154 = vadd.f32 %v6152, %v6153
        %v6155 = vadd.f32 %v5121, %v5137
        %v6156 = vrot.slane %v6155, 4
        %v6157 = vadd.f32 %v6155, %v6156
        %v6158 = vrot.slane %v6157, 2
        %v6159 = vadd.f32 %v6157, %v6158
        %v6160 = vrot.slane %v6159, 1
        %v6161 = vadd.f32 %v6159, %v6160
        %v6162 = vadd.f32 %v5122, %v5138
        %v6163 = vrot.slane %v6162, 4
        %v6164 = vadd.f32 %v6162, %v6163
        %v6165 = vrot.slane %v6164, 2
        %v6166 = vadd.f32 %v6164, %v6165
        %v6167 = vrot.slane %v6166, 1
        %v6168 = vadd.f32 %v6166, %v6167
        %v6169 = vadd.f32 %v5123, %v5139
        %v6170 = vrot.slane %v6169, 4
        %v6171 = vadd.f32 %v6169, %v6170
        %v6172 = vrot.slane %v6171, 2
        %v6173 = vadd.f32 %v6171, %v6172
        %v6174 = vrot.slane %v6173, 1
        %v6175 = vadd.f32 %v6173, %v6174
        %v6176 = vadd.f32 %v5124, %v5140
        %v6177 = vrot.slane %v6176, 4
        %v6178 = vadd.f32 %v6176, %v6177
        %v6179 = vrot.slane %v6178, 2
        %v6180 = vadd.f32 %v6178, %v6179
        %v6181 = vrot.slane %v6180, 1
        %v6182 = vadd.f32 %v6180, %v6181
        %v6183 = vadd.f32 %v5125, %v5141
        %v6184 = vrot.slane %v6183, 4
        %v6185 = vadd.f32 %v6183, %v6184
        %v6186 = vrot.slane %v6185, 2
        %v6187 = vadd.f32 %v6185, %v6186
        %v6188 = vrot.slane %v6187, 1
        %v6189 = vadd.f32 %v6187, %v6188
        %v6190 = vadd.f32 %v5126, %v5142
        %v6191 = vrot.slane %v6190, 4
        %v6192 = vadd.f32 %v6190, %v6191
        %v6193 = vrot.slane %v6192, 2
        %v6194 = vadd.f32 %v6192, %v6193
        %v6195 = vrot.slane %v6194, 1
        %v6196 = vadd.f32 %v6194, %v6195
        %v6197 = vadd.f32 %v5127, %v5143
        %v6198 = vrot.slane %v6197, 4
        %v6199 = vadd.f32 %v6197, %v6198
        %v6200 = vrot.slane %v6199, 2
        %v6201 = vadd.f32 %v6199, %v6200
        %v6202 = vrot.slane %v6201, 1
        %v6203 = vadd.f32 %v6201, %v6202
        %v6204 = vadd.f32 %v5128, %v5144
        %v6205 = vrot.slane %v6204, 4
        %v6206 = vadd.f32 %v6204, %v6205
        %v6207 = vrot.slane %v6206, 2
        %v6208 = vadd.f32 %v6206, %v6207
        %v6209 = vrot.slane %v6208, 1
        %v6210 = vadd.f32 %v6208, %v6209
        %v6211 = vadd.f32 %v5129, %v5145
        %v6212 = vrot.slane %v6211, 4
        %v6213 = vadd.f32 %v6211, %v6212
        %v6214 = vrot.slane %v6213, 2
        %v6215 = vadd.f32 %v6213, %v6214
        %v6216 = vrot.slane %v6215, 1
        %v6217 = vadd.f32 %v6215, %v6216
        %v6218 = vadd.f32 %v5146, %v5162
        %v6219 = vrot.slane %v6218, 4
        %v6220 = vadd.f32 %v6218, %v6219
        %v6221 = vrot.slane %v6220, 2
        %v6222 = vadd.f32 %v6220, %v6221
        %v6223 = vrot.slane %v6222, 1
        %v6224 = vadd.f32 %v6222, %v6223
        %v6225 = vadd.f32 %v5147, %v5163
        %v6226 = vrot.slane %v6225, 4
        %v6227 = vadd.f32 %v6225, %v6226
        %v6228 = vrot.slane %v6227, 2
        %v6229 = vadd.f32 %v6227, %v6228
        %v6230 = vrot.slane %v6229, 1
        %v6231 = vadd.f32 %v6229, %v6230
        %v6232 = vadd.f32 %v5148, %v5164
        %v6233 = vrot.slane %v6232, 4
        %v6234 = vadd.f32 %v6232, %v6233
        %v6235 = vrot.slane %v6234, 2
        %v6236 = vadd.f32 %v6234, %v6235
        %v6237 = vrot.slane %v6236, 1
        %v6238 = vadd.f32 %v6236, %v6237
        %v6239 = vadd.f32 %v5149, %v5165
        %v6240 = vrot.slane %v6239, 4
        %v6241 = vadd.f32 %v6239, %v6240
        %v6242 = vrot.slane %v6241, 2
        %v6243 = vadd.f32 %v6241, %v6242
        %v6244 = vrot.slane %v6243, 1
        %v6245 = vadd.f32 %v6243, %v6244
        %v6246 = vadd.f32 %v5150, %v5166
        %v6247 = vrot.slane %v6246, 4
        %v6248 = vadd.f32 %v6246, %v6247
        %v6249 = vrot.slane %v6248, 2
        %v6250 = vadd.f32 %v6248, %v6249
        %v6251 = vrot.slane %v6250, 1
        %v6252 = vadd.f32 %v6250, %v6251
        %v6253 = vadd.f32 %v5151, %v5167
        %v6254 = vrot.slane %v6253, 4
        %v6255 = vadd.f32 %v6253, %v6254
        %v6256 = vrot.slane %v6255, 2
        %v6257 = vadd.f32 %v6255, %v6256
        %v6258 = vrot.slane %v6257, 1
        %v6259 = vadd.f32 %v6257, %v6258
        %v6260 = vadd.f32 %v5152, %v5168
        %v6261 = vrot.slane %v6260, 4
        %v6262 = vadd.f32 %v6260, %v6261
        %v6263 = vrot.slane %v6262, 2
        %v6264 = vadd.f32 %v6262, %v6263
        %v6265 = vrot.slane %v6264, 1
        %v6266 = vadd.f32 %v6264, %v6265
        %v6267 = vadd.f32 %v5153, %v5169
        %v6268 = vrot.slane %v6267, 4
        %v6269 = vadd.f32 %v6267, %v6268
        %v6270 = vrot.slane %v6269, 2
        %v6271 = vadd.f32 %v6269, %v6270
        %v6272 = vrot.slane %v6271, 1
        %v6273 = vadd.f32 %v6271, %v6272
        %v6274 = vadd.f32 %v5154, %v5170
        %v6275 = vrot.slane %v6274, 4
        %v6276 = vadd.f32 %v6274, %v6275
        %v6277 = vrot.slane %v6276, 2
        %v6278 = vadd.f32 %v6276, %v6277
        %v6279 = vrot.slane %v6278, 1
        %v6280 = vadd.f32 %v6278, %v6279
        %v6281 = vadd.f32 %v5155, %v5171
        %v6282 = vrot.slane %v6281, 4
        %v6283 = vadd.f32 %v6281, %v6282
        %v6284 = vrot.slane %v6283, 2
        %v6285 = vadd.f32 %v6283, %v6284
        %v6286 = vrot.slane %v6285, 1
        %v6287 = vadd.f32 %v6285, %v6286
        %v6288 = vadd.f32 %v5156, %v5172
        %v6289 = vrot.slane %v6288, 4
        %v6290 = vadd.f32 %v6288, %v6289
        %v6291 = vrot.slane %v6290, 2
        %v6292 = vadd.f32 %v6290, %v6291
        %v6293 = vrot.slane %v6292, 1
        %v6294 = vadd.f32 %v6292, %v6293
        %v6295 = vadd.f32 %v5157, %v5173
        %v6296 = vrot.slane %v6295, 4
        %v6297 = vadd.f32 %v6295, %v6296
        %v6298 = vrot.slane %v6297, 2
        %v6299 = vadd.f32 %v6297, %v6298
        %v6300 = vrot.slane %v6299, 1
        %v6301 = vadd.f32 %v6299, %v6300
        %v6302 = vadd.f32 %v5158, %v5174
        %v6303 = vrot.slane %v6302, 4
        %v6304 = vadd.f32 %v6302, %v6303
        %v6305 = vrot.slane %v6304, 2
        %v6306 = vadd.f32 %v6304, %v6305
        %v6307 = vrot.slane %v6306, 1
        %v6308 = vadd.f32 %v6306, %v6307
        %v6309 = vadd.f32 %v5159, %v5175
        %v6310 = vrot.slane %v6309, 4
        %v6311 = vadd.f32 %v6309, %v6310
        %v6312 = vrot.slane %v6311, 2
        %v6313 = vadd.f32 %v6311, %v6312
        %v6314 = vrot.slane %v6313, 1
        %v6315 = vadd.f32 %v6313, %v6314
        %v6316 = vadd.f32 %v5160, %v5176
        %v6317 = vrot.slane %v6316, 4
        %v6318 = vadd.f32 %v6316, %v6317
        %v6319 = vrot.slane %v6318, 2
        %v6320 = vadd.f32 %v6318, %v6319
        %v6321 = vrot.slane %v6320, 1
        %v6322 = vadd.f32 %v6320, %v6321
        %v6323 = vadd.f32 %v5161, %v5177
        %v6324 = vrot.slane %v6323, 4
        %v6325 = vadd.f32 %v6323, %v6324
        %v6326 = vrot.slane %v6325, 2
        %v6327 = vadd.f32 %v6325, %v6326
        %v6328 = vrot.slane %v6327, 1
        %v6329 = vadd.f32 %v6327, %v6328
        %v6330 = vadd.f32 %v5178, %v5194
        %v6331 = vrot.slane %v6330, 4
        %v6332 = vadd.f32 %v6330, %v6331
        %v6333 = vrot.slane %v6332, 2
        %v6334 = vadd.f32 %v6332, %v6333
        %v6335 = vrot.slane %v6334, 1
        %v6336 = vadd.f32 %v6334, %v6335
        %v6337 = vadd.f32 %v5179, %v5195
        %v6338 = vrot.slane %v6337, 4
        %v6339 = vadd.f32 %v6337, %v6338
        %v6340 = vrot.slane %v6339, 2
        %v6341 = vadd.f32 %v6339, %v6340
        %v6342 = vrot.slane %v6341, 1
        %v6343 = vadd.f32 %v6341, %v6342
        %v6344 = vadd.f32 %v5180, %v5196
        %v6345 = vrot.slane %v6344, 4
        %v6346 = vadd.f32 %v6344, %v6345
        %v6347 = vrot.slane %v6346, 2
        %v6348 = vadd.f32 %v6346, %v6347
        %v6349 = vrot.slane %v6348, 1
        %v6350 = vadd.f32 %v6348, %v6349
        %v6351 = vadd.f32 %v5181, %v5197
        %v6352 = vrot.slane %v6351, 4
        %v6353 = vadd.f32 %v6351, %v6352
        %v6354 = vrot.slane %v6353, 2
        %v6355 = vadd.f32 %v6353, %v6354
        %v6356 = vrot.slane %v6355, 1
        %v6357 = vadd.f32 %v6355, %v6356
        %v6358 = vadd.f32 %v5182, %v5198
        %v6359 = vrot.slane %v6358, 4
        %v6360 = vadd.f32 %v6358, %v6359
        %v6361 = vrot.slane %v6360, 2
        %v6362 = vadd.f32 %v6360, %v6361
        %v6363 = vrot.slane %v6362, 1
        %v6364 = vadd.f32 %v6362, %v6363
        %v6365 = vadd.f32 %v5183, %v5199
        %v6366 = vrot.slane %v6365, 4
        %v6367 = vadd.f32 %v6365, %v6366
        %v6368 = vrot.slane %v6367, 2
        %v6369 = vadd.f32 %v6367, %v6368
        %v6370 = vrot.slane %v6369, 1
        %v6371 = vadd.f32 %v6369, %v6370
        %v6372 = vadd.f32 %v5184, %v5200
        %v6373 = vrot.slane %v6372, 4
        %v6374 = vadd.f32 %v6372, %v6373
        %v6375 = vrot.slane %v6374, 2
        %v6376 = vadd.f32 %v6374, %v6375
        %v6377 = vrot.slane %v6376, 1
        %v6378 = vadd.f32 %v6376, %v6377
        %v6379 = vadd.f32 %v5185, %v5201
        %v6380 = vrot.slane %v6379, 4
        %v6381 = vadd.f32 %v6379, %v6380
        %v6382 = vrot.slane %v6381, 2
        %v6383 = vadd.f32 %v6381, %v6382
        %v6384 = vrot.slane %v6383, 1
        %v6385 = vadd.f32 %v6383, %v6384
        %v6386 = vadd.f32 %v5186, %v5202
        %v6387 = vrot.slane %v6386, 4
        %v6388 = vadd.f32 %v6386, %v6387
        %v6389 = vrot.slane %v6388, 2
        %v6390 = vadd.f32 %v6388, %v6389
        %v6391 = vrot.slane %v6390, 1
        %v6392 = vadd.f32 %v6390, %v6391
        %v6393 = vadd.f32 %v5187, %v5203
        %v6394 = vrot.slane %v6393, 4
        %v6395 = vadd.f32 %v6393, %v6394
        %v6396 = vrot.slane %v6395, 2
        %v6397 = vadd.f32 %v6395, %v6396
        %v6398 = vrot.slane %v6397, 1
        %v6399 = vadd.f32 %v6397, %v6398
        %v6400 = vadd.f32 %v5188, %v5204
        %v6401 = vrot.slane %v6400, 4
        %v6402 = vadd.f32 %v6400, %v6401
        %v6403 = vrot.slane %v6402, 2
        %v6404 = vadd.f32 %v6402, %v6403
        %v6405 = vrot.slane %v6404, 1
        %v6406 = vadd.f32 %v6404, %v6405
        %v6407 = vadd.f32 %v5189, %v5205
        %v6408 = vrot.slane %v6407, 4
        %v6409 = vadd.f32 %v6407, %v6408
        %v6410 = vrot.slane %v6409, 2
        %v6411 = vadd.f32 %v6409, %v6410
        %v6412 = vrot.slane %v6411, 1
        %v6413 = vadd.f32 %v6411, %v6412
        %v6414 = vadd.f32 %v5190, %v5206
        %v6415 = vrot.slane %v6414, 4
        %v6416 = vadd.f32 %v6414, %v6415
        %v6417 = vrot.slane %v6416, 2
        %v6418 = vadd.f32 %v6416, %v6417
        %v6419 = vrot.slane %v6418, 1
        %v6420 = vadd.f32 %v6418, %v6419
        %v6421 = vadd.f32 %v5191, %v5207
        %v6422 = vrot.slane %v6421, 4
        %v6423 = vadd.f32 %v6421, %v6422
        %v6424 = vrot.slane %v6423, 2
        %v6425 = vadd.f32 %v6423, %v6424
        %v6426 = vrot.slane %v6425, 1
        %v6427 = vadd.f32 %v6425, %v6426
        %v6428 = vadd.f32 %v5192, %v5208
        %v6429 = vrot.slane %v6428, 4
        %v6430 = vadd.f32 %v6428, %v6429
        %v6431 = vrot.slane %v6430, 2
        %v6432 = vadd.f32 %v6430, %v6431
        %v6433 = vrot.slane %v6432, 1
        %v6434 = vadd.f32 %v6432, %v6433
        %v6435 = vadd.f32 %v5193, %v5209
        %v6436 = vrot.slane %v6435, 4
        %v6437 = vadd.f32 %v6435, %v6436
        %v6438 = vrot.slane %v6437, 2
        %v6439 = vadd.f32 %v6437, %v6438
        %v6440 = vrot.slane %v6439, 1
        %v6441 = vadd.f32 %v6439, %v6440
        %v6442 = vadd.f32 %v5210, %v5226
        %v6443 = vrot.slane %v6442, 4
        %v6444 = vadd.f32 %v6442, %v6443
        %v6445 = vrot.slane %v6444, 2
        %v6446 = vadd.f32 %v6444, %v6445
        %v6447 = vrot.slane %v6446, 1
        %v6448 = vadd.f32 %v6446, %v6447
        %v6449 = vadd.f32 %v5211, %v5227
        %v6450 = vrot.slane %v6449, 4
        %v6451 = vadd.f32 %v6449, %v6450
        %v6452 = vrot.slane %v6451, 2
        %v6453 = vadd.f32 %v6451, %v6452
        %v6454 = vrot.slane %v6453, 1
        %v6455 = vadd.f32 %v6453, %v6454
        %v6456 = vadd.f32 %v5212, %v5228
        %v6457 = vrot.slane %v6456, 4
        %v6458 = vadd.f32 %v6456, %v6457
        %v6459 = vrot.slane %v6458, 2
        %v6460 = vadd.f32 %v6458, %v6459
        %v6461 = vrot.slane %v6460, 1
        %v6462 = vadd.f32 %v6460, %v6461
        %v6463 = vadd.f32 %v5213, %v5229
        %v6464 = vrot.slane %v6463, 4
        %v6465 = vadd.f32 %v6463, %v6464
        %v6466 = vrot.slane %v6465, 2
        %v6467 = vadd.f32 %v6465, %v6466
        %v6468 = vrot.slane %v6467, 1
        %v6469 = vadd.f32 %v6467, %v6468
        %v6470 = vadd.f32 %v5214, %v5230
        %v6471 = vrot.slane %v6470, 4
        %v6472 = vadd.f32 %v6470, %v6471
        %v6473 = vrot.slane %v6472, 2
        %v6474 = vadd.f32 %v6472, %v6473
        %v6475 = vrot.slane %v6474, 1
        %v6476 = vadd.f32 %v6474, %v6475
        %v6477 = vadd.f32 %v5215, %v5231
        %v6478 = vrot.slane %v6477, 4
        %v6479 = vadd.f32 %v6477, %v6478
        %v6480 = vrot.slane %v6479, 2
        %v6481 = vadd.f32 %v6479, %v6480
        %v6482 = vrot.slane %v6481, 1
        %v6483 = vadd.f32 %v6481, %v6482
        %v6484 = vadd.f32 %v5216, %v5232
        %v6485 = vrot.slane %v6484, 4
        %v6486 = vadd.f32 %v6484, %v6485
        %v6487 = vrot.slane %v6486, 2
        %v6488 = vadd.f32 %v6486, %v6487
        %v6489 = vrot.slane %v6488, 1
        %v6490 = vadd.f32 %v6488, %v6489
        %v6491 = vadd.f32 %v5217, %v5233
        %v6492 = vrot.slane %v6491, 4
        %v6493 = vadd.f32 %v6491, %v6492
        %v6494 = vrot.slane %v6493, 2
        %v6495 = vadd.f32 %v6493, %v6494
        %v6496 = vrot.slane %v6495, 1
        %v6497 = vadd.f32 %v6495, %v6496
        %v6498 = vadd.f32 %v5218, %v5234
        %v6499 = vrot.slane %v6498, 4
        %v6500 = vadd.f32 %v6498, %v6499
        %v6501 = vrot.slane %v6500, 2
        %v6502 = vadd.f32 %v6500, %v6501
        %v6503 = vrot.slane %v6502, 1
        %v6504 = vadd.f32 %v6502, %v6503
        %v6505 = vadd.f32 %v5219, %v5235
        %v6506 = vrot.slane %v6505, 4
        %v6507 = vadd.f32 %v6505, %v6506
        %v6508 = vrot.slane %v6507, 2
        %v6509 = vadd.f32 %v6507, %v6508
        %v6510 = vrot.slane %v6509, 1
        %v6511 = vadd.f32 %v6509, %v6510
        %v6512 = vadd.f32 %v5220, %v5236
        %v6513 = vrot.slane %v6512, 4
        %v6514 = vadd.f32 %v6512, %v6513
        %v6515 = vrot.slane %v6514, 2
        %v6516 = vadd.f32 %v6514, %v6515
        %v6517 = vrot.slane %v6516, 1
        %v6518 = vadd.f32 %v6516, %v6517
        %v6519 = vadd.f32 %v5221, %v5237
        %v6520 = vrot.slane %v6519, 4
        %v6521 = vadd.f32 %v6519, %v6520
        %v6522 = vrot.slane %v6521, 2
        %v6523 = vadd.f32 %v6521, %v6522
        %v6524 = vrot.slane %v6523, 1
        %v6525 = vadd.f32 %v6523, %v6524
        %v6526 = vadd.f32 %v5222, %v5238
        %v6527 = vrot.slane %v6526, 4
        %v6528 = vadd.f32 %v6526, %v6527
        %v6529 = vrot.slane %v6528, 2
        %v6530 = vadd.f32 %v6528, %v6529
        %v6531 = vrot.slane %v6530, 1
        %v6532 = vadd.f32 %v6530, %v6531
        %v6533 = vadd.f32 %v5223, %v5239
        %v6534 = vrot.slane %v6533, 4
        %v6535 = vadd.f32 %v6533, %v6534
        %v6536 = vrot.slane %v6535, 2
        %v6537 = vadd.f32 %v6535, %v6536
        %v6538 = vrot.slane %v6537, 1
        %v6539 = vadd.f32 %v6537, %v6538
        %v6540 = vadd.f32 %v5224, %v5240
        %v6541 = vrot.slane %v6540, 4
        %v6542 = vadd.f32 %v6540, %v6541
        %v6543 = vrot.slane %v6542, 2
        %v6544 = vadd.f32 %v6542, %v6543
        %v6545 = vrot.slane %v6544, 1
        %v6546 = vadd.f32 %v6544, %v6545
        %v6547 = vadd.f32 %v5225, %v5241
        %v6548 = vrot.slane %v6547, 4
        %v6549 = vadd.f32 %v6547, %v6548
        %v6550 = vrot.slane %v6549, 2
        %v6551 = vadd.f32 %v6549, %v6550
        %v6552 = vrot.slane %v6551, 1
        %v6553 = vadd.f32 %v6551, %v6552
        %v6554 = vadd.f32 %v5242, %v5258
        %v6555 = vrot.slane %v6554, 4
        %v6556 = vadd.f32 %v6554, %v6555
        %v6557 = vrot.slane %v6556, 2
        %v6558 = vadd.f32 %v6556, %v6557
        %v6559 = vrot.slane %v6558, 1
        %v6560 = vadd.f32 %v6558, %v6559
        %v6561 = vadd.f32 %v5243, %v5259
        %v6562 = vrot.slane %v6561, 4
        %v6563 = vadd.f32 %v6561, %v6562
        %v6564 = vrot.slane %v6563, 2
        %v6565 = vadd.f32 %v6563, %v6564
        %v6566 = vrot.slane %v6565, 1
        %v6567 = vadd.f32 %v6565, %v6566
        %v6568 = vadd.f32 %v5244, %v5260
        %v6569 = vrot.slane %v6568, 4
        %v6570 = vadd.f32 %v6568, %v6569
        %v6571 = vrot.slane %v6570, 2
        %v6572 = vadd.f32 %v6570, %v6571
        %v6573 = vrot.slane %v6572, 1
        %v6574 = vadd.f32 %v6572, %v6573
        %v6575 = vadd.f32 %v5245, %v5261
        %v6576 = vrot.slane %v6575, 4
        %v6577 = vadd.f32 %v6575, %v6576
        %v6578 = vrot.slane %v6577, 2
        %v6579 = vadd.f32 %v6577, %v6578
        %v6580 = vrot.slane %v6579, 1
        %v6581 = vadd.f32 %v6579, %v6580
        %v6582 = vadd.f32 %v5246, %v5262
        %v6583 = vrot.slane %v6582, 4
        %v6584 = vadd.f32 %v6582, %v6583
        %v6585 = vrot.slane %v6584, 2
        %v6586 = vadd.f32 %v6584, %v6585
        %v6587 = vrot.slane %v6586, 1
        %v6588 = vadd.f32 %v6586, %v6587
        %v6589 = vadd.f32 %v5247, %v5263
        %v6590 = vrot.slane %v6589, 4
        %v6591 = vadd.f32 %v6589, %v6590
        %v6592 = vrot.slane %v6591, 2
        %v6593 = vadd.f32 %v6591, %v6592
        %v6594 = vrot.slane %v6593, 1
        %v6595 = vadd.f32 %v6593, %v6594
        %v6596 = vadd.f32 %v5248, %v5264
        %v6597 = vrot.slane %v6596, 4
        %v6598 = vadd.f32 %v6596, %v6597
        %v6599 = vrot.slane %v6598, 2
        %v6600 = vadd.f32 %v6598, %v6599
        %v6601 = vrot.slane %v6600, 1
        %v6602 = vadd.f32 %v6600, %v6601
        %v6603 = vadd.f32 %v5249, %v5265
        %v6604 = vrot.slane %v6603, 4
        %v6605 = vadd.f32 %v6603, %v6604
        %v6606 = vrot.slane %v6605, 2
        %v6607 = vadd.f32 %v6605, %v6606
        %v6608 = vrot.slane %v6607, 1
        %v6609 = vadd.f32 %v6607, %v6608
        %v6610 = vadd.f32 %v5250, %v5266
        %v6611 = vrot.slane %v6610, 4
        %v6612 = vadd.f32 %v6610, %v6611
        %v6613 = vrot.slane %v6612, 2
        %v6614 = vadd.f32 %v6612, %v6613
        %v6615 = vrot.slane %v6614, 1
        %v6616 = vadd.f32 %v6614, %v6615
        %v6617 = vadd.f32 %v5251, %v5267
        %v6618 = vrot.slane %v6617, 4
        %v6619 = vadd.f32 %v6617, %v6618
        %v6620 = vrot.slane %v6619, 2
        %v6621 = vadd.f32 %v6619, %v6620
        %v6622 = vrot.slane %v6621, 1
        %v6623 = vadd.f32 %v6621, %v6622
        %v6624 = vadd.f32 %v5252, %v5268
        %v6625 = vrot.slane %v6624, 4
        %v6626 = vadd.f32 %v6624, %v6625
        %v6627 = vrot.slane %v6626, 2
        %v6628 = vadd.f32 %v6626, %v6627
        %v6629 = vrot.slane %v6628, 1
        %v6630 = vadd.f32 %v6628, %v6629
        %v6631 = vadd.f32 %v5253, %v5269
        %v6632 = vrot.slane %v6631, 4
        %v6633 = vadd.f32 %v6631, %v6632
        %v6634 = vrot.slane %v6633, 2
        %v6635 = vadd.f32 %v6633, %v6634
        %v6636 = vrot.slane %v6635, 1
        %v6637 = vadd.f32 %v6635, %v6636
        %v6638 = vadd.f32 %v5254, %v5270
        %v6639 = vrot.slane %v6638, 4
        %v6640 = vadd.f32 %v6638, %v6639
        %v6641 = vrot.slane %v6640, 2
        %v6642 = vadd.f32 %v6640, %v6641
        %v6643 = vrot.slane %v6642, 1
        %v6644 = vadd.f32 %v6642, %v6643
        %v6645 = vadd.f32 %v5255, %v5271
        %v6646 = vrot.slane %v6645, 4
        %v6647 = vadd.f32 %v6645, %v6646
        %v6648 = vrot.slane %v6647, 2
        %v6649 = vadd.f32 %v6647, %v6648
        %v6650 = vrot.slane %v6649, 1
        %v6651 = vadd.f32 %v6649, %v6650
        %v6652 = vadd.f32 %v5256, %v5272
        %v6653 = vrot.slane %v6652, 4
        %v6654 = vadd.f32 %v6652, %v6653
        %v6655 = vrot.slane %v6654, 2
        %v6656 = vadd.f32 %v6654, %v6655
        %v6657 = vrot.slane %v6656, 1
        %v6658 = vadd.f32 %v6656, %v6657
        %v6659 = vadd.f32 %v5257, %v5273
        %v6660 = vrot.slane %v6659, 4
        %v6661 = vadd.f32 %v6659, %v6660
        %v6662 = vrot.slane %v6661, 2
        %v6663 = vadd.f32 %v6661, %v6662
        %v6664 = vrot.slane %v6663, 1
        %v6665 = vadd.f32 %v6663, %v6664
        %v6666 = vadd.f32 %v5274, %v5290
        %v6667 = vrot.slane %v6666, 4
        %v6668 = vadd.f32 %v6666, %v6667
        %v6669 = vrot.slane %v6668, 2
        %v6670 = vadd.f32 %v6668, %v6669
        %v6671 = vrot.slane %v6670, 1
        %v6672 = vadd.f32 %v6670, %v6671
        %v6673 = vadd.f32 %v5275, %v5291
        %v6674 = vrot.slane %v6673, 4
        %v6675 = vadd.f32 %v6673, %v6674
        %v6676 = vrot.slane %v6675, 2
        %v6677 = vadd.f32 %v6675, %v6676
        %v6678 = vrot.slane %v6677, 1
        %v6679 = vadd.f32 %v6677, %v6678
        %v6680 = vadd.f32 %v5276, %v5292
        %v6681 = vrot.slane %v6680, 4
        %v6682 = vadd.f32 %v6680, %v6681
        %v6683 = vrot.slane %v6682, 2
        %v6684 = vadd.f32 %v6682, %v6683
        %v6685 = vrot.slane %v6684, 1
        %v6686 = vadd.f32 %v6684, %v6685
        %v6687 = vadd.f32 %v5277, %v5293
        %v6688 = vrot.slane %v6687, 4
        %v6689 = vadd.f32 %v6687, %v6688
        %v6690 = vrot.slane %v6689, 2
        %v6691 = vadd.f32 %v6689, %v6690
        %v6692 = vrot.slane %v6691, 1
        %v6693 = vadd.f32 %v6691, %v6692
        %v6694 = vadd.f32 %v5278, %v5294
        %v6695 = vrot.slane %v6694, 4
        %v6696 = vadd.f32 %v6694, %v6695
        %v6697 = vrot.slane %v6696, 2
        %v6698 = vadd.f32 %v6696, %v6697
        %v6699 = vrot.slane %v6698, 1
        %v6700 = vadd.f32 %v6698, %v6699
        %v6701 = vadd.f32 %v5279, %v5295
        %v6702 = vrot.slane %v6701, 4
        %v6703 = vadd.f32 %v6701, %v6702
        %v6704 = vrot.slane %v6703, 2
        %v6705 = vadd.f32 %v6703, %v6704
        %v6706 = vrot.slane %v6705, 1
        %v6707 = vadd.f32 %v6705, %v6706
        %v6708 = vadd.f32 %v5280, %v5296
        %v6709 = vrot.slane %v6708, 4
        %v6710 = vadd.f32 %v6708, %v6709
        %v6711 = vrot.slane %v6710, 2
        %v6712 = vadd.f32 %v6710, %v6711
        %v6713 = vrot.slane %v6712, 1
        %v6714 = vadd.f32 %v6712, %v6713
        %v6715 = vadd.f32 %v5281, %v5297
        %v6716 = vrot.slane %v6715, 4
        %v6717 = vadd.f32 %v6715, %v6716
        %v6718 = vrot.slane %v6717, 2
        %v6719 = vadd.f32 %v6717, %v6718
        %v6720 = vrot.slane %v6719, 1
        %v6721 = vadd.f32 %v6719, %v6720
        %v6722 = vadd.f32 %v5282, %v5298
        %v6723 = vrot.slane %v6722, 4
        %v6724 = vadd.f32 %v6722, %v6723
        %v6725 = vrot.slane %v6724, 2
        %v6726 = vadd.f32 %v6724, %v6725
        %v6727 = vrot.slane %v6726, 1
        %v6728 = vadd.f32 %v6726, %v6727
        %v6729 = vadd.f32 %v5283, %v5299
        %v6730 = vrot.slane %v6729, 4
        %v6731 = vadd.f32 %v6729, %v6730
        %v6732 = vrot.slane %v6731, 2
        %v6733 = vadd.f32 %v6731, %v6732
        %v6734 = vrot.slane %v6733, 1
        %v6735 = vadd.f32 %v6733, %v6734
        %v6736 = vadd.f32 %v5284, %v5300
        %v6737 = vrot.slane %v6736, 4
        %v6738 = vadd.f32 %v6736, %v6737
        %v6739 = vrot.slane %v6738, 2
        %v6740 = vadd.f32 %v6738, %v6739
        %v6741 = vrot.slane %v6740, 1
        %v6742 = vadd.f32 %v6740, %v6741
        %v6743 = vadd.f32 %v5285, %v5301
        %v6744 = vrot.slane %v6743, 4
        %v6745 = vadd.f32 %v6743, %v6744
        %v6746 = vrot.slane %v6745, 2
        %v6747 = vadd.f32 %v6745, %v6746
        %v6748 = vrot.slane %v6747, 1
        %v6749 = vadd.f32 %v6747, %v6748
        %v6750 = vadd.f32 %v5286, %v5302
        %v6751 = vrot.slane %v6750, 4
        %v6752 = vadd.f32 %v6750, %v6751
        %v6753 = vrot.slane %v6752, 2
        %v6754 = vadd.f32 %v6752, %v6753
        %v6755 = vrot.slane %v6754, 1
        %v6756 = vadd.f32 %v6754, %v6755
        %v6757 = vadd.f32 %v5287, %v5303
        %v6758 = vrot.slane %v6757, 4
        %v6759 = vadd.f32 %v6757, %v6758
        %v6760 = vrot.slane %v6759, 2
        %v6761 = vadd.f32 %v6759, %v6760
        %v6762 = vrot.slane %v6761, 1
        %v6763 = vadd.f32 %v6761, %v6762
        %v6764 = vadd.f32 %v5288, %v5304
        %v6765 = vrot.slane %v6764, 4
        %v6766 = vadd.f32 %v6764, %v6765
        %v6767 = vrot.slane %v6766, 2
        %v6768 = vadd.f32 %v6766, %v6767
        %v6769 = vrot.slane %v6768, 1
        %v6770 = vadd.f32 %v6768, %v6769
        %v6771 = vadd.f32 %v5289, %v5305
        %v6772 = vrot.slane %v6771, 4
        %v6773 = vadd.f32 %v6771, %v6772
        %v6774 = vrot.slane %v6773, 2
        %v6775 = vadd.f32 %v6773, %v6774
        %v6776 = vrot.slane %v6775, 1
        %v6777 = vadd.f32 %v6775, %v6776
        %v6778 = vadd.f32 %v5306, %v5322
        %v6779 = vrot.slane %v6778, 4
        %v6780 = vadd.f32 %v6778, %v6779
        %v6781 = vrot.slane %v6780, 2
        %v6782 = vadd.f32 %v6780, %v6781
        %v6783 = vrot.slane %v6782, 1
        %v6784 = vadd.f32 %v6782, %v6783
        %v6785 = vadd.f32 %v5307, %v5323
        %v6786 = vrot.slane %v6785, 4
        %v6787 = vadd.f32 %v6785, %v6786
        %v6788 = vrot.slane %v6787, 2
        %v6789 = vadd.f32 %v6787, %v6788
        %v6790 = vrot.slane %v6789, 1
        %v6791 = vadd.f32 %v6789, %v6790
        %v6792 = vadd.f32 %v5308, %v5324
        %v6793 = vrot.slane %v6792, 4
        %v6794 = vadd.f32 %v6792, %v6793
        %v6795 = vrot.slane %v6794, 2
        %v6796 = vadd.f32 %v6794, %v6795
        %v6797 = vrot.slane %v6796, 1
        %v6798 = vadd.f32 %v6796, %v6797
        %v6799 = vadd.f32 %v5309, %v5325
        %v6800 = vrot.slane %v6799, 4
        %v6801 = vadd.f32 %v6799, %v6800
        %v6802 = vrot.slane %v6801, 2
        %v6803 = vadd.f32 %v6801, %v6802
        %v6804 = vrot.slane %v6803, 1
        %v6805 = vadd.f32 %v6803, %v6804
        %v6806 = vadd.f32 %v5310, %v5326
        %v6807 = vrot.slane %v6806, 4
        %v6808 = vadd.f32 %v6806, %v6807
        %v6809 = vrot.slane %v6808, 2
        %v6810 = vadd.f32 %v6808, %v6809
        %v6811 = vrot.slane %v6810, 1
        %v6812 = vadd.f32 %v6810, %v6811
        %v6813 = vadd.f32 %v5311, %v5327
        %v6814 = vrot.slane %v6813, 4
        %v6815 = vadd.f32 %v6813, %v6814
        %v6816 = vrot.slane %v6815, 2
        %v6817 = vadd.f32 %v6815, %v6816
        %v6818 = vrot.slane %v6817, 1
        %v6819 = vadd.f32 %v6817, %v6818
        %v6820 = vadd.f32 %v5312, %v5328
        %v6821 = vrot.slane %v6820, 4
        %v6822 = vadd.f32 %v6820, %v6821
        %v6823 = vrot.slane %v6822, 2
        %v6824 = vadd.f32 %v6822, %v6823
        %v6825 = vrot.slane %v6824, 1
        %v6826 = vadd.f32 %v6824, %v6825
        %v6827 = vadd.f32 %v5313, %v5329
        %v6828 = vrot.slane %v6827, 4
        %v6829 = vadd.f32 %v6827, %v6828
        %v6830 = vrot.slane %v6829, 2
        %v6831 = vadd.f32 %v6829, %v6830
        %v6832 = vrot.slane %v6831, 1
        %v6833 = vadd.f32 %v6831, %v6832
        %v6834 = vadd.f32 %v5314, %v5330
        %v6835 = vrot.slane %v6834, 4
        %v6836 = vadd.f32 %v6834, %v6835
        %v6837 = vrot.slane %v6836, 2
        %v6838 = vadd.f32 %v6836, %v6837
        %v6839 = vrot.slane %v6838, 1
        %v6840 = vadd.f32 %v6838, %v6839
        %v6841 = vadd.f32 %v5315, %v5331
        %v6842 = vrot.slane %v6841, 4
        %v6843 = vadd.f32 %v6841, %v6842
        %v6844 = vrot.slane %v6843, 2
        %v6845 = vadd.f32 %v6843, %v6844
        %v6846 = vrot.slane %v6845, 1
        %v6847 = vadd.f32 %v6845, %v6846
        %v6848 = vadd.f32 %v5316, %v5332
        %v6849 = vrot.slane %v6848, 4
        %v6850 = vadd.f32 %v6848, %v6849
        %v6851 = vrot.slane %v6850, 2
        %v6852 = vadd.f32 %v6850, %v6851
        %v6853 = vrot.slane %v6852, 1
        %v6854 = vadd.f32 %v6852, %v6853
        %v6855 = vadd.f32 %v5317, %v5333
        %v6856 = vrot.slane %v6855, 4
        %v6857 = vadd.f32 %v6855, %v6856
        %v6858 = vrot.slane %v6857, 2
        %v6859 = vadd.f32 %v6857, %v6858
        %v6860 = vrot.slane %v6859, 1
        %v6861 = vadd.f32 %v6859, %v6860
        %v6862 = vadd.f32 %v5318, %v5334
        %v6863 = vrot.slane %v6862, 4
        %v6864 = vadd.f32 %v6862, %v6863
        %v6865 = vrot.slane %v6864, 2
        %v6866 = vadd.f32 %v6864, %v6865
        %v6867 = vrot.slane %v6866, 1
        %v6868 = vadd.f32 %v6866, %v6867
        %v6869 = vadd.f32 %v5319, %v5335
        %v6870 = vrot.slane %v6869, 4
        %v6871 = vadd.f32 %v6869, %v6870
        %v6872 = vrot.slane %v6871, 2
        %v6873 = vadd.f32 %v6871, %v6872
        %v6874 = vrot.slane %v6873, 1
        %v6875 = vadd.f32 %v6873, %v6874
        %v6876 = vadd.f32 %v5320, %v5336
        %v6877 = vrot.slane %v6876, 4
        %v6878 = vadd.f32 %v6876, %v6877
        %v6879 = vrot.slane %v6878, 2
        %v6880 = vadd.f32 %v6878, %v6879
        %v6881 = vrot.slane %v6880, 1
        %v6882 = vadd.f32 %v6880, %v6881
        %v6883 = vadd.f32 %v5321, %v5337
        %v6884 = vrot.slane %v6883, 4
        %v6885 = vadd.f32 %v6883, %v6884
        %v6886 = vrot.slane %v6885, 2
        %v6887 = vadd.f32 %v6885, %v6886
        %v6888 = vrot.slane %v6887, 1
        %v6889 = vadd.f32 %v6887, %v6888
        %v6890 = vadd.f32 %v5338, %v5354
        %v6891 = vrot.slane %v6890, 4
        %v6892 = vadd.f32 %v6890, %v6891
        %v6893 = vrot.slane %v6892, 2
        %v6894 = vadd.f32 %v6892, %v6893
        %v6895 = vrot.slane %v6894, 1
        %v6896 = vadd.f32 %v6894, %v6895
        %v6897 = vadd.f32 %v5339, %v5355
        %v6898 = vrot.slane %v6897, 4
        %v6899 = vadd.f32 %v6897, %v6898
        %v6900 = vrot.slane %v6899, 2
        %v6901 = vadd.f32 %v6899, %v6900
        %v6902 = vrot.slane %v6901, 1
        %v6903 = vadd.f32 %v6901, %v6902
        %v6904 = vadd.f32 %v5340, %v5356
        %v6905 = vrot.slane %v6904, 4
        %v6906 = vadd.f32 %v6904, %v6905
        %v6907 = vrot.slane %v6906, 2
        %v6908 = vadd.f32 %v6906, %v6907
        %v6909 = vrot.slane %v6908, 1
        %v6910 = vadd.f32 %v6908, %v6909
        %v6911 = vadd.f32 %v5341, %v5357
        %v6912 = vrot.slane %v6911, 4
        %v6913 = vadd.f32 %v6911, %v6912
        %v6914 = vrot.slane %v6913, 2
        %v6915 = vadd.f32 %v6913, %v6914
        %v6916 = vrot.slane %v6915, 1
        %v6917 = vadd.f32 %v6915, %v6916
        %v6918 = vadd.f32 %v5342, %v5358
        %v6919 = vrot.slane %v6918, 4
        %v6920 = vadd.f32 %v6918, %v6919
        %v6921 = vrot.slane %v6920, 2
        %v6922 = vadd.f32 %v6920, %v6921
        %v6923 = vrot.slane %v6922, 1
        %v6924 = vadd.f32 %v6922, %v6923
        %v6925 = vadd.f32 %v5343, %v5359
        %v6926 = vrot.slane %v6925, 4
        %v6927 = vadd.f32 %v6925, %v6926
        %v6928 = vrot.slane %v6927, 2
        %v6929 = vadd.f32 %v6927, %v6928
        %v6930 = vrot.slane %v6929, 1
        %v6931 = vadd.f32 %v6929, %v6930
        %v6932 = vadd.f32 %v5344, %v5360
        %v6933 = vrot.slane %v6932, 4
        %v6934 = vadd.f32 %v6932, %v6933
        %v6935 = vrot.slane %v6934, 2
        %v6936 = vadd.f32 %v6934, %v6935
        %v6937 = vrot.slane %v6936, 1
        %v6938 = vadd.f32 %v6936, %v6937
        %v6939 = vadd.f32 %v5345, %v5361
        %v6940 = vrot.slane %v6939, 4
        %v6941 = vadd.f32 %v6939, %v6940
        %v6942 = vrot.slane %v6941, 2
        %v6943 = vadd.f32 %v6941, %v6942
        %v6944 = vrot.slane %v6943, 1
        %v6945 = vadd.f32 %v6943, %v6944
        %v6946 = vadd.f32 %v5346, %v5362
        %v6947 = vrot.slane %v6946, 4
        %v6948 = vadd.f32 %v6946, %v6947
        %v6949 = vrot.slane %v6948, 2
        %v6950 = vadd.f32 %v6948, %v6949
        %v6951 = vrot.slane %v6950, 1
        %v6952 = vadd.f32 %v6950, %v6951
        %v6953 = vadd.f32 %v5347, %v5363
        %v6954 = vrot.slane %v6953, 4
        %v6955 = vadd.f32 %v6953, %v6954
        %v6956 = vrot.slane %v6955, 2
        %v6957 = vadd.f32 %v6955, %v6956
        %v6958 = vrot.slane %v6957, 1
        %v6959 = vadd.f32 %v6957, %v6958
        %v6960 = vadd.f32 %v5348, %v5364
        %v6961 = vrot.slane %v6960, 4
        %v6962 = vadd.f32 %v6960, %v6961
        %v6963 = vrot.slane %v6962, 2
        %v6964 = vadd.f32 %v6962, %v6963
        %v6965 = vrot.slane %v6964, 1
        %v6966 = vadd.f32 %v6964, %v6965
        %v6967 = vadd.f32 %v5349, %v5365
        %v6968 = vrot.slane %v6967, 4
        %v6969 = vadd.f32 %v6967, %v6968
        %v6970 = vrot.slane %v6969, 2
        %v6971 = vadd.f32 %v6969, %v6970
        %v6972 = vrot.slane %v6971, 1
        %v6973 = vadd.f32 %v6971, %v6972
        %v6974 = vadd.f32 %v5350, %v5366
        %v6975 = vrot.slane %v6974, 4
        %v6976 = vadd.f32 %v6974, %v6975
        %v6977 = vrot.slane %v6976, 2
        %v6978 = vadd.f32 %v6976, %v6977
        %v6979 = vrot.slane %v6978, 1
        %v6980 = vadd.f32 %v6978, %v6979
        %v6981 = vadd.f32 %v5351, %v5367
        %v6982 = vrot.slane %v6981, 4
        %v6983 = vadd.f32 %v6981, %v6982
        %v6984 = vrot.slane %v6983, 2
        %v6985 = vadd.f32 %v6983, %v6984
        %v6986 = vrot.slane %v6985, 1
        %v6987 = vadd.f32 %v6985, %v6986
        %v6988 = vadd.f32 %v5352, %v5368
        %v6989 = vrot.slane %v6988, 4
        %v6990 = vadd.f32 %v6988, %v6989
        %v6991 = vrot.slane %v6990, 2
        %v6992 = vadd.f32 %v6990, %v6991
        %v6993 = vrot.slane %v6992, 1
        %v6994 = vadd.f32 %v6992, %v6993
        %v6995 = vadd.f32 %v5353, %v5369
        %v6996 = vrot.slane %v6995, 4
        %v6997 = vadd.f32 %v6995, %v6996
        %v6998 = vrot.slane %v6997, 2
        %v6999 = vadd.f32 %v6997, %v6998
        %v7000 = vrot.slane %v6999, 1
        %v7001 = vadd.f32 %v6999, %v7000
        %v7002 = vadd.f32 %v5370, %v5386
        %v7003 = vrot.slane %v7002, 4
        %v7004 = vadd.f32 %v7002, %v7003
        %v7005 = vrot.slane %v7004, 2
        %v7006 = vadd.f32 %v7004, %v7005
        %v7007 = vrot.slane %v7006, 1
        %v7008 = vadd.f32 %v7006, %v7007
        %v7009 = vadd.f32 %v5371, %v5387
        %v7010 = vrot.slane %v7009, 4
        %v7011 = vadd.f32 %v7009, %v7010
        %v7012 = vrot.slane %v7011, 2
        %v7013 = vadd.f32 %v7011, %v7012
        %v7014 = vrot.slane %v7013, 1
        %v7015 = vadd.f32 %v7013, %v7014
        %v7016 = vadd.f32 %v5372, %v5388
        %v7017 = vrot.slane %v7016, 4
        %v7018 = vadd.f32 %v7016, %v7017
        %v7019 = vrot.slane %v7018, 2
        %v7020 = vadd.f32 %v7018, %v7019
        %v7021 = vrot.slane %v7020, 1
        %v7022 = vadd.f32 %v7020, %v7021
        %v7023 = vadd.f32 %v5373, %v5389
        %v7024 = vrot.slane %v7023, 4
        %v7025 = vadd.f32 %v7023, %v7024
        %v7026 = vrot.slane %v7025, 2
        %v7027 = vadd.f32 %v7025, %v7026
        %v7028 = vrot.slane %v7027, 1
        %v7029 = vadd.f32 %v7027, %v7028
        %v7030 = vadd.f32 %v5374, %v5390
        %v7031 = vrot.slane %v7030, 4
        %v7032 = vadd.f32 %v7030, %v7031
        %v7033 = vrot.slane %v7032, 2
        %v7034 = vadd.f32 %v7032, %v7033
        %v7035 = vrot.slane %v7034, 1
        %v7036 = vadd.f32 %v7034, %v7035
        %v7037 = vadd.f32 %v5375, %v5391
        %v7038 = vrot.slane %v7037, 4
        %v7039 = vadd.f32 %v7037, %v7038
        %v7040 = vrot.slane %v7039, 2
        %v7041 = vadd.f32 %v7039, %v7040
        %v7042 = vrot.slane %v7041, 1
        %v7043 = vadd.f32 %v7041, %v7042
        %v7044 = vadd.f32 %v5376, %v5392
        %v7045 = vrot.slane %v7044, 4
        %v7046 = vadd.f32 %v7044, %v7045
        %v7047 = vrot.slane %v7046, 2
        %v7048 = vadd.f32 %v7046, %v7047
        %v7049 = vrot.slane %v7048, 1
        %v7050 = vadd.f32 %v7048, %v7049
        %v7051 = vadd.f32 %v5377, %v5393
        %v7052 = vrot.slane %v7051, 4
        %v7053 = vadd.f32 %v7051, %v7052
        %v7054 = vrot.slane %v7053, 2
        %v7055 = vadd.f32 %v7053, %v7054
        %v7056 = vrot.slane %v7055, 1
        %v7057 = vadd.f32 %v7055, %v7056
        %v7058 = vadd.f32 %v5378, %v5394
        %v7059 = vrot.slane %v7058, 4
        %v7060 = vadd.f32 %v7058, %v7059
        %v7061 = vrot.slane %v7060, 2
        %v7062 = vadd.f32 %v7060, %v7061
        %v7063 = vrot.slane %v7062, 1
        %v7064 = vadd.f32 %v7062, %v7063
        %v7065 = vadd.f32 %v5379, %v5395
        %v7066 = vrot.slane %v7065, 4
        %v7067 = vadd.f32 %v7065, %v7066
        %v7068 = vrot.slane %v7067, 2
        %v7069 = vadd.f32 %v7067, %v7068
        %v7070 = vrot.slane %v7069, 1
        %v7071 = vadd.f32 %v7069, %v7070
        %v7072 = vadd.f32 %v5380, %v5396
        %v7073 = vrot.slane %v7072, 4
        %v7074 = vadd.f32 %v7072, %v7073
        %v7075 = vrot.slane %v7074, 2
        %v7076 = vadd.f32 %v7074, %v7075
        %v7077 = vrot.slane %v7076, 1
        %v7078 = vadd.f32 %v7076, %v7077
        %v7079 = vadd.f32 %v5381, %v5397
        %v7080 = vrot.slane %v7079, 4
        %v7081 = vadd.f32 %v7079, %v7080
        %v7082 = vrot.slane %v7081, 2
        %v7083 = vadd.f32 %v7081, %v7082
        %v7084 = vrot.slane %v7083, 1
        %v7085 = vadd.f32 %v7083, %v7084
        %v7086 = vadd.f32 %v5382, %v5398
        %v7087 = vrot.slane %v7086, 4
        %v7088 = vadd.f32 %v7086, %v7087
        %v7089 = vrot.slane %v7088, 2
        %v7090 = vadd.f32 %v7088, %v7089
        %v7091 = vrot.slane %v7090, 1
        %v7092 = vadd.f32 %v7090, %v7091
        %v7093 = vadd.f32 %v5383, %v5399
        %v7094 = vrot.slane %v7093, 4
        %v7095 = vadd.f32 %v7093, %v7094
        %v7096 = vrot.slane %v7095, 2
        %v7097 = vadd.f32 %v7095, %v7096
        %v7098 = vrot.slane %v7097, 1
        %v7099 = vadd.f32 %v7097, %v7098
        %v7100 = vadd.f32 %v5384, %v5400
        %v7101 = vrot.slane %v7100, 4
        %v7102 = vadd.f32 %v7100, %v7101
        %v7103 = vrot.slane %v7102, 2
        %v7104 = vadd.f32 %v7102, %v7103
        %v7105 = vrot.slane %v7104, 1
        %v7106 = vadd.f32 %v7104, %v7105
        %v7107 = vadd.f32 %v5385, %v5401
        %v7108 = vrot.slane %v7107, 4
        %v7109 = vadd.f32 %v7107, %v7108
        %v7110 = vrot.slane %v7109, 2
        %v7111 = vadd.f32 %v7109, %v7110
        %v7112 = vrot.slane %v7111, 1
        %v7113 = vadd.f32 %v7111, %v7112
        %v7114 = vadd.f32 %v5402, %v5418
        %v7115 = vrot.slane %v7114, 4
        %v7116 = vadd.f32 %v7114, %v7115
        %v7117 = vrot.slane %v7116, 2
        %v7118 = vadd.f32 %v7116, %v7117
        %v7119 = vrot.slane %v7118, 1
        %v7120 = vadd.f32 %v7118, %v7119
        %v7121 = vadd.f32 %v5403, %v5419
        %v7122 = vrot.slane %v7121, 4
        %v7123 = vadd.f32 %v7121, %v7122
        %v7124 = vrot.slane %v7123, 2
        %v7125 = vadd.f32 %v7123, %v7124
        %v7126 = vrot.slane %v7125, 1
        %v7127 = vadd.f32 %v7125, %v7126
        %v7128 = vadd.f32 %v5404, %v5420
        %v7129 = vrot.slane %v7128, 4
        %v7130 = vadd.f32 %v7128, %v7129
        %v7131 = vrot.slane %v7130, 2
        %v7132 = vadd.f32 %v7130, %v7131
        %v7133 = vrot.slane %v7132, 1
        %v7134 = vadd.f32 %v7132, %v7133
        %v7135 = vadd.f32 %v5405, %v5421
        %v7136 = vrot.slane %v7135, 4
        %v7137 = vadd.f32 %v7135, %v7136
        %v7138 = vrot.slane %v7137, 2
        %v7139 = vadd.f32 %v7137, %v7138
        %v7140 = vrot.slane %v7139, 1
        %v7141 = vadd.f32 %v7139, %v7140
        %v7142 = vadd.f32 %v5406, %v5422
        %v7143 = vrot.slane %v7142, 4
        %v7144 = vadd.f32 %v7142, %v7143
        %v7145 = vrot.slane %v7144, 2
        %v7146 = vadd.f32 %v7144, %v7145
        %v7147 = vrot.slane %v7146, 1
        %v7148 = vadd.f32 %v7146, %v7147
        %v7149 = vadd.f32 %v5407, %v5423
        %v7150 = vrot.slane %v7149, 4
        %v7151 = vadd.f32 %v7149, %v7150
        %v7152 = vrot.slane %v7151, 2
        %v7153 = vadd.f32 %v7151, %v7152
        %v7154 = vrot.slane %v7153, 1
        %v7155 = vadd.f32 %v7153, %v7154
        %v7156 = vadd.f32 %v5408, %v5424
        %v7157 = vrot.slane %v7156, 4
        %v7158 = vadd.f32 %v7156, %v7157
        %v7159 = vrot.slane %v7158, 2
        %v7160 = vadd.f32 %v7158, %v7159
        %v7161 = vrot.slane %v7160, 1
        %v7162 = vadd.f32 %v7160, %v7161
        %v7163 = vadd.f32 %v5409, %v5425
        %v7164 = vrot.slane %v7163, 4
        %v7165 = vadd.f32 %v7163, %v7164
        %v7166 = vrot.slane %v7165, 2
        %v7167 = vadd.f32 %v7165, %v7166
        %v7168 = vrot.slane %v7167, 1
        %v7169 = vadd.f32 %v7167, %v7168
        %v7170 = vadd.f32 %v5410, %v5426
        %v7171 = vrot.slane %v7170, 4
        %v7172 = vadd.f32 %v7170, %v7171
        %v7173 = vrot.slane %v7172, 2
        %v7174 = vadd.f32 %v7172, %v7173
        %v7175 = vrot.slane %v7174, 1
        %v7176 = vadd.f32 %v7174, %v7175
        %v7177 = vadd.f32 %v5411, %v5427
        %v7178 = vrot.slane %v7177, 4
        %v7179 = vadd.f32 %v7177, %v7178
        %v7180 = vrot.slane %v7179, 2
        %v7181 = vadd.f32 %v7179, %v7180
        %v7182 = vrot.slane %v7181, 1
        %v7183 = vadd.f32 %v7181, %v7182
        %v7184 = vadd.f32 %v5412, %v5428
        %v7185 = vrot.slane %v7184, 4
        %v7186 = vadd.f32 %v7184, %v7185
        %v7187 = vrot.slane %v7186, 2
        %v7188 = vadd.f32 %v7186, %v7187
        %v7189 = vrot.slane %v7188, 1
        %v7190 = vadd.f32 %v7188, %v7189
        %v7191 = vadd.f32 %v5413, %v5429
        %v7192 = vrot.slane %v7191, 4
        %v7193 = vadd.f32 %v7191, %v7192
        %v7194 = vrot.slane %v7193, 2
        %v7195 = vadd.f32 %v7193, %v7194
        %v7196 = vrot.slane %v7195, 1
        %v7197 = vadd.f32 %v7195, %v7196
        %v7198 = vadd.f32 %v5414, %v5430
        %v7199 = vrot.slane %v7198, 4
        %v7200 = vadd.f32 %v7198, %v7199
        %v7201 = vrot.slane %v7200, 2
        %v7202 = vadd.f32 %v7200, %v7201
        %v7203 = vrot.slane %v7202, 1
        %v7204 = vadd.f32 %v7202, %v7203
        %v7205 = vadd.f32 %v5415, %v5431
        %v7206 = vrot.slane %v7205, 4
        %v7207 = vadd.f32 %v7205, %v7206
        %v7208 = vrot.slane %v7207, 2
        %v7209 = vadd.f32 %v7207, %v7208
        %v7210 = vrot.slane %v7209, 1
        %v7211 = vadd.f32 %v7209, %v7210
        %v7212 = vadd.f32 %v5416, %v5432
        %v7213 = vrot.slane %v7212, 4
        %v7214 = vadd.f32 %v7212, %v7213
        %v7215 = vrot.slane %v7214, 2
        %v7216 = vadd.f32 %v7214, %v7215
        %v7217 = vrot.slane %v7216, 1
        %v7218 = vadd.f32 %v7216, %v7217
        %v7219 = vadd.f32 %v5417, %v5433
        %v7220 = vrot.slane %v7219, 4
        %v7221 = vadd.f32 %v7219, %v7220
        %v7222 = vrot.slane %v7221, 2
        %v7223 = vadd.f32 %v7221, %v7222
        %v7224 = vrot.slane %v7223, 1
        %v7225 = vadd.f32 %v7223, %v7224
        %vm7354 = vcmask 1041409
        %v7355 = vsel %vm7354, %v4144, %v4032
        %vm7356 = vcmask 1042434
        %v7357 = vsel %vm7356, %v4256, %v7355
        %vm7358 = vcmask 1043459
        %v7359 = vsel %vm7358, %v4368, %v7357
        %vm7360 = vcmask 1044484
        %v7361 = vsel %vm7360, %v4480, %v7359
        %vm7362 = vcmask 1045509
        %v7363 = vsel %vm7362, %v4592, %v7361
        %vm7364 = vcmask 1046534
        %v7365 = vsel %vm7364, %v4704, %v7363
        %vm7366 = vcmask 1047559
        %v7367 = vsel %vm7366, %v4816, %v7365
        %v7368 = vsel %vm7354, %v4151, %v4039
        %v7369 = vsel %vm7356, %v4263, %v7368
        %v7370 = vsel %vm7358, %v4375, %v7369
        %v7371 = vsel %vm7360, %v4487, %v7370
        %v7372 = vsel %vm7362, %v4599, %v7371
        %v7373 = vsel %vm7364, %v4711, %v7372
        %v7374 = vsel %vm7366, %v4823, %v7373
        %v7375 = vsel %vm7354, %v4158, %v4046
        %v7376 = vsel %vm7356, %v4270, %v7375
        %v7377 = vsel %vm7358, %v4382, %v7376
        %v7378 = vsel %vm7360, %v4494, %v7377
        %v7379 = vsel %vm7362, %v4606, %v7378
        %v7380 = vsel %vm7364, %v4718, %v7379
        %v7381 = vsel %vm7366, %v4830, %v7380
        %v7382 = vsel %vm7354, %v4165, %v4053
        %v7383 = vsel %vm7356, %v4277, %v7382
        %v7384 = vsel %vm7358, %v4389, %v7383
        %v7385 = vsel %vm7360, %v4501, %v7384
        %v7386 = vsel %vm7362, %v4613, %v7385
        %v7387 = vsel %vm7364, %v4725, %v7386
        %v7388 = vsel %vm7366, %v4837, %v7387
        %v7389 = vsel %vm7354, %v4172, %v4060
        %v7390 = vsel %vm7356, %v4284, %v7389
        %v7391 = vsel %vm7358, %v4396, %v7390
        %v7392 = vsel %vm7360, %v4508, %v7391
        %v7393 = vsel %vm7362, %v4620, %v7392
        %v7394 = vsel %vm7364, %v4732, %v7393
        %v7395 = vsel %vm7366, %v4844, %v7394
        %v7396 = vsel %vm7354, %v4179, %v4067
        %v7397 = vsel %vm7356, %v4291, %v7396
        %v7398 = vsel %vm7358, %v4403, %v7397
        %v7399 = vsel %vm7360, %v4515, %v7398
        %v7400 = vsel %vm7362, %v4627, %v7399
        %v7401 = vsel %vm7364, %v4739, %v7400
        %v7402 = vsel %vm7366, %v4851, %v7401
        %v7403 = vsel %vm7354, %v4186, %v4074
        %v7404 = vsel %vm7356, %v4298, %v7403
        %v7405 = vsel %vm7358, %v4410, %v7404
        %v7406 = vsel %vm7360, %v4522, %v7405
        %v7407 = vsel %vm7362, %v4634, %v7406
        %v7408 = vsel %vm7364, %v4746, %v7407
        %v7409 = vsel %vm7366, %v4858, %v7408
        %v7410 = vsel %vm7354, %v4193, %v4081
        %v7411 = vsel %vm7356, %v4305, %v7410
        %v7412 = vsel %vm7358, %v4417, %v7411
        %v7413 = vsel %vm7360, %v4529, %v7412
        %v7414 = vsel %vm7362, %v4641, %v7413
        %v7415 = vsel %vm7364, %v4753, %v7414
        %v7416 = vsel %vm7366, %v4865, %v7415
        %v7417 = vsel %vm7354, %v4200, %v4088
        %v7418 = vsel %vm7356, %v4312, %v7417
        %v7419 = vsel %vm7358, %v4424, %v7418
        %v7420 = vsel %vm7360, %v4536, %v7419
        %v7421 = vsel %vm7362, %v4648, %v7420
        %v7422 = vsel %vm7364, %v4760, %v7421
        %v7423 = vsel %vm7366, %v4872, %v7422
        %v7424 = vsel %vm7354, %v4207, %v4095
        %v7425 = vsel %vm7356, %v4319, %v7424
        %v7426 = vsel %vm7358, %v4431, %v7425
        %v7427 = vsel %vm7360, %v4543, %v7426
        %v7428 = vsel %vm7362, %v4655, %v7427
        %v7429 = vsel %vm7364, %v4767, %v7428
        %v7430 = vsel %vm7366, %v4879, %v7429
        %v7431 = vsel %vm7354, %v4214, %v4102
        %v7432 = vsel %vm7356, %v4326, %v7431
        %v7433 = vsel %vm7358, %v4438, %v7432
        %v7434 = vsel %vm7360, %v4550, %v7433
        %v7435 = vsel %vm7362, %v4662, %v7434
        %v7436 = vsel %vm7364, %v4774, %v7435
        %v7437 = vsel %vm7366, %v4886, %v7436
        %v7438 = vsel %vm7354, %v4221, %v4109
        %v7439 = vsel %vm7356, %v4333, %v7438
        %v7440 = vsel %vm7358, %v4445, %v7439
        %v7441 = vsel %vm7360, %v4557, %v7440
        %v7442 = vsel %vm7362, %v4669, %v7441
        %v7443 = vsel %vm7364, %v4781, %v7442
        %v7444 = vsel %vm7366, %v4893, %v7443
        %v7445 = vsel %vm7354, %v4228, %v4116
        %v7446 = vsel %vm7356, %v4340, %v7445
        %v7447 = vsel %vm7358, %v4452, %v7446
        %v7448 = vsel %vm7360, %v4564, %v7447
        %v7449 = vsel %vm7362, %v4676, %v7448
        %v7450 = vsel %vm7364, %v4788, %v7449
        %v7451 = vsel %vm7366, %v4900, %v7450
        %v7452 = vsel %vm7354, %v4235, %v4123
        %v7453 = vsel %vm7356, %v4347, %v7452
        %v7454 = vsel %vm7358, %v4459, %v7453
        %v7455 = vsel %vm7360, %v4571, %v7454
        %v7456 = vsel %vm7362, %v4683, %v7455
        %v7457 = vsel %vm7364, %v4795, %v7456
        %v7458 = vsel %vm7366, %v4907, %v7457
        %v7459 = vsel %vm7354, %v4242, %v4130
        %v7460 = vsel %vm7356, %v4354, %v7459
        %v7461 = vsel %vm7358, %v4466, %v7460
        %v7462 = vsel %vm7360, %v4578, %v7461
        %v7463 = vsel %vm7362, %v4690, %v7462
        %v7464 = vsel %vm7364, %v4802, %v7463
        %v7465 = vsel %vm7366, %v4914, %v7464
        %v7466 = vsel %vm7354, %v4249, %v4137
        %v7467 = vsel %vm7356, %v4361, %v7466
        %v7468 = vsel %vm7358, %v4473, %v7467
        %v7469 = vsel %vm7360, %v4585, %v7468
        %v7470 = vsel %vm7362, %v4697, %v7469
        %v7471 = vsel %vm7364, %v4809, %v7470
        %v7472 = vsel %vm7366, %v4921, %v7471
        %v7745 = vsel %vm7354, %v5552, %v5440
        %v7746 = vsel %vm7356, %v5664, %v7745
        %v7747 = vsel %vm7358, %v5776, %v7746
        %v7748 = vsel %vm7360, %v5888, %v7747
        %v7749 = vsel %vm7362, %v6000, %v7748
        %v7750 = vsel %vm7364, %v6112, %v7749
        %v7751 = vsel %vm7366, %v6224, %v7750
        %v7752 = vsel %vm7354, %v5559, %v5447
        %v7753 = vsel %vm7356, %v5671, %v7752
        %v7754 = vsel %vm7358, %v5783, %v7753
        %v7755 = vsel %vm7360, %v5895, %v7754
        %v7756 = vsel %vm7362, %v6007, %v7755
        %v7757 = vsel %vm7364, %v6119, %v7756
        %v7758 = vsel %vm7366, %v6231, %v7757
        %v7759 = vsel %vm7354, %v5566, %v5454
        %v7760 = vsel %vm7356, %v5678, %v7759
        %v7761 = vsel %vm7358, %v5790, %v7760
        %v7762 = vsel %vm7360, %v5902, %v7761
        %v7763 = vsel %vm7362, %v6014, %v7762
        %v7764 = vsel %vm7364, %v6126, %v7763
        %v7765 = vsel %vm7366, %v6238, %v7764
        %v7766 = vsel %vm7354, %v5573, %v5461
        %v7767 = vsel %vm7356, %v5685, %v7766
        %v7768 = vsel %vm7358, %v5797, %v7767
        %v7769 = vsel %vm7360, %v5909, %v7768
        %v7770 = vsel %vm7362, %v6021, %v7769
        %v7771 = vsel %vm7364, %v6133, %v7770
        %v7772 = vsel %vm7366, %v6245, %v7771
        %v7773 = vsel %vm7354, %v5580, %v5468
        %v7774 = vsel %vm7356, %v5692, %v7773
        %v7775 = vsel %vm7358, %v5804, %v7774
        %v7776 = vsel %vm7360, %v5916, %v7775
        %v7777 = vsel %vm7362, %v6028, %v7776
        %v7778 = vsel %vm7364, %v6140, %v7777
        %v7779 = vsel %vm7366, %v6252, %v7778
        %v7780 = vsel %vm7354, %v5587, %v5475
        %v7781 = vsel %vm7356, %v5699, %v7780
        %v7782 = vsel %vm7358, %v5811, %v7781
        %v7783 = vsel %vm7360, %v5923, %v7782
        %v7784 = vsel %vm7362, %v6035, %v7783
        %v7785 = vsel %vm7364, %v6147, %v7784
        %v7786 = vsel %vm7366, %v6259, %v7785
        %v7787 = vsel %vm7354, %v5594, %v5482
        %v7788 = vsel %vm7356, %v5706, %v7787
        %v7789 = vsel %vm7358, %v5818, %v7788
        %v7790 = vsel %vm7360, %v5930, %v7789
        %v7791 = vsel %vm7362, %v6042, %v7790
        %v7792 = vsel %vm7364, %v6154, %v7791
        %v7793 = vsel %vm7366, %v6266, %v7792
        %v7794 = vsel %vm7354, %v5601, %v5489
        %v7795 = vsel %vm7356, %v5713, %v7794
        %v7796 = vsel %vm7358, %v5825, %v7795
        %v7797 = vsel %vm7360, %v5937, %v7796
        %v7798 = vsel %vm7362, %v6049, %v7797
        %v7799 = vsel %vm7364, %v6161, %v7798
        %v7800 = vsel %vm7366, %v6273, %v7799
        %v7801 = vsel %vm7354, %v5608, %v5496
        %v7802 = vsel %vm7356, %v5720, %v7801
        %v7803 = vsel %vm7358, %v5832, %v7802
        %v7804 = vsel %vm7360, %v5944, %v7803
        %v7805 = vsel %vm7362, %v6056, %v7804
        %v7806 = vsel %vm7364, %v6168, %v7805
        %v7807 = vsel %vm7366, %v6280, %v7806
        %v7808 = vsel %vm7354, %v5615, %v5503
        %v7809 = vsel %vm7356, %v5727, %v7808
        %v7810 = vsel %vm7358, %v5839, %v7809
        %v7811 = vsel %vm7360, %v5951, %v7810
        %v7812 = vsel %vm7362, %v6063, %v7811
        %v7813 = vsel %vm7364, %v6175, %v7812
        %v7814 = vsel %vm7366, %v6287, %v7813
        %v7815 = vsel %vm7354, %v5622, %v5510
        %v7816 = vsel %vm7356, %v5734, %v7815
        %v7817 = vsel %vm7358, %v5846, %v7816
        %v7818 = vsel %vm7360, %v5958, %v7817
        %v7819 = vsel %vm7362, %v6070, %v7818
        %v7820 = vsel %vm7364, %v6182, %v7819
        %v7821 = vsel %vm7366, %v6294, %v7820
        %v7822 = vsel %vm7354, %v5629, %v5517
        %v7823 = vsel %vm7356, %v5741, %v7822
        %v7824 = vsel %vm7358, %v5853, %v7823
        %v7825 = vsel %vm7360, %v5965, %v7824
        %v7826 = vsel %vm7362, %v6077, %v7825
        %v7827 = vsel %vm7364, %v6189, %v7826
        %v7828 = vsel %vm7366, %v6301, %v7827
        %v7829 = vsel %vm7354, %v5636, %v5524
        %v7830 = vsel %vm7356, %v5748, %v7829
        %v7831 = vsel %vm7358, %v5860, %v7830
        %v7832 = vsel %vm7360, %v5972, %v7831
        %v7833 = vsel %vm7362, %v6084, %v7832
        %v7834 = vsel %vm7364, %v6196, %v7833
        %v7835 = vsel %vm7366, %v6308, %v7834
        %v7836 = vsel %vm7354, %v5643, %v5531
        %v7837 = vsel %vm7356, %v5755, %v7836
        %v7838 = vsel %vm7358, %v5867, %v7837
        %v7839 = vsel %vm7360, %v5979, %v7838
        %v7840 = vsel %vm7362, %v6091, %v7839
        %v7841 = vsel %vm7364, %v6203, %v7840
        %v7842 = vsel %vm7366, %v6315, %v7841
        %v7843 = vsel %vm7354, %v5650, %v5538
        %v7844 = vsel %vm7356, %v5762, %v7843
        %v7845 = vsel %vm7358, %v5874, %v7844
        %v7846 = vsel %vm7360, %v5986, %v7845
        %v7847 = vsel %vm7362, %v6098, %v7846
        %v7848 = vsel %vm7364, %v6210, %v7847
        %v7849 = vsel %vm7366, %v6322, %v7848
        %v7850 = vsel %vm7354, %v5657, %v5545
        %v7851 = vsel %vm7356, %v5769, %v7850
        %v7852 = vsel %vm7358, %v5881, %v7851
        %v7853 = vsel %vm7360, %v5993, %v7852
        %v7854 = vsel %vm7362, %v6105, %v7853
        %v7855 = vsel %vm7364, %v6217, %v7854
        %v7856 = vsel %vm7366, %v6329, %v7855
        %v7857 = vsel %vm7354, %v6448, %v6336
        %v7858 = vsel %vm7356, %v6560, %v7857
        %v7859 = vsel %vm7358, %v6672, %v7858
        %v7860 = vsel %vm7360, %v6784, %v7859
        %v7861 = vsel %vm7362, %v6896, %v7860
        %v7862 = vsel %vm7364, %v7008, %v7861
        %v7863 = vsel %vm7366, %v7120, %v7862
        %v7864 = vsel %vm7354, %v6455, %v6343
        %v7865 = vsel %vm7356, %v6567, %v7864
        %v7866 = vsel %vm7358, %v6679, %v7865
        %v7867 = vsel %vm7360, %v6791, %v7866
        %v7868 = vsel %vm7362, %v6903, %v7867
        %v7869 = vsel %vm7364, %v7015, %v7868
        %v7870 = vsel %vm7366, %v7127, %v7869
        %v7871 = vsel %vm7354, %v6462, %v6350
        %v7872 = vsel %vm7356, %v6574, %v7871
        %v7873 = vsel %vm7358, %v6686, %v7872
        %v7874 = vsel %vm7360, %v6798, %v7873
        %v7875 = vsel %vm7362, %v6910, %v7874
        %v7876 = vsel %vm7364, %v7022, %v7875
        %v7877 = vsel %vm7366, %v7134, %v7876
        %v7878 = vsel %vm7354, %v6469, %v6357
        %v7879 = vsel %vm7356, %v6581, %v7878
        %v7880 = vsel %vm7358, %v6693, %v7879
        %v7881 = vsel %vm7360, %v6805, %v7880
        %v7882 = vsel %vm7362, %v6917, %v7881
        %v7883 = vsel %vm7364, %v7029, %v7882
        %v7884 = vsel %vm7366, %v7141, %v7883
        %v7885 = vsel %vm7354, %v6476, %v6364
        %v7886 = vsel %vm7356, %v6588, %v7885
        %v7887 = vsel %vm7358, %v6700, %v7886
        %v7888 = vsel %vm7360, %v6812, %v7887
        %v7889 = vsel %vm7362, %v6924, %v7888
        %v7890 = vsel %vm7364, %v7036, %v7889
        %v7891 = vsel %vm7366, %v7148, %v7890
        %v7892 = vsel %vm7354, %v6483, %v6371
        %v7893 = vsel %vm7356, %v6595, %v7892
        %v7894 = vsel %vm7358, %v6707, %v7893
        %v7895 = vsel %vm7360, %v6819, %v7894
        %v7896 = vsel %vm7362, %v6931, %v7895
        %v7897 = vsel %vm7364, %v7043, %v7896
        %v7898 = vsel %vm7366, %v7155, %v7897
        %v7899 = vsel %vm7354, %v6490, %v6378
        %v7900 = vsel %vm7356, %v6602, %v7899
        %v7901 = vsel %vm7358, %v6714, %v7900
        %v7902 = vsel %vm7360, %v6826, %v7901
        %v7903 = vsel %vm7362, %v6938, %v7902
        %v7904 = vsel %vm7364, %v7050, %v7903
        %v7905 = vsel %vm7366, %v7162, %v7904
        %v7906 = vsel %vm7354, %v6497, %v6385
        %v7907 = vsel %vm7356, %v6609, %v7906
        %v7908 = vsel %vm7358, %v6721, %v7907
        %v7909 = vsel %vm7360, %v6833, %v7908
        %v7910 = vsel %vm7362, %v6945, %v7909
        %v7911 = vsel %vm7364, %v7057, %v7910
        %v7912 = vsel %vm7366, %v7169, %v7911
        %v7913 = vsel %vm7354, %v6504, %v6392
        %v7914 = vsel %vm7356, %v6616, %v7913
        %v7915 = vsel %vm7358, %v6728, %v7914
        %v7916 = vsel %vm7360, %v6840, %v7915
        %v7917 = vsel %vm7362, %v6952, %v7916
        %v7918 = vsel %vm7364, %v7064, %v7917
        %v7919 = vsel %vm7366, %v7176, %v7918
        %v7920 = vsel %vm7354, %v6511, %v6399
        %v7921 = vsel %vm7356, %v6623, %v7920
        %v7922 = vsel %vm7358, %v6735, %v7921
        %v7923 = vsel %vm7360, %v6847, %v7922
        %v7924 = vsel %vm7362, %v6959, %v7923
        %v7925 = vsel %vm7364, %v7071, %v7924
        %v7926 = vsel %vm7366, %v7183, %v7925
        %v7927 = vsel %vm7354, %v6518, %v6406
        %v7928 = vsel %vm7356, %v6630, %v7927
        %v7929 = vsel %vm7358, %v6742, %v7928
        %v7930 = vsel %vm7360, %v6854, %v7929
        %v7931 = vsel %vm7362, %v6966, %v7930
        %v7932 = vsel %vm7364, %v7078, %v7931
        %v7933 = vsel %vm7366, %v7190, %v7932
        %v7934 = vsel %vm7354, %v6525, %v6413
        %v7935 = vsel %vm7356, %v6637, %v7934
        %v7936 = vsel %vm7358, %v6749, %v7935
        %v7937 = vsel %vm7360, %v6861, %v7936
        %v7938 = vsel %vm7362, %v6973, %v7937
        %v7939 = vsel %vm7364, %v7085, %v7938
        %v7940 = vsel %vm7366, %v7197, %v7939
        %v7941 = vsel %vm7354, %v6532, %v6420
        %v7942 = vsel %vm7356, %v6644, %v7941
        %v7943 = vsel %vm7358, %v6756, %v7942
        %v7944 = vsel %vm7360, %v6868, %v7943
        %v7945 = vsel %vm7362, %v6980, %v7944
        %v7946 = vsel %vm7364, %v7092, %v7945
        %v7947 = vsel %vm7366, %v7204, %v7946
        %v7948 = vsel %vm7354, %v6539, %v6427
        %v7949 = vsel %vm7356, %v6651, %v7948
        %v7950 = vsel %vm7358, %v6763, %v7949
        %v7951 = vsel %vm7360, %v6875, %v7950
        %v7952 = vsel %vm7362, %v6987, %v7951
        %v7953 = vsel %vm7364, %v7099, %v7952
        %v7954 = vsel %vm7366, %v7211, %v7953
        %v7955 = vsel %vm7354, %v6546, %v6434
        %v7956 = vsel %vm7356, %v6658, %v7955
        %v7957 = vsel %vm7358, %v6770, %v7956
        %v7958 = vsel %vm7360, %v6882, %v7957
        %v7959 = vsel %vm7362, %v6994, %v7958
        %v7960 = vsel %vm7364, %v7106, %v7959
        %v7961 = vsel %vm7366, %v7218, %v7960
        %v7962 = vsel %vm7354, %v6553, %v6441
        %v7963 = vsel %vm7356, %v6665, %v7962
        %v7964 = vsel %vm7358, %v6777, %v7963
        %v7965 = vsel %vm7360, %v6889, %v7964
        %v7966 = vsel %vm7362, %v7001, %v7965
        %v7967 = vsel %vm7364, %v7113, %v7966
        %v7968 = vsel %vm7366, %v7225, %v7967
        %v8001 = vmul.f32 %v7367, %v1692
        %v8002 = vmul.f32 %v7374, %v1830
        %v8003 = vmul.f32 %v7381, %v1968
        %v8004 = vmul.f32 %v7388, %v2106
        %v8005 = vmul.f32 %v7395, %v2244
        %v8006 = vmul.f32 %v7402, %v2382
        %v8007 = vmul.f32 %v7409, %v2520
        %v8008 = vmul.f32 %v7416, %v2658
        %v8009 = vmul.f32 %v7423, %v2796
        %v8010 = vmul.f32 %v7430, %v2934
        %v8011 = vmul.f32 %v7437, %v3072
        %v8012 = vmul.f32 %v7444, %v3210
        %v8013 = vmul.f32 %v7451, %v3348
        %v8014 = vmul.f32 %v7458, %v3486
        %v8015 = vmul.f32 %v7465, %v3624
        %v8016 = vmul.f32 %v7472, %v3762
        %v8017 = vmul.f32 %v7751, %v1694
        %v8018 = vmul.f32 %v7758, %v1832
        %v8019 = vmul.f32 %v7765, %v1970
        %v8020 = vmul.f32 %v7772, %v2108
        %v8021 = vmul.f32 %v7779, %v2246
        %v8022 = vmul.f32 %v7786, %v2384
        %v8023 = vmul.f32 %v7793, %v2522
        %v8024 = vmul.f32 %v7800, %v2660
        %v8025 = vmul.f32 %v7807, %v2798
        %v8026 = vmul.f32 %v7814, %v2936
        %v8027 = vmul.f32 %v7821, %v3074
        %v8028 = vmul.f32 %v7828, %v3212
        %v8029 = vmul.f32 %v7835, %v3350
        %v8030 = vmul.f32 %v7842, %v3488
        %v8031 = vmul.f32 %v7849, %v3626
        %v8032 = vmul.f32 %v7856, %v3764
        %v8033 = vmul.f32 %v7863, %v1697
        %v8034 = vmul.f32 %v7870, %v1835
        %v8035 = vmul.f32 %v7877, %v1973
        %v8036 = vmul.f32 %v7884, %v2111
        %v8037 = vmul.f32 %v7891, %v2249
        %v8038 = vmul.f32 %v7898, %v2387
        %v8039 = vmul.f32 %v7905, %v2525
        %v8040 = vmul.f32 %v7912, %v2663
        %v8041 = vmul.f32 %v7919, %v2801
        %v8042 = vmul.f32 %v7926, %v2939
        %v8043 = vmul.f32 %v7933, %v3077
        %v8044 = vmul.f32 %v7940, %v3215
        %v8045 = vmul.f32 %v7947, %v3353
        %v8046 = vmul.f32 %v7954, %v3491
        %v8047 = vmul.f32 %v7961, %v3629
        %v8048 = vmul.f32 %v7968, %v3767
        %v8049 = vld [vmem:[%s2] sm:$0xf]
        %vm8050 = vcmask 195584
        %v8052 = vsel %vm8050, %v8049, 0
        %8054 = vmatpush.msra.mxu0 0.0
        %8055 = vmatpush.msra.mxu0 0.0
        %8056 = vmatpush.msra.mxu0 0.0
        %8057 = vmatpush.msra.mxu0 0.0
        %8058 = vmatpush.msra.mxu0 0.0
        %8059 = vmatpush.msra.mxu0 0.0
        %8060 = vmatpush.msra.mxu0 0.0
        %8061 = vmatpush.msra.mxu0 0.0
        %8062 = vmatpush.msra.mxu0 0.0
        %8063 = vmatpush.msra.mxu0 0.0
        %8064 = vmatpush.msra.mxu0 0.0
        %8065 = vmatpush.msra.mxu0 0.0
        %8066 = vmatpush.msra.mxu0 0.0
        %8067 = vmatpush.msra.mxu0 %v8033
        %8068 = vmatpush.msra.mxu0 %v8017
        %8069 = vmatpush.msra.mxu0 %v8001
        %8070 = vmatmul.f32.gmra.mxu0 %v8052
        %v8071 = vpop.f32.mrf.mxu0
        %v8072 = vadd.f32 0.0, %v8071
        %8073 = vdwg.mxu0
        %8074 = vmatpush.msra.mxu0 0.0
        %8075 = vmatpush.msra.mxu0 0.0
        %8076 = vmatpush.msra.mxu0 0.0
        %8077 = vmatpush.msra.mxu0 0.0
        %8078 = vmatpush.msra.mxu0 0.0
        %8079 = vmatpush.msra.mxu0 0.0
        %8080 = vmatpush.msra.mxu0 0.0
        %8081 = vmatpush.msra.mxu0 0.0
        %8082 = vmatpush.msra.mxu0 0.0
        %8083 = vmatpush.msra.mxu0 0.0
        %8084 = vmatpush.msra.mxu0 0.0
        %8085 = vmatpush.msra.mxu0 0.0
        %8086 = vmatpush.msra.mxu0 0.0
        %8087 = vmatpush.msra.mxu0 %v8034
        %8088 = vmatpush.msra.mxu0 %v8018
        %8089 = vmatpush.msra.mxu0 %v8002
        %8090 = vmatmul.f32.gmra.mxu0 %v8052
        %v8091 = vpop.f32.mrf.mxu0
        %v8092 = vadd.f32 0.0, %v8091
        %8093 = vdwg.mxu0
        %8094 = vmatpush.msra.mxu0 0.0
        %8095 = vmatpush.msra.mxu0 0.0
        %8096 = vmatpush.msra.mxu0 0.0
        %8097 = vmatpush.msra.mxu0 0.0
        %8098 = vmatpush.msra.mxu0 0.0
        %8099 = vmatpush.msra.mxu0 0.0
        %8100 = vmatpush.msra.mxu0 0.0
        %8101 = vmatpush.msra.mxu0 0.0
        %8102 = vmatpush.msra.mxu0 0.0
        %8103 = vmatpush.msra.mxu0 0.0
        %8104 = vmatpush.msra.mxu0 0.0
        %8105 = vmatpush.msra.mxu0 0.0
        %8106 = vmatpush.msra.mxu0 0.0
        %8107 = vmatpush.msra.mxu0 %v8035
        %8108 = vmatpush.msra.mxu0 %v8019
        %8109 = vmatpush.msra.mxu0 %v8003
        %8110 = vmatmul.f32.gmra.mxu0 %v8052
        %v8111 = vpop.f32.mrf.mxu0
        %v8112 = vadd.f32 0.0, %v8111
        %8113 = vdwg.mxu0
        %8114 = vmatpush.msra.mxu0 0.0
        %8115 = vmatpush.msra.mxu0 0.0
        %8116 = vmatpush.msra.mxu0 0.0
        %8117 = vmatpush.msra.mxu0 0.0
        %8118 = vmatpush.msra.mxu0 0.0
        %8119 = vmatpush.msra.mxu0 0.0
        %8120 = vmatpush.msra.mxu0 0.0
        %8121 = vmatpush.msra.mxu0 0.0
        %8122 = vmatpush.msra.mxu0 0.0
        %8123 = vmatpush.msra.mxu0 0.0
        %8124 = vmatpush.msra.mxu0 0.0
        %8125 = vmatpush.msra.mxu0 0.0
        %8126 = vmatpush.msra.mxu0 0.0
        %8127 = vmatpush.msra.mxu0 %v8036
        %8128 = vmatpush.msra.mxu0 %v8020
        %8129 = vmatpush.msra.mxu0 %v8004
        %8130 = vmatmul.f32.gmra.mxu0 %v8052
        %v8131 = vpop.f32.mrf.mxu0
        %v8132 = vadd.f32 0.0, %v8131
        %8133 = vdwg.mxu0
        %8134 = vmatpush.msra.mxu0 0.0
        %8135 = vmatpush.msra.mxu0 0.0
        %8136 = vmatpush.msra.mxu0 0.0
        %8137 = vmatpush.msra.mxu0 0.0
        %8138 = vmatpush.msra.mxu0 0.0
        %8139 = vmatpush.msra.mxu0 0.0
        %8140 = vmatpush.msra.mxu0 0.0
        %8141 = vmatpush.msra.mxu0 0.0
        %8142 = vmatpush.msra.mxu0 0.0
        %8143 = vmatpush.msra.mxu0 0.0
        %8144 = vmatpush.msra.mxu0 0.0
        %8145 = vmatpush.msra.mxu0 0.0
        %8146 = vmatpush.msra.mxu0 0.0
        %8147 = vmatpush.msra.mxu0 %v8037
        %8148 = vmatpush.msra.mxu0 %v8021
        %8149 = vmatpush.msra.mxu0 %v8005
        %8150 = vmatmul.f32.gmra.mxu0 %v8052
        %v8151 = vpop.f32.mrf.mxu0
        %v8152 = vadd.f32 0.0, %v8151
        %8153 = vdwg.mxu0
        %8154 = vmatpush.msra.mxu0 0.0
        %8155 = vmatpush.msra.mxu0 0.0
        %8156 = vmatpush.msra.mxu0 0.0
        %8157 = vmatpush.msra.mxu0 0.0
        %8158 = vmatpush.msra.mxu0 0.0
        %8159 = vmatpush.msra.mxu0 0.0
        %8160 = vmatpush.msra.mxu0 0.0
        %8161 = vmatpush.msra.mxu0 0.0
        %8162 = vmatpush.msra.mxu0 0.0
        %8163 = vmatpush.msra.mxu0 0.0
        %8164 = vmatpush.msra.mxu0 0.0
        %8165 = vmatpush.msra.mxu0 0.0
        %8166 = vmatpush.msra.mxu0 0.0
        %8167 = vmatpush.msra.mxu0 %v8038
        %8168 = vmatpush.msra.mxu0 %v8022
        %8169 = vmatpush.msra.mxu0 %v8006
        %8170 = vmatmul.f32.gmra.mxu0 %v8052
        %v8171 = vpop.f32.mrf.mxu0
        %v8172 = vadd.f32 0.0, %v8171
        %8173 = vdwg.mxu0
        %8174 = vmatpush.msra.mxu0 0.0
        %8175 = vmatpush.msra.mxu0 0.0
        %8176 = vmatpush.msra.mxu0 0.0
        %8177 = vmatpush.msra.mxu0 0.0
        %8178 = vmatpush.msra.mxu0 0.0
        %8179 = vmatpush.msra.mxu0 0.0
        %8180 = vmatpush.msra.mxu0 0.0
        %8181 = vmatpush.msra.mxu0 0.0
        %8182 = vmatpush.msra.mxu0 0.0
        %8183 = vmatpush.msra.mxu0 0.0
        %8184 = vmatpush.msra.mxu0 0.0
        %8185 = vmatpush.msra.mxu0 0.0
        %8186 = vmatpush.msra.mxu0 0.0
        %8187 = vmatpush.msra.mxu0 %v8039
        %8188 = vmatpush.msra.mxu0 %v8023
        %8189 = vmatpush.msra.mxu0 %v8007
        %8190 = vmatmul.f32.gmra.mxu0 %v8052
        %v8191 = vpop.f32.mrf.mxu0
        %v8192 = vadd.f32 0.0, %v8191
        %8193 = vdwg.mxu0
        %8194 = vmatpush.msra.mxu0 0.0
        %8195 = vmatpush.msra.mxu0 0.0
        %8196 = vmatpush.msra.mxu0 0.0
        %8197 = vmatpush.msra.mxu0 0.0
        %8198 = vmatpush.msra.mxu0 0.0
        %8199 = vmatpush.msra.mxu0 0.0
        %8200 = vmatpush.msra.mxu0 0.0
        %8201 = vmatpush.msra.mxu0 0.0
        %8202 = vmatpush.msra.mxu0 0.0
        %8203 = vmatpush.msra.mxu0 0.0
        %8204 = vmatpush.msra.mxu0 0.0
        %8205 = vmatpush.msra.mxu0 0.0
        %8206 = vmatpush.msra.mxu0 0.0
        %8207 = vmatpush.msra.mxu0 %v8040
        %8208 = vmatpush.msra.mxu0 %v8024
        %8209 = vmatpush.msra.mxu0 %v8008
        %8210 = vmatmul.f32.gmra.mxu0 %v8052
        %v8211 = vpop.f32.mrf.mxu0
        %v8212 = vadd.f32 0.0, %v8211
        %8213 = vdwg.mxu0
        %8214 = vmatpush.msra.mxu0 0.0
        %8215 = vmatpush.msra.mxu0 0.0
        %8216 = vmatpush.msra.mxu0 0.0
        %8217 = vmatpush.msra.mxu0 0.0
        %8218 = vmatpush.msra.mxu0 0.0
        %8219 = vmatpush.msra.mxu0 0.0
        %8220 = vmatpush.msra.mxu0 0.0
        %8221 = vmatpush.msra.mxu0 0.0
        %8222 = vmatpush.msra.mxu0 0.0
        %8223 = vmatpush.msra.mxu0 0.0
        %8224 = vmatpush.msra.mxu0 0.0
        %8225 = vmatpush.msra.mxu0 0.0
        %8226 = vmatpush.msra.mxu0 0.0
        %8227 = vmatpush.msra.mxu0 %v8041
        %8228 = vmatpush.msra.mxu0 %v8025
        %8229 = vmatpush.msra.mxu0 %v8009
        %8230 = vmatmul.f32.gmra.mxu0 %v8052
        %v8231 = vpop.f32.mrf.mxu0
        %v8232 = vadd.f32 0.0, %v8231
        %8233 = vdwg.mxu0
        %8234 = vmatpush.msra.mxu0 0.0
        %8235 = vmatpush.msra.mxu0 0.0
        %8236 = vmatpush.msra.mxu0 0.0
        %8237 = vmatpush.msra.mxu0 0.0
        %8238 = vmatpush.msra.mxu0 0.0
        %8239 = vmatpush.msra.mxu0 0.0
        %8240 = vmatpush.msra.mxu0 0.0
        %8241 = vmatpush.msra.mxu0 0.0
        %8242 = vmatpush.msra.mxu0 0.0
        %8243 = vmatpush.msra.mxu0 0.0
        %8244 = vmatpush.msra.mxu0 0.0
        %8245 = vmatpush.msra.mxu0 0.0
        %8246 = vmatpush.msra.mxu0 0.0
        %8247 = vmatpush.msra.mxu0 %v8042
        %8248 = vmatpush.msra.mxu0 %v8026
        %8249 = vmatpush.msra.mxu0 %v8010
        %8250 = vmatmul.f32.gmra.mxu0 %v8052
        %v8251 = vpop.f32.mrf.mxu0
        %v8252 = vadd.f32 0.0, %v8251
        %8253 = vdwg.mxu0
        %8254 = vmatpush.msra.mxu0 0.0
        %8255 = vmatpush.msra.mxu0 0.0
        %8256 = vmatpush.msra.mxu0 0.0
        %8257 = vmatpush.msra.mxu0 0.0
        %8258 = vmatpush.msra.mxu0 0.0
        %8259 = vmatpush.msra.mxu0 0.0
        %8260 = vmatpush.msra.mxu0 0.0
        %8261 = vmatpush.msra.mxu0 0.0
        %8262 = vmatpush.msra.mxu0 0.0
        %8263 = vmatpush.msra.mxu0 0.0
        %8264 = vmatpush.msra.mxu0 0.0
        %8265 = vmatpush.msra.mxu0 0.0
        %8266 = vmatpush.msra.mxu0 0.0
        %8267 = vmatpush.msra.mxu0 %v8043
        %8268 = vmatpush.msra.mxu0 %v8027
        %8269 = vmatpush.msra.mxu0 %v8011
        %8270 = vmatmul.f32.gmra.mxu0 %v8052
        %v8271 = vpop.f32.mrf.mxu0
        %v8272 = vadd.f32 0.0, %v8271
        %8273 = vdwg.mxu0
        %8274 = vmatpush.msra.mxu0 0.0
        %8275 = vmatpush.msra.mxu0 0.0
        %8276 = vmatpush.msra.mxu0 0.0
        %8277 = vmatpush.msra.mxu0 0.0
        %8278 = vmatpush.msra.mxu0 0.0
        %8279 = vmatpush.msra.mxu0 0.0
        %8280 = vmatpush.msra.mxu0 0.0
        %8281 = vmatpush.msra.mxu0 0.0
        %8282 = vmatpush.msra.mxu0 0.0
        %8283 = vmatpush.msra.mxu0 0.0
        %8284 = vmatpush.msra.mxu0 0.0
        %8285 = vmatpush.msra.mxu0 0.0
        %8286 = vmatpush.msra.mxu0 0.0
        %8287 = vmatpush.msra.mxu0 %v8044
        %8288 = vmatpush.msra.mxu0 %v8028
        %8289 = vmatpush.msra.mxu0 %v8012
        %8290 = vmatmul.f32.gmra.mxu0 %v8052
        %v8291 = vpop.f32.mrf.mxu0
        %v8292 = vadd.f32 0.0, %v8291
        %8293 = vdwg.mxu0
        %8294 = vmatpush.msra.mxu0 0.0
        %8295 = vmatpush.msra.mxu0 0.0
        %8296 = vmatpush.msra.mxu0 0.0
        %8297 = vmatpush.msra.mxu0 0.0
        %8298 = vmatpush.msra.mxu0 0.0
        %8299 = vmatpush.msra.mxu0 0.0
        %8300 = vmatpush.msra.mxu0 0.0
        %8301 = vmatpush.msra.mxu0 0.0
        %8302 = vmatpush.msra.mxu0 0.0
        %8303 = vmatpush.msra.mxu0 0.0
        %8304 = vmatpush.msra.mxu0 0.0
        %8305 = vmatpush.msra.mxu0 0.0
        %8306 = vmatpush.msra.mxu0 0.0
        %8307 = vmatpush.msra.mxu0 %v8045
        %8308 = vmatpush.msra.mxu0 %v8029
        %8309 = vmatpush.msra.mxu0 %v8013
        %8310 = vmatmul.f32.gmra.mxu0 %v8052
        %v8311 = vpop.f32.mrf.mxu0
        %v8312 = vadd.f32 0.0, %v8311
        %8313 = vdwg.mxu0
        %8314 = vmatpush.msra.mxu0 0.0
        %8315 = vmatpush.msra.mxu0 0.0
        %8316 = vmatpush.msra.mxu0 0.0
        %8317 = vmatpush.msra.mxu0 0.0
        %8318 = vmatpush.msra.mxu0 0.0
        %8319 = vmatpush.msra.mxu0 0.0
        %8320 = vmatpush.msra.mxu0 0.0
        %8321 = vmatpush.msra.mxu0 0.0
        %8322 = vmatpush.msra.mxu0 0.0
        %8323 = vmatpush.msra.mxu0 0.0
        %8324 = vmatpush.msra.mxu0 0.0
        %8325 = vmatpush.msra.mxu0 0.0
        %8326 = vmatpush.msra.mxu0 0.0
        %8327 = vmatpush.msra.mxu0 %v8046
        %8328 = vmatpush.msra.mxu0 %v8030
        %8329 = vmatpush.msra.mxu0 %v8014
        %8330 = vmatmul.f32.gmra.mxu0 %v8052
        %v8331 = vpop.f32.mrf.mxu0
        %v8332 = vadd.f32 0.0, %v8331
        %8333 = vdwg.mxu0
        %8334 = vmatpush.msra.mxu0 0.0
        %8335 = vmatpush.msra.mxu0 0.0
        %8336 = vmatpush.msra.mxu0 0.0
        %8337 = vmatpush.msra.mxu0 0.0
        %8338 = vmatpush.msra.mxu0 0.0
        %8339 = vmatpush.msra.mxu0 0.0
        %8340 = vmatpush.msra.mxu0 0.0
        %8341 = vmatpush.msra.mxu0 0.0
        %8342 = vmatpush.msra.mxu0 0.0
        %8343 = vmatpush.msra.mxu0 0.0
        %8344 = vmatpush.msra.mxu0 0.0
        %8345 = vmatpush.msra.mxu0 0.0
        %8346 = vmatpush.msra.mxu0 0.0
        %8347 = vmatpush.msra.mxu0 %v8047
        %8348 = vmatpush.msra.mxu0 %v8031
        %8349 = vmatpush.msra.mxu0 %v8015
        %8350 = vmatmul.f32.gmra.mxu0 %v8052
        %v8351 = vpop.f32.mrf.mxu0
        %v8352 = vadd.f32 0.0, %v8351
        %8353 = vdwg.mxu0
        %8354 = vmatpush.msra.mxu0 0.0
        %8355 = vmatpush.msra.mxu0 0.0
        %8356 = vmatpush.msra.mxu0 0.0
        %8357 = vmatpush.msra.mxu0 0.0
        %8358 = vmatpush.msra.mxu0 0.0
        %8359 = vmatpush.msra.mxu0 0.0
        %8360 = vmatpush.msra.mxu0 0.0
        %8361 = vmatpush.msra.mxu0 0.0
        %8362 = vmatpush.msra.mxu0 0.0
        %8363 = vmatpush.msra.mxu0 0.0
        %8364 = vmatpush.msra.mxu0 0.0
        %8365 = vmatpush.msra.mxu0 0.0
        %8366 = vmatpush.msra.mxu0 0.0
        %8367 = vmatpush.msra.mxu0 %v8048
        %8368 = vmatpush.msra.mxu0 %v8032
        %8369 = vmatpush.msra.mxu0 %v8016
        %8370 = vmatmul.f32.gmra.mxu0 %v8052
        %v8371 = vpop.f32.mrf.mxu0
        %v8372 = vadd.f32 0.0, %v8371
        %8373 = vdwg.mxu0
        %v8390 = vrot.slane %v8092, 4
        %v8391 = vrot.slane %v8132, 4
        %v8392 = vrot.slane %v8172, 4
        %v8393 = vrot.slane %v8212, 4
        %v8394 = vrot.slane %v8252, 4
        %v8395 = vrot.slane %v8292, 4
        %v8396 = vrot.slane %v8332, 4
        %v8397 = vrot.slane %v8372, 4
        %vm8398 = vcmask 1043456
        %v8399 = vsel %vm8398, %v8072, %v8390
        %v8400 = vsel %vm8398, %v8112, %v8391
        %v8401 = vsel %vm8398, %v8152, %v8392
        %v8402 = vsel %vm8398, %v8192, %v8393
        %v8403 = vsel %vm8398, %v8232, %v8394
        %v8404 = vsel %vm8398, %v8272, %v8395
        %v8405 = vsel %vm8398, %v8312, %v8396
        %v8406 = vsel %vm8398, %v8352, %v8397
        %8415 = vst [vmem:[%s164] sm:$0xff] %v8399
        %8416 = vst [vmem:[%s164 + $0x8] sm:$0xff] %v8400
        %8417 = vst [vmem:[%s164 + $0x10] sm:$0xff] %v8401
        %8418 = vst [vmem:[%s164 + $0x18] sm:$0xff] %v8402
        %8419 = vst [vmem:[%s164 + $0x20] sm:$0xff] %v8403
        %8420 = vst [vmem:[%s164 + $0x28] sm:$0xff] %v8404
        %8421 = vst [vmem:[%s164 + $0x30] sm:$0xff] %v8405
        %8422 = vst [vmem:[%s164 + $0x38] sm:$0xff] %v8406
        %s8423 = sand.u32 %s93, 1
        %s8424 = scalar_lea.sflag [#allocation3], %s8423
        %s8425 = sand.u32 %s93, 1
        %s8426 = smul.addr %s8425, 64
        %s8427 = scalar_lea.vmem [#allocation2], %s8426
        // Predicated region
        $region33: #{tpu_custom_call.1} parent=31 // pred_check
          %p8428 = pneg %p103
        $region34: #{tpu_custom_call.1} parent=31 // pred_check_branch
          %8430 = sbr.rel (%p8428) target = $region36
        $region35: #{tpu_custom_call.1} parent=31 // pred_region
          %s8431 = smul.u32 16, %s17
          %8433 = vsyncadd %s8424, 0
          %s8434 = smul.addr %s8431, 4
          %s8435 = scalar_lea.hbm %s3, %s8434
          %s8437 = sshll.u32 %s8427, 4
          %s8438 = int_to_ptr.vmem [resolvable:$true] %s8437
          %s8439 = sshll.u32 %s8435, 4
          %s8440 = int_to_ptr.hbm [resolvable:$true] %s8439
          %8442 = dma.vmem_to_hbm [thread:$0]  %s8438, 1024, %s8440, %s8424
        $region36: #{tpu_custom_call.1} parent=31 // pred_fallthru
          _
      $region32: #{tpu_custom_call.1} parent=5 // pred_fallthru
        _
      %p8443 = scmp.le.s32.totalorder 2, %s12
      // Predicated region
      $region37: #{tpu_custom_call.1} parent=5 // pred_check
        %p8444 = pneg %p8443
      $region38: #{tpu_custom_call.1} parent=5 // pred_check_branch
        %8446 = sbr.rel (%p8444) target = $region40
      $region39: #{tpu_custom_call.1} parent=5 // pred_region
        %s8447 = ssub.s32 %s12, 2
        // Predicated region
        $region41: #{tpu_custom_call.1} parent=39 // pred_check
          %p8448 = pneg %p109
        $region42: #{tpu_custom_call.1} parent=39 // pred_check_branch
          %8450 = sbr.rel (%p8448) target = $region44
        $region43: #{tpu_custom_call.1} parent=39 // pred_region
          %s8451 = sand.u32 %s94, 1
          %s8452 = scalar_lea.sflag [#allocation3], %s8451
          %s8453 = sand.u32 %s94, 1
          %s8454 = smul.addr %s8453, 64
          %s8455 = scalar_lea.vmem [#allocation2], %s8454
          %8457 = dma.done %s8452, 1024
        $region44: #{tpu_custom_call.1} parent=39 // pred_fallthru
          _
      $region40: #{tpu_custom_call.1} parent=5 // pred_fallthru
        _
    $region6: #{tpu_custom_call.1} parent=1 // loop_footer
      %s16 = sadd.s32 1, %s12
    $region7: #{tpu_custom_call.1} parent=1 // loop_footer_branch
      %11 = sbr.rel target = $region3
    $region8: #{tpu_custom_call.1} parent=1 // loop_exit
      _
    %8458 = vsyncpa [#allocation3], 1
    %s8459 = scalar_lea.sflag [#allocation3], 1
    %8460 = vsyncpa %s8459, 1

</llo_original>
